<compile_context>
chip_gen: v5e
topology: v5e:2x2
jax: 0.10.0
libtpu: 0.0.40
codegen_flags: <defaults>
</compile_context>

<pallas_src>
import math
from functools import partial

import jax
import jax.numpy as jnp
import numpy as np
from jax.experimental import pallas as pl
from jax.experimental.pallas import tpu as pltpu

# MXU operand dtype: weights are streamed from HBM in this dtype and activations are cast to it
# right before each matmul; accumulation, residuals, LayerNorm and softmax stay f32.
MXU_DTYPE = jnp.bfloat16

PER_LAYER_KEYS = (
    "sa_qc_w", "sa_qc_b", "sa_qp_w", "sa_qp_b", "sa_kc_w", "sa_kc_b",
    "sa_kp_w", "sa_kp_b", "sa_v_w", "sa_v_b", "sa_o_w", "sa_o_b",
    "norm1_w", "norm1_b",
    "ca_qc_w", "ca_qc_b", "ca_kc_w", "ca_kc_b",
    "ca_kp_w", "ca_kp_b", "ca_v_w", "ca_v_b", "ca_qs_w", "ca_qs_b",
    "ca_o_w", "ca_o_b", "norm2_w", "norm2_b",
    "lin1_w", "lin1_b", "lin2_w", "lin2_b", "norm3_w", "norm3_b",
)
SHARED_KEYS = ("qs1_w", "qs1_b", "qs2_w", "qs2_b")
# matmul weight matrices streamed as bf16; biases / LayerNorm params stay f32
MATMUL_W = {
    "sa_qc_w", "sa_qp_w", "sa_kc_w", "sa_kp_w", "sa_v_w", "sa_o_w",
    "ca_qc_w", "ca_kc_w", "ca_kp_w", "ca_v_w", "ca_qs_w", "ca_o_w",
    "lin1_w", "lin2_w", "qs1_w", "qs2_w",
}


# ------------------------------ shared math helpers ------------------------------ #

def _layer_norm(x, w, b, eps=1e-5):
    mu = jnp.mean(x, axis=-1, keepdims=True)
    var = jnp.mean(jnp.square(x - mu), axis=-1, keepdims=True)
    return (x - mu) * jax.lax.rsqrt(var + eps) * w + b


def _mlp2(x, w1, b1, w2, b2):
    return jnp.maximum(x @ w1 + b1, 0.0) @ w2 + b2


def gen_sineembed_for_3d_position(pos_tensor):
    """pos_tensor: (NQ, B, 3) in [0,1] -> (NQ, B, 256) sine embedding (matches torch reference)."""
    scale = 2 * math.pi
    sum_dim = 256
    dim = 86
    dim_t = jnp.arange(dim, dtype=jnp.float32)
    dim_t = 10000.0 ** (3.0 * jnp.floor(dim_t / 3.0) / dim)

    def one(coord):  # (NQ, B)
        p = coord[:, :, None] * scale / dim_t                       # (NQ, B, 86)
        emb = jnp.stack((jnp.sin(p[:, :, 0::2]), jnp.cos(p[:, :, 1::2])), axis=3)
        return emb.reshape(p.shape[0], p.shape[1], -1)

    pos = jnp.concatenate(
        [one(pos_tensor[:, :, 0]), one(pos_tensor[:, :, 1]), one(pos_tensor[:, :, 2])], axis=2)
    return pos[..., :sum_dim]


# --------------------------------- Pallas kernel ---------------------------------- #

def decoder_stack_kernel(tgt_ref, mem_ref, qpos_ref, mpos_ref, qsine_ref, qpca_ref, mbias_ref,
                         *rest, nhead):
    n_lw, n_sh = len(PER_LAYER_KEYS), len(SHARED_KEYS)
    w = dict(zip(PER_LAYER_KEYS, rest[:n_lw]))
    shared = dict(zip(SHARED_KEYS, rest[n_lw:n_lw + n_sh]))
    o_ref = rest[n_lw + n_sh]                 # (TB, NQ, D) layer-resident decoder state (output)

    l = pl.program_id(1)                      # layer index (innermost, "arbitrary")

    TB, NQ, D = o_ref.shape
    S = mem_ref.shape[1]
    hd = D // nhead
    G = nhead * TB                            # attention group = (head-major, batch-minor)

    @pl.when(l == 0)
    def _():
        o_ref[...] = tgt_ref[...].astype(o_ref.dtype)

    # flattened (TB*N, D) operands so the projection matmuls fill the MXU M dimension
    x0 = o_ref[...].reshape(TB * NQ, D).astype(jnp.float32)
    mem = mem_ref[...].reshape(TB * S, D).astype(jnp.float32)
    qpos = qpos_ref[...].reshape(TB * NQ, D).astype(jnp.float32)
    mpos = mpos_ref[...].reshape(TB * S, D).astype(jnp.float32)
    qsine = qsine_ref[...].reshape(TB * NQ, D).astype(jnp.float32)
    qpca = qpca_ref[...].reshape(TB * NQ, D).astype(jnp.float32)   # precomputed ca_qpos_proj(qpos)
    mbias = mbias_ref[...].astype(jnp.float32)                     # (TB, 1, S) additive bias

    is_first = (l == 0).astype(jnp.float32)

    def lin(a, wk, bk):                        # per-layer Linear: refs (1, in, out) / (1, 1, out)
        return jnp.dot(a.astype(MXU_DTYPE), w[wk][0],
                       preferred_element_type=jnp.float32) + w[bk][0]

    def lin_shared(a, wk, bk):                 # shared Linear: refs (in, out) / (1, out)
        return jnp.dot(a.astype(MXU_DTYPE), shared[wk][...],
                       preferred_element_type=jnp.float32) + shared[bk][...]

    def heads_g(t, n):                         # (TB*n, D) -> (nhead*TB, n, hd), head-major groups
        parts = [t[:, h * hd:(h + 1) * hd] for h in range(nhead)]
        return jnp.stack(parts, axis=0).reshape(G, n, hd)          # pure leading-dim reshape

    def attention(q_g, k_g, v_g, bias_g, scale, ow_key, ob_key, n_q):
        # q_g/k_g: (G, n_q, dq) / (G, n_k, dq); v_g: (G, n_k, hd); bias_g: (G, 1, n_k) or None
        s = jnp.einsum('gqd,gkd->gqk', q_g.astype(MXU_DTYPE), k_g.astype(MXU_DTYPE),
                       preferred_element_type=jnp.float32) * scale
        if bias_g is not None:
            s = s + bias_g
        s = s - jnp.max(s, axis=-1, keepdims=True)
        p = jnp.exp(s)
        denom = jnp.sum(p, axis=-1, keepdims=True)                 # (G, n_q, 1)
        o = jnp.einsum('gqk,gkd->gqd', p.astype(MXU_DTYPE), v_g.astype(MXU_DTYPE),
                       preferred_element_type=jnp.float32)
        o = o * pl.reciprocal(denom, approx=True)                  # deferred softmax norm (EUP)
        # merge heads into lanes and project with ONE full-width K=D contraction
        o_h = o.reshape(nhead, TB * n_q, hd)
        o_m = jnp.concatenate([o_h[h] for h in range(nhead)], axis=-1)   # (TB*n_q, D)
        return jnp.dot(o_m.astype(MXU_DTYPE), w[ow_key][0],
                       preferred_element_type=jnp.float32) + w[ob_key][0]

    # ---------------- self attention ---------------- #
    q_sa = lin(x0, "sa_qc_w", "sa_qc_b") + lin(qpos, "sa_qp_w", "sa_qp_b")
    k_sa = lin(x0, "sa_kc_w", "sa_kc_b") + lin(qpos, "sa_kp_w", "sa_kp_b")
    v_sa = lin(x0, "sa_v_w", "sa_v_b")
    sa_out = attention(heads_g(q_sa, NQ), heads_g(k_sa, NQ), heads_g(v_sa, NQ),
                       None, 1.0 / math.sqrt(hd), "sa_o_w", "sa_o_b", NQ)
    x1 = _layer_norm(x0 + sa_out, w["norm1_w"][0], w["norm1_b"][0])

    # --- query_scale MLP on the layer *input* (pos_transformation; identity at layer 0) --- #
    qs_mlp = lin_shared(jnp.maximum(lin_shared(x0, "qs1_w", "qs1_b"), 0.0), "qs2_w", "qs2_b")
    pos_tf = is_first + (1.0 - is_first) * qs_mlp
    qse_p = lin(qsine * pos_tf, "ca_qs_w", "ca_qs_b")              # ca_qpos_sine_proj

    # ---------------- cross attention ---------------- #
    q_c = lin(x1, "ca_qc_w", "ca_qc_b") + is_first * qpca          # ca_qpos_proj only at layer 0
    k_c = lin(mem, "ca_kc_w", "ca_kc_b")
    v_c = lin(mem, "ca_v_w", "ca_v_b")
    k_p = lin(mpos, "ca_kp_w", "ca_kp_b")
    k_c = k_c + is_first * k_p
    # per-head [content ; positional] concatenation -> single 2*hd = 64-deep score contraction
    q2_g = jnp.concatenate([heads_g(q_c, NQ), heads_g(qse_p, NQ)], axis=-1)   # (G, NQ, 2hd)
    k2_g = jnp.concatenate([heads_g(k_c, S), heads_g(k_p, S)], axis=-1)       # (G, S, 2hd)
    bias_g = jnp.tile(mbias, (nhead, 1, 1))                                   # (G, 1, S)
    ca_out = attention(q2_g, k2_g, heads_g(v_c, S),
                       bias_g, 1.0 / math.sqrt(2 * hd), "ca_o_w", "ca_o_b", NQ)
    x2 = _layer_norm(x1 + ca_out, w["norm2_w"][0], w["norm2_b"][0])

    # ---------------- FFN ---------------- #
    ff = lin(jnp.maximum(lin(x2, "lin1_w", "lin1_b"), 0.0), "lin2_w", "lin2_b")
    x3 = _layer_norm(x2 + ff, w["norm3_w"][0], w["norm3_b"][0])

    o_ref[...] = x3.reshape(TB, NQ, D).astype(o_ref.dtype)


# ----------------------------------- wrapper -------------------------------------- #

def conditional_transformer_decoder(tgt, memory, params, *, nhead, pos, query_pos,
                                    memory_key_padding_mask=None, batch_tile=16):
    """tgt, query_pos: (NQ, B, D); memory, pos: (S, B, D); mask: (B, S) bool (True = pad).
    Returns (1, NQ, B, D) == output.unsqueeze(0) of the torch module (return_intermediate=False)."""
    NQ, B, D = tgt.shape
    S = memory.shape[0]
    L = params["sa_qc_w"].shape[0]
    assert D % nhead == 0
    assert D == 256, "gen_sineembed_for_3d_position hard-codes a 256-dim embedding (d_model=256)"

    # glue: reference points + 3-D sine embedding (tiny 3-wide tensors, not kernel-friendly)
    rp = _mlp2(query_pos, params["rp_w1"], params["rp_b1"], params["rp_w2"], params["rp_b2"])
    obj_center = jax.nn.sigmoid(rp)                                # (NQ, B, 3)
    qsine = gen_sineembed_for_3d_position(obj_center)              # (NQ, B, D)
    # layer-0-only ca_qpos_proj hoisted out of the kernel (weights never streamed per layer)
    qpca = query_pos @ params["ca_qp_w"][0] + params["ca_qp_b"][0] # (NQ, B, D)

    # batch tiling: TB batches per grid step, zero-padded to a multiple of TB
    TB = int(max(1, min(batch_tile, B)))
    Bp = ((B + TB - 1) // TB) * TB
    nb = Bp // TB

    def to_batch(a):                                               # (N, B, D) -> (Bp, N, D)
        a = jnp.transpose(a, (1, 0, 2)).astype(jnp.float32)
        if Bp != B:
            a = jnp.pad(a, ((0, Bp - B), (0, 0), (0, 0)))
        return a

    tgt_b, mem_b, qpos_b, mpos_b, qsine_b, qpca_b = map(
        to_batch, (tgt, memory, query_pos, pos, qsine, qpca))
    if memory_key_padding_mask is not None:
        mbias = jnp.where(memory_key_padding_mask, -1e9, 0.0).astype(jnp.float32)[:, None, :]
    else:
        mbias = jnp.zeros((B, 1, S), jnp.float32)
    if Bp != B:
        mbias = jnp.pad(mbias, ((0, Bp - B), (0, 0), (0, 0)))

    # weights: matmul matrices streamed as bf16, biases / LayerNorm params f32
    kp = {k: (params[k].astype(MXU_DTYPE) if k in MATMUL_W else params[k].astype(jnp.float32))
          for k in PER_LAYER_KEYS + SHARED_KEYS}

    def batch_block(a):                                            # data: DMA only on batch change
        return pl.BlockSpec((TB,) + a.shape[1:], lambda b, l: (b, 0, 0))

    def layer_block(a):                                            # weights: streamed per layer
        return pl.BlockSpec((1,) + a.shape[1:], lambda b, l: (l, 0, 0))

    def shared_block(a):                                           # shared: DMA'd once
        return pl.BlockSpec(a.shape, lambda b, l: (0, 0))

    data_inputs = [tgt_b, mem_b, qpos_b, mpos_b, qsine_b, qpca_b, mbias]
    layer_inputs = [kp[k] for k in PER_LAYER_KEYS]
    shared_inputs = [kp[k] for k in SHARED_KEYS]

    in_specs = ([batch_block(a) for a in data_inputs]
                + [layer_block(a) for a in layer_inputs]
                + [shared_block(a) for a in shared_inputs])
    out_spec = pl.BlockSpec((TB, NQ, D), lambda b, l: (b, 0, 0))

    # scoped-VMEM budget: 2x (double-buffered) blocks + resident output + margin, capped v7x-safe
    block_bytes = sum(TB * int(np.prod(a.shape[1:])) * a.dtype.itemsize for a in data_inputs)
    block_bytes += sum(int(np.prod(a.shape[1:])) * a.dtype.itemsize for a in layer_inputs)
    block_bytes += sum(a.size * a.dtype.itemsize for a in shared_inputs)
    out_bytes = TB * NQ * D * 4
    vmem_limit = int(min(max(2 * (block_bytes + out_bytes) + (8 << 20), 32 << 20), 100 << 20))

    out_b = pl.pallas_call(
        partial(decoder_stack_kernel, nhead=nhead),
        out_shape=jax.ShapeDtypeStruct((Bp, NQ, D), jnp.float32),
        grid=(nb, L),
        in_specs=in_specs,
        out_specs=out_spec,
        compiler_params=pltpu.CompilerParams(
            dimension_semantics=("parallel", "arbitrary"),
            vmem_limit_bytes=vmem_limit),
    )(*(data_inputs + layer_inputs + shared_inputs))

    x = out_b[:B]
    if "norm_w" in params:                                         # final LayerNorm (self.norm)
        x = _layer_norm(x, params["norm_w"], params["norm_b"])
    return jnp.transpose(x, (1, 0, 2))[None]                       # (1, NQ, B, D)


# ------------------------------ deterministic params ------------------------------- #

def init_params(key, L, D, F, nhead):
    keys = iter(jax.random.split(key, 64))

    def u(shape, fan_in):
        lim = 1.0 / math.sqrt(fan_in)
        return jax.random.uniform(next(keys), shape, jnp.float32, -lim, lim)

    p = {}
    for name in ("sa_qc", "sa_qp", "sa_kc", "sa_kp", "sa_v", "sa_o",
                 "ca_qc", "ca_qp", "ca_kc", "ca_kp", "ca_v", "ca_qs", "ca_o"):
        p[name + "_w"] = u((L, D, D), D)
        p[name + "_b"] = u((L, 1, D), D)
    p["lin1_w"] = u((L, D, F), D);  p["lin1_b"] = u((L, 1, F), D)
    p["lin2_w"] = u((L, F, D), F);  p["lin2_b"] = u((L, 1, D), F)
    for n in ("norm1", "norm2", "norm3"):
        p[n + "_w"] = jnp.ones((L, 1, D), jnp.float32)
        p[n + "_b"] = jnp.zeros((L, 1, D), jnp.float32)
    # shared query_scale MLP (runs inside the kernel)
    p["qs1_w"] = u((D, D), D); p["qs1_b"] = u((1, D), D)
    p["qs2_w"] = u((D, D), D); p["qs2_b"] = u((1, D), D)
    # ref_point_head MLP (glue)
    p["rp_w1"] = u((D, D), D); p["rp_b1"] = u((1, D), D)
    p["rp_w2"] = u((D, 3), D); p["rp_b2"] = u((1, 3), D)
    # final LayerNorm (self.norm)
    p["norm_w"] = jnp.ones((D,), jnp.float32)
    p["norm_b"] = jnp.zeros((D,), jnp.float32)
    return p


# ------------------------------- pure-JAX reference -------------------------------- #

def reference_decoder(tgt, memory, params, nhead, pos, query_pos, memory_key_padding_mask=None):
    NQ, B, D = tgt.shape
    S = memory.shape[0]
    L = params["sa_qc_w"].shape[0]
    hd = D // nhead

    rp = _mlp2(query_pos, params["rp_w1"], params["rp_b1"], params["rp_w2"], params["rp_b2"])
    obj_center = jax.nn.sigmoid(rp)
    qs = jnp.transpose(gen_sineembed_for_3d_position(obj_center), (1, 0, 2))   # (B, NQ, D)

    bias = (jnp.where(memory_key_padding_mask, -1e9, 0.0)
            if memory_key_padding_mask is not None else jnp.zeros((B, S)))     # (B, S)

    x = jnp.transpose(tgt, (1, 0, 2)).astype(jnp.float32)
    mem = jnp.transpose(memory, (1, 0, 2)).astype(jnp.float32)
    qp = jnp.transpose(query_pos, (1, 0, 2)).astype(jnp.float32)
    mp = jnp.transpose(pos, (1, 0, 2)).astype(jnp.float32)

    def heads(t):  # (B, N, Dd) -> (B, h, N, hd)
        Bb, N, Dd = t.shape
        return t.reshape(Bb, N, nhead, Dd // nhead).transpose(0, 2, 1, 3)

    for l in range(L):
        p = {k: params[k][l] for k in PER_LAYER_KEYS}
        pos_tf = 1.0 if l == 0 else _mlp2(x, params["qs1_w"], params["qs1_b"],
                                          params["qs2_w"], params["qs2_b"])
        qse = qs * pos_tf
        # self attention
        q = x @ p["sa_qc_w"] + p["sa_qc_b"] + qp @ p["sa_qp_w"] + p["sa_qp_b"]
        k = x @ p["sa_kc_w"] + p["sa_kc_b"] + qp @ p["sa_kp_w"] + p["sa_kp_b"]
        v = x @ p["sa_v_w"] + p["sa_v_b"]
        s = jnp.einsum('bhqd,bhkd->bhqk', heads(q), heads(k)) / math.sqrt(hd)
        a = jax.nn.softmax(s, axis=-1)
        o = jnp.einsum('bhqk,bhkd->bhqd', a, heads(v)).transpose(0, 2, 1, 3).reshape(B, NQ, D)
        x = _layer_norm(x + o @ p["sa_o_w"] + p["sa_o_b"], p["norm1_w"], p["norm1_b"])
        # cross attention (concatenated-head content/positional queries & keys)
        qc = x @ p["ca_qc_w"] + p["ca_qc_b"]
        kc = mem @ p["ca_kc_w"] + p["ca_kc_b"]
        vc = mem @ p["ca_v_w"] + p["ca_v_b"]
        kpos = mp @ p["ca_kp_w"] + p["ca_kp_b"]
        qse_p = qse @ p["ca_qs_w"] + p["ca_qs_b"]
        if l == 0:
            qc = qc + (qp @ params["ca_qp_w"][0] + params["ca_qp_b"][0])
            kc = kc + kpos
        q2 = jnp.concatenate([heads(qc), heads(qse_p)], axis=-1)
        k2 = jnp.concatenate([heads(kc), heads(kpos)], axis=-1)
        s = jnp.einsum('bhqd,bhkd->bhqk', q2, k2) / math.sqrt(2 * hd) + bias[:, None, None, :]
        a = jax.nn.softmax(s, axis=-1)
        o = jnp.einsum('bhqk,bhkd->bhqd', a, heads(vc)).transpose(0, 2, 1, 3).reshape(B, NQ, D)
        x = _layer_norm(x + o @ p["ca_o_w"] + p["ca_o_b"], p["norm2_w"], p["norm2_b"])
        # FFN
        ff = jnp.maximum(x @ p["lin1_w"] + p["lin1_b"], 0.0) @ p["lin2_w"] + p["lin2_b"]
        x = _layer_norm(x + ff, p["norm3_w"], p["norm3_b"])

    x = _layer_norm(x, params["norm_w"], params["norm_b"])
    return jnp.transpose(x, (1, 0, 2))[None]


# -------------------------------------- main --------------------------------------- #

if __name__ == "__main__":
    D, NHEAD, FF, NUM_LAYERS = 256, 8, 128, 2      # d_model fixed at 256 by the sine embedding
    NQ, S, B = 8, 16, 2                            # num queries, memory tokens, batch

    root = jax.random.PRNGKey(0)
    k_tgt, k_mem, k_qp, k_mp, k_par = jax.random.split(root, 5)
    tgt = jax.random.normal(k_tgt, (NQ, B, D), jnp.float32)
    memory = jax.random.normal(k_mem, (S, B, D), jnp.float32)
    query_pos = jax.random.normal(k_qp, (NQ, B, D), jnp.float32)
    pos = jax.random.normal(k_mp, (S, B, D), jnp.float32)
    mem_pad = jnp.zeros((B, S), jnp.bool_).at[1, S - 3:].set(True)   # last 3 tokens of b=1 padded

    params = init_params(k_par, NUM_LAYERS, D, FF, NHEAD)

    out = conditional_transformer_decoder(
        tgt, memory, params, nhead=NHEAD, pos=pos, query_pos=query_pos,
        memory_key_padding_mask=mem_pad)
    out = jax.block_until_ready(out)

    ref = reference_decoder(tgt, memory, params, NHEAD, pos, query_pos, mem_pad)
    # tolerance covers bf16 weight/activation streaming (MXU path) + approx-reciprocal softmax
    np.testing.assert_allclose(np.asarray(out), np.asarray(ref), rtol=3e-2, atol=3e-2)
    assert out.shape == (1, NQ, B, D)
    assert bool(jnp.all(jnp.isfinite(out)))
    print("KERNEL_OK")
</pallas_src>

<mosaic_0001>
module attributes {stable_mosaic.version = 11 : i64} {
  func.func @decoder_stack_kernel(%arg0: i32, %arg1: i32, %arg2: memref<2x8x256xf32, #tpu.memory_space<vmem>>, %arg3: memref<2x16x256xf32, #tpu.memory_space<vmem>>, %arg4: memref<2x8x256xf32, #tpu.memory_space<vmem>>, %arg5: memref<2x16x256xf32, #tpu.memory_space<vmem>>, %arg6: memref<2x8x256xf32, #tpu.memory_space<vmem>>, %arg7: memref<2x8x256xf32, #tpu.memory_space<vmem>>, %arg8: memref<2x1x16xf32, #tpu.memory_space<vmem>>, %arg9: memref<1x256x256xbf16, #tpu.memory_space<vmem>>, %arg10: memref<1x1x256xf32, #tpu.memory_space<vmem>>, %arg11: memref<1x256x256xbf16, #tpu.memory_space<vmem>>, %arg12: memref<1x1x256xf32, #tpu.memory_space<vmem>>, %arg13: memref<1x256x256xbf16, #tpu.memory_space<vmem>>, %arg14: memref<1x1x256xf32, #tpu.memory_space<vmem>>, %arg15: memref<1x256x256xbf16, #tpu.memory_space<vmem>>, %arg16: memref<1x1x256xf32, #tpu.memory_space<vmem>>, %arg17: memref<1x256x256xbf16, #tpu.memory_space<vmem>>, %arg18: memref<1x1x256xf32, #tpu.memory_space<vmem>>, %arg19: memref<1x256x256xbf16, #tpu.memory_space<vmem>>, %arg20: memref<1x1x256xf32, #tpu.memory_space<vmem>>, %arg21: memref<1x1x256xf32, #tpu.memory_space<vmem>>, %arg22: memref<1x1x256xf32, #tpu.memory_space<vmem>>, %arg23: memref<1x256x256xbf16, #tpu.memory_space<vmem>>, %arg24: memref<1x1x256xf32, #tpu.memory_space<vmem>>, %arg25: memref<1x256x256xbf16, #tpu.memory_space<vmem>>, %arg26: memref<1x1x256xf32, #tpu.memory_space<vmem>>, %arg27: memref<1x256x256xbf16, #tpu.memory_space<vmem>>, %arg28: memref<1x1x256xf32, #tpu.memory_space<vmem>>, %arg29: memref<1x256x256xbf16, #tpu.memory_space<vmem>>, %arg30: memref<1x1x256xf32, #tpu.memory_space<vmem>>, %arg31: memref<1x256x256xbf16, #tpu.memory_space<vmem>>, %arg32: memref<1x1x256xf32, #tpu.memory_space<vmem>>, %arg33: memref<1x256x256xbf16, #tpu.memory_space<vmem>>, %arg34: memref<1x1x256xf32, #tpu.memory_space<vmem>>, %arg35: memref<1x1x256xf32, #tpu.memory_space<vmem>>, %arg36: memref<1x1x256xf32, #tpu.memory_space<vmem>>, %arg37: memref<1x256x128xbf16, #tpu.memory_space<vmem>>, %arg38: memref<1x1x128xf32, #tpu.memory_space<vmem>>, %arg39: memref<1x128x256xbf16, #tpu.memory_space<vmem>>, %arg40: memref<1x1x256xf32, #tpu.memory_space<vmem>>, %arg41: memref<1x1x256xf32, #tpu.memory_space<vmem>>, %arg42: memref<1x1x256xf32, #tpu.memory_space<vmem>>, %arg43: memref<256x256xbf16, #tpu.memory_space<vmem>>, %arg44: memref<1x256xf32, #tpu.memory_space<vmem>>, %arg45: memref<256x256xbf16, #tpu.memory_space<vmem>>, %arg46: memref<1x256xf32, #tpu.memory_space<vmem>>, %arg47: memref<2x8x256xf32, #tpu.memory_space<vmem>>) attributes {dimension_semantics = [#tpu.dimension_semantics<parallel>, #tpu.dimension_semantics<arbitrary>], iteration_bounds = array<i64: 1, 2>, scalar_prefetch = 0 : i64, scratch_operands = 0 : i64, tpu.core_type = #tpu.core_type<tc>, window_params = [{transform_indices = @transform_0, window_bounds = array<i64: 2, 8, 256>}, {transform_indices = @transform_1, window_bounds = array<i64: 2, 16, 256>}, {transform_indices = @transform_2, window_bounds = array<i64: 2, 8, 256>}, {transform_indices = @transform_3, window_bounds = array<i64: 2, 16, 256>}, {transform_indices = @transform_4, window_bounds = array<i64: 2, 8, 256>}, {transform_indices = @transform_5, window_bounds = array<i64: 2, 8, 256>}, {transform_indices = @transform_6, window_bounds = array<i64: 2, 1, 16>}, {transform_indices = @transform_7, window_bounds = array<i64: 1, 256, 256>}, {transform_indices = @transform_8, window_bounds = array<i64: 1, 1, 256>}, {transform_indices = @transform_9, window_bounds = array<i64: 1, 256, 256>}, {transform_indices = @transform_10, window_bounds = array<i64: 1, 1, 256>}, {transform_indices = @transform_11, window_bounds = array<i64: 1, 256, 256>}, {transform_indices = @transform_12, window_bounds = array<i64: 1, 1, 256>}, {transform_indices = @transform_13, window_bounds = array<i64: 1, 256, 256>}, {transform_indices = @transform_14, window_bounds = array<i64: 1, 1, 256>}, {transform_indices = @transform_15, window_bounds = array<i64: 1, 256, 256>}, {transform_indices = @transform_16, window_bounds = array<i64: 1, 1, 256>}, {transform_indices = @transform_17, window_bounds = array<i64: 1, 256, 256>}, {transform_indices = @transform_18, window_bounds = array<i64: 1, 1, 256>}, {transform_indices = @transform_19, window_bounds = array<i64: 1, 1, 256>}, {transform_indices = @transform_20, window_bounds = array<i64: 1, 1, 256>}, {transform_indices = @transform_21, window_bounds = array<i64: 1, 256, 256>}, {transform_indices = @transform_22, window_bounds = array<i64: 1, 1, 256>}, {transform_indices = @transform_23, window_bounds = array<i64: 1, 256, 256>}, {transform_indices = @transform_24, window_bounds = array<i64: 1, 1, 256>}, {transform_indices = @transform_25, window_bounds = array<i64: 1, 256, 256>}, {transform_indices = @transform_26, window_bounds = array<i64: 1, 1, 256>}, {transform_indices = @transform_27, window_bounds = array<i64: 1, 256, 256>}, {transform_indices = @transform_28, window_bounds = array<i64: 1, 1, 256>}, {transform_indices = @transform_29, window_bounds = array<i64: 1, 256, 256>}, {transform_indices = @transform_30, window_bounds = array<i64: 1, 1, 256>}, {transform_indices = @transform_31, window_bounds = array<i64: 1, 256, 256>}, {transform_indices = @transform_32, window_bounds = array<i64: 1, 1, 256>}, {transform_indices = @transform_33, window_bounds = array<i64: 1, 1, 256>}, {transform_indices = @transform_34, window_bounds = array<i64: 1, 1, 256>}, {transform_indices = @transform_35, window_bounds = array<i64: 1, 256, 128>}, {transform_indices = @transform_36, window_bounds = array<i64: 1, 1, 128>}, {transform_indices = @transform_37, window_bounds = array<i64: 1, 128, 256>}, {transform_indices = @transform_38, window_bounds = array<i64: 1, 1, 256>}, {transform_indices = @transform_39, window_bounds = array<i64: 1, 1, 256>}, {transform_indices = @transform_40, window_bounds = array<i64: 1, 1, 256>}, {pipeline_mode = #tpu.pipeline_mode<synchronous>, transform_indices = @transform_41, window_bounds = array<i64: 256, 256>}, {pipeline_mode = #tpu.pipeline_mode<synchronous>, transform_indices = @transform_42, window_bounds = array<i64: 1, 256>}, {pipeline_mode = #tpu.pipeline_mode<synchronous>, transform_indices = @transform_43, window_bounds = array<i64: 256, 256>}, {pipeline_mode = #tpu.pipeline_mode<synchronous>, transform_indices = @transform_44, window_bounds = array<i64: 1, 256>}, {transform_indices = @transform_45, window_bounds = array<i64: 2, 8, 256>}]} {
    %c0_i32 = arith.constant 0 : i32
    %0 = arith.cmpi eq, %arg1, %c0_i32 : i32
    %1 = arith.extui %0 : i1 to i32
    %c0_i32_0 = arith.constant 0 : i32
    %2 = arith.cmpi ne, %1, %c0_i32_0 : i32
    scf.if %2 {
      %c0_178 = arith.constant 0 : index
      %c0_179 = arith.constant 0 : index
      %c0_180 = arith.constant 0 : index
      %465 = vector.load %arg2[%c0_178, %c0_179, %c0_180] : memref<2x8x256xf32, #tpu.memory_space<vmem>>, vector<2x8x256xf32>
      %c0_181 = arith.constant 0 : index
      %c0_182 = arith.constant 0 : index
      %c0_183 = arith.constant 0 : index
      %466 = vector.load %arg47[%c0_181, %c0_182, %c0_183] : memref<2x8x256xf32, #tpu.memory_space<vmem>>, vector<2x8x256xf32>
      tpu.vector_store %arg47[%c0_181, %c0_182, %c0_183], %465 {strides = array<i32>} : memref<2x8x256xf32, #tpu.memory_space<vmem>>, vector<2x8x256xf32>,
    } else {
    }
    %c0 = arith.constant 0 : index
    %c0_1 = arith.constant 0 : index
    %c0_2 = arith.constant 0 : index
    %3 = vector.load %arg47[%c0, %c0_1, %c0_2] : memref<2x8x256xf32, #tpu.memory_space<vmem>>, vector<2x8x256xf32>
    %4 = vector.shape_cast %3 : vector<2x8x256xf32> to vector<16x256xf32>
    %c0_3 = arith.constant 0 : index
    %c0_4 = arith.constant 0 : index
    %c0_5 = arith.constant 0 : index
    %5 = vector.load %arg3[%c0_3, %c0_4, %c0_5] : memref<2x16x256xf32, #tpu.memory_space<vmem>>, vector<2x16x256xf32>
    %6 = vector.shape_cast %5 : vector<2x16x256xf32> to vector<32x256xf32>
    %c0_6 = arith.constant 0 : index
    %c0_7 = arith.constant 0 : index
    %c0_8 = arith.constant 0 : index
    %7 = vector.load %arg4[%c0_6, %c0_7, %c0_8] : memref<2x8x256xf32, #tpu.memory_space<vmem>>, vector<2x8x256xf32>
    %8 = vector.shape_cast %7 : vector<2x8x256xf32> to vector<16x256xf32>
    %c0_9 = arith.constant 0 : index
    %c0_10 = arith.constant 0 : index
    %c0_11 = arith.constant 0 : index
    %9 = vector.load %arg5[%c0_9, %c0_10, %c0_11] : memref<2x16x256xf32, #tpu.memory_space<vmem>>, vector<2x16x256xf32>
    %10 = vector.shape_cast %9 : vector<2x16x256xf32> to vector<32x256xf32>
    %c0_12 = arith.constant 0 : index
    %c0_13 = arith.constant 0 : index
    %c0_14 = arith.constant 0 : index
    %11 = vector.load %arg6[%c0_12, %c0_13, %c0_14] : memref<2x8x256xf32, #tpu.memory_space<vmem>>, vector<2x8x256xf32>
    %12 = vector.shape_cast %11 : vector<2x8x256xf32> to vector<16x256xf32>
    %c0_15 = arith.constant 0 : index
    %c0_16 = arith.constant 0 : index
    %c0_17 = arith.constant 0 : index
    %13 = vector.load %arg7[%c0_15, %c0_16, %c0_17] : memref<2x8x256xf32, #tpu.memory_space<vmem>>, vector<2x8x256xf32>
    %14 = vector.shape_cast %13 : vector<2x8x256xf32> to vector<16x256xf32>
    %c0_18 = arith.constant 0 : index
    %c0_19 = arith.constant 0 : index
    %c0_20 = arith.constant 0 : index
    %15 = vector.load %arg8[%c0_18, %c0_19, %c0_20] : memref<2x1x16xf32, #tpu.memory_space<vmem>>, vector<2x1x16xf32>
    %c0_i32_21 = arith.constant 0 : i32
    %16 = arith.cmpi eq, %arg1, %c0_i32_21 : i32
    %17 = arith.extui %16 : i1 to i32
    %18 = arith.sitofp %17 : i32 to f32
    %19 = arith.truncf %4 : vector<16x256xf32> to vector<16x256xbf16>
    %c0_22 = arith.constant 0 : index
    %c0_23 = arith.constant 0 : index
    %c0_24 = arith.constant 0 : index
    %20 = vector.load %arg9[%c0_22, %c0_23, %c0_24] : memref<1x256x256xbf16, #tpu.memory_space<vmem>>, vector<1x256x256xbf16>
    %21 = vector.shape_cast %20 : vector<1x256x256xbf16> to vector<256x256xbf16>
    %cst = arith.constant dense<0.000000e+00> : vector<16x256xf32>
    %22 = tpu.matmul %19, %21, %cst {dimension_numbers = #tpu.dot_dimension_numbers<[1], [0], [0], [1], [0, 0, 1, 1], [], []>} : vector<16x256xbf16>, vector<256x256xbf16>, vector<16x256xf32> -> vector<16x256xf32>
    %c0_25 = arith.constant 0 : index
    %c0_26 = arith.constant 0 : index
    %c0_27 = arith.constant 0 : index
    %23 = vector.load %arg10[%c0_25, %c0_26, %c0_27] : memref<1x1x256xf32, #tpu.memory_space<vmem>>, vector<1x1x256xf32>
    %24 = vector.shape_cast %23 : vector<1x1x256xf32> to vector<1x256xf32>
    %25 = vector.broadcast %24 : vector<1x256xf32> to vector<16x256xf32>
    %26 = arith.addf %22, %25 : vector<16x256xf32>
    %27 = arith.truncf %8 : vector<16x256xf32> to vector<16x256xbf16>
    %c0_28 = arith.constant 0 : index
    %c0_29 = arith.constant 0 : index
    %c0_30 = arith.constant 0 : index
    %28 = vector.load %arg11[%c0_28, %c0_29, %c0_30] : memref<1x256x256xbf16, #tpu.memory_space<vmem>>, vector<1x256x256xbf16>
    %29 = vector.shape_cast %28 : vector<1x256x256xbf16> to vector<256x256xbf16>
    %cst_31 = arith.constant dense<0.000000e+00> : vector<16x256xf32>
    %30 = tpu.matmul %27, %29, %cst_31 {dimension_numbers = #tpu.dot_dimension_numbers<[1], [0], [0], [1], [0, 0, 1, 1], [], []>} : vector<16x256xbf16>, vector<256x256xbf16>, vector<16x256xf32> -> vector<16x256xf32>
    %c0_32 = arith.constant 0 : index
    %c0_33 = arith.constant 0 : index
    %c0_34 = arith.constant 0 : index
    %31 = vector.load %arg12[%c0_32, %c0_33, %c0_34] : memref<1x1x256xf32, #tpu.memory_space<vmem>>, vector<1x1x256xf32>
    %32 = vector.shape_cast %31 : vector<1x1x256xf32> to vector<1x256xf32>
    %33 = vector.broadcast %32 : vector<1x256xf32> to vector<16x256xf32>
    %34 = arith.addf %30, %33 : vector<16x256xf32>
    %35 = arith.addf %26, %34 : vector<16x256xf32>
    %36 = arith.truncf %4 : vector<16x256xf32> to vector<16x256xbf16>
    %c0_35 = arith.constant 0 : index
    %c0_36 = arith.constant 0 : index
    %c0_37 = arith.constant 0 : index
    %37 = vector.load %arg13[%c0_35, %c0_36, %c0_37] : memref<1x256x256xbf16, #tpu.memory_space<vmem>>, vector<1x256x256xbf16>
    %38 = vector.shape_cast %37 : vector<1x256x256xbf16> to vector<256x256xbf16>
    %cst_38 = arith.constant dense<0.000000e+00> : vector<16x256xf32>
    %39 = tpu.matmul %36, %38, %cst_38 {dimension_numbers = #tpu.dot_dimension_numbers<[1], [0], [0], [1], [0, 0, 1, 1], [], []>} : vector<16x256xbf16>, vector<256x256xbf16>, vector<16x256xf32> -> vector<16x256xf32>
    %c0_39 = arith.constant 0 : index
    %c0_40 = arith.constant 0 : index
    %c0_41 = arith.constant 0 : index
    %40 = vector.load %arg14[%c0_39, %c0_40, %c0_41] : memref<1x1x256xf32, #tpu.memory_space<vmem>>, vector<1x1x256xf32>
    %41 = vector.shape_cast %40 : vector<1x1x256xf32> to vector<1x256xf32>
    %42 = vector.broadcast %41 : vector<1x256xf32> to vector<16x256xf32>
    %43 = arith.addf %39, %42 : vector<16x256xf32>
    %44 = arith.truncf %8 : vector<16x256xf32> to vector<16x256xbf16>
    %c0_42 = arith.constant 0 : index
    %c0_43 = arith.constant 0 : index
    %c0_44 = arith.constant 0 : index
    %45 = vector.load %arg15[%c0_42, %c0_43, %c0_44] : memref<1x256x256xbf16, #tpu.memory_space<vmem>>, vector<1x256x256xbf16>
    %46 = vector.shape_cast %45 : vector<1x256x256xbf16> to vector<256x256xbf16>
    %cst_45 = arith.constant dense<0.000000e+00> : vector<16x256xf32>
    %47 = tpu.matmul %44, %46, %cst_45 {dimension_numbers = #tpu.dot_dimension_numbers<[1], [0], [0], [1], [0, 0, 1, 1], [], []>} : vector<16x256xbf16>, vector<256x256xbf16>, vector<16x256xf32> -> vector<16x256xf32>
    %c0_46 = arith.constant 0 : index
    %c0_47 = arith.constant 0 : index
    %c0_48 = arith.constant 0 : index
    %48 = vector.load %arg16[%c0_46, %c0_47, %c0_48] : memref<1x1x256xf32, #tpu.memory_space<vmem>>, vector<1x1x256xf32>
    %49 = vector.shape_cast %48 : vector<1x1x256xf32> to vector<1x256xf32>
    %50 = vector.broadcast %49 : vector<1x256xf32> to vector<16x256xf32>
    %51 = arith.addf %47, %50 : vector<16x256xf32>
    %52 = arith.addf %43, %51 : vector<16x256xf32>
    %53 = arith.truncf %4 : vector<16x256xf32> to vector<16x256xbf16>
    %c0_49 = arith.constant 0 : index
    %c0_50 = arith.constant 0 : index
    %c0_51 = arith.constant 0 : index
    %54 = vector.load %arg17[%c0_49, %c0_50, %c0_51] : memref<1x256x256xbf16, #tpu.memory_space<vmem>>, vector<1x256x256xbf16>
    %55 = vector.shape_cast %54 : vector<1x256x256xbf16> to vector<256x256xbf16>
    %cst_52 = arith.constant dense<0.000000e+00> : vector<16x256xf32>
    %56 = tpu.matmul %53, %55, %cst_52 {dimension_numbers = #tpu.dot_dimension_numbers<[1], [0], [0], [1], [0, 0, 1, 1], [], []>} : vector<16x256xbf16>, vector<256x256xbf16>, vector<16x256xf32> -> vector<16x256xf32>
    %c0_53 = arith.constant 0 : index
    %c0_54 = arith.constant 0 : index
    %c0_55 = arith.constant 0 : index
    %57 = vector.load %arg18[%c0_53, %c0_54, %c0_55] : memref<1x1x256xf32, #tpu.memory_space<vmem>>, vector<1x1x256xf32>
    %58 = vector.shape_cast %57 : vector<1x1x256xf32> to vector<1x256xf32>
    %59 = vector.broadcast %58 : vector<1x256xf32> to vector<16x256xf32>
    %60 = arith.addf %56, %59 : vector<16x256xf32>
    %61 = vector.extract_strided_slice %35 {offsets = [0, 0], sizes = [16, 32], strides = [1, 1]} : vector<16x256xf32> to vector<16x32xf32>
    %62 = vector.extract_strided_slice %35 {offsets = [0, 32], sizes = [16, 32], strides = [1, 1]} : vector<16x256xf32> to vector<16x32xf32>
    %63 = vector.extract_strided_slice %35 {offsets = [0, 64], sizes = [16, 32], strides = [1, 1]} : vector<16x256xf32> to vector<16x32xf32>
    %64 = vector.extract_strided_slice %35 {offsets = [0, 96], sizes = [16, 32], strides = [1, 1]} : vector<16x256xf32> to vector<16x32xf32>
    %65 = vector.extract_strided_slice %35 {offsets = [0, 128], sizes = [16, 32], strides = [1, 1]} : vector<16x256xf32> to vector<16x32xf32>
    %66 = vector.extract_strided_slice %35 {offsets = [0, 160], sizes = [16, 32], strides = [1, 1]} : vector<16x256xf32> to vector<16x32xf32>
    %67 = vector.extract_strided_slice %35 {offsets = [0, 192], sizes = [16, 32], strides = [1, 1]} : vector<16x256xf32> to vector<16x32xf32>
    %68 = vector.extract_strided_slice %35 {offsets = [0, 224], sizes = [16, 32], strides = [1, 1]} : vector<16x256xf32> to vector<16x32xf32>
    %69 = vector.shape_cast %61 : vector<16x32xf32> to vector<1x16x32xf32>
    %70 = vector.shape_cast %62 : vector<16x32xf32> to vector<1x16x32xf32>
    %71 = vector.shape_cast %63 : vector<16x32xf32> to vector<1x16x32xf32>
    %72 = vector.shape_cast %64 : vector<16x32xf32> to vector<1x16x32xf32>
    %73 = vector.shape_cast %65 : vector<16x32xf32> to vector<1x16x32xf32>
    %74 = vector.shape_cast %66 : vector<16x32xf32> to vector<1x16x32xf32>
    %75 = vector.shape_cast %67 : vector<16x32xf32> to vector<1x16x32xf32>
    %76 = vector.shape_cast %68 : vector<16x32xf32> to vector<1x16x32xf32>
    %77 = tpu.concatenate %69, %70, %71, %72, %73, %74, %75, %76 in 0 : vector<1x16x32xf32>, vector<1x16x32xf32>, vector<1x16x32xf32>, vector<1x16x32xf32>, vector<1x16x32xf32>, vector<1x16x32xf32>, vector<1x16x32xf32>, vector<1x16x32xf32> -> vector<8x16x32xf32>
    %78 = vector.shape_cast %77 : vector<8x16x32xf32> to vector<16x8x32xf32>
    %79 = vector.extract_strided_slice %52 {offsets = [0, 0], sizes = [16, 32], strides = [1, 1]} : vector<16x256xf32> to vector<16x32xf32>
    %80 = vector.extract_strided_slice %52 {offsets = [0, 32], sizes = [16, 32], strides = [1, 1]} : vector<16x256xf32> to vector<16x32xf32>
    %81 = vector.extract_strided_slice %52 {offsets = [0, 64], sizes = [16, 32], strides = [1, 1]} : vector<16x256xf32> to vector<16x32xf32>
    %82 = vector.extract_strided_slice %52 {offsets = [0, 96], sizes = [16, 32], strides = [1, 1]} : vector<16x256xf32> to vector<16x32xf32>
    %83 = vector.extract_strided_slice %52 {offsets = [0, 128], sizes = [16, 32], strides = [1, 1]} : vector<16x256xf32> to vector<16x32xf32>
    %84 = vector.extract_strided_slice %52 {offsets = [0, 160], sizes = [16, 32], strides = [1, 1]} : vector<16x256xf32> to vector<16x32xf32>
    %85 = vector.extract_strided_slice %52 {offsets = [0, 192], sizes = [16, 32], strides = [1, 1]} : vector<16x256xf32> to vector<16x32xf32>
    %86 = vector.extract_strided_slice %52 {offsets = [0, 224], sizes = [16, 32], strides = [1, 1]} : vector<16x256xf32> to vector<16x32xf32>
    %87 = vector.shape_cast %79 : vector<16x32xf32> to vector<1x16x32xf32>
    %88 = vector.shape_cast %80 : vector<16x32xf32> to vector<1x16x32xf32>
    %89 = vector.shape_cast %81 : vector<16x32xf32> to vector<1x16x32xf32>
    %90 = vector.shape_cast %82 : vector<16x32xf32> to vector<1x16x32xf32>
    %91 = vector.shape_cast %83 : vector<16x32xf32> to vector<1x16x32xf32>
    %92 = vector.shape_cast %84 : vector<16x32xf32> to vector<1x16x32xf32>
    %93 = vector.shape_cast %85 : vector<16x32xf32> to vector<1x16x32xf32>
    %94 = vector.shape_cast %86 : vector<16x32xf32> to vector<1x16x32xf32>
    %95 = tpu.concatenate %87, %88, %89, %90, %91, %92, %93, %94 in 0 : vector<1x16x32xf32>, vector<1x16x32xf32>, vector<1x16x32xf32>, vector<1x16x32xf32>, vector<1x16x32xf32>, vector<1x16x32xf32>, vector<1x16x32xf32>, vector<1x16x32xf32> -> vector<8x16x32xf32>
    %96 = vector.shape_cast %95 : vector<8x16x32xf32> to vector<16x8x32xf32>
    %97 = vector.extract_strided_slice %60 {offsets = [0, 0], sizes = [16, 32], strides = [1, 1]} : vector<16x256xf32> to vector<16x32xf32>
    %98 = vector.extract_strided_slice %60 {offsets = [0, 32], sizes = [16, 32], strides = [1, 1]} : vector<16x256xf32> to vector<16x32xf32>
    %99 = vector.extract_strided_slice %60 {offsets = [0, 64], sizes = [16, 32], strides = [1, 1]} : vector<16x256xf32> to vector<16x32xf32>
    %100 = vector.extract_strided_slice %60 {offsets = [0, 96], sizes = [16, 32], strides = [1, 1]} : vector<16x256xf32> to vector<16x32xf32>
    %101 = vector.extract_strided_slice %60 {offsets = [0, 128], sizes = [16, 32], strides = [1, 1]} : vector<16x256xf32> to vector<16x32xf32>
    %102 = vector.extract_strided_slice %60 {offsets = [0, 160], sizes = [16, 32], strides = [1, 1]} : vector<16x256xf32> to vector<16x32xf32>
    %103 = vector.extract_strided_slice %60 {offsets = [0, 192], sizes = [16, 32], strides = [1, 1]} : vector<16x256xf32> to vector<16x32xf32>
    %104 = vector.extract_strided_slice %60 {offsets = [0, 224], sizes = [16, 32], strides = [1, 1]} : vector<16x256xf32> to vector<16x32xf32>
    %105 = vector.shape_cast %97 : vector<16x32xf32> to vector<1x16x32xf32>
    %106 = vector.shape_cast %98 : vector<16x32xf32> to vector<1x16x32xf32>
    %107 = vector.shape_cast %99 : vector<16x32xf32> to vector<1x16x32xf32>
    %108 = vector.shape_cast %100 : vector<16x32xf32> to vector<1x16x32xf32>
    %109 = vector.shape_cast %101 : vector<16x32xf32> to vector<1x16x32xf32>
    %110 = vector.shape_cast %102 : vector<16x32xf32> to vector<1x16x32xf32>
    %111 = vector.shape_cast %103 : vector<16x32xf32> to vector<1x16x32xf32>
    %112 = vector.shape_cast %104 : vector<16x32xf32> to vector<1x16x32xf32>
    %113 = tpu.concatenate %105, %106, %107, %108, %109, %110, %111, %112 in 0 : vector<1x16x32xf32>, vector<1x16x32xf32>, vector<1x16x32xf32>, vector<1x16x32xf32>, vector<1x16x32xf32>, vector<1x16x32xf32>, vector<1x16x32xf32>, vector<1x16x32xf32> -> vector<8x16x32xf32>
    %114 = vector.shape_cast %113 : vector<8x16x32xf32> to vector<16x8x32xf32>
    %115 = arith.truncf %78 : vector<16x8x32xf32> to vector<16x8x32xbf16>
    %116 = arith.truncf %96 : vector<16x8x32xf32> to vector<16x8x32xbf16>
    "tpu.trace_start"() <{level = 10 : i32, message = "gqd,gkd->gqk"}> : () -> ()
    %cst_56 = arith.constant dense<0.000000e+00> : vector<16x8x8xf32>
    %117 = tpu.matmul %115, %116, %cst_56 {dimension_numbers = #tpu.dot_dimension_numbers<[2], [2], [1], [1], [0, 0, 0, 1, 1, 1], [0], [0]>} : vector<16x8x32xbf16>, vector<16x8x32xbf16>, vector<16x8x8xf32> -> vector<16x8x8xf32>
    "tpu.trace_stop"() : () -> ()
    %cst_57 = arith.constant 0.176776692 : f32
    %118 = vector.broadcast %cst_57 : f32 to vector<16x8x8xf32>
    %119 = arith.mulf %117, %118 : vector<16x8x8xf32>
    %cst_58 = arith.constant dense<0xFF800000> : vector<16x8xf32>
    %120 = vector.multi_reduction <maximumf>, %119, %cst_58 [2] : vector<16x8x8xf32> to vector<16x8xf32>
    %121 = vector.shape_cast %120 : vector<16x8xf32> to vector<16x8x1xf32>
    %122 = vector.broadcast %121 : vector<16x8x1xf32> to vector<16x8x8xf32>
    %123 = arith.subf %119, %122 : vector<16x8x8xf32>
    %124 = math.exp %123 : vector<16x8x8xf32>
    %cst_59 = arith.constant dense<0.000000e+00> : vector<16x8xf32>
    %125 = vector.multi_reduction <add>, %124, %cst_59 [2] : vector<16x8x8xf32> to vector<16x8xf32>
    %126 = vector.shape_cast %125 : vector<16x8xf32> to vector<16x8x1xf32>
    %127 = arith.truncf %124 : vector<16x8x8xf32> to vector<16x8x8xbf16>
    %128 = arith.truncf %114 : vector<16x8x32xf32> to vector<16x8x32xbf16>
    "tpu.trace_start"() <{level = 10 : i32, message = "gqk,gkd->gqd"}> : () -> ()
    %cst_60 = arith.constant dense<0.000000e+00> : vector<16x8x32xf32>
    %129 = tpu.matmul %127, %128, %cst_60 {dimension_numbers = #tpu.dot_dimension_numbers<[2], [1], [1], [2], [0, 0, 0, 1, 1, 2], [0], [0]>} : vector<16x8x8xbf16>, vector<16x8x32xbf16>, vector<16x8x32xf32> -> vector<16x8x32xf32>
    "tpu.trace_stop"() : () -> ()
    %130 = tpu.reciprocal %126 {approx = true} : vector<16x8x1xf32> -> vector<16x8x1xf32>
    %131 = vector.broadcast %130 : vector<16x8x1xf32> to vector<16x8x32xf32>
    %132 = arith.mulf %129, %131 : vector<16x8x32xf32>
    %133 = vector.shape_cast %132 : vector<16x8x32xf32> to vector<8x16x32xf32>
    %134 = vector.extract_strided_slice %133 {offsets = [0, 0, 0], sizes = [1, 16, 32], strides = [1, 1, 1]} : vector<8x16x32xf32> to vector<1x16x32xf32>
    %135 = vector.shape_cast %134 : vector<1x16x32xf32> to vector<16x32xf32>
    %136 = vector.extract_strided_slice %133 {offsets = [1, 0, 0], sizes = [1, 16, 32], strides = [1, 1, 1]} : vector<8x16x32xf32> to vector<1x16x32xf32>
    %137 = vector.shape_cast %136 : vector<1x16x32xf32> to vector<16x32xf32>
    %138 = vector.extract_strided_slice %133 {offsets = [2, 0, 0], sizes = [1, 16, 32], strides = [1, 1, 1]} : vector<8x16x32xf32> to vector<1x16x32xf32>
    %139 = vector.shape_cast %138 : vector<1x16x32xf32> to vector<16x32xf32>
    %140 = vector.extract_strided_slice %133 {offsets = [3, 0, 0], sizes = [1, 16, 32], strides = [1, 1, 1]} : vector<8x16x32xf32> to vector<1x16x32xf32>
    %141 = vector.shape_cast %140 : vector<1x16x32xf32> to vector<16x32xf32>
    %142 = vector.extract_strided_slice %133 {offsets = [4, 0, 0], sizes = [1, 16, 32], strides = [1, 1, 1]} : vector<8x16x32xf32> to vector<1x16x32xf32>
    %143 = vector.shape_cast %142 : vector<1x16x32xf32> to vector<16x32xf32>
    %144 = vector.extract_strided_slice %133 {offsets = [5, 0, 0], sizes = [1, 16, 32], strides = [1, 1, 1]} : vector<8x16x32xf32> to vector<1x16x32xf32>
    %145 = vector.shape_cast %144 : vector<1x16x32xf32> to vector<16x32xf32>
    %146 = vector.extract_strided_slice %133 {offsets = [6, 0, 0], sizes = [1, 16, 32], strides = [1, 1, 1]} : vector<8x16x32xf32> to vector<1x16x32xf32>
    %147 = vector.shape_cast %146 : vector<1x16x32xf32> to vector<16x32xf32>
    %148 = vector.extract_strided_slice %133 {offsets = [7, 0, 0], sizes = [1, 16, 32], strides = [1, 1, 1]} : vector<8x16x32xf32> to vector<1x16x32xf32>
    %149 = vector.shape_cast %148 : vector<1x16x32xf32> to vector<16x32xf32>
    %150 = tpu.concatenate %135, %137, %139, %141, %143, %145, %147, %149 in 1 : vector<16x32xf32>, vector<16x32xf32>, vector<16x32xf32>, vector<16x32xf32>, vector<16x32xf32>, vector<16x32xf32>, vector<16x32xf32>, vector<16x32xf32> -> vector<16x256xf32>
    %151 = arith.truncf %150 : vector<16x256xf32> to vector<16x256xbf16>
    %c0_61 = arith.constant 0 : index
    %c0_62 = arith.constant 0 : index
    %c0_63 = arith.constant 0 : index
    %152 = vector.load %arg19[%c0_61, %c0_62, %c0_63] : memref<1x256x256xbf16, #tpu.memory_space<vmem>>, vector<1x256x256xbf16>
    %153 = vector.shape_cast %152 : vector<1x256x256xbf16> to vector<256x256xbf16>
    %cst_64 = arith.constant dense<0.000000e+00> : vector<16x256xf32>
    %154 = tpu.matmul %151, %153, %cst_64 {dimension_numbers = #tpu.dot_dimension_numbers<[1], [0], [0], [1], [0, 0, 1, 1], [], []>} : vector<16x256xbf16>, vector<256x256xbf16>, vector<16x256xf32> -> vector<16x256xf32>
    %c0_65 = arith.constant 0 : index
    %c0_66 = arith.constant 0 : index
    %c0_67 = arith.constant 0 : index
    %155 = vector.load %arg20[%c0_65, %c0_66, %c0_67] : memref<1x1x256xf32, #tpu.memory_space<vmem>>, vector<1x1x256xf32>
    %156 = vector.shape_cast %155 : vector<1x1x256xf32> to vector<1x256xf32>
    %157 = vector.broadcast %156 : vector<1x256xf32> to vector<16x256xf32>
    %158 = arith.addf %154, %157 : vector<16x256xf32>
    %159 = arith.addf %4, %158 : vector<16x256xf32>
    %c0_68 = arith.constant 0 : index
    %c0_69 = arith.constant 0 : index
    %c0_70 = arith.constant 0 : index
    %160 = vector.load %arg21[%c0_68, %c0_69, %c0_70] : memref<1x1x256xf32, #tpu.memory_space<vmem>>, vector<1x1x256xf32>
    %161 = vector.shape_cast %160 : vector<1x1x256xf32> to vector<1x256xf32>
    %c0_71 = arith.constant 0 : index
    %c0_72 = arith.constant 0 : index
    %c0_73 = arith.constant 0 : index
    %162 = vector.load %arg22[%c0_71, %c0_72, %c0_73] : memref<1x1x256xf32, #tpu.memory_space<vmem>>, vector<1x1x256xf32>
    %163 = vector.shape_cast %162 : vector<1x1x256xf32> to vector<1x256xf32>
    %cst_74 = arith.constant dense<0.000000e+00> : vector<16xf32>
    %164 = vector.multi_reduction <add>, %159, %cst_74 [1] : vector<16x256xf32> to vector<16xf32>
    %165 = vector.shape_cast %164 : vector<16xf32> to vector<16x1xf32>
    %cst_75 = arith.constant 2.560000e+02 : f32
    %166 = vector.broadcast %cst_75 : f32 to vector<16x1xf32>
    %167 = arith.divf %165, %166 : vector<16x1xf32>
    %168 = vector.broadcast %167 : vector<16x1xf32> to vector<16x256xf32>
    %169 = arith.subf %159, %168 : vector<16x256xf32>
    %170 = arith.mulf %169, %169 : vector<16x256xf32>
    %cst_76 = arith.constant dense<0.000000e+00> : vector<16xf32>
    %171 = vector.multi_reduction <add>, %170, %cst_76 [1] : vector<16x256xf32> to vector<16xf32>
    %172 = vector.shape_cast %171 : vector<16xf32> to vector<16x1xf32>
    %cst_77 = arith.constant 2.560000e+02 : f32
    %173 = vector.broadcast %cst_77 : f32 to vector<16x1xf32>
    %174 = arith.divf %172, %173 : vector<16x1xf32>
    %175 = vector.broadcast %167 : vector<16x1xf32> to vector<16x256xf32>
    %176 = arith.subf %159, %175 : vector<16x256xf32>
    %cst_78 = arith.constant 9.99999974E-6 : f32
    %177 = vector.broadcast %cst_78 : f32 to vector<16x1xf32>
    %178 = arith.addf %174, %177 : vector<16x1xf32>
    %179 = math.rsqrt %178 : vector<16x1xf32>
    %180 = vector.broadcast %179 : vector<16x1xf32> to vector<16x256xf32>
    %181 = arith.mulf %176, %180 : vector<16x256xf32>
    %182 = vector.broadcast %161 : vector<1x256xf32> to vector<16x256xf32>
    %183 = arith.mulf %181, %182 : vector<16x256xf32>
    %184 = vector.broadcast %163 : vector<1x256xf32> to vector<16x256xf32>
    %185 = arith.addf %183, %184 : vector<16x256xf32>
    %186 = arith.truncf %4 : vector<16x256xf32> to vector<16x256xbf16>
    %c0_79 = arith.constant 0 : index
    %c0_80 = arith.constant 0 : index
    %187 = vector.load %arg43[%c0_79, %c0_80] : memref<256x256xbf16, #tpu.memory_space<vmem>>, vector<256x256xbf16>
    %cst_81 = arith.constant dense<0.000000e+00> : vector<16x256xf32>
    %188 = tpu.matmul %186, %187, %cst_81 {dimension_numbers = #tpu.dot_dimension_numbers<[1], [0], [0], [1], [0, 0, 1, 1], [], []>} : vector<16x256xbf16>, vector<256x256xbf16>, vector<16x256xf32> -> vector<16x256xf32>
    %c0_82 = arith.constant 0 : index
    %c0_83 = arith.constant 0 : index
    %189 = vector.load %arg44[%c0_82, %c0_83] : memref<1x256xf32, #tpu.memory_space<vmem>>, vector<1x256xf32>
    %190 = vector.broadcast %189 : vector<1x256xf32> to vector<16x256xf32>
    %191 = arith.addf %188, %190 : vector<16x256xf32>
    %cst_84 = arith.constant 0.000000e+00 : f32
    %192 = vector.broadcast %cst_84 : f32 to vector<16x256xf32>
    %193 = arith.maximumf %191, %192 : vector<16x256xf32>
    %194 = arith.truncf %193 : vector<16x256xf32> to vector<16x256xbf16>
    %c0_85 = arith.constant 0 : index
    %c0_86 = arith.constant 0 : index
    %195 = vector.load %arg45[%c0_85, %c0_86] : memref<256x256xbf16, #tpu.memory_space<vmem>>, vector<256x256xbf16>
    %cst_87 = arith.constant dense<0.000000e+00> : vector<16x256xf32>
    %196 = tpu.matmul %194, %195, %cst_87 {dimension_numbers = #tpu.dot_dimension_numbers<[1], [0], [0], [1], [0, 0, 1, 1], [], []>} : vector<16x256xbf16>, vector<256x256xbf16>, vector<16x256xf32> -> vector<16x256xf32>
    %c0_88 = arith.constant 0 : index
    %c0_89 = arith.constant 0 : index
    %197 = vector.load %arg46[%c0_88, %c0_89] : memref<1x256xf32, #tpu.memory_space<vmem>>, vector<1x256xf32>
    %198 = vector.broadcast %197 : vector<1x256xf32> to vector<16x256xf32>
    %199 = arith.addf %196, %198 : vector<16x256xf32>
    %cst_90 = arith.constant 1.000000e+00 : f32
    %200 = arith.subf %cst_90, %18 : f32
    %201 = vector.broadcast %200 : f32 to vector<16x256xf32>
    %202 = arith.mulf %201, %199 : vector<16x256xf32>
    %203 = vector.broadcast %18 : f32 to vector<16x256xf32>
    %204 = arith.addf %203, %202 : vector<16x256xf32>
    %205 = arith.mulf %12, %204 : vector<16x256xf32>
    %206 = arith.truncf %205 : vector<16x256xf32> to vector<16x256xbf16>
    %c0_91 = arith.constant 0 : index
    %c0_92 = arith.constant 0 : index
    %c0_93 = arith.constant 0 : index
    %207 = vector.load %arg31[%c0_91, %c0_92, %c0_93] : memref<1x256x256xbf16, #tpu.memory_space<vmem>>, vector<1x256x256xbf16>
    %208 = vector.shape_cast %207 : vector<1x256x256xbf16> to vector<256x256xbf16>
    %cst_94 = arith.constant dense<0.000000e+00> : vector<16x256xf32>
    %209 = tpu.matmul %206, %208, %cst_94 {dimension_numbers = #tpu.dot_dimension_numbers<[1], [0], [0], [1], [0, 0, 1, 1], [], []>} : vector<16x256xbf16>, vector<256x256xbf16>, vector<16x256xf32> -> vector<16x256xf32>
    %c0_95 = arith.constant 0 : index
    %c0_96 = arith.constant 0 : index
    %c0_97 = arith.constant 0 : index
    %210 = vector.load %arg32[%c0_95, %c0_96, %c0_97] : memref<1x1x256xf32, #tpu.memory_space<vmem>>, vector<1x1x256xf32>
    %211 = vector.shape_cast %210 : vector<1x1x256xf32> to vector<1x256xf32>
    %212 = vector.broadcast %211 : vector<1x256xf32> to vector<16x256xf32>
    %213 = arith.addf %209, %212 : vector<16x256xf32>
    %214 = arith.truncf %185 : vector<16x256xf32> to vector<16x256xbf16>
    %c0_98 = arith.constant 0 : index
    %c0_99 = arith.constant 0 : index
    %c0_100 = arith.constant 0 : index
    %215 = vector.load %arg23[%c0_98, %c0_99, %c0_100] : memref<1x256x256xbf16, #tpu.memory_space<vmem>>, vector<1x256x256xbf16>
    %216 = vector.shape_cast %215 : vector<1x256x256xbf16> to vector<256x256xbf16>
    %cst_101 = arith.constant dense<0.000000e+00> : vector<16x256xf32>
    %217 = tpu.matmul %214, %216, %cst_101 {dimension_numbers = #tpu.dot_dimension_numbers<[1], [0], [0], [1], [0, 0, 1, 1], [], []>} : vector<16x256xbf16>, vector<256x256xbf16>, vector<16x256xf32> -> vector<16x256xf32>
    %c0_102 = arith.constant 0 : index
    %c0_103 = arith.constant 0 : index
    %c0_104 = arith.constant 0 : index
    %218 = vector.load %arg24[%c0_102, %c0_103, %c0_104] : memref<1x1x256xf32, #tpu.memory_space<vmem>>, vector<1x1x256xf32>
    %219 = vector.shape_cast %218 : vector<1x1x256xf32> to vector<1x256xf32>
    %220 = vector.broadcast %219 : vector<1x256xf32> to vector<16x256xf32>
    %221 = arith.addf %217, %220 : vector<16x256xf32>
    %222 = vector.broadcast %18 : f32 to vector<16x256xf32>
    %223 = arith.mulf %222, %14 : vector<16x256xf32>
    %224 = arith.addf %221, %223 : vector<16x256xf32>
    %225 = arith.truncf %6 : vector<32x256xf32> to vector<32x256xbf16>
    %c0_105 = arith.constant 0 : index
    %c0_106 = arith.constant 0 : index
    %c0_107 = arith.constant 0 : index
    %226 = vector.load %arg25[%c0_105, %c0_106, %c0_107] : memref<1x256x256xbf16, #tpu.memory_space<vmem>>, vector<1x256x256xbf16>
    %227 = vector.shape_cast %226 : vector<1x256x256xbf16> to vector<256x256xbf16>
    %cst_108 = arith.constant dense<0.000000e+00> : vector<32x256xf32>
    %228 = tpu.matmul %225, %227, %cst_108 {dimension_numbers = #tpu.dot_dimension_numbers<[1], [0], [0], [1], [0, 0, 1, 1], [], []>} : vector<32x256xbf16>, vector<256x256xbf16>, vector<32x256xf32> -> vector<32x256xf32>
    %c0_109 = arith.constant 0 : index
    %c0_110 = arith.constant 0 : index
    %c0_111 = arith.constant 0 : index
    %229 = vector.load %arg26[%c0_109, %c0_110, %c0_111] : memref<1x1x256xf32, #tpu.memory_space<vmem>>, vector<1x1x256xf32>
    %230 = vector.shape_cast %229 : vector<1x1x256xf32> to vector<1x256xf32>
    %231 = vector.broadcast %230 : vector<1x256xf32> to vector<32x256xf32>
    %232 = arith.addf %228, %231 : vector<32x256xf32>
    %233 = arith.truncf %6 : vector<32x256xf32> to vector<32x256xbf16>
    %c0_112 = arith.constant 0 : index
    %c0_113 = arith.constant 0 : index
    %c0_114 = arith.constant 0 : index
    %234 = vector.load %arg29[%c0_112, %c0_113, %c0_114] : memref<1x256x256xbf16, #tpu.memory_space<vmem>>, vector<1x256x256xbf16>
    %235 = vector.shape_cast %234 : vector<1x256x256xbf16> to vector<256x256xbf16>
    %cst_115 = arith.constant dense<0.000000e+00> : vector<32x256xf32>
    %236 = tpu.matmul %233, %235, %cst_115 {dimension_numbers = #tpu.dot_dimension_numbers<[1], [0], [0], [1], [0, 0, 1, 1], [], []>} : vector<32x256xbf16>, vector<256x256xbf16>, vector<32x256xf32> -> vector<32x256xf32>
    %c0_116 = arith.constant 0 : index
    %c0_117 = arith.constant 0 : index
    %c0_118 = arith.constant 0 : index
    %237 = vector.load %arg30[%c0_116, %c0_117, %c0_118] : memref<1x1x256xf32, #tpu.memory_space<vmem>>, vector<1x1x256xf32>
    %238 = vector.shape_cast %237 : vector<1x1x256xf32> to vector<1x256xf32>
    %239 = vector.broadcast %238 : vector<1x256xf32> to vector<32x256xf32>
    %240 = arith.addf %236, %239 : vector<32x256xf32>
    %241 = arith.truncf %10 : vector<32x256xf32> to vector<32x256xbf16>
    %c0_119 = arith.constant 0 : index
    %c0_120 = arith.constant 0 : index
    %c0_121 = arith.constant 0 : index
    %242 = vector.load %arg27[%c0_119, %c0_120, %c0_121] : memref<1x256x256xbf16, #tpu.memory_space<vmem>>, vector<1x256x256xbf16>
    %243 = vector.shape_cast %242 : vector<1x256x256xbf16> to vector<256x256xbf16>
    %cst_122 = arith.constant dense<0.000000e+00> : vector<32x256xf32>
    %244 = tpu.matmul %241, %243, %cst_122 {dimension_numbers = #tpu.dot_dimension_numbers<[1], [0], [0], [1], [0, 0, 1, 1], [], []>} : vector<32x256xbf16>, vector<256x256xbf16>, vector<32x256xf32> -> vector<32x256xf32>
    %c0_123 = arith.constant 0 : index
    %c0_124 = arith.constant 0 : index
    %c0_125 = arith.constant 0 : index
    %245 = vector.load %arg28[%c0_123, %c0_124, %c0_125] : memref<1x1x256xf32, #tpu.memory_space<vmem>>, vector<1x1x256xf32>
    %246 = vector.shape_cast %245 : vector<1x1x256xf32> to vector<1x256xf32>
    %247 = vector.broadcast %246 : vector<1x256xf32> to vector<32x256xf32>
    %248 = arith.addf %244, %247 : vector<32x256xf32>
    %249 = vector.broadcast %18 : f32 to vector<32x256xf32>
    %250 = arith.mulf %249, %248 : vector<32x256xf32>
    %251 = arith.addf %232, %250 : vector<32x256xf32>
    %252 = vector.extract_strided_slice %224 {offsets = [0, 0], sizes = [16, 32], strides = [1, 1]} : vector<16x256xf32> to vector<16x32xf32>
    %253 = vector.extract_strided_slice %224 {offsets = [0, 32], sizes = [16, 32], strides = [1, 1]} : vector<16x256xf32> to vector<16x32xf32>
    %254 = vector.extract_strided_slice %224 {offsets = [0, 64], sizes = [16, 32], strides = [1, 1]} : vector<16x256xf32> to vector<16x32xf32>
    %255 = vector.extract_strided_slice %224 {offsets = [0, 96], sizes = [16, 32], strides = [1, 1]} : vector<16x256xf32> to vector<16x32xf32>
    %256 = vector.extract_strided_slice %224 {offsets = [0, 128], sizes = [16, 32], strides = [1, 1]} : vector<16x256xf32> to vector<16x32xf32>
    %257 = vector.extract_strided_slice %224 {offsets = [0, 160], sizes = [16, 32], strides = [1, 1]} : vector<16x256xf32> to vector<16x32xf32>
    %258 = vector.extract_strided_slice %224 {offsets = [0, 192], sizes = [16, 32], strides = [1, 1]} : vector<16x256xf32> to vector<16x32xf32>
    %259 = vector.extract_strided_slice %224 {offsets = [0, 224], sizes = [16, 32], strides = [1, 1]} : vector<16x256xf32> to vector<16x32xf32>
    %260 = vector.shape_cast %252 : vector<16x32xf32> to vector<1x16x32xf32>
    %261 = vector.shape_cast %253 : vector<16x32xf32> to vector<1x16x32xf32>
    %262 = vector.shape_cast %254 : vector<16x32xf32> to vector<1x16x32xf32>
    %263 = vector.shape_cast %255 : vector<16x32xf32> to vector<1x16x32xf32>
    %264 = vector.shape_cast %256 : vector<16x32xf32> to vector<1x16x32xf32>
    %265 = vector.shape_cast %257 : vector<16x32xf32> to vector<1x16x32xf32>
    %266 = vector.shape_cast %258 : vector<16x32xf32> to vector<1x16x32xf32>
    %267 = vector.shape_cast %259 : vector<16x32xf32> to vector<1x16x32xf32>
    %268 = tpu.concatenate %260, %261, %262, %263, %264, %265, %266, %267 in 0 : vector<1x16x32xf32>, vector<1x16x32xf32>, vector<1x16x32xf32>, vector<1x16x32xf32>, vector<1x16x32xf32>, vector<1x16x32xf32>, vector<1x16x32xf32>, vector<1x16x32xf32> -> vector<8x16x32xf32>
    %269 = vector.shape_cast %268 : vector<8x16x32xf32> to vector<16x8x32xf32>
    %270 = vector.extract_strided_slice %213 {offsets = [0, 0], sizes = [16, 32], strides = [1, 1]} : vector<16x256xf32> to vector<16x32xf32>
    %271 = vector.extract_strided_slice %213 {offsets = [0, 32], sizes = [16, 32], strides = [1, 1]} : vector<16x256xf32> to vector<16x32xf32>
    %272 = vector.extract_strided_slice %213 {offsets = [0, 64], sizes = [16, 32], strides = [1, 1]} : vector<16x256xf32> to vector<16x32xf32>
    %273 = vector.extract_strided_slice %213 {offsets = [0, 96], sizes = [16, 32], strides = [1, 1]} : vector<16x256xf32> to vector<16x32xf32>
    %274 = vector.extract_strided_slice %213 {offsets = [0, 128], sizes = [16, 32], strides = [1, 1]} : vector<16x256xf32> to vector<16x32xf32>
    %275 = vector.extract_strided_slice %213 {offsets = [0, 160], sizes = [16, 32], strides = [1, 1]} : vector<16x256xf32> to vector<16x32xf32>
    %276 = vector.extract_strided_slice %213 {offsets = [0, 192], sizes = [16, 32], strides = [1, 1]} : vector<16x256xf32> to vector<16x32xf32>
    %277 = vector.extract_strided_slice %213 {offsets = [0, 224], sizes = [16, 32], strides = [1, 1]} : vector<16x256xf32> to vector<16x32xf32>
    %278 = vector.shape_cast %270 : vector<16x32xf32> to vector<1x16x32xf32>
    %279 = vector.shape_cast %271 : vector<16x32xf32> to vector<1x16x32xf32>
    %280 = vector.shape_cast %272 : vector<16x32xf32> to vector<1x16x32xf32>
    %281 = vector.shape_cast %273 : vector<16x32xf32> to vector<1x16x32xf32>
    %282 = vector.shape_cast %274 : vector<16x32xf32> to vector<1x16x32xf32>
    %283 = vector.shape_cast %275 : vector<16x32xf32> to vector<1x16x32xf32>
    %284 = vector.shape_cast %276 : vector<16x32xf32> to vector<1x16x32xf32>
    %285 = vector.shape_cast %277 : vector<16x32xf32> to vector<1x16x32xf32>
    %286 = tpu.concatenate %278, %279, %280, %281, %282, %283, %284, %285 in 0 : vector<1x16x32xf32>, vector<1x16x32xf32>, vector<1x16x32xf32>, vector<1x16x32xf32>, vector<1x16x32xf32>, vector<1x16x32xf32>, vector<1x16x32xf32>, vector<1x16x32xf32> -> vector<8x16x32xf32>
    %287 = vector.shape_cast %286 : vector<8x16x32xf32> to vector<16x8x32xf32>
    %288 = tpu.concatenate %269, %287 in 2 : vector<16x8x32xf32>, vector<16x8x32xf32> -> vector<16x8x64xf32>
    %289 = vector.extract_strided_slice %251 {offsets = [0, 0], sizes = [32, 32], strides = [1, 1]} : vector<32x256xf32> to vector<32x32xf32>
    %290 = vector.extract_strided_slice %251 {offsets = [0, 32], sizes = [32, 32], strides = [1, 1]} : vector<32x256xf32> to vector<32x32xf32>
    %291 = vector.extract_strided_slice %251 {offsets = [0, 64], sizes = [32, 32], strides = [1, 1]} : vector<32x256xf32> to vector<32x32xf32>
    %292 = vector.extract_strided_slice %251 {offsets = [0, 96], sizes = [32, 32], strides = [1, 1]} : vector<32x256xf32> to vector<32x32xf32>
    %293 = vector.extract_strided_slice %251 {offsets = [0, 128], sizes = [32, 32], strides = [1, 1]} : vector<32x256xf32> to vector<32x32xf32>
    %294 = vector.extract_strided_slice %251 {offsets = [0, 160], sizes = [32, 32], strides = [1, 1]} : vector<32x256xf32> to vector<32x32xf32>
    %295 = vector.extract_strided_slice %251 {offsets = [0, 192], sizes = [32, 32], strides = [1, 1]} : vector<32x256xf32> to vector<32x32xf32>
    %296 = vector.extract_strided_slice %251 {offsets = [0, 224], sizes = [32, 32], strides = [1, 1]} : vector<32x256xf32> to vector<32x32xf32>
    %297 = vector.shape_cast %289 : vector<32x32xf32> to vector<1x32x32xf32>
    %298 = vector.shape_cast %290 : vector<32x32xf32> to vector<1x32x32xf32>
    %299 = vector.shape_cast %291 : vector<32x32xf32> to vector<1x32x32xf32>
    %300 = vector.shape_cast %292 : vector<32x32xf32> to vector<1x32x32xf32>
    %301 = vector.shape_cast %293 : vector<32x32xf32> to vector<1x32x32xf32>
    %302 = vector.shape_cast %294 : vector<32x32xf32> to vector<1x32x32xf32>
    %303 = vector.shape_cast %295 : vector<32x32xf32> to vector<1x32x32xf32>
    %304 = vector.shape_cast %296 : vector<32x32xf32> to vector<1x32x32xf32>
    %305 = tpu.concatenate %297, %298, %299, %300, %301, %302, %303, %304 in 0 : vector<1x32x32xf32>, vector<1x32x32xf32>, vector<1x32x32xf32>, vector<1x32x32xf32>, vector<1x32x32xf32>, vector<1x32x32xf32>, vector<1x32x32xf32>, vector<1x32x32xf32> -> vector<8x32x32xf32>
    %306 = vector.shape_cast %305 : vector<8x32x32xf32> to vector<16x16x32xf32>
    %307 = vector.extract_strided_slice %248 {offsets = [0, 0], sizes = [32, 32], strides = [1, 1]} : vector<32x256xf32> to vector<32x32xf32>
    %308 = vector.extract_strided_slice %248 {offsets = [0, 32], sizes = [32, 32], strides = [1, 1]} : vector<32x256xf32> to vector<32x32xf32>
    %309 = vector.extract_strided_slice %248 {offsets = [0, 64], sizes = [32, 32], strides = [1, 1]} : vector<32x256xf32> to vector<32x32xf32>
    %310 = vector.extract_strided_slice %248 {offsets = [0, 96], sizes = [32, 32], strides = [1, 1]} : vector<32x256xf32> to vector<32x32xf32>
    %311 = vector.extract_strided_slice %248 {offsets = [0, 128], sizes = [32, 32], strides = [1, 1]} : vector<32x256xf32> to vector<32x32xf32>
    %312 = vector.extract_strided_slice %248 {offsets = [0, 160], sizes = [32, 32], strides = [1, 1]} : vector<32x256xf32> to vector<32x32xf32>
    %313 = vector.extract_strided_slice %248 {offsets = [0, 192], sizes = [32, 32], strides = [1, 1]} : vector<32x256xf32> to vector<32x32xf32>
    %314 = vector.extract_strided_slice %248 {offsets = [0, 224], sizes = [32, 32], strides = [1, 1]} : vector<32x256xf32> to vector<32x32xf32>
    %315 = vector.shape_cast %307 : vector<32x32xf32> to vector<1x32x32xf32>
    %316 = vector.shape_cast %308 : vector<32x32xf32> to vector<1x32x32xf32>
    %317 = vector.shape_cast %309 : vector<32x32xf32> to vector<1x32x32xf32>
    %318 = vector.shape_cast %310 : vector<32x32xf32> to vector<1x32x32xf32>
    %319 = vector.shape_cast %311 : vector<32x32xf32> to vector<1x32x32xf32>
    %320 = vector.shape_cast %312 : vector<32x32xf32> to vector<1x32x32xf32>
    %321 = vector.shape_cast %313 : vector<32x32xf32> to vector<1x32x32xf32>
    %322 = vector.shape_cast %314 : vector<32x32xf32> to vector<1x32x32xf32>
    %323 = tpu.concatenate %315, %316, %317, %318, %319, %320, %321, %322 in 0 : vector<1x32x32xf32>, vector<1x32x32xf32>, vector<1x32x32xf32>, vector<1x32x32xf32>, vector<1x32x32xf32>, vector<1x32x32xf32>, vector<1x32x32xf32>, vector<1x32x32xf32> -> vector<8x32x32xf32>
    %324 = vector.shape_cast %323 : vector<8x32x32xf32> to vector<16x16x32xf32>
    %325 = tpu.concatenate %306, %324 in 2 : vector<16x16x32xf32>, vector<16x16x32xf32> -> vector<16x16x64xf32>
    %326 = tpu.concatenate %15, %15, %15, %15, %15, %15, %15, %15 in 0 : vector<2x1x16xf32>, vector<2x1x16xf32>, vector<2x1x16xf32>, vector<2x1x16xf32>, vector<2x1x16xf32>, vector<2x1x16xf32>, vector<2x1x16xf32>, vector<2x1x16xf32> -> vector<16x1x16xf32>
    %327 = vector.extract_strided_slice %240 {offsets = [0, 0], sizes = [32, 32], strides = [1, 1]} : vector<32x256xf32> to vector<32x32xf32>
    %328 = vector.extract_strided_slice %240 {offsets = [0, 32], sizes = [32, 32], strides = [1, 1]} : vector<32x256xf32> to vector<32x32xf32>
    %329 = vector.extract_strided_slice %240 {offsets = [0, 64], sizes = [32, 32], strides = [1, 1]} : vector<32x256xf32> to vector<32x32xf32>
    %330 = vector.extract_strided_slice %240 {offsets = [0, 96], sizes = [32, 32], strides = [1, 1]} : vector<32x256xf32> to vector<32x32xf32>
    %331 = vector.extract_strided_slice %240 {offsets = [0, 128], sizes = [32, 32], strides = [1, 1]} : vector<32x256xf32> to vector<32x32xf32>
    %332 = vector.extract_strided_slice %240 {offsets = [0, 160], sizes = [32, 32], strides = [1, 1]} : vector<32x256xf32> to vector<32x32xf32>
    %333 = vector.extract_strided_slice %240 {offsets = [0, 192], sizes = [32, 32], strides = [1, 1]} : vector<32x256xf32> to vector<32x32xf32>
    %334 = vector.extract_strided_slice %240 {offsets = [0, 224], sizes = [32, 32], strides = [1, 1]} : vector<32x256xf32> to vector<32x32xf32>
    %335 = vector.shape_cast %327 : vector<32x32xf32> to vector<1x32x32xf32>
    %336 = vector.shape_cast %328 : vector<32x32xf32> to vector<1x32x32xf32>
    %337 = vector.shape_cast %329 : vector<32x32xf32> to vector<1x32x32xf32>
    %338 = vector.shape_cast %330 : vector<32x32xf32> to vector<1x32x32xf32>
    %339 = vector.shape_cast %331 : vector<32x32xf32> to vector<1x32x32xf32>
    %340 = vector.shape_cast %332 : vector<32x32xf32> to vector<1x32x32xf32>
    %341 = vector.shape_cast %333 : vector<32x32xf32> to vector<1x32x32xf32>
    %342 = vector.shape_cast %334 : vector<32x32xf32> to vector<1x32x32xf32>
    %343 = tpu.concatenate %335, %336, %337, %338, %339, %340, %341, %342 in 0 : vector<1x32x32xf32>, vector<1x32x32xf32>, vector<1x32x32xf32>, vector<1x32x32xf32>, vector<1x32x32xf32>, vector<1x32x32xf32>, vector<1x32x32xf32>, vector<1x32x32xf32> -> vector<8x32x32xf32>
    %344 = vector.shape_cast %343 : vector<8x32x32xf32> to vector<16x16x32xf32>
    %345 = arith.truncf %288 : vector<16x8x64xf32> to vector<16x8x64xbf16>
    %346 = arith.truncf %325 : vector<16x16x64xf32> to vector<16x16x64xbf16>
    "tpu.trace_start"() <{level = 10 : i32, message = "gqd,gkd->gqk"}> : () -> ()
    %cst_126 = arith.constant dense<0.000000e+00> : vector<16x8x16xf32>
    %347 = tpu.matmul %345, %346, %cst_126 {dimension_numbers = #tpu.dot_dimension_numbers<[2], [2], [1], [1], [0, 0, 0, 1, 1, 1], [0], [0]>} : vector<16x8x64xbf16>, vector<16x16x64xbf16>, vector<16x8x16xf32> -> vector<16x8x16xf32>
    "tpu.trace_stop"() : () -> ()
    %cst_127 = arith.constant 1.250000e-01 : f32
    %348 = vector.broadcast %cst_127 : f32 to vector<16x8x16xf32>
    %349 = arith.mulf %347, %348 : vector<16x8x16xf32>
    %350 = vector.broadcast %326 : vector<16x1x16xf32> to vector<16x8x16xf32>
    %351 = arith.addf %349, %350 : vector<16x8x16xf32>
    %cst_128 = arith.constant dense<0xFF800000> : vector<16x8xf32>
    %352 = vector.multi_reduction <maximumf>, %351, %cst_128 [2] : vector<16x8x16xf32> to vector<16x8xf32>
    %353 = vector.shape_cast %352 : vector<16x8xf32> to vector<16x8x1xf32>
    %354 = vector.broadcast %353 : vector<16x8x1xf32> to vector<16x8x16xf32>
    %355 = arith.subf %351, %354 : vector<16x8x16xf32>
    %356 = math.exp %355 : vector<16x8x16xf32>
    %cst_129 = arith.constant dense<0.000000e+00> : vector<16x8xf32>
    %357 = vector.multi_reduction <add>, %356, %cst_129 [2] : vector<16x8x16xf32> to vector<16x8xf32>
    %358 = vector.shape_cast %357 : vector<16x8xf32> to vector<16x8x1xf32>
    %359 = arith.truncf %356 : vector<16x8x16xf32> to vector<16x8x16xbf16>
    %360 = arith.truncf %344 : vector<16x16x32xf32> to vector<16x16x32xbf16>
    "tpu.trace_start"() <{level = 10 : i32, message = "gqk,gkd->gqd"}> : () -> ()
    %cst_130 = arith.constant dense<0.000000e+00> : vector<16x8x32xf32>
    %361 = tpu.matmul %359, %360, %cst_130 {dimension_numbers = #tpu.dot_dimension_numbers<[2], [1], [1], [2], [0, 0, 0, 1, 1, 2], [0], [0]>} : vector<16x8x16xbf16>, vector<16x16x32xbf16>, vector<16x8x32xf32> -> vector<16x8x32xf32>
    "tpu.trace_stop"() : () -> ()
    %362 = tpu.reciprocal %358 {approx = true} : vector<16x8x1xf32> -> vector<16x8x1xf32>
    %363 = vector.broadcast %362 : vector<16x8x1xf32> to vector<16x8x32xf32>
    %364 = arith.mulf %361, %363 : vector<16x8x32xf32>
    %365 = vector.shape_cast %364 : vector<16x8x32xf32> to vector<8x16x32xf32>
    %366 = vector.extract_strided_slice %365 {offsets = [0, 0, 0], sizes = [1, 16, 32], strides = [1, 1, 1]} : vector<8x16x32xf32> to vector<1x16x32xf32>
    %367 = vector.shape_cast %366 : vector<1x16x32xf32> to vector<16x32xf32>
    %368 = vector.extract_strided_slice %365 {offsets = [1, 0, 0], sizes = [1, 16, 32], strides = [1, 1, 1]} : vector<8x16x32xf32> to vector<1x16x32xf32>
    %369 = vector.shape_cast %368 : vector<1x16x32xf32> to vector<16x32xf32>
    %370 = vector.extract_strided_slice %365 {offsets = [2, 0, 0], sizes = [1, 16, 32], strides = [1, 1, 1]} : vector<8x16x32xf32> to vector<1x16x32xf32>
    %371 = vector.shape_cast %370 : vector<1x16x32xf32> to vector<16x32xf32>
    %372 = vector.extract_strided_slice %365 {offsets = [3, 0, 0], sizes = [1, 16, 32], strides = [1, 1, 1]} : vector<8x16x32xf32> to vector<1x16x32xf32>
    %373 = vector.shape_cast %372 : vector<1x16x32xf32> to vector<16x32xf32>
    %374 = vector.extract_strided_slice %365 {offsets = [4, 0, 0], sizes = [1, 16, 32], strides = [1, 1, 1]} : vector<8x16x32xf32> to vector<1x16x32xf32>
    %375 = vector.shape_cast %374 : vector<1x16x32xf32> to vector<16x32xf32>
    %376 = vector.extract_strided_slice %365 {offsets = [5, 0, 0], sizes = [1, 16, 32], strides = [1, 1, 1]} : vector<8x16x32xf32> to vector<1x16x32xf32>
    %377 = vector.shape_cast %376 : vector<1x16x32xf32> to vector<16x32xf32>
    %378 = vector.extract_strided_slice %365 {offsets = [6, 0, 0], sizes = [1, 16, 32], strides = [1, 1, 1]} : vector<8x16x32xf32> to vector<1x16x32xf32>
    %379 = vector.shape_cast %378 : vector<1x16x32xf32> to vector<16x32xf32>
    %380 = vector.extract_strided_slice %365 {offsets = [7, 0, 0], sizes = [1, 16, 32], strides = [1, 1, 1]} : vector<8x16x32xf32> to vector<1x16x32xf32>
    %381 = vector.shape_cast %380 : vector<1x16x32xf32> to vector<16x32xf32>
    %382 = tpu.concatenate %367, %369, %371, %373, %375, %377, %379, %381 in 1 : vector<16x32xf32>, vector<16x32xf32>, vector<16x32xf32>, vector<16x32xf32>, vector<16x32xf32>, vector<16x32xf32>, vector<16x32xf32>, vector<16x32xf32> -> vector<16x256xf32>
    %383 = arith.truncf %382 : vector<16x256xf32> to vector<16x256xbf16>
    %c0_131 = arith.constant 0 : index
    %c0_132 = arith.constant 0 : index
    %c0_133 = arith.constant 0 : index
    %384 = vector.load %arg33[%c0_131, %c0_132, %c0_133] : memref<1x256x256xbf16, #tpu.memory_space<vmem>>, vector<1x256x256xbf16>
    %385 = vector.shape_cast %384 : vector<1x256x256xbf16> to vector<256x256xbf16>
    %cst_134 = arith.constant dense<0.000000e+00> : vector<16x256xf32>
    %386 = tpu.matmul %383, %385, %cst_134 {dimension_numbers = #tpu.dot_dimension_numbers<[1], [0], [0], [1], [0, 0, 1, 1], [], []>} : vector<16x256xbf16>, vector<256x256xbf16>, vector<16x256xf32> -> vector<16x256xf32>
    %c0_135 = arith.constant 0 : index
    %c0_136 = arith.constant 0 : index
    %c0_137 = arith.constant 0 : index
    %387 = vector.load %arg34[%c0_135, %c0_136, %c0_137] : memref<1x1x256xf32, #tpu.memory_space<vmem>>, vector<1x1x256xf32>
    %388 = vector.shape_cast %387 : vector<1x1x256xf32> to vector<1x256xf32>
    %389 = vector.broadcast %388 : vector<1x256xf32> to vector<16x256xf32>
    %390 = arith.addf %386, %389 : vector<16x256xf32>
    %391 = arith.addf %185, %390 : vector<16x256xf32>
    %c0_138 = arith.constant 0 : index
    %c0_139 = arith.constant 0 : index
    %c0_140 = arith.constant 0 : index
    %392 = vector.load %arg35[%c0_138, %c0_139, %c0_140] : memref<1x1x256xf32, #tpu.memory_space<vmem>>, vector<1x1x256xf32>
    %393 = vector.shape_cast %392 : vector<1x1x256xf32> to vector<1x256xf32>
    %c0_141 = arith.constant 0 : index
    %c0_142 = arith.constant 0 : index
    %c0_143 = arith.constant 0 : index
    %394 = vector.load %arg36[%c0_141, %c0_142, %c0_143] : memref<1x1x256xf32, #tpu.memory_space<vmem>>, vector<1x1x256xf32>
    %395 = vector.shape_cast %394 : vector<1x1x256xf32> to vector<1x256xf32>
    %cst_144 = arith.constant dense<0.000000e+00> : vector<16xf32>
    %396 = vector.multi_reduction <add>, %391, %cst_144 [1] : vector<16x256xf32> to vector<16xf32>
    %397 = vector.shape_cast %396 : vector<16xf32> to vector<16x1xf32>
    %cst_145 = arith.constant 2.560000e+02 : f32
    %398 = vector.broadcast %cst_145 : f32 to vector<16x1xf32>
    %399 = arith.divf %397, %398 : vector<16x1xf32>
    %400 = vector.broadcast %399 : vector<16x1xf32> to vector<16x256xf32>
    %401 = arith.subf %391, %400 : vector<16x256xf32>
    %402 = arith.mulf %401, %401 : vector<16x256xf32>
    %cst_146 = arith.constant dense<0.000000e+00> : vector<16xf32>
    %403 = vector.multi_reduction <add>, %402, %cst_146 [1] : vector<16x256xf32> to vector<16xf32>
    %404 = vector.shape_cast %403 : vector<16xf32> to vector<16x1xf32>
    %cst_147 = arith.constant 2.560000e+02 : f32
    %405 = vector.broadcast %cst_147 : f32 to vector<16x1xf32>
    %406 = arith.divf %404, %405 : vector<16x1xf32>
    %407 = vector.broadcast %399 : vector<16x1xf32> to vector<16x256xf32>
    %408 = arith.subf %391, %407 : vector<16x256xf32>
    %cst_148 = arith.constant 9.99999974E-6 : f32
    %409 = vector.broadcast %cst_148 : f32 to vector<16x1xf32>
    %410 = arith.addf %406, %409 : vector<16x1xf32>
    %411 = math.rsqrt %410 : vector<16x1xf32>
    %412 = vector.broadcast %411 : vector<16x1xf32> to vector<16x256xf32>
    %413 = arith.mulf %408, %412 : vector<16x256xf32>
    %414 = vector.broadcast %393 : vector<1x256xf32> to vector<16x256xf32>
    %415 = arith.mulf %413, %414 : vector<16x256xf32>
    %416 = vector.broadcast %395 : vector<1x256xf32> to vector<16x256xf32>
    %417 = arith.addf %415, %416 : vector<16x256xf32>
    %418 = arith.truncf %417 : vector<16x256xf32> to vector<16x256xbf16>
    %c0_149 = arith.constant 0 : index
    %c0_150 = arith.constant 0 : index
    %c0_151 = arith.constant 0 : index
    %419 = vector.load %arg37[%c0_149, %c0_150, %c0_151] : memref<1x256x128xbf16, #tpu.memory_space<vmem>>, vector<1x256x128xbf16>
    %420 = vector.shape_cast %419 : vector<1x256x128xbf16> to vector<256x128xbf16>
    %cst_152 = arith.constant dense<0.000000e+00> : vector<16x128xf32>
    %421 = tpu.matmul %418, %420, %cst_152 {dimension_numbers = #tpu.dot_dimension_numbers<[1], [0], [0], [1], [0, 0, 1, 1], [], []>} : vector<16x256xbf16>, vector<256x128xbf16>, vector<16x128xf32> -> vector<16x128xf32>
    %c0_153 = arith.constant 0 : index
    %c0_154 = arith.constant 0 : index
    %c0_155 = arith.constant 0 : index
    %422 = vector.load %arg38[%c0_153, %c0_154, %c0_155] : memref<1x1x128xf32, #tpu.memory_space<vmem>>, vector<1x1x128xf32>
    %423 = vector.shape_cast %422 : vector<1x1x128xf32> to vector<1x128xf32>
    %424 = vector.broadcast %423 : vector<1x128xf32> to vector<16x128xf32>
    %425 = arith.addf %421, %424 : vector<16x128xf32>
    %cst_156 = arith.constant 0.000000e+00 : f32
    %426 = vector.broadcast %cst_156 : f32 to vector<16x128xf32>
    %427 = arith.maximumf %425, %426 : vector<16x128xf32>
    %428 = arith.truncf %427 : vector<16x128xf32> to vector<16x128xbf16>
    %c0_157 = arith.constant 0 : index
    %c0_158 = arith.constant 0 : index
    %c0_159 = arith.constant 0 : index
    %429 = vector.load %arg39[%c0_157, %c0_158, %c0_159] : memref<1x128x256xbf16, #tpu.memory_space<vmem>>, vector<1x128x256xbf16>
    %430 = vector.shape_cast %429 : vector<1x128x256xbf16> to vector<128x256xbf16>
    %cst_160 = arith.constant dense<0.000000e+00> : vector<16x256xf32>
    %431 = tpu.matmul %428, %430, %cst_160 {dimension_numbers = #tpu.dot_dimension_numbers<[1], [0], [0], [1], [0, 0, 1, 1], [], []>} : vector<16x128xbf16>, vector<128x256xbf16>, vector<16x256xf32> -> vector<16x256xf32>
    %c0_161 = arith.constant 0 : index
    %c0_162 = arith.constant 0 : index
    %c0_163 = arith.constant 0 : index
    %432 = vector.load %arg40[%c0_161, %c0_162, %c0_163] : memref<1x1x256xf32, #tpu.memory_space<vmem>>, vector<1x1x256xf32>
    %433 = vector.shape_cast %432 : vector<1x1x256xf32> to vector<1x256xf32>
    %434 = vector.broadcast %433 : vector<1x256xf32> to vector<16x256xf32>
    %435 = arith.addf %431, %434 : vector<16x256xf32>
    %436 = arith.addf %417, %435 : vector<16x256xf32>
    %c0_164 = arith.constant 0 : index
    %c0_165 = arith.constant 0 : index
    %c0_166 = arith.constant 0 : index
    %437 = vector.load %arg41[%c0_164, %c0_165, %c0_166] : memref<1x1x256xf32, #tpu.memory_space<vmem>>, vector<1x1x256xf32>
    %438 = vector.shape_cast %437 : vector<1x1x256xf32> to vector<1x256xf32>
    %c0_167 = arith.constant 0 : index
    %c0_168 = arith.constant 0 : index
    %c0_169 = arith.constant 0 : index
    %439 = vector.load %arg42[%c0_167, %c0_168, %c0_169] : memref<1x1x256xf32, #tpu.memory_space<vmem>>, vector<1x1x256xf32>
    %440 = vector.shape_cast %439 : vector<1x1x256xf32> to vector<1x256xf32>
    %cst_170 = arith.constant dense<0.000000e+00> : vector<16xf32>
    %441 = vector.multi_reduction <add>, %436, %cst_170 [1] : vector<16x256xf32> to vector<16xf32>
    %442 = vector.shape_cast %441 : vector<16xf32> to vector<16x1xf32>
    %cst_171 = arith.constant 2.560000e+02 : f32
    %443 = vector.broadcast %cst_171 : f32 to vector<16x1xf32>
    %444 = arith.divf %442, %443 : vector<16x1xf32>
    %445 = vector.broadcast %444 : vector<16x1xf32> to vector<16x256xf32>
    %446 = arith.subf %436, %445 : vector<16x256xf32>
    %447 = arith.mulf %446, %446 : vector<16x256xf32>
    %cst_172 = arith.constant dense<0.000000e+00> : vector<16xf32>
    %448 = vector.multi_reduction <add>, %447, %cst_172 [1] : vector<16x256xf32> to vector<16xf32>
    %449 = vector.shape_cast %448 : vector<16xf32> to vector<16x1xf32>
    %cst_173 = arith.constant 2.560000e+02 : f32
    %450 = vector.broadcast %cst_173 : f32 to vector<16x1xf32>
    %451 = arith.divf %449, %450 : vector<16x1xf32>
    %452 = vector.broadcast %444 : vector<16x1xf32> to vector<16x256xf32>
    %453 = arith.subf %436, %452 : vector<16x256xf32>
    %cst_174 = arith.constant 9.99999974E-6 : f32
    %454 = vector.broadcast %cst_174 : f32 to vector<16x1xf32>
    %455 = arith.addf %451, %454 : vector<16x1xf32>
    %456 = math.rsqrt %455 : vector<16x1xf32>
    %457 = vector.broadcast %456 : vector<16x1xf32> to vector<16x256xf32>
    %458 = arith.mulf %453, %457 : vector<16x256xf32>
    %459 = vector.broadcast %438 : vector<1x256xf32> to vector<16x256xf32>
    %460 = arith.mulf %458, %459 : vector<16x256xf32>
    %461 = vector.broadcast %440 : vector<1x256xf32> to vector<16x256xf32>
    %462 = arith.addf %460, %461 : vector<16x256xf32>
    %463 = vector.shape_cast %462 : vector<16x256xf32> to vector<2x8x256xf32>
    %c0_175 = arith.constant 0 : index
    %c0_176 = arith.constant 0 : index
    %c0_177 = arith.constant 0 : index
    %464 = vector.load %arg47[%c0_175, %c0_176, %c0_177] : memref<2x8x256xf32, #tpu.memory_space<vmem>>, vector<2x8x256xf32>
    tpu.vector_store %arg47[%c0_175, %c0_176, %c0_177], %463 {strides = array<i32>} : memref<2x8x256xf32, #tpu.memory_space<vmem>>, vector<2x8x256xf32>,
    return
  }
  func.func @transform_0(%arg0: i32, %arg1: i32) -> (i32, i32, i32) {
    %c0_i32 = arith.constant 0 : i32
    %c0_i32_0 = arith.constant 0 : i32
    %c0_i32_1 = arith.constant 0 : i32
    return %arg0, %c0_i32, %c0_i32_0 : i32, i32, i32
  }
  func.func @transform_1(%arg0: i32, %arg1: i32) -> (i32, i32, i32) {
    %c0_i32 = arith.constant 0 : i32
    %c0_i32_0 = arith.constant 0 : i32
    %c0_i32_1 = arith.constant 0 : i32
    return %arg0, %c0_i32, %c0_i32_0 : i32, i32, i32
  }
  func.func @transform_2(%arg0: i32, %arg1: i32) -> (i32, i32, i32) {
    %c0_i32 = arith.constant 0 : i32
    %c0_i32_0 = arith.constant 0 : i32
    %c0_i32_1 = arith.constant 0 : i32
    return %arg0, %c0_i32, %c0_i32_0 : i32, i32, i32
  }
  func.func @transform_3(%arg0: i32, %arg1: i32) -> (i32, i32, i32) {
    %c0_i32 = arith.constant 0 : i32
    %c0_i32_0 = arith.constant 0 : i32
    %c0_i32_1 = arith.constant 0 : i32
    return %arg0, %c0_i32, %c0_i32_0 : i32, i32, i32
  }
  func.func @transform_4(%arg0: i32, %arg1: i32) -> (i32, i32, i32) {
    %c0_i32 = arith.constant 0 : i32
    %c0_i32_0 = arith.constant 0 : i32
    %c0_i32_1 = arith.constant 0 : i32
    return %arg0, %c0_i32, %c0_i32_0 : i32, i32, i32
  }
  func.func @transform_5(%arg0: i32, %arg1: i32) -> (i32, i32, i32) {
    %c0_i32 = arith.constant 0 : i32
    %c0_i32_0 = arith.constant 0 : i32
    %c0_i32_1 = arith.constant 0 : i32
    return %arg0, %c0_i32, %c0_i32_0 : i32, i32, i32
  }
  func.func @transform_6(%arg0: i32, %arg1: i32) -> (i32, i32, i32) {
    %c0_i32 = arith.constant 0 : i32
    %c0_i32_0 = arith.constant 0 : i32
    %c0_i32_1 = arith.constant 0 : i32
    return %arg0, %c0_i32, %c0_i32_0 : i32, i32, i32
  }
  func.func @transform_7(%arg0: i32, %arg1: i32) -> (i32, i32, i32) {
    %c0_i32 = arith.constant 0 : i32
    %c0_i32_0 = arith.constant 0 : i32
    %c0_i32_1 = arith.constant 0 : i32
    return %arg1, %c0_i32, %c0_i32_0 : i32, i32, i32
  }
  func.func @transform_8(%arg0: i32, %arg1: i32) -> (i32, i32, i32) {
    %c0_i32 = arith.constant 0 : i32
    %c0_i32_0 = arith.constant 0 : i32
    %c0_i32_1 = arith.constant 0 : i32
    return %arg1, %c0_i32, %c0_i32_0 : i32, i32, i32
  }
  func.func @transform_9(%arg0: i32, %arg1: i32) -> (i32, i32, i32) {
    %c0_i32 = arith.constant 0 : i32
    %c0_i32_0 = arith.constant 0 : i32
    %c0_i32_1 = arith.constant 0 : i32
    return %arg1, %c0_i32, %c0_i32_0 : i32, i32, i32
  }
  func.func @transform_10(%arg0: i32, %arg1: i32) -> (i32, i32, i32) {
    %c0_i32 = arith.constant 0 : i32
    %c0_i32_0 = arith.constant 0 : i32
    %c0_i32_1 = arith.constant 0 : i32
    return %arg1, %c0_i32, %c0_i32_0 : i32, i32, i32
  }
  func.func @transform_11(%arg0: i32, %arg1: i32) -> (i32, i32, i32) {
    %c0_i32 = arith.constant 0 : i32
    %c0_i32_0 = arith.constant 0 : i32
    %c0_i32_1 = arith.constant 0 : i32
    return %arg1, %c0_i32, %c0_i32_0 : i32, i32, i32
  }
  func.func @transform_12(%arg0: i32, %arg1: i32) -> (i32, i32, i32) {
    %c0_i32 = arith.constant 0 : i32
    %c0_i32_0 = arith.constant 0 : i32
    %c0_i32_1 = arith.constant 0 : i32
    return %arg1, %c0_i32, %c0_i32_0 : i32, i32, i32
  }
  func.func @transform_13(%arg0: i32, %arg1: i32) -> (i32, i32, i32) {
    %c0_i32 = arith.constant 0 : i32
    %c0_i32_0 = arith.constant 0 : i32
    %c0_i32_1 = arith.constant 0 : i32
    return %arg1, %c0_i32, %c0_i32_0 : i32, i32, i32
  }
  func.func @transform_14(%arg0: i32, %arg1: i32) -> (i32, i32, i32) {
    %c0_i32 = arith.constant 0 : i32
    %c0_i32_0 = arith.constant 0 : i32
    %c0_i32_1 = arith.constant 0 : i32
    return %arg1, %c0_i32, %c0_i32_0 : i32, i32, i32
  }
  func.func @transform_15(%arg0: i32, %arg1: i32) -> (i32, i32, i32) {
    %c0_i32 = arith.constant 0 : i32
    %c0_i32_0 = arith.constant 0 : i32
    %c0_i32_1 = arith.constant 0 : i32
    return %arg1, %c0_i32, %c0_i32_0 : i32, i32, i32
  }
  func.func @transform_16(%arg0: i32, %arg1: i32) -> (i32, i32, i32) {
    %c0_i32 = arith.constant 0 : i32
    %c0_i32_0 = arith.constant 0 : i32
    %c0_i32_1 = arith.constant 0 : i32
    return %arg1, %c0_i32, %c0_i32_0 : i32, i32, i32
  }
  func.func @transform_17(%arg0: i32, %arg1: i32) -> (i32, i32, i32) {
    %c0_i32 = arith.constant 0 : i32
    %c0_i32_0 = arith.constant 0 : i32
    %c0_i32_1 = arith.constant 0 : i32
    return %arg1, %c0_i32, %c0_i32_0 : i32, i32, i32
  }
  func.func @transform_18(%arg0: i32, %arg1: i32) -> (i32, i32, i32) {
    %c0_i32 = arith.constant 0 : i32
    %c0_i32_0 = arith.constant 0 : i32
    %c0_i32_1 = arith.constant 0 : i32
    return %arg1, %c0_i32, %c0_i32_0 : i32, i32, i32
  }
  func.func @transform_19(%arg0: i32, %arg1: i32) -> (i32, i32, i32) {
    %c0_i32 = arith.constant 0 : i32
    %c0_i32_0 = arith.constant 0 : i32
    %c0_i32_1 = arith.constant 0 : i32
    return %arg1, %c0_i32, %c0_i32_0 : i32, i32, i32
  }
  func.func @transform_20(%arg0: i32, %arg1: i32) -> (i32, i32, i32) {
    %c0_i32 = arith.constant 0 : i32
    %c0_i32_0 = arith.constant 0 : i32
    %c0_i32_1 = arith.constant 0 : i32
    return %arg1, %c0_i32, %c0_i32_0 : i32, i32, i32
  }
  func.func @transform_21(%arg0: i32, %arg1: i32) -> (i32, i32, i32) {
    %c0_i32 = arith.constant 0 : i32
    %c0_i32_0 = arith.constant 0 : i32
    %c0_i32_1 = arith.constant 0 : i32
    return %arg1, %c0_i32, %c0_i32_0 : i32, i32, i32
  }
  func.func @transform_22(%arg0: i32, %arg1: i32) -> (i32, i32, i32) {
    %c0_i32 = arith.constant 0 : i32
    %c0_i32_0 = arith.constant 0 : i32
    %c0_i32_1 = arith.constant 0 : i32
    return %arg1, %c0_i32, %c0_i32_0 : i32, i32, i32
  }
  func.func @transform_23(%arg0: i32, %arg1: i32) -> (i32, i32, i32) {
    %c0_i32 = arith.constant 0 : i32
    %c0_i32_0 = arith.constant 0 : i32
    %c0_i32_1 = arith.constant 0 : i32
    return %arg1, %c0_i32, %c0_i32_0 : i32, i32, i32
  }
  func.func @transform_24(%arg0: i32, %arg1: i32) -> (i32, i32, i32) {
    %c0_i32 = arith.constant 0 : i32
    %c0_i32_0 = arith.constant 0 : i32
    %c0_i32_1 = arith.constant 0 : i32
    return %arg1, %c0_i32, %c0_i32_0 : i32, i32, i32
  }
  func.func @transform_25(%arg0: i32, %arg1: i32) -> (i32, i32, i32) {
    %c0_i32 = arith.constant 0 : i32
    %c0_i32_0 = arith.constant 0 : i32
    %c0_i32_1 = arith.constant 0 : i32
    return %arg1, %c0_i32, %c0_i32_0 : i32, i32, i32
  }
  func.func @transform_26(%arg0: i32, %arg1: i32) -> (i32, i32, i32) {
    %c0_i32 = arith.constant 0 : i32
    %c0_i32_0 = arith.constant 0 : i32
    %c0_i32_1 = arith.constant 0 : i32
    return %arg1, %c0_i32, %c0_i32_0 : i32, i32, i32
  }
  func.func @transform_27(%arg0: i32, %arg1: i32) -> (i32, i32, i32) {
    %c0_i32 = arith.constant 0 : i32
    %c0_i32_0 = arith.constant 0 : i32
    %c0_i32_1 = arith.constant 0 : i32
    return %arg1, %c0_i32, %c0_i32_0 : i32, i32, i32
  }
  func.func @transform_28(%arg0: i32, %arg1: i32) -> (i32, i32, i32) {
    %c0_i32 = arith.constant 0 : i32
    %c0_i32_0 = arith.constant 0 : i32
    %c0_i32_1 = arith.constant 0 : i32
    return %arg1, %c0_i32, %c0_i32_0 : i32, i32, i32
  }
  func.func @transform_29(%arg0: i32, %arg1: i32) -> (i32, i32, i32) {
    %c0_i32 = arith.constant 0 : i32
    %c0_i32_0 = arith.constant 0 : i32
    %c0_i32_1 = arith.constant 0 : i32
    return %arg1, %c0_i32, %c0_i32_0 : i32, i32, i32
  }
  func.func @transform_30(%arg0: i32, %arg1: i32) -> (i32, i32, i32) {
    %c0_i32 = arith.constant 0 : i32
    %c0_i32_0 = arith.constant 0 : i32
    %c0_i32_1 = arith.constant 0 : i32
    return %arg1, %c0_i32, %c0_i32_0 : i32, i32, i32
  }
  func.func @transform_31(%arg0: i32, %arg1: i32) -> (i32, i32, i32) {
    %c0_i32 = arith.constant 0 : i32
    %c0_i32_0 = arith.constant 0 : i32
    %c0_i32_1 = arith.constant 0 : i32
    return %arg1, %c0_i32, %c0_i32_0 : i32, i32, i32
  }
  func.func @transform_32(%arg0: i32, %arg1: i32) -> (i32, i32, i32) {
    %c0_i32 = arith.constant 0 : i32
    %c0_i32_0 = arith.constant 0 : i32
    %c0_i32_1 = arith.constant 0 : i32
    return %arg1, %c0_i32, %c0_i32_0 : i32, i32, i32
  }
  func.func @transform_33(%arg0: i32, %arg1: i32) -> (i32, i32, i32) {
    %c0_i32 = arith.constant 0 : i32
    %c0_i32_0 = arith.constant 0 : i32
    %c0_i32_1 = arith.constant 0 : i32
    return %arg1, %c0_i32, %c0_i32_0 : i32, i32, i32
  }
  func.func @transform_34(%arg0: i32, %arg1: i32) -> (i32, i32, i32) {
    %c0_i32 = arith.constant 0 : i32
    %c0_i32_0 = arith.constant 0 : i32
    %c0_i32_1 = arith.constant 0 : i32
    return %arg1, %c0_i32, %c0_i32_0 : i32, i32, i32
  }
  func.func @transform_35(%arg0: i32, %arg1: i32) -> (i32, i32, i32) {
    %c0_i32 = arith.constant 0 : i32
    %c0_i32_0 = arith.constant 0 : i32
    %c0_i32_1 = arith.constant 0 : i32
    return %arg1, %c0_i32, %c0_i32_0 : i32, i32, i32
  }
  func.func @transform_36(%arg0: i32, %arg1: i32) -> (i32, i32, i32) {
    %c0_i32 = arith.constant 0 : i32
    %c0_i32_0 = arith.constant 0 : i32
    %c0_i32_1 = arith.constant 0 : i32
    return %arg1, %c0_i32, %c0_i32_0 : i32, i32, i32
  }
  func.func @transform_37(%arg0: i32, %arg1: i32) -> (i32, i32, i32) {
    %c0_i32 = arith.constant 0 : i32
    %c0_i32_0 = arith.constant 0 : i32
    %c0_i32_1 = arith.constant 0 : i32
    return %arg1, %c0_i32, %c0_i32_0 : i32, i32, i32
  }
  func.func @transform_38(%arg0: i32, %arg1: i32) -> (i32, i32, i32) {
    %c0_i32 = arith.constant 0 : i32
    %c0_i32_0 = arith.constant 0 : i32
    %c0_i32_1 = arith.constant 0 : i32
    return %arg1, %c0_i32, %c0_i32_0 : i32, i32, i32
  }
  func.func @transform_39(%arg0: i32, %arg1: i32) -> (i32, i32, i32) {
    %c0_i32 = arith.constant 0 : i32
    %c0_i32_0 = arith.constant 0 : i32
    %c0_i32_1 = arith.constant 0 : i32
    return %arg1, %c0_i32, %c0_i32_0 : i32, i32, i32
  }
  func.func @transform_40(%arg0: i32, %arg1: i32) -> (i32, i32, i32) {
    %c0_i32 = arith.constant 0 : i32
    %c0_i32_0 = arith.constant 0 : i32
    %c0_i32_1 = arith.constant 0 : i32
    return %arg1, %c0_i32, %c0_i32_0 : i32, i32, i32
  }
  func.func @transform_41(%arg0: i32, %arg1: i32) -> (i32, i32) {
    %c0_i32 = arith.constant 0 : i32
    %c0_i32_0 = arith.constant 0 : i32
    %c0_i32_1 = arith.constant 0 : i32
    return %c0_i32, %c0_i32_0 : i32, i32
  }
  func.func @transform_42(%arg0: i32, %arg1: i32) -> (i32, i32) {
    %c0_i32 = arith.constant 0 : i32
    %c0_i32_0 = arith.constant 0 : i32
    %c0_i32_1 = arith.constant 0 : i32
    return %c0_i32, %c0_i32_0 : i32, i32
  }
  func.func @transform_43(%arg0: i32, %arg1: i32) -> (i32, i32) {
    %c0_i32 = arith.constant 0 : i32
    %c0_i32_0 = arith.constant 0 : i32
    %c0_i32_1 = arith.constant 0 : i32
    return %c0_i32, %c0_i32_0 : i32, i32
  }
  func.func @transform_44(%arg0: i32, %arg1: i32) -> (i32, i32) {
    %c0_i32 = arith.constant 0 : i32
    %c0_i32_0 = arith.constant 0 : i32
    %c0_i32_1 = arith.constant 0 : i32
    return %c0_i32, %c0_i32_0 : i32, i32
  }
  func.func @transform_45(%arg0: i32, %arg1: i32) -> (i32, i32, i32) {
    %c0_i32 = arith.constant 0 : i32
    %c0_i32_0 = arith.constant 0 : i32
    %c0_i32_1 = arith.constant 0 : i32
    return %arg0, %c0_i32, %c0_i32_0 : i32, i32, i32
  }
}

</mosaic_0001>

<llo_original>
// kernel: tpu_custom_call.1
$region0: #{tpu_custom_call.1}
  #allocation0 [shape = 'u32[]', space=smem, size = 0x4, offset = 0x4, fixed_abs, tag = 'smem constant byte address 0x4 - core index']
  #allocation1 [shape = 'u32[72,128]{1,0:T(1,128)}', space=vmem, size = 0x9000, scoped, tag = 'internal scratch']
  %s0 = inlined_call_operand.smem [shape: u32[46], index: -1, kind: input, shape index: {}]
  %s1 = sld [smem:[%s0]]
  %s2 = scalar_lea.smem %s0, 1
  %s3 = sld [smem:[%s2]]
  %s4 = scalar_lea.smem %s0, 2
  %s5 = sld [smem:[%s4]]
  %s6 = scalar_lea.smem %s0, 3
  %s7 = sld [smem:[%s6]]
  %s8 = scalar_lea.smem %s0, 4
  %s9 = sld [smem:[%s8]]
  %s10 = scalar_lea.smem %s0, 5
  %s11 = sld [smem:[%s10]]
  %s12 = scalar_lea.smem %s0, 6
  %s13 = sld [smem:[%s12]]
  %s14 = scalar_lea.smem %s0, 7
  %s15 = sld [smem:[%s14]]
  %s16 = scalar_lea.smem %s0, 8
  %s17 = sld [smem:[%s16]]
  %s18 = scalar_lea.smem %s0, 9
  %s19 = sld [smem:[%s18]]
  %s20 = scalar_lea.smem %s0, 10
  %s21 = sld [smem:[%s20]]
  %s22 = scalar_lea.smem %s0, 11
  %s23 = sld [smem:[%s22]]
  %s24 = scalar_lea.smem %s0, 12
  %s25 = sld [smem:[%s24]]
  %s26 = scalar_lea.smem %s0, 13
  %s27 = sld [smem:[%s26]]
  %s28 = scalar_lea.smem %s0, 14
  %s29 = sld [smem:[%s28]]
  %s30 = scalar_lea.smem %s0, 15
  %s31 = sld [smem:[%s30]]
  %s32 = scalar_lea.smem %s0, 16
  %s33 = sld [smem:[%s32]]
  %s34 = scalar_lea.smem %s0, 17
  %s35 = sld [smem:[%s34]]
  %s36 = scalar_lea.smem %s0, 18
  %s37 = sld [smem:[%s36]]
  %s38 = scalar_lea.smem %s0, 19
  %s39 = sld [smem:[%s38]]
  %s40 = scalar_lea.smem %s0, 20
  %s41 = sld [smem:[%s40]]
  %s42 = scalar_lea.smem %s0, 21
  %s43 = sld [smem:[%s42]]
  %s44 = scalar_lea.smem %s0, 22
  %s45 = sld [smem:[%s44]]
  %s46 = scalar_lea.smem %s0, 23
  %s47 = sld [smem:[%s46]]
  %s48 = scalar_lea.smem %s0, 24
  %s49 = sld [smem:[%s48]]
  %s50 = scalar_lea.smem %s0, 25
  %s51 = sld [smem:[%s50]]
  %s52 = scalar_lea.smem %s0, 26
  %s53 = sld [smem:[%s52]]
  %s54 = scalar_lea.smem %s0, 27
  %s55 = sld [smem:[%s54]]
  %s56 = scalar_lea.smem %s0, 28
  %s57 = sld [smem:[%s56]]
  %s58 = scalar_lea.smem %s0, 29
  %s59 = sld [smem:[%s58]]
  %s60 = scalar_lea.smem %s0, 30
  %s61 = sld [smem:[%s60]]
  %s62 = scalar_lea.smem %s0, 31
  %s63 = sld [smem:[%s62]]
  %s64 = scalar_lea.smem %s0, 32
  %s65 = sld [smem:[%s64]]
  %s66 = scalar_lea.smem %s0, 33
  %s67 = sld [smem:[%s66]]
  %s68 = scalar_lea.smem %s0, 34
  %s69 = sld [smem:[%s68]]
  %s70 = scalar_lea.smem %s0, 35
  %s71 = sld [smem:[%s70]]
  %s72 = scalar_lea.smem %s0, 36
  %s73 = sld [smem:[%s72]]
  %s74 = scalar_lea.smem %s0, 37
  %s75 = sld [smem:[%s74]]
  %s76 = scalar_lea.smem %s0, 38
  %s77 = sld [smem:[%s76]]
  %s78 = scalar_lea.smem %s0, 39
  %s79 = sld [smem:[%s78]]
  %s80 = scalar_lea.smem %s0, 40
  %s81 = sld [smem:[%s80]]
  %s82 = scalar_lea.smem %s0, 41
  %s83 = sld [smem:[%s82]]
  %s84 = scalar_lea.smem %s0, 42
  %s85 = sld [smem:[%s84]]
  %s86 = scalar_lea.smem %s0, 43
  %s87 = sld [smem:[%s86]]
  %s88 = scalar_lea.smem %s0, 44
  %s89 = sld [smem:[%s88]]
  %s90 = scalar_lea.smem %s0, 45
  %s91 = sld [smem:[%s90]]
  %s92 = sld [smem:[#allocation0]]
  $region353: #{tpu_custom_call.1} parent=0
    _
  %s94 = ssub.s32 1, %s92
  %s95 = scalar_select 0, %s94, %s92
  $region1: #{tpu_custom_call.1} parent=0
    #allocation2 [shape = 'u8[16384]{0}', space=vmem, size = 0x4000, scoped, tag = 'input window, operand 0, single buffered']
    #allocation3 [shape = 's32[2]{0}', space=sflag, size = 0x8, scoped, tag = 'scoped memory for tpu_custom_call.1']
    #allocation4 [shape = 's32[2]{0}', space=sflag, size = 0x8, scoped, tag = 'scoped memory for tpu_custom_call.1']
    #allocation5 [shape = 'u8[32768]{0}', space=vmem, size = 0x8000, scoped, tag = 'input window, operand 1, single buffered']
    #allocation6 [shape = 's32[1]{0}', space=sflag, size = 0x4, scoped, tag = 'scoped memory for tpu_custom_call.1']
    #allocation7 [shape = 'u8[16384]{0}', space=vmem, size = 0x4000, scoped, tag = 'input window, operand 2, single buffered']
    #allocation8 [shape = 'u8[32768]{0}', space=vmem, size = 0x8000, scoped, tag = 'input window, operand 3, single buffered']
    #allocation9 [shape = 's32[1]{0}', space=sflag, size = 0x4, scoped, tag = 'scoped memory for tpu_custom_call.1']
    #allocation10 [shape = 'u8[16384]{0}', space=vmem, size = 0x4000, scoped, tag = 'input window, operand 4, single buffered']
    #allocation11 [shape = 'u8[16384]{0}', space=vmem, size = 0x4000, scoped, tag = 'input window, operand 5, single buffered']
    #allocation12 [shape = 's32[1]{0}', space=sflag, size = 0x4, scoped, tag = 'scoped memory for tpu_custom_call.1']
    #allocation13 [shape = 'u8[1024]{0}', space=vmem, size = 0x400, scoped, tag = 'input window, operand 6, single buffered']
    #allocation14 [shape = 'u8[262144]{0}', space=vmem, size = 0x40000, scoped, tag = 'input window, operand 7']
    #allocation15 [shape = 's32[2]{0}', space=sflag, size = 0x8, scoped, tag = 'scoped memory for tpu_custom_call.1']
    #allocation16 [shape = 'u8[262144]{0}', space=vmem, size = 0x40000, scoped, tag = 'input window, operand 9']
    #allocation17 [shape = 'u8[262144]{0}', space=vmem, size = 0x40000, scoped, tag = 'input window, operand 11']
    #allocation18 [shape = 's32[2]{0}', space=sflag, size = 0x8, scoped, tag = 'scoped memory for tpu_custom_call.1']
    #allocation19 [shape = 'u8[2048]{0}', space=vmem, size = 0x800, scoped, tag = 'input window, operand 12']
    #allocation20 [shape = 'u8[262144]{0}', space=vmem, size = 0x40000, scoped, tag = 'input window, operand 13']
    #allocation21 [shape = 's32[2]{0}', space=sflag, size = 0x8, scoped, tag = 'scoped memory for tpu_custom_call.1']
    #allocation22 [shape = 'u8[262144]{0}', space=vmem, size = 0x40000, scoped, tag = 'input window, operand 15']
    #allocation23 [shape = 'u8[2048]{0}', space=vmem, size = 0x800, scoped, tag = 'input window, operand 16']
    #allocation24 [shape = 's32[2]{0}', space=sflag, size = 0x8, scoped, tag = 'scoped memory for tpu_custom_call.1']
    #allocation25 [shape = 'u8[262144]{0}', space=vmem, size = 0x40000, scoped, tag = 'input window, operand 17']
    #allocation26 [shape = 'u8[2048]{0}', space=vmem, size = 0x800, scoped, tag = 'input window, operand 19']
    #allocation27 [shape = 's32[2]{0}', space=sflag, size = 0x8, scoped, tag = 'scoped memory for tpu_custom_call.1']
    #allocation28 [shape = 'u8[2048]{0}', space=vmem, size = 0x800, scoped, tag = 'input window, operand 20']
    #allocation29 [shape = 'u8[262144]{0}', space=vmem, size = 0x40000, scoped, tag = 'input window, operand 21']
    #allocation30 [shape = 's32[2]{0}', space=sflag, size = 0x8, scoped, tag = 'scoped memory for tpu_custom_call.1']
    #allocation31 [shape = 'u8[262144]{0}', space=vmem, size = 0x40000, scoped, tag = 'input window, operand 23']
    #allocation32 [shape = 'u8[2048]{0}', space=vmem, size = 0x800, scoped, tag = 'input window, operand 24']
    #allocation33 [shape = 's32[2]{0}', space=sflag, size = 0x8, scoped, tag = 'scoped memory for tpu_custom_call.1']
    #allocation34 [shape = 'u8[262144]{0}', space=vmem, size = 0x40000, scoped, tag = 'input window, operand 25']
    #allocation35 [shape = 'u8[262144]{0}', space=vmem, size = 0x40000, scoped, tag = 'input window, operand 27']
    #allocation36 [shape = 's32[2]{0}', space=sflag, size = 0x8, scoped, tag = 'scoped memory for tpu_custom_call.1']
    #allocation37 [shape = 'u8[2048]{0}', space=vmem, size = 0x800, scoped, tag = 'input window, operand 28']
    #allocation38 [shape = 'u8[262144]{0}', space=vmem, size = 0x40000, scoped, tag = 'input window, operand 29']
    #allocation39 [shape = 's32[2]{0}', space=sflag, size = 0x8, scoped, tag = 'scoped memory for tpu_custom_call.1']
    #allocation40 [shape = 'u8[262144]{0}', space=vmem, size = 0x40000, scoped, tag = 'input window, operand 31']
    #allocation41 [shape = 'u8[2048]{0}', space=vmem, size = 0x800, scoped, tag = 'input window, operand 32']
    #allocation42 [shape = 's32[2]{0}', space=sflag, size = 0x8, scoped, tag = 'scoped memory for tpu_custom_call.1']
    #allocation43 [shape = 'u8[2048]{0}', space=vmem, size = 0x800, scoped, tag = 'input window, operand 33']
    #allocation44 [shape = 'u8[131072]{0}', space=vmem, size = 0x20000, scoped, tag = 'input window, operand 35']
    #allocation45 [shape = 's32[2]{0}', space=sflag, size = 0x8, scoped, tag = 'scoped memory for tpu_custom_call.1']
    #allocation46 [shape = 'u8[1024]{0}', space=vmem, size = 0x400, scoped, tag = 'input window, operand 36']
    #allocation47 [shape = 'u8[131072]{0}', space=vmem, size = 0x20000, scoped, tag = 'input window, operand 37']
    #allocation48 [shape = 's32[2]{0}', space=sflag, size = 0x8, scoped, tag = 'scoped memory for tpu_custom_call.1']
    #allocation49 [shape = 'u8[2048]{0}', space=vmem, size = 0x800, scoped, tag = 'input window, operand 39']
    #allocation50 [shape = 'u8[2048]{0}', space=vmem, size = 0x800, scoped, tag = 'input window, operand 40']
    #allocation51 [shape = 's32[2]{0}', space=sflag, size = 0x8, scoped, tag = 'scoped memory for tpu_custom_call.1']
    #allocation52 [shape = 'u8[131072]{0}', space=vmem, size = 0x20000, scoped, tag = 'input window, operand 41, single buffered']
    #allocation53 [shape = 'u8[131072]{0}', space=vmem, size = 0x20000, scoped, tag = 'input window, operand 43, single buffered']
    #allocation54 [shape = 's32[1]{0}', space=sflag, size = 0x4, scoped, tag = 'scoped memory for tpu_custom_call.1']
    #allocation55 [shape = 'u8[16384]{0}', space=vmem, size = 0x4000, scoped, tag = 'output window, operand 0, single buffered']
    %96 = vsyncpa [#allocation3], 0
    %97 = vsyncpa [#allocation6], 0
    %98 = vsyncpa [#allocation9], 0
    %99 = vsyncpa [#allocation12], 0
    %100 = vsyncpa [#allocation15], 0
    %s101 = scalar_lea.sflag [#allocation15], 1
    %102 = vsyncpa %s101, 0
    %103 = vsyncpa [#allocation18], 0
    %s104 = scalar_lea.sflag [#allocation18], 1
    %105 = vsyncpa %s104, 0
    %106 = vsyncpa [#allocation21], 0
    %s107 = scalar_lea.sflag [#allocation21], 1
    %108 = vsyncpa %s107, 0
    %109 = vsyncpa [#allocation24], 0
    %s110 = scalar_lea.sflag [#allocation24], 1
    %111 = vsyncpa %s110, 0
    %112 = vsyncpa [#allocation27], 0
    %s113 = scalar_lea.sflag [#allocation27], 1
    %114 = vsyncpa %s113, 0
    %115 = vsyncpa [#allocation30], 0
    %s116 = scalar_lea.sflag [#allocation30], 1
    %117 = vsyncpa %s116, 0
    %118 = vsyncpa [#allocation33], 0
    %s119 = scalar_lea.sflag [#allocation33], 1
    %120 = vsyncpa %s119, 0
    %121 = vsyncpa [#allocation36], 0
    %s122 = scalar_lea.sflag [#allocation36], 1
    %123 = vsyncpa %s122, 0
    %124 = vsyncpa [#allocation39], 0
    %s125 = scalar_lea.sflag [#allocation39], 1
    %126 = vsyncpa %s125, 0
    %127 = vsyncpa [#allocation42], 0
    %s128 = scalar_lea.sflag [#allocation42], 1
    %129 = vsyncpa %s128, 0
    %130 = vsyncpa [#allocation45], 0
    %s131 = scalar_lea.sflag [#allocation45], 1
    %132 = vsyncpa %s131, 0
    %133 = vsyncpa [#allocation48], 0
    %s134 = scalar_lea.sflag [#allocation48], 1
    %135 = vsyncpa %s134, 0
    %136 = vsyncpa [#allocation51], 0
    %s137 = scalar_lea.sflag [#allocation51], 1
    %138 = vsyncpa %s137, 0
    %139 = vsyncpa [#allocation54], 0
    %140 = vsyncpa [#allocation4], 0
    loop: start=0, step=1, limit=4
    $region2: #{tpu_custom_call.1} parent=1 // loop_pre_header
      _
    $region3: #{tpu_custom_call.1} parent=1 // loop_header
      %s142 = sphi 0, %s146
      %p143 = scmp.ge.s32.totalorder %s142, 4
      %s149 = sphi 0, %s161
      %s150 = sphi 0, %s157
      %s151 = sphi 0, %s149
      %s152 = sphi 0, %s150
      %s153 = sphi 0, %s151
      %s154 = sphi 0, %s152
      %s164 = sphi 0, %s166
      %s167 = sphi 0, %s164
      %s168 = sphi 0, %s167
      %s184 = sphi 0, %s168
      %s190 = sphi 0, %s192
      %s193 = sphi 0, %s190
      %s194 = sphi 0, %s193
      %s210 = sphi 0, %s194
      %s216 = sphi 0, %s218
      %s219 = sphi 0, %s216
      %s220 = sphi 0, %s219
      %s236 = sphi 0, %s220
      %s242 = sphi 0, %s244
      %s245 = sphi 0, %s242
      %s246 = sphi 0, %s245
      %s262 = sphi 0, %s246
      %s268 = sphi 0, %s270
      %s271 = sphi 0, %s268
      %s272 = sphi 0, %s271
      %s288 = sphi 0, %s272
      %s294 = sphi 0, %s296
      %s297 = sphi 0, %s294
      %s298 = sphi 0, %s297
      %s314 = sphi 0, %s298
      %s320 = sphi 0, %s322
      %s323 = sphi 0, %s320
      %s324 = sphi 0, %s323
      %s340 = sphi 0, %s324
      %s346 = sphi 0, %s348
      %s349 = sphi 0, %s346
      %s350 = sphi 0, %s349
      %s366 = sphi 0, %s350
      %s372 = sphi 0, %s374
      %s375 = sphi 0, %s372
      %s376 = sphi 0, %s375
      %s392 = sphi 0, %s376
      %s398 = sphi 0, %s400
      %s401 = sphi 0, %s398
      %s402 = sphi 0, %s401
      %s418 = sphi 0, %s402
      %s424 = sphi 0, %s426
      %s427 = sphi 0, %s424
      %s428 = sphi 0, %s427
      %s444 = sphi 0, %s428
      %s450 = sphi 0, %s452
      %s453 = sphi 0, %s450
      %s454 = sphi 0, %s453
      %s470 = sphi 0, %s454
      %s476 = sphi 0, %s478
      %s479 = sphi 0, %s476
      %s480 = sphi 0, %s479
      %s496 = sphi 0, %s480
      %s502 = sphi 0, %s504
      %s505 = sphi 0, %s502
      %s506 = sphi 0, %s505
      %s522 = sphi 0, %s506
      %s528 = sphi 0, %s530
      %s531 = sphi 0, %s528
      %s532 = sphi 0, %s531
      %s548 = sphi 0, %s532
      %s554 = sphi 0, %s556
      %s557 = sphi 0, %s554
      %s558 = sphi 0, %s557
      %s574 = sphi 0, %s558
      %s580 = sphi 0, %s582
      %s583 = sphi 0, %s580
      %s584 = sphi 0, %s583
      %s600 = sphi 0, %s584
      %s606 = sphi 0, %s608
      %s609 = sphi 0, %s606
      %s610 = sphi 0, %s609
      %s626 = sphi 0, %s610
      %s632 = sphi 0, %s634
      %s635 = sphi 0, %s632
      %s636 = sphi 0, %s635
      %s652 = sphi 0, %s636
      %s658 = sphi 0, %s660
      %s661 = sphi 0, %s658
      %s662 = sphi 0, %s661
      %s678 = sphi 0, %s662
      %s684 = sphi 0, %s686
      %s687 = sphi 0, %s684
      %s688 = sphi 0, %s687
      %s704 = sphi 0, %s688
      %s710 = sphi 0, %s712
      %s713 = sphi 0, %s710
      %s714 = sphi 0, %s713
      %s730 = sphi 0, %s714
      %s736 = sphi 0, %s738
      %s739 = sphi 0, %s736
      %s740 = sphi 0, %s739
      %s756 = sphi 0, %s740
      %s762 = sphi 0, %s764
      %s765 = sphi 0, %s762
      %s766 = sphi 0, %s765
      %s782 = sphi 0, %s766
      %s788 = sphi 0, %s790
      %s791 = sphi 0, %s788
      %s792 = sphi 0, %s791
      %s808 = sphi 0, %s792
      %s814 = sphi 0, %s816
      %s817 = sphi 0, %s814
      %s818 = sphi 0, %s817
      %s834 = sphi 0, %s818
      %s840 = sphi 0, %s842
      %s843 = sphi 0, %s840
      %s844 = sphi 0, %s843
      %s860 = sphi 0, %s844
      %s866 = sphi 0, %s868
      %s869 = sphi 0, %s866
      %s870 = sphi 0, %s869
      %s886 = sphi 0, %s870
      %s892 = sphi 0, %s894
      %s895 = sphi 0, %s892
      %s896 = sphi 0, %s895
      %s912 = sphi 0, %s896
      %s918 = sphi 0, %s920
      %s921 = sphi 0, %s918
      %s922 = sphi 0, %s921
      %s938 = sphi 0, %s922
      %s944 = sphi 0, %s946
      %s947 = sphi 0, %s944
      %s948 = sphi 0, %s947
      %s964 = sphi 0, %s948
      %s970 = sphi 0, %s972
      %s973 = sphi 0, %s970
      %s974 = sphi 0, %s973
      %s990 = sphi 0, %s974
      %s996 = sphi 0, %s998
      %s999 = sphi 0, %s996
      %s1000 = sphi 0, %s999
      %s1016 = sphi 0, %s1000
      %s1022 = sphi 0, %s1024
      %s1025 = sphi 0, %s1022
      %s1026 = sphi 0, %s1025
      %s1042 = sphi 0, %s1026
      %s1048 = sphi 0, %s1050
      %s1051 = sphi 0, %s1048
      %s1052 = sphi 0, %s1051
      %s1068 = sphi 0, %s1052
      %s1074 = sphi 0, %s1076
      %s1077 = sphi 0, %s1074
      %s1078 = sphi 0, %s1077
      %s1094 = sphi 0, %s1078
      %s1100 = sphi 0, %s1102
      %s1103 = sphi 0, %s1100
      %s1104 = sphi 0, %s1103
      %s1120 = sphi 0, %s1104
      %s1126 = sphi 0, %s1128
      %s1129 = sphi 0, %s1126
      %s1130 = sphi 0, %s1129
      %s1146 = sphi 0, %s1130
      %s1152 = sphi 0, %s1154
      %s1155 = sphi 0, %s1152
      %s1156 = sphi 0, %s1155
      %s1172 = sphi 0, %s1156
      %s1178 = sphi 0, %s1180
      %s1181 = sphi 0, %s1178
      %s1182 = sphi 0, %s1181
      %s1198 = sphi 0, %s1182
      %s1204 = sphi 0, %s1206
      %s1207 = sphi 0, %s1204
      %s1208 = sphi 0, %s1207
      %s1224 = sphi 0, %s1208
      %s1228 = sphi 0, %s1228
      %s1230 = sphi 0, %s1228
      %s1231 = sphi 0, %s1230
      %s1245 = sphi 0, %s1231
      %s1249 = sphi 0, %s1249
      %s1251 = sphi 0, %s1249
      %s1252 = sphi 0, %s1251
      %s1266 = sphi 0, %s1252
      %s1270 = sphi 0, %s1270
      %s1272 = sphi 0, %s1270
      %s1273 = sphi 0, %s1272
      %s1287 = sphi 0, %s1273
      %s1291 = sphi 0, %s1291
      %s1293 = sphi 0, %s1291
      %s1294 = sphi 0, %s1293
      %s1308 = sphi 0, %s1294
      %s1314 = sphi 0, %s1316
      %s1317 = sphi 0, %s1314
      %s1318 = sphi 0, %s1317
      %s1334 = sphi 0, %s1318
    $region4: #{tpu_custom_call.1} parent=1 // loop_header_branch
      %145 = sbr.rel (%p143) target = $region8
    $region5: #{tpu_custom_call.1} parent=1 // loop_body
      %s147 = ssub.s32 %s142, 1
      %s148 = ssub.s32 %s142, 2
      %s155 = sadd.s32 1, %s150
      %p156 = scmp.ge.s32.totalorder %s155, 2
      %s157 = scalar_select %p156, 0, %s155
      %s158 = sadd.s32 1, %s149
      %s159 = scalar_select %p156, %s158, %s149
      %p160 = scmp.ge.s32.totalorder %s159, 1
      %s161 = scalar_select %p160, 0, %s159
      %s162 = ssub.s32 %s149, %s161
      %p163 = scmp.eq.s32.totalorder %s162, 0
      %s165 = sadd.s32 %s164, 1
      %s166 = scalar_select %p163, %s164, %s165
      %p169 = pneg %p163
      %p170 = scmp.eq.s32.totalorder %s142, 1
      %p171 = por %p169, %p170
      %p172 = scmp.ne.s32.totalorder %s164, %s167
      %p173 = scmp.eq.s32.totalorder %s142, 0
      %p174 = por %p172, %p173
      %p175 = scmp.ne.s32.totalorder %s164, %s167
      %p176 = scmp.eq.s32.totalorder %s147, 1
      %p177 = por %p175, %p176
      %p178 = scmp.ne.s32.totalorder %s167, %s168
      %p179 = scmp.eq.s32.totalorder %s147, 0
      %p180 = por %p178, %p179
      %p181 = scmp.ne.s32.totalorder %s167, %s168
      %p182 = scmp.eq.s32.totalorder %s148, 1
      %p183 = por %p181, %p182
      %p185 = scmp.ne.s32.totalorder %s168, %s184
      %p186 = scmp.eq.s32.totalorder %s148, 0
      %p187 = por %p185, %p186
      %s188 = ssub.s32 %s149, %s161
      %p189 = scmp.eq.s32.totalorder %s188, 0
      %s191 = sadd.s32 %s190, 1
      %s192 = scalar_select %p189, %s190, %s191
      %p195 = pneg %p189
      %p196 = scmp.eq.s32.totalorder %s142, 1
      %p197 = por %p195, %p196
      %p198 = scmp.ne.s32.totalorder %s190, %s193
      %p199 = scmp.eq.s32.totalorder %s142, 0
      %p200 = por %p198, %p199
      %p201 = scmp.ne.s32.totalorder %s190, %s193
      %p202 = scmp.eq.s32.totalorder %s147, 1
      %p203 = por %p201, %p202
      %p204 = scmp.ne.s32.totalorder %s193, %s194
      %p205 = scmp.eq.s32.totalorder %s147, 0
      %p206 = por %p204, %p205
      %p207 = scmp.ne.s32.totalorder %s193, %s194
      %p208 = scmp.eq.s32.totalorder %s148, 1
      %p209 = por %p207, %p208
      %p211 = scmp.ne.s32.totalorder %s194, %s210
      %p212 = scmp.eq.s32.totalorder %s148, 0
      %p213 = por %p211, %p212
      %s214 = ssub.s32 %s149, %s161
      %p215 = scmp.eq.s32.totalorder %s214, 0
      %s217 = sadd.s32 %s216, 1
      %s218 = scalar_select %p215, %s216, %s217
      %p221 = pneg %p215
      %p222 = scmp.eq.s32.totalorder %s142, 1
      %p223 = por %p221, %p222
      %p224 = scmp.ne.s32.totalorder %s216, %s219
      %p225 = scmp.eq.s32.totalorder %s142, 0
      %p226 = por %p224, %p225
      %p227 = scmp.ne.s32.totalorder %s216, %s219
      %p228 = scmp.eq.s32.totalorder %s147, 1
      %p229 = por %p227, %p228
      %p230 = scmp.ne.s32.totalorder %s219, %s220
      %p231 = scmp.eq.s32.totalorder %s147, 0
      %p232 = por %p230, %p231
      %p233 = scmp.ne.s32.totalorder %s219, %s220
      %p234 = scmp.eq.s32.totalorder %s148, 1
      %p235 = por %p233, %p234
      %p237 = scmp.ne.s32.totalorder %s220, %s236
      %p238 = scmp.eq.s32.totalorder %s148, 0
      %p239 = por %p237, %p238
      %s240 = ssub.s32 %s149, %s161
      %p241 = scmp.eq.s32.totalorder %s240, 0
      %s243 = sadd.s32 %s242, 1
      %s244 = scalar_select %p241, %s242, %s243
      %p247 = pneg %p241
      %p248 = scmp.eq.s32.totalorder %s142, 1
      %p249 = por %p247, %p248
      %p250 = scmp.ne.s32.totalorder %s242, %s245
      %p251 = scmp.eq.s32.totalorder %s142, 0
      %p252 = por %p250, %p251
      %p253 = scmp.ne.s32.totalorder %s242, %s245
      %p254 = scmp.eq.s32.totalorder %s147, 1
      %p255 = por %p253, %p254
      %p256 = scmp.ne.s32.totalorder %s245, %s246
      %p257 = scmp.eq.s32.totalorder %s147, 0
      %p258 = por %p256, %p257
      %p259 = scmp.ne.s32.totalorder %s245, %s246
      %p260 = scmp.eq.s32.totalorder %s148, 1
      %p261 = por %p259, %p260
      %p263 = scmp.ne.s32.totalorder %s246, %s262
      %p264 = scmp.eq.s32.totalorder %s148, 0
      %p265 = por %p263, %p264
      %s266 = ssub.s32 %s149, %s161
      %p267 = scmp.eq.s32.totalorder %s266, 0
      %s269 = sadd.s32 %s268, 1
      %s270 = scalar_select %p267, %s268, %s269
      %p273 = pneg %p267
      %p274 = scmp.eq.s32.totalorder %s142, 1
      %p275 = por %p273, %p274
      %p276 = scmp.ne.s32.totalorder %s268, %s271
      %p277 = scmp.eq.s32.totalorder %s142, 0
      %p278 = por %p276, %p277
      %p279 = scmp.ne.s32.totalorder %s268, %s271
      %p280 = scmp.eq.s32.totalorder %s147, 1
      %p281 = por %p279, %p280
      %p282 = scmp.ne.s32.totalorder %s271, %s272
      %p283 = scmp.eq.s32.totalorder %s147, 0
      %p284 = por %p282, %p283
      %p285 = scmp.ne.s32.totalorder %s271, %s272
      %p286 = scmp.eq.s32.totalorder %s148, 1
      %p287 = por %p285, %p286
      %p289 = scmp.ne.s32.totalorder %s272, %s288
      %p290 = scmp.eq.s32.totalorder %s148, 0
      %p291 = por %p289, %p290
      %s292 = ssub.s32 %s149, %s161
      %p293 = scmp.eq.s32.totalorder %s292, 0
      %s295 = sadd.s32 %s294, 1
      %s296 = scalar_select %p293, %s294, %s295
      %p299 = pneg %p293
      %p300 = scmp.eq.s32.totalorder %s142, 1
      %p301 = por %p299, %p300
      %p302 = scmp.ne.s32.totalorder %s294, %s297
      %p303 = scmp.eq.s32.totalorder %s142, 0
      %p304 = por %p302, %p303
      %p305 = scmp.ne.s32.totalorder %s294, %s297
      %p306 = scmp.eq.s32.totalorder %s147, 1
      %p307 = por %p305, %p306
      %p308 = scmp.ne.s32.totalorder %s297, %s298
      %p309 = scmp.eq.s32.totalorder %s147, 0
      %p310 = por %p308, %p309
      %p311 = scmp.ne.s32.totalorder %s297, %s298
      %p312 = scmp.eq.s32.totalorder %s148, 1
      %p313 = por %p311, %p312
      %p315 = scmp.ne.s32.totalorder %s298, %s314
      %p316 = scmp.eq.s32.totalorder %s148, 0
      %p317 = por %p315, %p316
      %s318 = ssub.s32 %s149, %s161
      %p319 = scmp.eq.s32.totalorder %s318, 0
      %s321 = sadd.s32 %s320, 1
      %s322 = scalar_select %p319, %s320, %s321
      %p325 = pneg %p319
      %p326 = scmp.eq.s32.totalorder %s142, 1
      %p327 = por %p325, %p326
      %p328 = scmp.ne.s32.totalorder %s320, %s323
      %p329 = scmp.eq.s32.totalorder %s142, 0
      %p330 = por %p328, %p329
      %p331 = scmp.ne.s32.totalorder %s320, %s323
      %p332 = scmp.eq.s32.totalorder %s147, 1
      %p333 = por %p331, %p332
      %p334 = scmp.ne.s32.totalorder %s323, %s324
      %p335 = scmp.eq.s32.totalorder %s147, 0
      %p336 = por %p334, %p335
      %p337 = scmp.ne.s32.totalorder %s323, %s324
      %p338 = scmp.eq.s32.totalorder %s148, 1
      %p339 = por %p337, %p338
      %p341 = scmp.ne.s32.totalorder %s324, %s340
      %p342 = scmp.eq.s32.totalorder %s148, 0
      %p343 = por %p341, %p342
      %s344 = ssub.s32 %s150, %s157
      %p345 = scmp.eq.s32.totalorder %s344, 0
      %s347 = sadd.s32 %s346, 1
      %s348 = scalar_select %p345, %s346, %s347
      %p351 = pneg %p345
      %p352 = scmp.eq.s32.totalorder %s142, 1
      %p353 = por %p351, %p352
      %p354 = scmp.ne.s32.totalorder %s346, %s349
      %p355 = scmp.eq.s32.totalorder %s142, 0
      %p356 = por %p354, %p355
      %p357 = scmp.ne.s32.totalorder %s346, %s349
      %p358 = scmp.eq.s32.totalorder %s147, 1
      %p359 = por %p357, %p358
      %p360 = scmp.ne.s32.totalorder %s349, %s350
      %p361 = scmp.eq.s32.totalorder %s147, 0
      %p362 = por %p360, %p361
      %p363 = scmp.ne.s32.totalorder %s349, %s350
      %p364 = scmp.eq.s32.totalorder %s148, 1
      %p365 = por %p363, %p364
      %p367 = scmp.ne.s32.totalorder %s350, %s366
      %p368 = scmp.eq.s32.totalorder %s148, 0
      %p369 = por %p367, %p368
      %s370 = ssub.s32 %s150, %s157
      %p371 = scmp.eq.s32.totalorder %s370, 0
      %s373 = sadd.s32 %s372, 1
      %s374 = scalar_select %p371, %s372, %s373
      %p377 = pneg %p371
      %p378 = scmp.eq.s32.totalorder %s142, 1
      %p379 = por %p377, %p378
      %p380 = scmp.ne.s32.totalorder %s372, %s375
      %p381 = scmp.eq.s32.totalorder %s142, 0
      %p382 = por %p380, %p381
      %p383 = scmp.ne.s32.totalorder %s372, %s375
      %p384 = scmp.eq.s32.totalorder %s147, 1
      %p385 = por %p383, %p384
      %p386 = scmp.ne.s32.totalorder %s375, %s376
      %p387 = scmp.eq.s32.totalorder %s147, 0
      %p388 = por %p386, %p387
      %p389 = scmp.ne.s32.totalorder %s375, %s376
      %p390 = scmp.eq.s32.totalorder %s148, 1
      %p391 = por %p389, %p390
      %p393 = scmp.ne.s32.totalorder %s376, %s392
      %p394 = scmp.eq.s32.totalorder %s148, 0
      %p395 = por %p393, %p394
      %s396 = ssub.s32 %s150, %s157
      %p397 = scmp.eq.s32.totalorder %s396, 0
      %s399 = sadd.s32 %s398, 1
      %s400 = scalar_select %p397, %s398, %s399
      %p403 = pneg %p397
      %p404 = scmp.eq.s32.totalorder %s142, 1
      %p405 = por %p403, %p404
      %p406 = scmp.ne.s32.totalorder %s398, %s401
      %p407 = scmp.eq.s32.totalorder %s142, 0
      %p408 = por %p406, %p407
      %p409 = scmp.ne.s32.totalorder %s398, %s401
      %p410 = scmp.eq.s32.totalorder %s147, 1
      %p411 = por %p409, %p410
      %p412 = scmp.ne.s32.totalorder %s401, %s402
      %p413 = scmp.eq.s32.totalorder %s147, 0
      %p414 = por %p412, %p413
      %p415 = scmp.ne.s32.totalorder %s401, %s402
      %p416 = scmp.eq.s32.totalorder %s148, 1
      %p417 = por %p415, %p416
      %p419 = scmp.ne.s32.totalorder %s402, %s418
      %p420 = scmp.eq.s32.totalorder %s148, 0
      %p421 = por %p419, %p420
      %s422 = ssub.s32 %s150, %s157
      %p423 = scmp.eq.s32.totalorder %s422, 0
      %s425 = sadd.s32 %s424, 1
      %s426 = scalar_select %p423, %s424, %s425
      %p429 = pneg %p423
      %p430 = scmp.eq.s32.totalorder %s142, 1
      %p431 = por %p429, %p430
      %p432 = scmp.ne.s32.totalorder %s424, %s427
      %p433 = scmp.eq.s32.totalorder %s142, 0
      %p434 = por %p432, %p433
      %p435 = scmp.ne.s32.totalorder %s424, %s427
      %p436 = scmp.eq.s32.totalorder %s147, 1
      %p437 = por %p435, %p436
      %p438 = scmp.ne.s32.totalorder %s427, %s428
      %p439 = scmp.eq.s32.totalorder %s147, 0
      %p440 = por %p438, %p439
      %p441 = scmp.ne.s32.totalorder %s427, %s428
      %p442 = scmp.eq.s32.totalorder %s148, 1
      %p443 = por %p441, %p442
      %p445 = scmp.ne.s32.totalorder %s428, %s444
      %p446 = scmp.eq.s32.totalorder %s148, 0
      %p447 = por %p445, %p446
      %s448 = ssub.s32 %s150, %s157
      %p449 = scmp.eq.s32.totalorder %s448, 0
      %s451 = sadd.s32 %s450, 1
      %s452 = scalar_select %p449, %s450, %s451
      %p455 = pneg %p449
      %p456 = scmp.eq.s32.totalorder %s142, 1
      %p457 = por %p455, %p456
      %p458 = scmp.ne.s32.totalorder %s450, %s453
      %p459 = scmp.eq.s32.totalorder %s142, 0
      %p460 = por %p458, %p459
      %p461 = scmp.ne.s32.totalorder %s450, %s453
      %p462 = scmp.eq.s32.totalorder %s147, 1
      %p463 = por %p461, %p462
      %p464 = scmp.ne.s32.totalorder %s453, %s454
      %p465 = scmp.eq.s32.totalorder %s147, 0
      %p466 = por %p464, %p465
      %p467 = scmp.ne.s32.totalorder %s453, %s454
      %p468 = scmp.eq.s32.totalorder %s148, 1
      %p469 = por %p467, %p468
      %p471 = scmp.ne.s32.totalorder %s454, %s470
      %p472 = scmp.eq.s32.totalorder %s148, 0
      %p473 = por %p471, %p472
      %s474 = ssub.s32 %s150, %s157
      %p475 = scmp.eq.s32.totalorder %s474, 0
      %s477 = sadd.s32 %s476, 1
      %s478 = scalar_select %p475, %s476, %s477
      %p481 = pneg %p475
      %p482 = scmp.eq.s32.totalorder %s142, 1
      %p483 = por %p481, %p482
      %p484 = scmp.ne.s32.totalorder %s476, %s479
      %p485 = scmp.eq.s32.totalorder %s142, 0
      %p486 = por %p484, %p485
      %p487 = scmp.ne.s32.totalorder %s476, %s479
      %p488 = scmp.eq.s32.totalorder %s147, 1
      %p489 = por %p487, %p488
      %p490 = scmp.ne.s32.totalorder %s479, %s480
      %p491 = scmp.eq.s32.totalorder %s147, 0
      %p492 = por %p490, %p491
      %p493 = scmp.ne.s32.totalorder %s479, %s480
      %p494 = scmp.eq.s32.totalorder %s148, 1
      %p495 = por %p493, %p494
      %p497 = scmp.ne.s32.totalorder %s480, %s496
      %p498 = scmp.eq.s32.totalorder %s148, 0
      %p499 = por %p497, %p498
      %s500 = ssub.s32 %s150, %s157
      %p501 = scmp.eq.s32.totalorder %s500, 0
      %s503 = sadd.s32 %s502, 1
      %s504 = scalar_select %p501, %s502, %s503
      %p507 = pneg %p501
      %p508 = scmp.eq.s32.totalorder %s142, 1
      %p509 = por %p507, %p508
      %p510 = scmp.ne.s32.totalorder %s502, %s505
      %p511 = scmp.eq.s32.totalorder %s142, 0
      %p512 = por %p510, %p511
      %p513 = scmp.ne.s32.totalorder %s502, %s505
      %p514 = scmp.eq.s32.totalorder %s147, 1
      %p515 = por %p513, %p514
      %p516 = scmp.ne.s32.totalorder %s505, %s506
      %p517 = scmp.eq.s32.totalorder %s147, 0
      %p518 = por %p516, %p517
      %p519 = scmp.ne.s32.totalorder %s505, %s506
      %p520 = scmp.eq.s32.totalorder %s148, 1
      %p521 = por %p519, %p520
      %p523 = scmp.ne.s32.totalorder %s506, %s522
      %p524 = scmp.eq.s32.totalorder %s148, 0
      %p525 = por %p523, %p524
      %s526 = ssub.s32 %s150, %s157
      %p527 = scmp.eq.s32.totalorder %s526, 0
      %s529 = sadd.s32 %s528, 1
      %s530 = scalar_select %p527, %s528, %s529
      %p533 = pneg %p527
      %p534 = scmp.eq.s32.totalorder %s142, 1
      %p535 = por %p533, %p534
      %p536 = scmp.ne.s32.totalorder %s528, %s531
      %p537 = scmp.eq.s32.totalorder %s142, 0
      %p538 = por %p536, %p537
      %p539 = scmp.ne.s32.totalorder %s528, %s531
      %p540 = scmp.eq.s32.totalorder %s147, 1
      %p541 = por %p539, %p540
      %p542 = scmp.ne.s32.totalorder %s531, %s532
      %p543 = scmp.eq.s32.totalorder %s147, 0
      %p544 = por %p542, %p543
      %p545 = scmp.ne.s32.totalorder %s531, %s532
      %p546 = scmp.eq.s32.totalorder %s148, 1
      %p547 = por %p545, %p546
      %p549 = scmp.ne.s32.totalorder %s532, %s548
      %p550 = scmp.eq.s32.totalorder %s148, 0
      %p551 = por %p549, %p550
      %s552 = ssub.s32 %s150, %s157
      %p553 = scmp.eq.s32.totalorder %s552, 0
      %s555 = sadd.s32 %s554, 1
      %s556 = scalar_select %p553, %s554, %s555
      %p559 = pneg %p553
      %p560 = scmp.eq.s32.totalorder %s142, 1
      %p561 = por %p559, %p560
      %p562 = scmp.ne.s32.totalorder %s554, %s557
      %p563 = scmp.eq.s32.totalorder %s142, 0
      %p564 = por %p562, %p563
      %p565 = scmp.ne.s32.totalorder %s554, %s557
      %p566 = scmp.eq.s32.totalorder %s147, 1
      %p567 = por %p565, %p566
      %p568 = scmp.ne.s32.totalorder %s557, %s558
      %p569 = scmp.eq.s32.totalorder %s147, 0
      %p570 = por %p568, %p569
      %p571 = scmp.ne.s32.totalorder %s557, %s558
      %p572 = scmp.eq.s32.totalorder %s148, 1
      %p573 = por %p571, %p572
      %p575 = scmp.ne.s32.totalorder %s558, %s574
      %p576 = scmp.eq.s32.totalorder %s148, 0
      %p577 = por %p575, %p576
      %s578 = ssub.s32 %s150, %s157
      %p579 = scmp.eq.s32.totalorder %s578, 0
      %s581 = sadd.s32 %s580, 1
      %s582 = scalar_select %p579, %s580, %s581
      %p585 = pneg %p579
      %p586 = scmp.eq.s32.totalorder %s142, 1
      %p587 = por %p585, %p586
      %p588 = scmp.ne.s32.totalorder %s580, %s583
      %p589 = scmp.eq.s32.totalorder %s142, 0
      %p590 = por %p588, %p589
      %p591 = scmp.ne.s32.totalorder %s580, %s583
      %p592 = scmp.eq.s32.totalorder %s147, 1
      %p593 = por %p591, %p592
      %p594 = scmp.ne.s32.totalorder %s583, %s584
      %p595 = scmp.eq.s32.totalorder %s147, 0
      %p596 = por %p594, %p595
      %p597 = scmp.ne.s32.totalorder %s583, %s584
      %p598 = scmp.eq.s32.totalorder %s148, 1
      %p599 = por %p597, %p598
      %p601 = scmp.ne.s32.totalorder %s584, %s600
      %p602 = scmp.eq.s32.totalorder %s148, 0
      %p603 = por %p601, %p602
      %s604 = ssub.s32 %s150, %s157
      %p605 = scmp.eq.s32.totalorder %s604, 0
      %s607 = sadd.s32 %s606, 1
      %s608 = scalar_select %p605, %s606, %s607
      %p611 = pneg %p605
      %p612 = scmp.eq.s32.totalorder %s142, 1
      %p613 = por %p611, %p612
      %p614 = scmp.ne.s32.totalorder %s606, %s609
      %p615 = scmp.eq.s32.totalorder %s142, 0
      %p616 = por %p614, %p615
      %p617 = scmp.ne.s32.totalorder %s606, %s609
      %p618 = scmp.eq.s32.totalorder %s147, 1
      %p619 = por %p617, %p618
      %p620 = scmp.ne.s32.totalorder %s609, %s610
      %p621 = scmp.eq.s32.totalorder %s147, 0
      %p622 = por %p620, %p621
      %p623 = scmp.ne.s32.totalorder %s609, %s610
      %p624 = scmp.eq.s32.totalorder %s148, 1
      %p625 = por %p623, %p624
      %p627 = scmp.ne.s32.totalorder %s610, %s626
      %p628 = scmp.eq.s32.totalorder %s148, 0
      %p629 = por %p627, %p628
      %s630 = ssub.s32 %s150, %s157
      %p631 = scmp.eq.s32.totalorder %s630, 0
      %s633 = sadd.s32 %s632, 1
      %s634 = scalar_select %p631, %s632, %s633
      %p637 = pneg %p631
      %p638 = scmp.eq.s32.totalorder %s142, 1
      %p639 = por %p637, %p638
      %p640 = scmp.ne.s32.totalorder %s632, %s635
      %p641 = scmp.eq.s32.totalorder %s142, 0
      %p642 = por %p640, %p641
      %p643 = scmp.ne.s32.totalorder %s632, %s635
      %p644 = scmp.eq.s32.totalorder %s147, 1
      %p645 = por %p643, %p644
      %p646 = scmp.ne.s32.totalorder %s635, %s636
      %p647 = scmp.eq.s32.totalorder %s147, 0
      %p648 = por %p646, %p647
      %p649 = scmp.ne.s32.totalorder %s635, %s636
      %p650 = scmp.eq.s32.totalorder %s148, 1
      %p651 = por %p649, %p650
      %p653 = scmp.ne.s32.totalorder %s636, %s652
      %p654 = scmp.eq.s32.totalorder %s148, 0
      %p655 = por %p653, %p654
      %s656 = ssub.s32 %s150, %s157
      %p657 = scmp.eq.s32.totalorder %s656, 0
      %s659 = sadd.s32 %s658, 1
      %s660 = scalar_select %p657, %s658, %s659
      %p663 = pneg %p657
      %p664 = scmp.eq.s32.totalorder %s142, 1
      %p665 = por %p663, %p664
      %p666 = scmp.ne.s32.totalorder %s658, %s661
      %p667 = scmp.eq.s32.totalorder %s142, 0
      %p668 = por %p666, %p667
      %p669 = scmp.ne.s32.totalorder %s658, %s661
      %p670 = scmp.eq.s32.totalorder %s147, 1
      %p671 = por %p669, %p670
      %p672 = scmp.ne.s32.totalorder %s661, %s662
      %p673 = scmp.eq.s32.totalorder %s147, 0
      %p674 = por %p672, %p673
      %p675 = scmp.ne.s32.totalorder %s661, %s662
      %p676 = scmp.eq.s32.totalorder %s148, 1
      %p677 = por %p675, %p676
      %p679 = scmp.ne.s32.totalorder %s662, %s678
      %p680 = scmp.eq.s32.totalorder %s148, 0
      %p681 = por %p679, %p680
      %s682 = ssub.s32 %s150, %s157
      %p683 = scmp.eq.s32.totalorder %s682, 0
      %s685 = sadd.s32 %s684, 1
      %s686 = scalar_select %p683, %s684, %s685
      %p689 = pneg %p683
      %p690 = scmp.eq.s32.totalorder %s142, 1
      %p691 = por %p689, %p690
      %p692 = scmp.ne.s32.totalorder %s684, %s687
      %p693 = scmp.eq.s32.totalorder %s142, 0
      %p694 = por %p692, %p693
      %p695 = scmp.ne.s32.totalorder %s684, %s687
      %p696 = scmp.eq.s32.totalorder %s147, 1
      %p697 = por %p695, %p696
      %p698 = scmp.ne.s32.totalorder %s687, %s688
      %p699 = scmp.eq.s32.totalorder %s147, 0
      %p700 = por %p698, %p699
      %p701 = scmp.ne.s32.totalorder %s687, %s688
      %p702 = scmp.eq.s32.totalorder %s148, 1
      %p703 = por %p701, %p702
      %p705 = scmp.ne.s32.totalorder %s688, %s704
      %p706 = scmp.eq.s32.totalorder %s148, 0
      %p707 = por %p705, %p706
      %s708 = ssub.s32 %s150, %s157
      %p709 = scmp.eq.s32.totalorder %s708, 0
      %s711 = sadd.s32 %s710, 1
      %s712 = scalar_select %p709, %s710, %s711
      %p715 = pneg %p709
      %p716 = scmp.eq.s32.totalorder %s142, 1
      %p717 = por %p715, %p716
      %p718 = scmp.ne.s32.totalorder %s710, %s713
      %p719 = scmp.eq.s32.totalorder %s142, 0
      %p720 = por %p718, %p719
      %p721 = scmp.ne.s32.totalorder %s710, %s713
      %p722 = scmp.eq.s32.totalorder %s147, 1
      %p723 = por %p721, %p722
      %p724 = scmp.ne.s32.totalorder %s713, %s714
      %p725 = scmp.eq.s32.totalorder %s147, 0
      %p726 = por %p724, %p725
      %p727 = scmp.ne.s32.totalorder %s713, %s714
      %p728 = scmp.eq.s32.totalorder %s148, 1
      %p729 = por %p727, %p728
      %p731 = scmp.ne.s32.totalorder %s714, %s730
      %p732 = scmp.eq.s32.totalorder %s148, 0
      %p733 = por %p731, %p732
      %s734 = ssub.s32 %s150, %s157
      %p735 = scmp.eq.s32.totalorder %s734, 0
      %s737 = sadd.s32 %s736, 1
      %s738 = scalar_select %p735, %s736, %s737
      %p741 = pneg %p735
      %p742 = scmp.eq.s32.totalorder %s142, 1
      %p743 = por %p741, %p742
      %p744 = scmp.ne.s32.totalorder %s736, %s739
      %p745 = scmp.eq.s32.totalorder %s142, 0
      %p746 = por %p744, %p745
      %p747 = scmp.ne.s32.totalorder %s736, %s739
      %p748 = scmp.eq.s32.totalorder %s147, 1
      %p749 = por %p747, %p748
      %p750 = scmp.ne.s32.totalorder %s739, %s740
      %p751 = scmp.eq.s32.totalorder %s147, 0
      %p752 = por %p750, %p751
      %p753 = scmp.ne.s32.totalorder %s739, %s740
      %p754 = scmp.eq.s32.totalorder %s148, 1
      %p755 = por %p753, %p754
      %p757 = scmp.ne.s32.totalorder %s740, %s756
      %p758 = scmp.eq.s32.totalorder %s148, 0
      %p759 = por %p757, %p758
      %s760 = ssub.s32 %s150, %s157
      %p761 = scmp.eq.s32.totalorder %s760, 0
      %s763 = sadd.s32 %s762, 1
      %s764 = scalar_select %p761, %s762, %s763
      %p767 = pneg %p761
      %p768 = scmp.eq.s32.totalorder %s142, 1
      %p769 = por %p767, %p768
      %p770 = scmp.ne.s32.totalorder %s762, %s765
      %p771 = scmp.eq.s32.totalorder %s142, 0
      %p772 = por %p770, %p771
      %p773 = scmp.ne.s32.totalorder %s762, %s765
      %p774 = scmp.eq.s32.totalorder %s147, 1
      %p775 = por %p773, %p774
      %p776 = scmp.ne.s32.totalorder %s765, %s766
      %p777 = scmp.eq.s32.totalorder %s147, 0
      %p778 = por %p776, %p777
      %p779 = scmp.ne.s32.totalorder %s765, %s766
      %p780 = scmp.eq.s32.totalorder %s148, 1
      %p781 = por %p779, %p780
      %p783 = scmp.ne.s32.totalorder %s766, %s782
      %p784 = scmp.eq.s32.totalorder %s148, 0
      %p785 = por %p783, %p784
      %s786 = ssub.s32 %s150, %s157
      %p787 = scmp.eq.s32.totalorder %s786, 0
      %s789 = sadd.s32 %s788, 1
      %s790 = scalar_select %p787, %s788, %s789
      %p793 = pneg %p787
      %p794 = scmp.eq.s32.totalorder %s142, 1
      %p795 = por %p793, %p794
      %p796 = scmp.ne.s32.totalorder %s788, %s791
      %p797 = scmp.eq.s32.totalorder %s142, 0
      %p798 = por %p796, %p797
      %p799 = scmp.ne.s32.totalorder %s788, %s791
      %p800 = scmp.eq.s32.totalorder %s147, 1
      %p801 = por %p799, %p800
      %p802 = scmp.ne.s32.totalorder %s791, %s792
      %p803 = scmp.eq.s32.totalorder %s147, 0
      %p804 = por %p802, %p803
      %p805 = scmp.ne.s32.totalorder %s791, %s792
      %p806 = scmp.eq.s32.totalorder %s148, 1
      %p807 = por %p805, %p806
      %p809 = scmp.ne.s32.totalorder %s792, %s808
      %p810 = scmp.eq.s32.totalorder %s148, 0
      %p811 = por %p809, %p810
      %s812 = ssub.s32 %s150, %s157
      %p813 = scmp.eq.s32.totalorder %s812, 0
      %s815 = sadd.s32 %s814, 1
      %s816 = scalar_select %p813, %s814, %s815
      %p819 = pneg %p813
      %p820 = scmp.eq.s32.totalorder %s142, 1
      %p821 = por %p819, %p820
      %p822 = scmp.ne.s32.totalorder %s814, %s817
      %p823 = scmp.eq.s32.totalorder %s142, 0
      %p824 = por %p822, %p823
      %p825 = scmp.ne.s32.totalorder %s814, %s817
      %p826 = scmp.eq.s32.totalorder %s147, 1
      %p827 = por %p825, %p826
      %p828 = scmp.ne.s32.totalorder %s817, %s818
      %p829 = scmp.eq.s32.totalorder %s147, 0
      %p830 = por %p828, %p829
      %p831 = scmp.ne.s32.totalorder %s817, %s818
      %p832 = scmp.eq.s32.totalorder %s148, 1
      %p833 = por %p831, %p832
      %p835 = scmp.ne.s32.totalorder %s818, %s834
      %p836 = scmp.eq.s32.totalorder %s148, 0
      %p837 = por %p835, %p836
      %s838 = ssub.s32 %s150, %s157
      %p839 = scmp.eq.s32.totalorder %s838, 0
      %s841 = sadd.s32 %s840, 1
      %s842 = scalar_select %p839, %s840, %s841
      %p845 = pneg %p839
      %p846 = scmp.eq.s32.totalorder %s142, 1
      %p847 = por %p845, %p846
      %p848 = scmp.ne.s32.totalorder %s840, %s843
      %p849 = scmp.eq.s32.totalorder %s142, 0
      %p850 = por %p848, %p849
      %p851 = scmp.ne.s32.totalorder %s840, %s843
      %p852 = scmp.eq.s32.totalorder %s147, 1
      %p853 = por %p851, %p852
      %p854 = scmp.ne.s32.totalorder %s843, %s844
      %p855 = scmp.eq.s32.totalorder %s147, 0
      %p856 = por %p854, %p855
      %p857 = scmp.ne.s32.totalorder %s843, %s844
      %p858 = scmp.eq.s32.totalorder %s148, 1
      %p859 = por %p857, %p858
      %p861 = scmp.ne.s32.totalorder %s844, %s860
      %p862 = scmp.eq.s32.totalorder %s148, 0
      %p863 = por %p861, %p862
      %s864 = ssub.s32 %s150, %s157
      %p865 = scmp.eq.s32.totalorder %s864, 0
      %s867 = sadd.s32 %s866, 1
      %s868 = scalar_select %p865, %s866, %s867
      %p871 = pneg %p865
      %p872 = scmp.eq.s32.totalorder %s142, 1
      %p873 = por %p871, %p872
      %p874 = scmp.ne.s32.totalorder %s866, %s869
      %p875 = scmp.eq.s32.totalorder %s142, 0
      %p876 = por %p874, %p875
      %p877 = scmp.ne.s32.totalorder %s866, %s869
      %p878 = scmp.eq.s32.totalorder %s147, 1
      %p879 = por %p877, %p878
      %p880 = scmp.ne.s32.totalorder %s869, %s870
      %p881 = scmp.eq.s32.totalorder %s147, 0
      %p882 = por %p880, %p881
      %p883 = scmp.ne.s32.totalorder %s869, %s870
      %p884 = scmp.eq.s32.totalorder %s148, 1
      %p885 = por %p883, %p884
      %p887 = scmp.ne.s32.totalorder %s870, %s886
      %p888 = scmp.eq.s32.totalorder %s148, 0
      %p889 = por %p887, %p888
      %s890 = ssub.s32 %s150, %s157
      %p891 = scmp.eq.s32.totalorder %s890, 0
      %s893 = sadd.s32 %s892, 1
      %s894 = scalar_select %p891, %s892, %s893
      %p897 = pneg %p891
      %p898 = scmp.eq.s32.totalorder %s142, 1
      %p899 = por %p897, %p898
      %p900 = scmp.ne.s32.totalorder %s892, %s895
      %p901 = scmp.eq.s32.totalorder %s142, 0
      %p902 = por %p900, %p901
      %p903 = scmp.ne.s32.totalorder %s892, %s895
      %p904 = scmp.eq.s32.totalorder %s147, 1
      %p905 = por %p903, %p904
      %p906 = scmp.ne.s32.totalorder %s895, %s896
      %p907 = scmp.eq.s32.totalorder %s147, 0
      %p908 = por %p906, %p907
      %p909 = scmp.ne.s32.totalorder %s895, %s896
      %p910 = scmp.eq.s32.totalorder %s148, 1
      %p911 = por %p909, %p910
      %p913 = scmp.ne.s32.totalorder %s896, %s912
      %p914 = scmp.eq.s32.totalorder %s148, 0
      %p915 = por %p913, %p914
      %s916 = ssub.s32 %s150, %s157
      %p917 = scmp.eq.s32.totalorder %s916, 0
      %s919 = sadd.s32 %s918, 1
      %s920 = scalar_select %p917, %s918, %s919
      %p923 = pneg %p917
      %p924 = scmp.eq.s32.totalorder %s142, 1
      %p925 = por %p923, %p924
      %p926 = scmp.ne.s32.totalorder %s918, %s921
      %p927 = scmp.eq.s32.totalorder %s142, 0
      %p928 = por %p926, %p927
      %p929 = scmp.ne.s32.totalorder %s918, %s921
      %p930 = scmp.eq.s32.totalorder %s147, 1
      %p931 = por %p929, %p930
      %p932 = scmp.ne.s32.totalorder %s921, %s922
      %p933 = scmp.eq.s32.totalorder %s147, 0
      %p934 = por %p932, %p933
      %p935 = scmp.ne.s32.totalorder %s921, %s922
      %p936 = scmp.eq.s32.totalorder %s148, 1
      %p937 = por %p935, %p936
      %p939 = scmp.ne.s32.totalorder %s922, %s938
      %p940 = scmp.eq.s32.totalorder %s148, 0
      %p941 = por %p939, %p940
      %s942 = ssub.s32 %s150, %s157
      %p943 = scmp.eq.s32.totalorder %s942, 0
      %s945 = sadd.s32 %s944, 1
      %s946 = scalar_select %p943, %s944, %s945
      %p949 = pneg %p943
      %p950 = scmp.eq.s32.totalorder %s142, 1
      %p951 = por %p949, %p950
      %p952 = scmp.ne.s32.totalorder %s944, %s947
      %p953 = scmp.eq.s32.totalorder %s142, 0
      %p954 = por %p952, %p953
      %p955 = scmp.ne.s32.totalorder %s944, %s947
      %p956 = scmp.eq.s32.totalorder %s147, 1
      %p957 = por %p955, %p956
      %p958 = scmp.ne.s32.totalorder %s947, %s948
      %p959 = scmp.eq.s32.totalorder %s147, 0
      %p960 = por %p958, %p959
      %p961 = scmp.ne.s32.totalorder %s947, %s948
      %p962 = scmp.eq.s32.totalorder %s148, 1
      %p963 = por %p961, %p962
      %p965 = scmp.ne.s32.totalorder %s948, %s964
      %p966 = scmp.eq.s32.totalorder %s148, 0
      %p967 = por %p965, %p966
      %s968 = ssub.s32 %s150, %s157
      %p969 = scmp.eq.s32.totalorder %s968, 0
      %s971 = sadd.s32 %s970, 1
      %s972 = scalar_select %p969, %s970, %s971
      %p975 = pneg %p969
      %p976 = scmp.eq.s32.totalorder %s142, 1
      %p977 = por %p975, %p976
      %p978 = scmp.ne.s32.totalorder %s970, %s973
      %p979 = scmp.eq.s32.totalorder %s142, 0
      %p980 = por %p978, %p979
      %p981 = scmp.ne.s32.totalorder %s970, %s973
      %p982 = scmp.eq.s32.totalorder %s147, 1
      %p983 = por %p981, %p982
      %p984 = scmp.ne.s32.totalorder %s973, %s974
      %p985 = scmp.eq.s32.totalorder %s147, 0
      %p986 = por %p984, %p985
      %p987 = scmp.ne.s32.totalorder %s973, %s974
      %p988 = scmp.eq.s32.totalorder %s148, 1
      %p989 = por %p987, %p988
      %p991 = scmp.ne.s32.totalorder %s974, %s990
      %p992 = scmp.eq.s32.totalorder %s148, 0
      %p993 = por %p991, %p992
      %s994 = ssub.s32 %s150, %s157
      %p995 = scmp.eq.s32.totalorder %s994, 0
      %s997 = sadd.s32 %s996, 1
      %s998 = scalar_select %p995, %s996, %s997
      %p1001 = pneg %p995
      %p1002 = scmp.eq.s32.totalorder %s142, 1
      %p1003 = por %p1001, %p1002
      %p1004 = scmp.ne.s32.totalorder %s996, %s999
      %p1005 = scmp.eq.s32.totalorder %s142, 0
      %p1006 = por %p1004, %p1005
      %p1007 = scmp.ne.s32.totalorder %s996, %s999
      %p1008 = scmp.eq.s32.totalorder %s147, 1
      %p1009 = por %p1007, %p1008
      %p1010 = scmp.ne.s32.totalorder %s999, %s1000
      %p1011 = scmp.eq.s32.totalorder %s147, 0
      %p1012 = por %p1010, %p1011
      %p1013 = scmp.ne.s32.totalorder %s999, %s1000
      %p1014 = scmp.eq.s32.totalorder %s148, 1
      %p1015 = por %p1013, %p1014
      %p1017 = scmp.ne.s32.totalorder %s1000, %s1016
      %p1018 = scmp.eq.s32.totalorder %s148, 0
      %p1019 = por %p1017, %p1018
      %s1020 = ssub.s32 %s150, %s157
      %p1021 = scmp.eq.s32.totalorder %s1020, 0
      %s1023 = sadd.s32 %s1022, 1
      %s1024 = scalar_select %p1021, %s1022, %s1023
      %p1027 = pneg %p1021
      %p1028 = scmp.eq.s32.totalorder %s142, 1
      %p1029 = por %p1027, %p1028
      %p1030 = scmp.ne.s32.totalorder %s1022, %s1025
      %p1031 = scmp.eq.s32.totalorder %s142, 0
      %p1032 = por %p1030, %p1031
      %p1033 = scmp.ne.s32.totalorder %s1022, %s1025
      %p1034 = scmp.eq.s32.totalorder %s147, 1
      %p1035 = por %p1033, %p1034
      %p1036 = scmp.ne.s32.totalorder %s1025, %s1026
      %p1037 = scmp.eq.s32.totalorder %s147, 0
      %p1038 = por %p1036, %p1037
      %p1039 = scmp.ne.s32.totalorder %s1025, %s1026
      %p1040 = scmp.eq.s32.totalorder %s148, 1
      %p1041 = por %p1039, %p1040
      %p1043 = scmp.ne.s32.totalorder %s1026, %s1042
      %p1044 = scmp.eq.s32.totalorder %s148, 0
      %p1045 = por %p1043, %p1044
      %s1046 = ssub.s32 %s150, %s157
      %p1047 = scmp.eq.s32.totalorder %s1046, 0
      %s1049 = sadd.s32 %s1048, 1
      %s1050 = scalar_select %p1047, %s1048, %s1049
      %p1053 = pneg %p1047
      %p1054 = scmp.eq.s32.totalorder %s142, 1
      %p1055 = por %p1053, %p1054
      %p1056 = scmp.ne.s32.totalorder %s1048, %s1051
      %p1057 = scmp.eq.s32.totalorder %s142, 0
      %p1058 = por %p1056, %p1057
      %p1059 = scmp.ne.s32.totalorder %s1048, %s1051
      %p1060 = scmp.eq.s32.totalorder %s147, 1
      %p1061 = por %p1059, %p1060
      %p1062 = scmp.ne.s32.totalorder %s1051, %s1052
      %p1063 = scmp.eq.s32.totalorder %s147, 0
      %p1064 = por %p1062, %p1063
      %p1065 = scmp.ne.s32.totalorder %s1051, %s1052
      %p1066 = scmp.eq.s32.totalorder %s148, 1
      %p1067 = por %p1065, %p1066
      %p1069 = scmp.ne.s32.totalorder %s1052, %s1068
      %p1070 = scmp.eq.s32.totalorder %s148, 0
      %p1071 = por %p1069, %p1070
      %s1072 = ssub.s32 %s150, %s157
      %p1073 = scmp.eq.s32.totalorder %s1072, 0
      %s1075 = sadd.s32 %s1074, 1
      %s1076 = scalar_select %p1073, %s1074, %s1075
      %p1079 = pneg %p1073
      %p1080 = scmp.eq.s32.totalorder %s142, 1
      %p1081 = por %p1079, %p1080
      %p1082 = scmp.ne.s32.totalorder %s1074, %s1077
      %p1083 = scmp.eq.s32.totalorder %s142, 0
      %p1084 = por %p1082, %p1083
      %p1085 = scmp.ne.s32.totalorder %s1074, %s1077
      %p1086 = scmp.eq.s32.totalorder %s147, 1
      %p1087 = por %p1085, %p1086
      %p1088 = scmp.ne.s32.totalorder %s1077, %s1078
      %p1089 = scmp.eq.s32.totalorder %s147, 0
      %p1090 = por %p1088, %p1089
      %p1091 = scmp.ne.s32.totalorder %s1077, %s1078
      %p1092 = scmp.eq.s32.totalorder %s148, 1
      %p1093 = por %p1091, %p1092
      %p1095 = scmp.ne.s32.totalorder %s1078, %s1094
      %p1096 = scmp.eq.s32.totalorder %s148, 0
      %p1097 = por %p1095, %p1096
      %s1098 = ssub.s32 %s150, %s157
      %p1099 = scmp.eq.s32.totalorder %s1098, 0
      %s1101 = sadd.s32 %s1100, 1
      %s1102 = scalar_select %p1099, %s1100, %s1101
      %p1105 = pneg %p1099
      %p1106 = scmp.eq.s32.totalorder %s142, 1
      %p1107 = por %p1105, %p1106
      %p1108 = scmp.ne.s32.totalorder %s1100, %s1103
      %p1109 = scmp.eq.s32.totalorder %s142, 0
      %p1110 = por %p1108, %p1109
      %p1111 = scmp.ne.s32.totalorder %s1100, %s1103
      %p1112 = scmp.eq.s32.totalorder %s147, 1
      %p1113 = por %p1111, %p1112
      %p1114 = scmp.ne.s32.totalorder %s1103, %s1104
      %p1115 = scmp.eq.s32.totalorder %s147, 0
      %p1116 = por %p1114, %p1115
      %p1117 = scmp.ne.s32.totalorder %s1103, %s1104
      %p1118 = scmp.eq.s32.totalorder %s148, 1
      %p1119 = por %p1117, %p1118
      %p1121 = scmp.ne.s32.totalorder %s1104, %s1120
      %p1122 = scmp.eq.s32.totalorder %s148, 0
      %p1123 = por %p1121, %p1122
      %s1124 = ssub.s32 %s150, %s157
      %p1125 = scmp.eq.s32.totalorder %s1124, 0
      %s1127 = sadd.s32 %s1126, 1
      %s1128 = scalar_select %p1125, %s1126, %s1127
      %p1131 = pneg %p1125
      %p1132 = scmp.eq.s32.totalorder %s142, 1
      %p1133 = por %p1131, %p1132
      %p1134 = scmp.ne.s32.totalorder %s1126, %s1129
      %p1135 = scmp.eq.s32.totalorder %s142, 0
      %p1136 = por %p1134, %p1135
      %p1137 = scmp.ne.s32.totalorder %s1126, %s1129
      %p1138 = scmp.eq.s32.totalorder %s147, 1
      %p1139 = por %p1137, %p1138
      %p1140 = scmp.ne.s32.totalorder %s1129, %s1130
      %p1141 = scmp.eq.s32.totalorder %s147, 0
      %p1142 = por %p1140, %p1141
      %p1143 = scmp.ne.s32.totalorder %s1129, %s1130
      %p1144 = scmp.eq.s32.totalorder %s148, 1
      %p1145 = por %p1143, %p1144
      %p1147 = scmp.ne.s32.totalorder %s1130, %s1146
      %p1148 = scmp.eq.s32.totalorder %s148, 0
      %p1149 = por %p1147, %p1148
      %s1150 = ssub.s32 %s150, %s157
      %p1151 = scmp.eq.s32.totalorder %s1150, 0
      %s1153 = sadd.s32 %s1152, 1
      %s1154 = scalar_select %p1151, %s1152, %s1153
      %p1157 = pneg %p1151
      %p1158 = scmp.eq.s32.totalorder %s142, 1
      %p1159 = por %p1157, %p1158
      %p1160 = scmp.ne.s32.totalorder %s1152, %s1155
      %p1161 = scmp.eq.s32.totalorder %s142, 0
      %p1162 = por %p1160, %p1161
      %p1163 = scmp.ne.s32.totalorder %s1152, %s1155
      %p1164 = scmp.eq.s32.totalorder %s147, 1
      %p1165 = por %p1163, %p1164
      %p1166 = scmp.ne.s32.totalorder %s1155, %s1156
      %p1167 = scmp.eq.s32.totalorder %s147, 0
      %p1168 = por %p1166, %p1167
      %p1169 = scmp.ne.s32.totalorder %s1155, %s1156
      %p1170 = scmp.eq.s32.totalorder %s148, 1
      %p1171 = por %p1169, %p1170
      %p1173 = scmp.ne.s32.totalorder %s1156, %s1172
      %p1174 = scmp.eq.s32.totalorder %s148, 0
      %p1175 = por %p1173, %p1174
      %s1176 = ssub.s32 %s150, %s157
      %p1177 = scmp.eq.s32.totalorder %s1176, 0
      %s1179 = sadd.s32 %s1178, 1
      %s1180 = scalar_select %p1177, %s1178, %s1179
      %p1183 = pneg %p1177
      %p1184 = scmp.eq.s32.totalorder %s142, 1
      %p1185 = por %p1183, %p1184
      %p1186 = scmp.ne.s32.totalorder %s1178, %s1181
      %p1187 = scmp.eq.s32.totalorder %s142, 0
      %p1188 = por %p1186, %p1187
      %p1189 = scmp.ne.s32.totalorder %s1178, %s1181
      %p1190 = scmp.eq.s32.totalorder %s147, 1
      %p1191 = por %p1189, %p1190
      %p1192 = scmp.ne.s32.totalorder %s1181, %s1182
      %p1193 = scmp.eq.s32.totalorder %s147, 0
      %p1194 = por %p1192, %p1193
      %p1195 = scmp.ne.s32.totalorder %s1181, %s1182
      %p1196 = scmp.eq.s32.totalorder %s148, 1
      %p1197 = por %p1195, %p1196
      %p1199 = scmp.ne.s32.totalorder %s1182, %s1198
      %p1200 = scmp.eq.s32.totalorder %s148, 0
      %p1201 = por %p1199, %p1200
      %s1202 = ssub.s32 %s150, %s157
      %p1203 = scmp.eq.s32.totalorder %s1202, 0
      %s1205 = sadd.s32 %s1204, 1
      %s1206 = scalar_select %p1203, %s1204, %s1205
      %p1209 = pneg %p1203
      %p1210 = scmp.eq.s32.totalorder %s142, 1
      %p1211 = por %p1209, %p1210
      %p1212 = scmp.ne.s32.totalorder %s1204, %s1207
      %p1213 = scmp.eq.s32.totalorder %s142, 0
      %p1214 = por %p1212, %p1213
      %p1215 = scmp.ne.s32.totalorder %s1204, %s1207
      %p1216 = scmp.eq.s32.totalorder %s147, 1
      %p1217 = por %p1215, %p1216
      %p1218 = scmp.ne.s32.totalorder %s1207, %s1208
      %p1219 = scmp.eq.s32.totalorder %s147, 0
      %p1220 = por %p1218, %p1219
      %p1221 = scmp.ne.s32.totalorder %s1207, %s1208
      %p1222 = scmp.eq.s32.totalorder %s148, 1
      %p1223 = por %p1221, %p1222
      %p1225 = scmp.ne.s32.totalorder %s1208, %s1224
      %p1226 = scmp.eq.s32.totalorder %s148, 0
      %p1227 = por %p1225, %p1226
      %s1229 = sadd.s32 %s1228, 1
      %p1232 = scmp.eq.s32.totalorder %s142, 1
      %p1233 = scmp.ne.s32.totalorder %s1228, %s1230
      %p1234 = scmp.eq.s32.totalorder %s142, 0
      %p1235 = por %p1233, %p1234
      %p1236 = scmp.ne.s32.totalorder %s1228, %s1230
      %p1237 = scmp.eq.s32.totalorder %s147, 1
      %p1238 = por %p1236, %p1237
      %p1239 = scmp.ne.s32.totalorder %s1230, %s1231
      %p1240 = scmp.eq.s32.totalorder %s147, 0
      %p1241 = por %p1239, %p1240
      %p1242 = scmp.ne.s32.totalorder %s1230, %s1231
      %p1243 = scmp.eq.s32.totalorder %s148, 1
      %p1244 = por %p1242, %p1243
      %p1246 = scmp.ne.s32.totalorder %s1231, %s1245
      %p1247 = scmp.eq.s32.totalorder %s148, 0
      %p1248 = por %p1246, %p1247
      %s1250 = sadd.s32 %s1249, 1
      %p1253 = scmp.eq.s32.totalorder %s142, 1
      %p1254 = scmp.ne.s32.totalorder %s1249, %s1251
      %p1255 = scmp.eq.s32.totalorder %s142, 0
      %p1256 = por %p1254, %p1255
      %p1257 = scmp.ne.s32.totalorder %s1249, %s1251
      %p1258 = scmp.eq.s32.totalorder %s147, 1
      %p1259 = por %p1257, %p1258
      %p1260 = scmp.ne.s32.totalorder %s1251, %s1252
      %p1261 = scmp.eq.s32.totalorder %s147, 0
      %p1262 = por %p1260, %p1261
      %p1263 = scmp.ne.s32.totalorder %s1251, %s1252
      %p1264 = scmp.eq.s32.totalorder %s148, 1
      %p1265 = por %p1263, %p1264
      %p1267 = scmp.ne.s32.totalorder %s1252, %s1266
      %p1268 = scmp.eq.s32.totalorder %s148, 0
      %p1269 = por %p1267, %p1268
      %s1271 = sadd.s32 %s1270, 1
      %p1274 = scmp.eq.s32.totalorder %s142, 1
      %p1275 = scmp.ne.s32.totalorder %s1270, %s1272
      %p1276 = scmp.eq.s32.totalorder %s142, 0
      %p1277 = por %p1275, %p1276
      %p1278 = scmp.ne.s32.totalorder %s1270, %s1272
      %p1279 = scmp.eq.s32.totalorder %s147, 1
      %p1280 = por %p1278, %p1279
      %p1281 = scmp.ne.s32.totalorder %s1272, %s1273
      %p1282 = scmp.eq.s32.totalorder %s147, 0
      %p1283 = por %p1281, %p1282
      %p1284 = scmp.ne.s32.totalorder %s1272, %s1273
      %p1285 = scmp.eq.s32.totalorder %s148, 1
      %p1286 = por %p1284, %p1285
      %p1288 = scmp.ne.s32.totalorder %s1273, %s1287
      %p1289 = scmp.eq.s32.totalorder %s148, 0
      %p1290 = por %p1288, %p1289
      %s1292 = sadd.s32 %s1291, 1
      %p1295 = scmp.eq.s32.totalorder %s142, 1
      %p1296 = scmp.ne.s32.totalorder %s1291, %s1293
      %p1297 = scmp.eq.s32.totalorder %s142, 0
      %p1298 = por %p1296, %p1297
      %p1299 = scmp.ne.s32.totalorder %s1291, %s1293
      %p1300 = scmp.eq.s32.totalorder %s147, 1
      %p1301 = por %p1299, %p1300
      %p1302 = scmp.ne.s32.totalorder %s1293, %s1294
      %p1303 = scmp.eq.s32.totalorder %s147, 0
      %p1304 = por %p1302, %p1303
      %p1305 = scmp.ne.s32.totalorder %s1293, %s1294
      %p1306 = scmp.eq.s32.totalorder %s148, 1
      %p1307 = por %p1305, %p1306
      %p1309 = scmp.ne.s32.totalorder %s1294, %s1308
      %p1310 = scmp.eq.s32.totalorder %s148, 0
      %p1311 = por %p1309, %p1310
      %s1312 = ssub.s32 %s149, %s161
      %p1313 = scmp.eq.s32.totalorder %s1312, 0
      %s1315 = sadd.s32 %s1314, 1
      %s1316 = scalar_select %p1313, %s1314, %s1315
      %p1319 = pneg %p1313
      %p1320 = scmp.eq.s32.totalorder %s142, 1
      %p1321 = por %p1319, %p1320
      %p1322 = scmp.ne.s32.totalorder %s1314, %s1317
      %p1323 = scmp.eq.s32.totalorder %s142, 0
      %p1324 = por %p1322, %p1323
      %p1325 = scmp.ne.s32.totalorder %s1314, %s1317
      %p1326 = scmp.eq.s32.totalorder %s147, 1
      %p1327 = por %p1325, %p1326
      %p1328 = scmp.ne.s32.totalorder %s1317, %s1318
      %p1329 = scmp.eq.s32.totalorder %s147, 0
      %p1330 = por %p1328, %p1329
      %p1331 = scmp.ne.s32.totalorder %s1317, %s1318
      %p1332 = scmp.eq.s32.totalorder %s148, 1
      %p1333 = por %p1331, %p1332
      %p1335 = scmp.ne.s32.totalorder %s1318, %s1334
      %p1336 = scmp.eq.s32.totalorder %s148, 0
      %p1337 = por %p1335, %p1336
      %p1338 = scmp.le.s32.totalorder 1, %s142
      %p1339 = scmp.lt.s32.totalorder %s142, 3
      %p1340 = pnand %p1338, %p1339
      %p1341 = pneg %p1340
      // Predicated region
      $region9: #{tpu_custom_call.1} parent=5 // pred_check
        _
      $region10: #{tpu_custom_call.1} parent=5 // pred_check_branch
        %1343 = sbr.rel (%p1340) target = $region12
      $region11: #{tpu_custom_call.1} parent=5 // pred_region
        %s1344 = ssub.s32 %s142, 1
        // Predicated region
        $region13: #{tpu_custom_call.1} parent=11 // pred_check
          %p1345 = pneg %p180
        $region14: #{tpu_custom_call.1} parent=11 // pred_check_branch
          %1347 = sbr.rel (%p1345) target = $region16
        $region15: #{tpu_custom_call.1} parent=11 // pred_region
          %s1348 = smul.u32 2, %s151
          %1350 = vsyncadd [#allocation3], 0
          %s1351 = smul.addr %s1348, 2
          %s1352 = smul.addr %s1351, 8
          %s1353 = scalar_lea.hbm %s1, %s1352
          %s1354 = sshll.u32 %s1353, 4
          %s1355 = int_to_ptr.hbm [resolvable:$true] %s1354
          %s1356 = sshll.u32 [#allocation2], 4
          %s1357 = int_to_ptr.vmem [resolvable:$true] %s1356
          %1362 = dma.hbm_to_vmem [thread:$0]  %s1355, 512, %s1357, [#allocation3], 256, 256, 16
        $region16: #{tpu_custom_call.1} parent=11 // pred_fallthru
          _
        // Predicated region
        $region17: #{tpu_custom_call.1} parent=11 // pred_check
          %p1363 = pneg %p206
        $region18: #{tpu_custom_call.1} parent=11 // pred_check_branch
          %1365 = sbr.rel (%p1363) target = $region20
        $region19: #{tpu_custom_call.1} parent=11 // pred_region
          %s1366 = smul.u32 2, %s151
          %1368 = vsyncadd [#allocation6], 0
          %s1369 = smul.addr %s1366, 4
          %s1370 = smul.addr %s1369, 8
          %s1371 = scalar_lea.hbm %s3, %s1370
          %s1372 = sshll.u32 %s1371, 4
          %s1373 = int_to_ptr.hbm [resolvable:$true] %s1372
          %s1374 = sshll.u32 [#allocation5], 4
          %s1375 = int_to_ptr.vmem [resolvable:$true] %s1374
          %1380 = dma.hbm_to_vmem [thread:$0]  %s1373, 1024, %s1375, [#allocation6], 256, 256, 16
        $region20: #{tpu_custom_call.1} parent=11 // pred_fallthru
          _
        // Predicated region
        $region21: #{tpu_custom_call.1} parent=11 // pred_check
          %p1381 = pneg %p232
        $region22: #{tpu_custom_call.1} parent=11 // pred_check_branch
          %1383 = sbr.rel (%p1381) target = $region24
        $region23: #{tpu_custom_call.1} parent=11 // pred_region
          %s1384 = smul.u32 2, %s151
          %1386 = vsyncadd [#allocation6], 0
          %s1387 = smul.addr %s1384, 2
          %s1388 = smul.addr %s1387, 8
          %s1389 = scalar_lea.hbm %s5, %s1388
          %s1390 = sshll.u32 %s1389, 4
          %s1391 = int_to_ptr.hbm [resolvable:$true] %s1390
          %s1392 = sshll.u32 [#allocation7], 4
          %s1393 = int_to_ptr.vmem [resolvable:$true] %s1392
          %1398 = dma.hbm_to_vmem [thread:$0]  %s1391, 512, %s1393, [#allocation6], 256, 256, 16
        $region24: #{tpu_custom_call.1} parent=11 // pred_fallthru
          _
        // Predicated region
        $region25: #{tpu_custom_call.1} parent=11 // pred_check
          %p1399 = pneg %p258
        $region26: #{tpu_custom_call.1} parent=11 // pred_check_branch
          %1401 = sbr.rel (%p1399) target = $region28
        $region27: #{tpu_custom_call.1} parent=11 // pred_region
          %s1402 = smul.u32 2, %s151
          %1404 = vsyncadd [#allocation9], 0
          %s1405 = smul.addr %s1402, 4
          %s1406 = smul.addr %s1405, 8
          %s1407 = scalar_lea.hbm %s7, %s1406
          %s1408 = sshll.u32 %s1407, 4
          %s1409 = int_to_ptr.hbm [resolvable:$true] %s1408
          %s1410 = sshll.u32 [#allocation8], 4
          %s1411 = int_to_ptr.vmem [resolvable:$true] %s1410
          %1416 = dma.hbm_to_vmem [thread:$0]  %s1409, 1024, %s1411, [#allocation9], 256, 256, 16
        $region28: #{tpu_custom_call.1} parent=11 // pred_fallthru
          _
        // Predicated region
        $region29: #{tpu_custom_call.1} parent=11 // pred_check
          %p1417 = pneg %p284
        $region30: #{tpu_custom_call.1} parent=11 // pred_check_branch
          %1419 = sbr.rel (%p1417) target = $region32
        $region31: #{tpu_custom_call.1} parent=11 // pred_region
          %s1420 = smul.u32 2, %s151
          %1422 = vsyncadd [#allocation9], 0
          %s1423 = smul.addr %s1420, 2
          %s1424 = smul.addr %s1423, 8
          %s1425 = scalar_lea.hbm %s9, %s1424
          %s1426 = sshll.u32 %s1425, 4
          %s1427 = int_to_ptr.hbm [resolvable:$true] %s1426
          %s1428 = sshll.u32 [#allocation10], 4
          %s1429 = int_to_ptr.vmem [resolvable:$true] %s1428
          %1434 = dma.hbm_to_vmem [thread:$0]  %s1427, 512, %s1429, [#allocation9], 256, 256, 16
        $region32: #{tpu_custom_call.1} parent=11 // pred_fallthru
          _
        // Predicated region
        $region33: #{tpu_custom_call.1} parent=11 // pred_check
          %p1435 = pneg %p310
        $region34: #{tpu_custom_call.1} parent=11 // pred_check_branch
          %1437 = sbr.rel (%p1435) target = $region36
        $region35: #{tpu_custom_call.1} parent=11 // pred_region
          %s1438 = smul.u32 2, %s151
          %1440 = vsyncadd [#allocation12], 0
          %s1441 = smul.addr %s1438, 2
          %s1442 = smul.addr %s1441, 8
          %s1443 = scalar_lea.hbm %s11, %s1442
          %s1444 = sshll.u32 %s1443, 4
          %s1445 = int_to_ptr.hbm [resolvable:$true] %s1444
          %s1446 = sshll.u32 [#allocation11], 4
          %s1447 = int_to_ptr.vmem [resolvable:$true] %s1446
          %1452 = dma.hbm_to_vmem [thread:$0]  %s1445, 512, %s1447, [#allocation12], 256, 256, 16
        $region36: #{tpu_custom_call.1} parent=11 // pred_fallthru
          _
        // Predicated region
        $region37: #{tpu_custom_call.1} parent=11 // pred_check
          %p1453 = pneg %p336
        $region38: #{tpu_custom_call.1} parent=11 // pred_check_branch
          %1455 = sbr.rel (%p1453) target = $region40
        $region39: #{tpu_custom_call.1} parent=11 // pred_region
          %s1456 = smul.u32 2, %s151
          %1458 = vsyncadd [#allocation12], 0
          %s1459 = scalar_lea.hbm %s13, %s1456
          %s1460 = sshll.u32 %s1459, 4
          %s1461 = int_to_ptr.hbm [resolvable:$true] %s1460
          %s1462 = sshll.u32 [#allocation13], 4
          %s1463 = int_to_ptr.vmem [resolvable:$true] %s1462
          %1468 = dma.hbm_to_vmem [thread:$0]  %s1461, 32, %s1463, [#allocation12], 16, 16, 1
        $region40: #{tpu_custom_call.1} parent=11 // pred_fallthru
          _
        // Predicated region
        $region41: #{tpu_custom_call.1} parent=11 // pred_check
          %p1469 = pneg %p1241
        $region42: #{tpu_custom_call.1} parent=11 // pred_check_branch
          %1471 = sbr.rel (%p1469) target = $region44
        $region43: #{tpu_custom_call.1} parent=11 // pred_region
          %1473 = vsyncadd [#allocation51], 0
          %s1474 = sshll.u32 %s83, 4
          %s1475 = int_to_ptr.hbm [resolvable:$true] %s1474
          %s1476 = sshll.u32 [#allocation52], 4
          %s1477 = int_to_ptr.vmem [resolvable:$true] %s1476
          %1482 = dma.hbm_to_vmem [thread:$0]  %s1475, 4096, %s1477, [#allocation51], 128, 128, 8
        $region44: #{tpu_custom_call.1} parent=11 // pred_fallthru
          _
        // Predicated region
        $region45: #{tpu_custom_call.1} parent=11 // pred_check
          %p1483 = pneg %p1262
        $region46: #{tpu_custom_call.1} parent=11 // pred_check_branch
          %1485 = sbr.rel (%p1483) target = $region48
        $region47: #{tpu_custom_call.1} parent=11 // pred_region
          _
        $region48: #{tpu_custom_call.1} parent=11 // pred_fallthru
          _
        // Predicated region
        $region49: #{tpu_custom_call.1} parent=11 // pred_check
          %p1486 = pneg %p1283
        $region50: #{tpu_custom_call.1} parent=11 // pred_check_branch
          %1488 = sbr.rel (%p1486) target = $region52
        $region51: #{tpu_custom_call.1} parent=11 // pred_region
          %1490 = vsyncadd [#allocation54], 0
          %s1491 = sshll.u32 %s87, 4
          %s1492 = int_to_ptr.hbm [resolvable:$true] %s1491
          %s1493 = sshll.u32 [#allocation53], 4
          %s1494 = int_to_ptr.vmem [resolvable:$true] %s1493
          %1499 = dma.hbm_to_vmem [thread:$0]  %s1492, 4096, %s1494, [#allocation54], 128, 128, 8
        $region52: #{tpu_custom_call.1} parent=11 // pred_fallthru
          _
        // Predicated region
        $region53: #{tpu_custom_call.1} parent=11 // pred_check
          %p1500 = pneg %p1304
        $region54: #{tpu_custom_call.1} parent=11 // pred_check_branch
          %1502 = sbr.rel (%p1500) target = $region56
        $region55: #{tpu_custom_call.1} parent=11 // pred_region
          _
        $region56: #{tpu_custom_call.1} parent=11 // pred_fallthru
          _
      $region12: #{tpu_custom_call.1} parent=5 // pred_fallthru
        _
      %p1503 = scmp.lt.s32.totalorder %s142, 2
      // Predicated region
      $region57: #{tpu_custom_call.1} parent=5 // pred_check
        %p1504 = pneg %p1503
      $region58: #{tpu_custom_call.1} parent=5 // pred_check_branch
        %1506 = sbr.rel (%p1504) target = $region60
      $region59: #{tpu_custom_call.1} parent=5 // pred_region
        // Predicated region
        $region61: #{tpu_custom_call.1} parent=59 // pred_check
          %p1507 = pneg %p356
        $region62: #{tpu_custom_call.1} parent=59 // pred_check_branch
          %1509 = sbr.rel (%p1507) target = $region64
        $region63: #{tpu_custom_call.1} parent=59 // pred_region
          %s1510 = sand.u32 %s142, 1
          %s1511 = scalar_lea.sflag [#allocation15], %s1510
          %s1512 = sand.u32 %s346, 1
          %s1513 = smul.addr %s1512, 256
          %s1514 = scalar_lea.vmem [#allocation14], %s1513
          %1516 = vsyncadd %s1511, 0
          %s1517 = smul.addr %s150, 64
          %s1518 = smul.addr %s1517, 4
          %s1519 = scalar_lea.hbm %s15, %s1518
          %s1520 = sshll.u32 %s1519, 4
          %s1521 = int_to_ptr.hbm [resolvable:$true] %s1520
          %s1522 = sshll.u32 %s1514, 4
          %s1523 = int_to_ptr.vmem [resolvable:$true] %s1522
          %1528 = dma.hbm_to_vmem [thread:$0]  %s1521, 4096, %s1523, %s1511, 128, 128, 8
        $region64: #{tpu_custom_call.1} parent=59 // pred_fallthru
          _
        // Predicated region
        $region65: #{tpu_custom_call.1} parent=59 // pred_check
          %p1529 = pneg %p382
        $region66: #{tpu_custom_call.1} parent=59 // pred_check_branch
          %1531 = sbr.rel (%p1529) target = $region68
        $region67: #{tpu_custom_call.1} parent=59 // pred_region
          %p1532 = scmp.lt.s32.totalorder %s150, 1
          %s1533 = scalar_select %p1532, %s150, 1
          %s1534 = smul.addr %s1533, 2
          %s1535 = scalar_lea.vmem %s17, %s1534
        $region68: #{tpu_custom_call.1} parent=59 // pred_fallthru
          _
        // Predicated region
        $region69: #{tpu_custom_call.1} parent=59 // pred_check
          %p1536 = pneg %p408
        $region70: #{tpu_custom_call.1} parent=59 // pred_check_branch
          %1538 = sbr.rel (%p1536) target = $region72
        $region71: #{tpu_custom_call.1} parent=59 // pred_region
          %s1539 = sand.u32 %s142, 1
          %s1540 = scalar_lea.sflag [#allocation15], %s1539
          %s1541 = sand.u32 %s398, 1
          %s1542 = smul.addr %s1541, 256
          %s1543 = scalar_lea.vmem [#allocation16], %s1542
          %1545 = vsyncadd %s1540, 0
          %s1546 = smul.addr %s150, 64
          %s1547 = smul.addr %s1546, 4
          %s1548 = scalar_lea.hbm %s19, %s1547
          %s1549 = sshll.u32 %s1548, 4
          %s1550 = int_to_ptr.hbm [resolvable:$true] %s1549
          %s1551 = sshll.u32 %s1543, 4
          %s1552 = int_to_ptr.vmem [resolvable:$true] %s1551
          %1557 = dma.hbm_to_vmem [thread:$0]  %s1550, 4096, %s1552, %s1540, 128, 128, 8
        $region72: #{tpu_custom_call.1} parent=59 // pred_fallthru
          _
        // Predicated region
        $region73: #{tpu_custom_call.1} parent=59 // pred_check
          %p1558 = pneg %p434
        $region74: #{tpu_custom_call.1} parent=59 // pred_check_branch
          %1560 = sbr.rel (%p1558) target = $region76
        $region75: #{tpu_custom_call.1} parent=59 // pred_region
          %p1561 = scmp.lt.s32.totalorder %s150, 1
          %s1562 = scalar_select %p1561, %s150, 1
          %s1563 = smul.addr %s1562, 2
          %s1564 = scalar_lea.vmem %s21, %s1563
        $region76: #{tpu_custom_call.1} parent=59 // pred_fallthru
          _
        // Predicated region
        $region77: #{tpu_custom_call.1} parent=59 // pred_check
          %p1565 = pneg %p460
        $region78: #{tpu_custom_call.1} parent=59 // pred_check_branch
          %1567 = sbr.rel (%p1565) target = $region80
        $region79: #{tpu_custom_call.1} parent=59 // pred_region
          %s1568 = sand.u32 %s142, 1
          %s1569 = scalar_lea.sflag [#allocation18], %s1568
          %s1570 = sand.u32 %s450, 1
          %s1571 = smul.addr %s1570, 256
          %s1572 = scalar_lea.vmem [#allocation17], %s1571
          %1574 = vsyncadd %s1569, 0
          %s1575 = smul.addr %s150, 64
          %s1576 = smul.addr %s1575, 4
          %s1577 = scalar_lea.hbm %s23, %s1576
          %s1578 = sshll.u32 %s1577, 4
          %s1579 = int_to_ptr.hbm [resolvable:$true] %s1578
          %s1580 = sshll.u32 %s1572, 4
          %s1581 = int_to_ptr.vmem [resolvable:$true] %s1580
          %1586 = dma.hbm_to_vmem [thread:$0]  %s1579, 4096, %s1581, %s1569, 128, 128, 8
        $region80: #{tpu_custom_call.1} parent=59 // pred_fallthru
          _
        // Predicated region
        $region81: #{tpu_custom_call.1} parent=59 // pred_check
          %p1587 = pneg %p486
        $region82: #{tpu_custom_call.1} parent=59 // pred_check_branch
          %1589 = sbr.rel (%p1587) target = $region84
        $region83: #{tpu_custom_call.1} parent=59 // pred_region
          %s1590 = sand.u32 %s142, 1
          %s1591 = scalar_lea.sflag [#allocation18], %s1590
          %s1592 = sand.u32 %s476, 1
          %s1593 = smul.addr %s1592, 2
          %s1594 = scalar_lea.vmem [#allocation19], %s1593
          %1596 = vsyncadd %s1591, 0
          %s1597 = smul.addr %s150, 2
          %s1598 = scalar_lea.hbm %s25, %s1597
          %s1600 = sshll.u32 %s1598, 4
          %s1601 = int_to_ptr.hbm [resolvable:$true] %s1600
          %s1602 = sshll.u32 %s1594, 4
          %s1603 = int_to_ptr.vmem [resolvable:$true] %s1602
          %1605 = dma.hbm_to_vmem [thread:$0]  %s1601, 32, %s1603, %s1591
        $region84: #{tpu_custom_call.1} parent=59 // pred_fallthru
          _
        // Predicated region
        $region85: #{tpu_custom_call.1} parent=59 // pred_check
          %p1606 = pneg %p512
        $region86: #{tpu_custom_call.1} parent=59 // pred_check_branch
          %1608 = sbr.rel (%p1606) target = $region88
        $region87: #{tpu_custom_call.1} parent=59 // pred_region
          %s1609 = sand.u32 %s142, 1
          %s1610 = scalar_lea.sflag [#allocation21], %s1609
          %s1611 = sand.u32 %s502, 1
          %s1612 = smul.addr %s1611, 256
          %s1613 = scalar_lea.vmem [#allocation20], %s1612
          %1615 = vsyncadd %s1610, 0
          %s1616 = smul.addr %s150, 64
          %s1617 = smul.addr %s1616, 4
          %s1618 = scalar_lea.hbm %s27, %s1617
          %s1619 = sshll.u32 %s1618, 4
          %s1620 = int_to_ptr.hbm [resolvable:$true] %s1619
          %s1621 = sshll.u32 %s1613, 4
          %s1622 = int_to_ptr.vmem [resolvable:$true] %s1621
          %1627 = dma.hbm_to_vmem [thread:$0]  %s1620, 4096, %s1622, %s1610, 128, 128, 8
        $region88: #{tpu_custom_call.1} parent=59 // pred_fallthru
          _
        // Predicated region
        $region89: #{tpu_custom_call.1} parent=59 // pred_check
          %p1628 = pneg %p538
        $region90: #{tpu_custom_call.1} parent=59 // pred_check_branch
          %1630 = sbr.rel (%p1628) target = $region92
        $region91: #{tpu_custom_call.1} parent=59 // pred_region
          %p1631 = scmp.lt.s32.totalorder %s150, 1
          %s1632 = scalar_select %p1631, %s150, 1
          %s1633 = smul.addr %s1632, 2
          %s1634 = scalar_lea.vmem %s29, %s1633
        $region92: #{tpu_custom_call.1} parent=59 // pred_fallthru
          _
        // Predicated region
        $region93: #{tpu_custom_call.1} parent=59 // pred_check
          %p1635 = pneg %p564
        $region94: #{tpu_custom_call.1} parent=59 // pred_check_branch
          %1637 = sbr.rel (%p1635) target = $region96
        $region95: #{tpu_custom_call.1} parent=59 // pred_region
          %s1638 = sand.u32 %s142, 1
          %s1639 = scalar_lea.sflag [#allocation21], %s1638
          %s1640 = sand.u32 %s554, 1
          %s1641 = smul.addr %s1640, 256
          %s1642 = scalar_lea.vmem [#allocation22], %s1641
          %1644 = vsyncadd %s1639, 0
          %s1645 = smul.addr %s150, 64
          %s1646 = smul.addr %s1645, 4
          %s1647 = scalar_lea.hbm %s31, %s1646
          %s1648 = sshll.u32 %s1647, 4
          %s1649 = int_to_ptr.hbm [resolvable:$true] %s1648
          %s1650 = sshll.u32 %s1642, 4
          %s1651 = int_to_ptr.vmem [resolvable:$true] %s1650
          %1656 = dma.hbm_to_vmem [thread:$0]  %s1649, 4096, %s1651, %s1639, 128, 128, 8
        $region96: #{tpu_custom_call.1} parent=59 // pred_fallthru
          _
        // Predicated region
        $region97: #{tpu_custom_call.1} parent=59 // pred_check
          %p1657 = pneg %p590
        $region98: #{tpu_custom_call.1} parent=59 // pred_check_branch
          %1659 = sbr.rel (%p1657) target = $region100
        $region99: #{tpu_custom_call.1} parent=59 // pred_region
          %s1660 = sand.u32 %s142, 1
          %s1661 = scalar_lea.sflag [#allocation24], %s1660
          %s1662 = sand.u32 %s580, 1
          %s1663 = smul.addr %s1662, 2
          %s1664 = scalar_lea.vmem [#allocation23], %s1663
          %1666 = vsyncadd %s1661, 0
          %s1667 = smul.addr %s150, 2
          %s1668 = scalar_lea.hbm %s33, %s1667
          %s1670 = sshll.u32 %s1668, 4
          %s1671 = int_to_ptr.hbm [resolvable:$true] %s1670
          %s1672 = sshll.u32 %s1664, 4
          %s1673 = int_to_ptr.vmem [resolvable:$true] %s1672
          %1675 = dma.hbm_to_vmem [thread:$0]  %s1671, 32, %s1673, %s1661
        $region100: #{tpu_custom_call.1} parent=59 // pred_fallthru
          _
        // Predicated region
        $region101: #{tpu_custom_call.1} parent=59 // pred_check
          %p1676 = pneg %p616
        $region102: #{tpu_custom_call.1} parent=59 // pred_check_branch
          %1678 = sbr.rel (%p1676) target = $region104
        $region103: #{tpu_custom_call.1} parent=59 // pred_region
          %s1679 = sand.u32 %s142, 1
          %s1680 = scalar_lea.sflag [#allocation24], %s1679
          %s1681 = sand.u32 %s606, 1
          %s1682 = smul.addr %s1681, 256
          %s1683 = scalar_lea.vmem [#allocation25], %s1682
          %1685 = vsyncadd %s1680, 0
          %s1686 = smul.addr %s150, 64
          %s1687 = smul.addr %s1686, 4
          %s1688 = scalar_lea.hbm %s35, %s1687
          %s1689 = sshll.u32 %s1688, 4
          %s1690 = int_to_ptr.hbm [resolvable:$true] %s1689
          %s1691 = sshll.u32 %s1683, 4
          %s1692 = int_to_ptr.vmem [resolvable:$true] %s1691
          %1697 = dma.hbm_to_vmem [thread:$0]  %s1690, 4096, %s1692, %s1680, 128, 128, 8
        $region104: #{tpu_custom_call.1} parent=59 // pred_fallthru
          _
        // Predicated region
        $region105: #{tpu_custom_call.1} parent=59 // pred_check
          %p1698 = pneg %p642
        $region106: #{tpu_custom_call.1} parent=59 // pred_check_branch
          %1700 = sbr.rel (%p1698) target = $region108
        $region107: #{tpu_custom_call.1} parent=59 // pred_region
          %p1701 = scmp.lt.s32.totalorder %s150, 1
          %s1702 = scalar_select %p1701, %s150, 1
          %s1703 = smul.addr %s1702, 2
          %s1704 = scalar_lea.vmem %s37, %s1703
        $region108: #{tpu_custom_call.1} parent=59 // pred_fallthru
          _
        // Predicated region
        $region109: #{tpu_custom_call.1} parent=59 // pred_check
          %p1705 = pneg %p668
        $region110: #{tpu_custom_call.1} parent=59 // pred_check_branch
          %1707 = sbr.rel (%p1705) target = $region112
        $region111: #{tpu_custom_call.1} parent=59 // pred_region
          %s1708 = sand.u32 %s142, 1
          %s1709 = scalar_lea.sflag [#allocation27], %s1708
          %s1710 = sand.u32 %s658, 1
          %s1711 = smul.addr %s1710, 2
          %s1712 = scalar_lea.vmem [#allocation26], %s1711
          %1714 = vsyncadd %s1709, 0
          %s1715 = smul.addr %s150, 2
          %s1716 = scalar_lea.hbm %s39, %s1715
          %s1718 = sshll.u32 %s1716, 4
          %s1719 = int_to_ptr.hbm [resolvable:$true] %s1718
          %s1720 = sshll.u32 %s1712, 4
          %s1721 = int_to_ptr.vmem [resolvable:$true] %s1720
          %1723 = dma.hbm_to_vmem [thread:$0]  %s1719, 32, %s1721, %s1709
        $region112: #{tpu_custom_call.1} parent=59 // pred_fallthru
          _
        // Predicated region
        $region113: #{tpu_custom_call.1} parent=59 // pred_check
          %p1724 = pneg %p694
        $region114: #{tpu_custom_call.1} parent=59 // pred_check_branch
          %1726 = sbr.rel (%p1724) target = $region116
        $region115: #{tpu_custom_call.1} parent=59 // pred_region
          %s1727 = sand.u32 %s142, 1
          %s1728 = scalar_lea.sflag [#allocation27], %s1727
          %s1729 = sand.u32 %s684, 1
          %s1730 = smul.addr %s1729, 2
          %s1731 = scalar_lea.vmem [#allocation28], %s1730
          %1733 = vsyncadd %s1728, 0
          %s1734 = smul.addr %s150, 2
          %s1735 = scalar_lea.hbm %s41, %s1734
          %s1737 = sshll.u32 %s1735, 4
          %s1738 = int_to_ptr.hbm [resolvable:$true] %s1737
          %s1739 = sshll.u32 %s1731, 4
          %s1740 = int_to_ptr.vmem [resolvable:$true] %s1739
          %1742 = dma.hbm_to_vmem [thread:$0]  %s1738, 32, %s1740, %s1728
        $region116: #{tpu_custom_call.1} parent=59 // pred_fallthru
          _
        // Predicated region
        $region117: #{tpu_custom_call.1} parent=59 // pred_check
          %p1743 = pneg %p720
        $region118: #{tpu_custom_call.1} parent=59 // pred_check_branch
          %1745 = sbr.rel (%p1743) target = $region120
        $region119: #{tpu_custom_call.1} parent=59 // pred_region
          %s1746 = sand.u32 %s142, 1
          %s1747 = scalar_lea.sflag [#allocation30], %s1746
          %s1748 = sand.u32 %s710, 1
          %s1749 = smul.addr %s1748, 256
          %s1750 = scalar_lea.vmem [#allocation29], %s1749
          %1752 = vsyncadd %s1747, 0
          %s1753 = smul.addr %s150, 64
          %s1754 = smul.addr %s1753, 4
          %s1755 = scalar_lea.hbm %s43, %s1754
          %s1756 = sshll.u32 %s1755, 4
          %s1757 = int_to_ptr.hbm [resolvable:$true] %s1756
          %s1758 = sshll.u32 %s1750, 4
          %s1759 = int_to_ptr.vmem [resolvable:$true] %s1758
          %1764 = dma.hbm_to_vmem [thread:$0]  %s1757, 4096, %s1759, %s1747, 128, 128, 8
        $region120: #{tpu_custom_call.1} parent=59 // pred_fallthru
          _
        // Predicated region
        $region121: #{tpu_custom_call.1} parent=59 // pred_check
          %p1765 = pneg %p746
        $region122: #{tpu_custom_call.1} parent=59 // pred_check_branch
          %1767 = sbr.rel (%p1765) target = $region124
        $region123: #{tpu_custom_call.1} parent=59 // pred_region
          %p1768 = scmp.lt.s32.totalorder %s150, 1
          %s1769 = scalar_select %p1768, %s150, 1
          %s1770 = smul.addr %s1769, 2
          %s1771 = scalar_lea.vmem %s45, %s1770
        $region124: #{tpu_custom_call.1} parent=59 // pred_fallthru
          _
        // Predicated region
        $region125: #{tpu_custom_call.1} parent=59 // pred_check
          %p1772 = pneg %p772
        $region126: #{tpu_custom_call.1} parent=59 // pred_check_branch
          %1774 = sbr.rel (%p1772) target = $region128
        $region127: #{tpu_custom_call.1} parent=59 // pred_region
          %s1775 = sand.u32 %s142, 1
          %s1776 = scalar_lea.sflag [#allocation30], %s1775
          %s1777 = sand.u32 %s762, 1
          %s1778 = smul.addr %s1777, 256
          %s1779 = scalar_lea.vmem [#allocation31], %s1778
          %1781 = vsyncadd %s1776, 0
          %s1782 = smul.addr %s150, 64
          %s1783 = smul.addr %s1782, 4
          %s1784 = scalar_lea.hbm %s47, %s1783
          %s1785 = sshll.u32 %s1784, 4
          %s1786 = int_to_ptr.hbm [resolvable:$true] %s1785
          %s1787 = sshll.u32 %s1779, 4
          %s1788 = int_to_ptr.vmem [resolvable:$true] %s1787
          %1793 = dma.hbm_to_vmem [thread:$0]  %s1786, 4096, %s1788, %s1776, 128, 128, 8
        $region128: #{tpu_custom_call.1} parent=59 // pred_fallthru
          _
        // Predicated region
        $region129: #{tpu_custom_call.1} parent=59 // pred_check
          %p1794 = pneg %p798
        $region130: #{tpu_custom_call.1} parent=59 // pred_check_branch
          %1796 = sbr.rel (%p1794) target = $region132
        $region131: #{tpu_custom_call.1} parent=59 // pred_region
          %s1797 = sand.u32 %s142, 1
          %s1798 = scalar_lea.sflag [#allocation33], %s1797
          %s1799 = sand.u32 %s788, 1
          %s1800 = smul.addr %s1799, 2
          %s1801 = scalar_lea.vmem [#allocation32], %s1800
          %1803 = vsyncadd %s1798, 0
          %s1804 = smul.addr %s150, 2
          %s1805 = scalar_lea.hbm %s49, %s1804
          %s1807 = sshll.u32 %s1805, 4
          %s1808 = int_to_ptr.hbm [resolvable:$true] %s1807
          %s1809 = sshll.u32 %s1801, 4
          %s1810 = int_to_ptr.vmem [resolvable:$true] %s1809
          %1812 = dma.hbm_to_vmem [thread:$0]  %s1808, 32, %s1810, %s1798
        $region132: #{tpu_custom_call.1} parent=59 // pred_fallthru
          _
        // Predicated region
        $region133: #{tpu_custom_call.1} parent=59 // pred_check
          %p1813 = pneg %p824
        $region134: #{tpu_custom_call.1} parent=59 // pred_check_branch
          %1815 = sbr.rel (%p1813) target = $region136
        $region135: #{tpu_custom_call.1} parent=59 // pred_region
          %s1816 = sand.u32 %s142, 1
          %s1817 = scalar_lea.sflag [#allocation33], %s1816
          %s1818 = sand.u32 %s814, 1
          %s1819 = smul.addr %s1818, 256
          %s1820 = scalar_lea.vmem [#allocation34], %s1819
          %1822 = vsyncadd %s1817, 0
          %s1823 = smul.addr %s150, 64
          %s1824 = smul.addr %s1823, 4
          %s1825 = scalar_lea.hbm %s51, %s1824
          %s1826 = sshll.u32 %s1825, 4
          %s1827 = int_to_ptr.hbm [resolvable:$true] %s1826
          %s1828 = sshll.u32 %s1820, 4
          %s1829 = int_to_ptr.vmem [resolvable:$true] %s1828
          %1834 = dma.hbm_to_vmem [thread:$0]  %s1827, 4096, %s1829, %s1817, 128, 128, 8
        $region136: #{tpu_custom_call.1} parent=59 // pred_fallthru
          _
        // Predicated region
        $region137: #{tpu_custom_call.1} parent=59 // pred_check
          %p1835 = pneg %p850
        $region138: #{tpu_custom_call.1} parent=59 // pred_check_branch
          %1837 = sbr.rel (%p1835) target = $region140
        $region139: #{tpu_custom_call.1} parent=59 // pred_region
          %p1838 = scmp.lt.s32.totalorder %s150, 1
          %s1839 = scalar_select %p1838, %s150, 1
          %s1840 = smul.addr %s1839, 2
          %s1841 = scalar_lea.vmem %s53, %s1840
        $region140: #{tpu_custom_call.1} parent=59 // pred_fallthru
          _
        // Predicated region
        $region141: #{tpu_custom_call.1} parent=59 // pred_check
          %p1842 = pneg %p876
        $region142: #{tpu_custom_call.1} parent=59 // pred_check_branch
          %1844 = sbr.rel (%p1842) target = $region144
        $region143: #{tpu_custom_call.1} parent=59 // pred_region
          %s1845 = sand.u32 %s142, 1
          %s1846 = scalar_lea.sflag [#allocation36], %s1845
          %s1847 = sand.u32 %s866, 1
          %s1848 = smul.addr %s1847, 256
          %s1849 = scalar_lea.vmem [#allocation35], %s1848
          %1851 = vsyncadd %s1846, 0
          %s1852 = smul.addr %s150, 64
          %s1853 = smul.addr %s1852, 4
          %s1854 = scalar_lea.hbm %s55, %s1853
          %s1855 = sshll.u32 %s1854, 4
          %s1856 = int_to_ptr.hbm [resolvable:$true] %s1855
          %s1857 = sshll.u32 %s1849, 4
          %s1858 = int_to_ptr.vmem [resolvable:$true] %s1857
          %1863 = dma.hbm_to_vmem [thread:$0]  %s1856, 4096, %s1858, %s1846, 128, 128, 8
        $region144: #{tpu_custom_call.1} parent=59 // pred_fallthru
          _
        // Predicated region
        $region145: #{tpu_custom_call.1} parent=59 // pred_check
          %p1864 = pneg %p902
        $region146: #{tpu_custom_call.1} parent=59 // pred_check_branch
          %1866 = sbr.rel (%p1864) target = $region148
        $region147: #{tpu_custom_call.1} parent=59 // pred_region
          %s1867 = sand.u32 %s142, 1
          %s1868 = scalar_lea.sflag [#allocation36], %s1867
          %s1869 = sand.u32 %s892, 1
          %s1870 = smul.addr %s1869, 2
          %s1871 = scalar_lea.vmem [#allocation37], %s1870
          %1873 = vsyncadd %s1868, 0
          %s1874 = smul.addr %s150, 2
          %s1875 = scalar_lea.hbm %s57, %s1874
          %s1877 = sshll.u32 %s1875, 4
          %s1878 = int_to_ptr.hbm [resolvable:$true] %s1877
          %s1879 = sshll.u32 %s1871, 4
          %s1880 = int_to_ptr.vmem [resolvable:$true] %s1879
          %1882 = dma.hbm_to_vmem [thread:$0]  %s1878, 32, %s1880, %s1868
        $region148: #{tpu_custom_call.1} parent=59 // pred_fallthru
          _
        // Predicated region
        $region149: #{tpu_custom_call.1} parent=59 // pred_check
          %p1883 = pneg %p928
        $region150: #{tpu_custom_call.1} parent=59 // pred_check_branch
          %1885 = sbr.rel (%p1883) target = $region152
        $region151: #{tpu_custom_call.1} parent=59 // pred_region
          %s1886 = sand.u32 %s142, 1
          %s1887 = scalar_lea.sflag [#allocation39], %s1886
          %s1888 = sand.u32 %s918, 1
          %s1889 = smul.addr %s1888, 256
          %s1890 = scalar_lea.vmem [#allocation38], %s1889
          %1892 = vsyncadd %s1887, 0
          %s1893 = smul.addr %s150, 64
          %s1894 = smul.addr %s1893, 4
          %s1895 = scalar_lea.hbm %s59, %s1894
          %s1896 = sshll.u32 %s1895, 4
          %s1897 = int_to_ptr.hbm [resolvable:$true] %s1896
          %s1898 = sshll.u32 %s1890, 4
          %s1899 = int_to_ptr.vmem [resolvable:$true] %s1898
          %1904 = dma.hbm_to_vmem [thread:$0]  %s1897, 4096, %s1899, %s1887, 128, 128, 8
        $region152: #{tpu_custom_call.1} parent=59 // pred_fallthru
          _
        // Predicated region
        $region153: #{tpu_custom_call.1} parent=59 // pred_check
          %p1905 = pneg %p954
        $region154: #{tpu_custom_call.1} parent=59 // pred_check_branch
          %1907 = sbr.rel (%p1905) target = $region156
        $region155: #{tpu_custom_call.1} parent=59 // pred_region
          %p1908 = scmp.lt.s32.totalorder %s150, 1
          %s1909 = scalar_select %p1908, %s150, 1
          %s1910 = smul.addr %s1909, 2
          %s1911 = scalar_lea.vmem %s61, %s1910
        $region156: #{tpu_custom_call.1} parent=59 // pred_fallthru
          _
        // Predicated region
        $region157: #{tpu_custom_call.1} parent=59 // pred_check
          %p1912 = pneg %p980
        $region158: #{tpu_custom_call.1} parent=59 // pred_check_branch
          %1914 = sbr.rel (%p1912) target = $region160
        $region159: #{tpu_custom_call.1} parent=59 // pred_region
          %s1915 = sand.u32 %s142, 1
          %s1916 = scalar_lea.sflag [#allocation39], %s1915
          %s1917 = sand.u32 %s970, 1
          %s1918 = smul.addr %s1917, 256
          %s1919 = scalar_lea.vmem [#allocation40], %s1918
          %1921 = vsyncadd %s1916, 0
          %s1922 = smul.addr %s150, 64
          %s1923 = smul.addr %s1922, 4
          %s1924 = scalar_lea.hbm %s63, %s1923
          %s1925 = sshll.u32 %s1924, 4
          %s1926 = int_to_ptr.hbm [resolvable:$true] %s1925
          %s1927 = sshll.u32 %s1919, 4
          %s1928 = int_to_ptr.vmem [resolvable:$true] %s1927
          %1933 = dma.hbm_to_vmem [thread:$0]  %s1926, 4096, %s1928, %s1916, 128, 128, 8
        $region160: #{tpu_custom_call.1} parent=59 // pred_fallthru
          _
        // Predicated region
        $region161: #{tpu_custom_call.1} parent=59 // pred_check
          %p1934 = pneg %p1006
        $region162: #{tpu_custom_call.1} parent=59 // pred_check_branch
          %1936 = sbr.rel (%p1934) target = $region164
        $region163: #{tpu_custom_call.1} parent=59 // pred_region
          %s1937 = sand.u32 %s142, 1
          %s1938 = scalar_lea.sflag [#allocation42], %s1937
          %s1939 = sand.u32 %s996, 1
          %s1940 = smul.addr %s1939, 2
          %s1941 = scalar_lea.vmem [#allocation41], %s1940
          %1943 = vsyncadd %s1938, 0
          %s1944 = smul.addr %s150, 2
          %s1945 = scalar_lea.hbm %s65, %s1944
          %s1947 = sshll.u32 %s1945, 4
          %s1948 = int_to_ptr.hbm [resolvable:$true] %s1947
          %s1949 = sshll.u32 %s1941, 4
          %s1950 = int_to_ptr.vmem [resolvable:$true] %s1949
          %1952 = dma.hbm_to_vmem [thread:$0]  %s1948, 32, %s1950, %s1938
        $region164: #{tpu_custom_call.1} parent=59 // pred_fallthru
          _
        // Predicated region
        $region165: #{tpu_custom_call.1} parent=59 // pred_check
          %p1953 = pneg %p1032
        $region166: #{tpu_custom_call.1} parent=59 // pred_check_branch
          %1955 = sbr.rel (%p1953) target = $region168
        $region167: #{tpu_custom_call.1} parent=59 // pred_region
          %s1956 = sand.u32 %s142, 1
          %s1957 = scalar_lea.sflag [#allocation42], %s1956
          %s1958 = sand.u32 %s1022, 1
          %s1959 = smul.addr %s1958, 2
          %s1960 = scalar_lea.vmem [#allocation43], %s1959
          %1962 = vsyncadd %s1957, 0
          %s1963 = smul.addr %s150, 2
          %s1964 = scalar_lea.hbm %s67, %s1963
          %s1966 = sshll.u32 %s1964, 4
          %s1967 = int_to_ptr.hbm [resolvable:$true] %s1966
          %s1968 = sshll.u32 %s1960, 4
          %s1969 = int_to_ptr.vmem [resolvable:$true] %s1968
          %1971 = dma.hbm_to_vmem [thread:$0]  %s1967, 32, %s1969, %s1957
        $region168: #{tpu_custom_call.1} parent=59 // pred_fallthru
          _
        // Predicated region
        $region169: #{tpu_custom_call.1} parent=59 // pred_check
          %p1972 = pneg %p1058
        $region170: #{tpu_custom_call.1} parent=59 // pred_check_branch
          %1974 = sbr.rel (%p1972) target = $region172
        $region171: #{tpu_custom_call.1} parent=59 // pred_region
          %p1975 = scmp.lt.s32.totalorder %s150, 1
          %s1976 = scalar_select %p1975, %s150, 1
          %s1977 = smul.addr %s1976, 2
          %s1978 = scalar_lea.vmem %s69, %s1977
        $region172: #{tpu_custom_call.1} parent=59 // pred_fallthru
          _
        // Predicated region
        $region173: #{tpu_custom_call.1} parent=59 // pred_check
          %p1979 = pneg %p1084
        $region174: #{tpu_custom_call.1} parent=59 // pred_check_branch
          %1981 = sbr.rel (%p1979) target = $region176
        $region175: #{tpu_custom_call.1} parent=59 // pred_region
          %s1982 = sand.u32 %s142, 1
          %s1983 = scalar_lea.sflag [#allocation45], %s1982
          %s1984 = sand.u32 %s1074, 1
          %s1985 = smul.addr %s1984, 128
          %s1986 = scalar_lea.vmem [#allocation44], %s1985
          %1988 = vsyncadd %s1983, 0
          %s1989 = smul.addr %s150, 32
          %s1990 = smul.addr %s1989, 4
          %s1991 = scalar_lea.hbm %s71, %s1990
          %s1992 = sshll.u32 %s1991, 4
          %s1993 = int_to_ptr.hbm [resolvable:$true] %s1992
          %s1994 = sshll.u32 %s1986, 4
          %s1995 = int_to_ptr.vmem [resolvable:$true] %s1994
          %2000 = dma.hbm_to_vmem [thread:$0]  %s1993, 2048, %s1995, %s1983, 64, 64, 4
        $region176: #{tpu_custom_call.1} parent=59 // pred_fallthru
          _
        // Predicated region
        $region177: #{tpu_custom_call.1} parent=59 // pred_check
          %p2001 = pneg %p1110
        $region178: #{tpu_custom_call.1} parent=59 // pred_check_branch
          %2003 = sbr.rel (%p2001) target = $region180
        $region179: #{tpu_custom_call.1} parent=59 // pred_region
          %s2004 = sand.u32 %s142, 1
          %s2005 = scalar_lea.sflag [#allocation45], %s2004
          %s2006 = sand.u32 %s1100, 1
          %s2007 = scalar_lea.vmem [#allocation46], %s2006
          %2009 = vsyncadd %s2005, 0
          %s2010 = scalar_lea.hbm %s73, %s150
          %s2012 = sshll.u32 %s2010, 4
          %s2013 = int_to_ptr.hbm [resolvable:$true] %s2012
          %s2014 = sshll.u32 %s2007, 4
          %s2015 = int_to_ptr.vmem [resolvable:$true] %s2014
          %2017 = dma.hbm_to_vmem [thread:$0]  %s2013, 16, %s2015, %s2005
        $region180: #{tpu_custom_call.1} parent=59 // pred_fallthru
          _
        // Predicated region
        $region181: #{tpu_custom_call.1} parent=59 // pred_check
          %p2018 = pneg %p1136
        $region182: #{tpu_custom_call.1} parent=59 // pred_check_branch
          %2020 = sbr.rel (%p2018) target = $region184
        $region183: #{tpu_custom_call.1} parent=59 // pred_region
          %s2021 = sand.u32 %s142, 1
          %s2022 = scalar_lea.sflag [#allocation48], %s2021
          %s2023 = sand.u32 %s1126, 1
          %s2024 = smul.addr %s2023, 128
          %s2025 = scalar_lea.vmem [#allocation47], %s2024
          %2027 = vsyncadd %s2022, 0
          %s2028 = smul.addr %s150, 32
          %s2029 = smul.addr %s2028, 4
          %s2030 = scalar_lea.hbm %s75, %s2029
          %s2031 = sshll.u32 %s2030, 4
          %s2032 = int_to_ptr.hbm [resolvable:$true] %s2031
          %s2033 = sshll.u32 %s2025, 4
          %s2034 = int_to_ptr.vmem [resolvable:$true] %s2033
          %2039 = dma.hbm_to_vmem [thread:$0]  %s2032, 2048, %s2034, %s2022, 128, 128, 8
        $region184: #{tpu_custom_call.1} parent=59 // pred_fallthru
          _
        // Predicated region
        $region185: #{tpu_custom_call.1} parent=59 // pred_check
          %p2040 = pneg %p1162
        $region186: #{tpu_custom_call.1} parent=59 // pred_check_branch
          %2042 = sbr.rel (%p2040) target = $region188
        $region187: #{tpu_custom_call.1} parent=59 // pred_region
          %p2043 = scmp.lt.s32.totalorder %s150, 1
          %s2044 = scalar_select %p2043, %s150, 1
          %s2045 = smul.addr %s2044, 2
          %s2046 = scalar_lea.vmem %s77, %s2045
        $region188: #{tpu_custom_call.1} parent=59 // pred_fallthru
          _
        // Predicated region
        $region189: #{tpu_custom_call.1} parent=59 // pred_check
          %p2047 = pneg %p1188
        $region190: #{tpu_custom_call.1} parent=59 // pred_check_branch
          %2049 = sbr.rel (%p2047) target = $region192
        $region191: #{tpu_custom_call.1} parent=59 // pred_region
          %s2050 = sand.u32 %s142, 1
          %s2051 = scalar_lea.sflag [#allocation48], %s2050
          %s2052 = sand.u32 %s1178, 1
          %s2053 = smul.addr %s2052, 2
          %s2054 = scalar_lea.vmem [#allocation49], %s2053
          %2056 = vsyncadd %s2051, 0
          %s2057 = smul.addr %s150, 2
          %s2058 = scalar_lea.hbm %s79, %s2057
          %s2060 = sshll.u32 %s2058, 4
          %s2061 = int_to_ptr.hbm [resolvable:$true] %s2060
          %s2062 = sshll.u32 %s2054, 4
          %s2063 = int_to_ptr.vmem [resolvable:$true] %s2062
          %2065 = dma.hbm_to_vmem [thread:$0]  %s2061, 32, %s2063, %s2051
        $region192: #{tpu_custom_call.1} parent=59 // pred_fallthru
          _
        // Predicated region
        $region193: #{tpu_custom_call.1} parent=59 // pred_check
          %p2066 = pneg %p1214
        $region194: #{tpu_custom_call.1} parent=59 // pred_check_branch
          %2068 = sbr.rel (%p2066) target = $region196
        $region195: #{tpu_custom_call.1} parent=59 // pred_region
          %s2069 = sand.u32 %s142, 1
          %s2070 = scalar_lea.sflag [#allocation51], %s2069
          %s2071 = sand.u32 %s1204, 1
          %s2072 = smul.addr %s2071, 2
          %s2073 = scalar_lea.vmem [#allocation50], %s2072
          %2075 = vsyncadd %s2070, 0
          %s2076 = smul.addr %s150, 2
          %s2077 = scalar_lea.hbm %s81, %s2076
          %s2079 = sshll.u32 %s2077, 4
          %s2080 = int_to_ptr.hbm [resolvable:$true] %s2079
          %s2081 = sshll.u32 %s2073, 4
          %s2082 = int_to_ptr.vmem [resolvable:$true] %s2081
          %2084 = dma.hbm_to_vmem [thread:$0]  %s2080, 32, %s2082, %s2070
        $region196: #{tpu_custom_call.1} parent=59 // pred_fallthru
          _
      $region60: #{tpu_custom_call.1} parent=5 // pred_fallthru
        _
      %p2085 = scmp.le.s32.totalorder 1, %s142
      %p2086 = scmp.lt.s32.totalorder %s142, 3
      %p2087 = pnand %p2085, %p2086
      %p2088 = pneg %p2087
      // Predicated region
      $region197: #{tpu_custom_call.1} parent=5 // pred_check
        _
      $region198: #{tpu_custom_call.1} parent=5 // pred_check_branch
        %2090 = sbr.rel (%p2087) target = $region200
      $region199: #{tpu_custom_call.1} parent=5 // pred_region
        %s2091 = ssub.s32 %s142, 1
        // Predicated region
        $region201: #{tpu_custom_call.1} parent=199 // pred_check
          %p2092 = pneg %p180
        $region202: #{tpu_custom_call.1} parent=199 // pred_check_branch
          %2094 = sbr.rel (%p2092) target = $region204
        $region203: #{tpu_custom_call.1} parent=199 // pred_region
          %2096 = dma.done [#allocation3], 512
        $region204: #{tpu_custom_call.1} parent=199 // pred_fallthru
          _
        // Predicated region
        $region205: #{tpu_custom_call.1} parent=199 // pred_check
          %p2097 = pneg %p206
        $region206: #{tpu_custom_call.1} parent=199 // pred_check_branch
          %2099 = sbr.rel (%p2097) target = $region208
        $region207: #{tpu_custom_call.1} parent=199 // pred_region
          %2101 = dma.done [#allocation6], 1024
        $region208: #{tpu_custom_call.1} parent=199 // pred_fallthru
          _
        // Predicated region
        $region209: #{tpu_custom_call.1} parent=199 // pred_check
          %p2102 = pneg %p232
        $region210: #{tpu_custom_call.1} parent=199 // pred_check_branch
          %2104 = sbr.rel (%p2102) target = $region212
        $region211: #{tpu_custom_call.1} parent=199 // pred_region
          %2106 = dma.done [#allocation6], 512
        $region212: #{tpu_custom_call.1} parent=199 // pred_fallthru
          _
        // Predicated region
        $region213: #{tpu_custom_call.1} parent=199 // pred_check
          %p2107 = pneg %p258
        $region214: #{tpu_custom_call.1} parent=199 // pred_check_branch
          %2109 = sbr.rel (%p2107) target = $region216
        $region215: #{tpu_custom_call.1} parent=199 // pred_region
          %2111 = dma.done [#allocation9], 1024
        $region216: #{tpu_custom_call.1} parent=199 // pred_fallthru
          _
        // Predicated region
        $region217: #{tpu_custom_call.1} parent=199 // pred_check
          %p2112 = pneg %p284
        $region218: #{tpu_custom_call.1} parent=199 // pred_check_branch
          %2114 = sbr.rel (%p2112) target = $region220
        $region219: #{tpu_custom_call.1} parent=199 // pred_region
          %2116 = dma.done [#allocation9], 512
        $region220: #{tpu_custom_call.1} parent=199 // pred_fallthru
          _
        // Predicated region
        $region221: #{tpu_custom_call.1} parent=199 // pred_check
          %p2117 = pneg %p310
        $region222: #{tpu_custom_call.1} parent=199 // pred_check_branch
          %2119 = sbr.rel (%p2117) target = $region224
        $region223: #{tpu_custom_call.1} parent=199 // pred_region
          %2121 = dma.done [#allocation12], 512
        $region224: #{tpu_custom_call.1} parent=199 // pred_fallthru
          _
        // Predicated region
        $region225: #{tpu_custom_call.1} parent=199 // pred_check
          %p2122 = pneg %p336
        $region226: #{tpu_custom_call.1} parent=199 // pred_check_branch
          %2124 = sbr.rel (%p2122) target = $region228
        $region227: #{tpu_custom_call.1} parent=199 // pred_region
          %2126 = dma.done [#allocation12], 32
        $region228: #{tpu_custom_call.1} parent=199 // pred_fallthru
          _
        %s2127 = sand.u32 %s147, 1
        %s2128 = scalar_lea.sflag [#allocation15], %s2127
        %s2129 = sand.u32 %s349, 1
        %s2130 = smul.addr %s2129, 256
        %s2131 = scalar_lea.vmem [#allocation14], %s2130
        // Predicated region
        $region229: #{tpu_custom_call.1} parent=199 // pred_check
          %p2132 = pneg %p362
        $region230: #{tpu_custom_call.1} parent=199 // pred_check_branch
          %2134 = sbr.rel (%p2132) target = $region232
        $region231: #{tpu_custom_call.1} parent=199 // pred_region
          %2136 = dma.done %s2128, 4096
        $region232: #{tpu_custom_call.1} parent=199 // pred_fallthru
          _
        %s2137 = sand.u32 %s147, 1
        %s2138 = scalar_lea.sflag [#allocation15], %s2137
        %s2139 = sand.u32 %s401, 1
        %s2140 = smul.addr %s2139, 256
        %s2141 = scalar_lea.vmem [#allocation16], %s2140
        // Predicated region
        $region233: #{tpu_custom_call.1} parent=199 // pred_check
          %p2142 = pneg %p414
        $region234: #{tpu_custom_call.1} parent=199 // pred_check_branch
          %2144 = sbr.rel (%p2142) target = $region236
        $region235: #{tpu_custom_call.1} parent=199 // pred_region
          %2146 = dma.done %s2138, 4096
        $region236: #{tpu_custom_call.1} parent=199 // pred_fallthru
          _
        %s2147 = sand.u32 %s147, 1
        %s2148 = scalar_lea.sflag [#allocation18], %s2147
        %s2149 = sand.u32 %s453, 1
        %s2150 = smul.addr %s2149, 256
        %s2151 = scalar_lea.vmem [#allocation17], %s2150
        // Predicated region
        $region237: #{tpu_custom_call.1} parent=199 // pred_check
          %p2152 = pneg %p466
        $region238: #{tpu_custom_call.1} parent=199 // pred_check_branch
          %2154 = sbr.rel (%p2152) target = $region240
        $region239: #{tpu_custom_call.1} parent=199 // pred_region
          %2156 = dma.done %s2148, 4096
        $region240: #{tpu_custom_call.1} parent=199 // pred_fallthru
          _
        %s2157 = sand.u32 %s147, 1
        %s2158 = scalar_lea.sflag [#allocation18], %s2157
        %s2159 = sand.u32 %s479, 1
        %s2160 = smul.addr %s2159, 2
        %s2161 = scalar_lea.vmem [#allocation19], %s2160
        // Predicated region
        $region241: #{tpu_custom_call.1} parent=199 // pred_check
          %p2162 = pneg %p492
        $region242: #{tpu_custom_call.1} parent=199 // pred_check_branch
          %2164 = sbr.rel (%p2162) target = $region244
        $region243: #{tpu_custom_call.1} parent=199 // pred_region
          %2166 = dma.done %s2158, 32
        $region244: #{tpu_custom_call.1} parent=199 // pred_fallthru
          _
        %s2167 = sand.u32 %s147, 1
        %s2168 = scalar_lea.sflag [#allocation21], %s2167
        %s2169 = sand.u32 %s505, 1
        %s2170 = smul.addr %s2169, 256
        %s2171 = scalar_lea.vmem [#allocation20], %s2170
        // Predicated region
        $region245: #{tpu_custom_call.1} parent=199 // pred_check
          %p2172 = pneg %p518
        $region246: #{tpu_custom_call.1} parent=199 // pred_check_branch
          %2174 = sbr.rel (%p2172) target = $region248
        $region247: #{tpu_custom_call.1} parent=199 // pred_region
          %2176 = dma.done %s2168, 4096
        $region248: #{tpu_custom_call.1} parent=199 // pred_fallthru
          _
        %s2177 = sand.u32 %s147, 1
        %s2178 = scalar_lea.sflag [#allocation21], %s2177
        %s2179 = sand.u32 %s557, 1
        %s2180 = smul.addr %s2179, 256
        %s2181 = scalar_lea.vmem [#allocation22], %s2180
        // Predicated region
        $region249: #{tpu_custom_call.1} parent=199 // pred_check
          %p2182 = pneg %p570
        $region250: #{tpu_custom_call.1} parent=199 // pred_check_branch
          %2184 = sbr.rel (%p2182) target = $region252
        $region251: #{tpu_custom_call.1} parent=199 // pred_region
          %2186 = dma.done %s2178, 4096
        $region252: #{tpu_custom_call.1} parent=199 // pred_fallthru
          _
        %s2187 = sand.u32 %s147, 1
        %s2188 = scalar_lea.sflag [#allocation24], %s2187
        %s2189 = sand.u32 %s583, 1
        %s2190 = smul.addr %s2189, 2
        %s2191 = scalar_lea.vmem [#allocation23], %s2190
        // Predicated region
        $region253: #{tpu_custom_call.1} parent=199 // pred_check
          %p2192 = pneg %p596
        $region254: #{tpu_custom_call.1} parent=199 // pred_check_branch
          %2194 = sbr.rel (%p2192) target = $region256
        $region255: #{tpu_custom_call.1} parent=199 // pred_region
          %2196 = dma.done %s2188, 32
        $region256: #{tpu_custom_call.1} parent=199 // pred_fallthru
          _
        %s2197 = sand.u32 %s147, 1
        %s2198 = scalar_lea.sflag [#allocation24], %s2197
        %s2199 = sand.u32 %s609, 1
        %s2200 = smul.addr %s2199, 256
        %s2201 = scalar_lea.vmem [#allocation25], %s2200
        // Predicated region
        $region257: #{tpu_custom_call.1} parent=199 // pred_check
          %p2202 = pneg %p622
        $region258: #{tpu_custom_call.1} parent=199 // pred_check_branch
          %2204 = sbr.rel (%p2202) target = $region260
        $region259: #{tpu_custom_call.1} parent=199 // pred_region
          %2206 = dma.done %s2198, 4096
        $region260: #{tpu_custom_call.1} parent=199 // pred_fallthru
          _
        %s2207 = sand.u32 %s147, 1
        %s2208 = scalar_lea.sflag [#allocation27], %s2207
        %s2209 = sand.u32 %s661, 1
        %s2210 = smul.addr %s2209, 2
        %s2211 = scalar_lea.vmem [#allocation26], %s2210
        // Predicated region
        $region261: #{tpu_custom_call.1} parent=199 // pred_check
          %p2212 = pneg %p674
        $region262: #{tpu_custom_call.1} parent=199 // pred_check_branch
          %2214 = sbr.rel (%p2212) target = $region264
        $region263: #{tpu_custom_call.1} parent=199 // pred_region
          %2216 = dma.done %s2208, 32
        $region264: #{tpu_custom_call.1} parent=199 // pred_fallthru
          _
        %s2217 = sand.u32 %s147, 1
        %s2218 = scalar_lea.sflag [#allocation27], %s2217
        %s2219 = sand.u32 %s687, 1
        %s2220 = smul.addr %s2219, 2
        %s2221 = scalar_lea.vmem [#allocation28], %s2220
        // Predicated region
        $region265: #{tpu_custom_call.1} parent=199 // pred_check
          %p2222 = pneg %p700
        $region266: #{tpu_custom_call.1} parent=199 // pred_check_branch
          %2224 = sbr.rel (%p2222) target = $region268
        $region267: #{tpu_custom_call.1} parent=199 // pred_region
          %2226 = dma.done %s2218, 32
        $region268: #{tpu_custom_call.1} parent=199 // pred_fallthru
          _
        %s2227 = sand.u32 %s147, 1
        %s2228 = scalar_lea.sflag [#allocation30], %s2227
        %s2229 = sand.u32 %s713, 1
        %s2230 = smul.addr %s2229, 256
        %s2231 = scalar_lea.vmem [#allocation29], %s2230
        // Predicated region
        $region269: #{tpu_custom_call.1} parent=199 // pred_check
          %p2232 = pneg %p726
        $region270: #{tpu_custom_call.1} parent=199 // pred_check_branch
          %2234 = sbr.rel (%p2232) target = $region272
        $region271: #{tpu_custom_call.1} parent=199 // pred_region
          %2236 = dma.done %s2228, 4096
        $region272: #{tpu_custom_call.1} parent=199 // pred_fallthru
          _
        %s2237 = sand.u32 %s147, 1
        %s2238 = scalar_lea.sflag [#allocation30], %s2237
        %s2239 = sand.u32 %s765, 1
        %s2240 = smul.addr %s2239, 256
        %s2241 = scalar_lea.vmem [#allocation31], %s2240
        // Predicated region
        $region273: #{tpu_custom_call.1} parent=199 // pred_check
          %p2242 = pneg %p778
        $region274: #{tpu_custom_call.1} parent=199 // pred_check_branch
          %2244 = sbr.rel (%p2242) target = $region276
        $region275: #{tpu_custom_call.1} parent=199 // pred_region
          %2246 = dma.done %s2238, 4096
        $region276: #{tpu_custom_call.1} parent=199 // pred_fallthru
          _
        %s2247 = sand.u32 %s147, 1
        %s2248 = scalar_lea.sflag [#allocation33], %s2247
        %s2249 = sand.u32 %s791, 1
        %s2250 = smul.addr %s2249, 2
        %s2251 = scalar_lea.vmem [#allocation32], %s2250
        // Predicated region
        $region277: #{tpu_custom_call.1} parent=199 // pred_check
          %p2252 = pneg %p804
        $region278: #{tpu_custom_call.1} parent=199 // pred_check_branch
          %2254 = sbr.rel (%p2252) target = $region280
        $region279: #{tpu_custom_call.1} parent=199 // pred_region
          %2256 = dma.done %s2248, 32
        $region280: #{tpu_custom_call.1} parent=199 // pred_fallthru
          _
        %s2257 = sand.u32 %s147, 1
        %s2258 = scalar_lea.sflag [#allocation33], %s2257
        %s2259 = sand.u32 %s817, 1
        %s2260 = smul.addr %s2259, 256
        %s2261 = scalar_lea.vmem [#allocation34], %s2260
        // Predicated region
        $region281: #{tpu_custom_call.1} parent=199 // pred_check
          %p2262 = pneg %p830
        $region282: #{tpu_custom_call.1} parent=199 // pred_check_branch
          %2264 = sbr.rel (%p2262) target = $region284
        $region283: #{tpu_custom_call.1} parent=199 // pred_region
          %2266 = dma.done %s2258, 4096
        $region284: #{tpu_custom_call.1} parent=199 // pred_fallthru
          _
        %s2267 = sand.u32 %s147, 1
        %s2268 = scalar_lea.sflag [#allocation36], %s2267
        %s2269 = sand.u32 %s869, 1
        %s2270 = smul.addr %s2269, 256
        %s2271 = scalar_lea.vmem [#allocation35], %s2270
        // Predicated region
        $region285: #{tpu_custom_call.1} parent=199 // pred_check
          %p2272 = pneg %p882
        $region286: #{tpu_custom_call.1} parent=199 // pred_check_branch
          %2274 = sbr.rel (%p2272) target = $region288
        $region287: #{tpu_custom_call.1} parent=199 // pred_region
          %2276 = dma.done %s2268, 4096
        $region288: #{tpu_custom_call.1} parent=199 // pred_fallthru
          _
        %s2277 = sand.u32 %s147, 1
        %s2278 = scalar_lea.sflag [#allocation36], %s2277
        %s2279 = sand.u32 %s895, 1
        %s2280 = smul.addr %s2279, 2
        %s2281 = scalar_lea.vmem [#allocation37], %s2280
        // Predicated region
        $region289: #{tpu_custom_call.1} parent=199 // pred_check
          %p2282 = pneg %p908
        $region290: #{tpu_custom_call.1} parent=199 // pred_check_branch
          %2284 = sbr.rel (%p2282) target = $region292
        $region291: #{tpu_custom_call.1} parent=199 // pred_region
          %2286 = dma.done %s2278, 32
        $region292: #{tpu_custom_call.1} parent=199 // pred_fallthru
          _
        %s2287 = sand.u32 %s147, 1
        %s2288 = scalar_lea.sflag [#allocation39], %s2287
        %s2289 = sand.u32 %s921, 1
        %s2290 = smul.addr %s2289, 256
        %s2291 = scalar_lea.vmem [#allocation38], %s2290
        // Predicated region
        $region293: #{tpu_custom_call.1} parent=199 // pred_check
          %p2292 = pneg %p934
        $region294: #{tpu_custom_call.1} parent=199 // pred_check_branch
          %2294 = sbr.rel (%p2292) target = $region296
        $region295: #{tpu_custom_call.1} parent=199 // pred_region
          %2296 = dma.done %s2288, 4096
        $region296: #{tpu_custom_call.1} parent=199 // pred_fallthru
          _
        %s2297 = sand.u32 %s147, 1
        %s2298 = scalar_lea.sflag [#allocation39], %s2297
        %s2299 = sand.u32 %s973, 1
        %s2300 = smul.addr %s2299, 256
        %s2301 = scalar_lea.vmem [#allocation40], %s2300
        // Predicated region
        $region297: #{tpu_custom_call.1} parent=199 // pred_check
          %p2302 = pneg %p986
        $region298: #{tpu_custom_call.1} parent=199 // pred_check_branch
          %2304 = sbr.rel (%p2302) target = $region300
        $region299: #{tpu_custom_call.1} parent=199 // pred_region
          %2306 = dma.done %s2298, 4096
        $region300: #{tpu_custom_call.1} parent=199 // pred_fallthru
          _
        %s2307 = sand.u32 %s147, 1
        %s2308 = scalar_lea.sflag [#allocation42], %s2307
        %s2309 = sand.u32 %s999, 1
        %s2310 = smul.addr %s2309, 2
        %s2311 = scalar_lea.vmem [#allocation41], %s2310
        // Predicated region
        $region301: #{tpu_custom_call.1} parent=199 // pred_check
          %p2312 = pneg %p1012
        $region302: #{tpu_custom_call.1} parent=199 // pred_check_branch
          %2314 = sbr.rel (%p2312) target = $region304
        $region303: #{tpu_custom_call.1} parent=199 // pred_region
          %2316 = dma.done %s2308, 32
        $region304: #{tpu_custom_call.1} parent=199 // pred_fallthru
          _
        %s2317 = sand.u32 %s147, 1
        %s2318 = scalar_lea.sflag [#allocation42], %s2317
        %s2319 = sand.u32 %s1025, 1
        %s2320 = smul.addr %s2319, 2
        %s2321 = scalar_lea.vmem [#allocation43], %s2320
        // Predicated region
        $region305: #{tpu_custom_call.1} parent=199 // pred_check
          %p2322 = pneg %p1038
        $region306: #{tpu_custom_call.1} parent=199 // pred_check_branch
          %2324 = sbr.rel (%p2322) target = $region308
        $region307: #{tpu_custom_call.1} parent=199 // pred_region
          %2326 = dma.done %s2318, 32
        $region308: #{tpu_custom_call.1} parent=199 // pred_fallthru
          _
        %s2327 = sand.u32 %s147, 1
        %s2328 = scalar_lea.sflag [#allocation45], %s2327
        %s2329 = sand.u32 %s1077, 1
        %s2330 = smul.addr %s2329, 128
        %s2331 = scalar_lea.vmem [#allocation44], %s2330
        // Predicated region
        $region309: #{tpu_custom_call.1} parent=199 // pred_check
          %p2332 = pneg %p1090
        $region310: #{tpu_custom_call.1} parent=199 // pred_check_branch
          %2334 = sbr.rel (%p2332) target = $region312
        $region311: #{tpu_custom_call.1} parent=199 // pred_region
          %2336 = dma.done %s2328, 2048
        $region312: #{tpu_custom_call.1} parent=199 // pred_fallthru
          _
        %s2337 = sand.u32 %s147, 1
        %s2338 = scalar_lea.sflag [#allocation45], %s2337
        %s2339 = sand.u32 %s1103, 1
        %s2340 = scalar_lea.vmem [#allocation46], %s2339
        // Predicated region
        $region313: #{tpu_custom_call.1} parent=199 // pred_check
          %p2341 = pneg %p1116
        $region314: #{tpu_custom_call.1} parent=199 // pred_check_branch
          %2343 = sbr.rel (%p2341) target = $region316
        $region315: #{tpu_custom_call.1} parent=199 // pred_region
          %2345 = dma.done %s2338, 16
        $region316: #{tpu_custom_call.1} parent=199 // pred_fallthru
          _
        %s2346 = sand.u32 %s147, 1
        %s2347 = scalar_lea.sflag [#allocation48], %s2346
        %s2348 = sand.u32 %s1129, 1
        %s2349 = smul.addr %s2348, 128
        %s2350 = scalar_lea.vmem [#allocation47], %s2349
        // Predicated region
        $region317: #{tpu_custom_call.1} parent=199 // pred_check
          %p2351 = pneg %p1142
        $region318: #{tpu_custom_call.1} parent=199 // pred_check_branch
          %2353 = sbr.rel (%p2351) target = $region320
        $region319: #{tpu_custom_call.1} parent=199 // pred_region
          %2355 = dma.done %s2347, 2048
        $region320: #{tpu_custom_call.1} parent=199 // pred_fallthru
          _
        %s2356 = sand.u32 %s147, 1
        %s2357 = scalar_lea.sflag [#allocation48], %s2356
        %s2358 = sand.u32 %s1181, 1
        %s2359 = smul.addr %s2358, 2
        %s2360 = scalar_lea.vmem [#allocation49], %s2359
        // Predicated region
        $region321: #{tpu_custom_call.1} parent=199 // pred_check
          %p2361 = pneg %p1194
        $region322: #{tpu_custom_call.1} parent=199 // pred_check_branch
          %2363 = sbr.rel (%p2361) target = $region324
        $region323: #{tpu_custom_call.1} parent=199 // pred_region
          %2365 = dma.done %s2357, 32
        $region324: #{tpu_custom_call.1} parent=199 // pred_fallthru
          _
        %s2366 = sand.u32 %s147, 1
        %s2367 = scalar_lea.sflag [#allocation51], %s2366
        %s2368 = sand.u32 %s1207, 1
        %s2369 = smul.addr %s2368, 2
        %s2370 = scalar_lea.vmem [#allocation50], %s2369
        // Predicated region
        $region325: #{tpu_custom_call.1} parent=199 // pred_check
          %p2371 = pneg %p1220
        $region326: #{tpu_custom_call.1} parent=199 // pred_check_branch
          %2373 = sbr.rel (%p2371) target = $region328
        $region327: #{tpu_custom_call.1} parent=199 // pred_region
          %2375 = dma.done %s2367, 32
        $region328: #{tpu_custom_call.1} parent=199 // pred_fallthru
          _
        // Predicated region
        $region329: #{tpu_custom_call.1} parent=199 // pred_check
          %p2376 = pneg %p1241
        $region330: #{tpu_custom_call.1} parent=199 // pred_check_branch
          %2378 = sbr.rel (%p2376) target = $region332
        $region331: #{tpu_custom_call.1} parent=199 // pred_region
          %2380 = dma.done [#allocation51], 4096
        $region332: #{tpu_custom_call.1} parent=199 // pred_fallthru
          _
        // Predicated region
        $region333: #{tpu_custom_call.1} parent=199 // pred_check
          %p2381 = pneg %p1283
        $region334: #{tpu_custom_call.1} parent=199 // pred_check_branch
          %2383 = sbr.rel (%p2381) target = $region336
        $region335: #{tpu_custom_call.1} parent=199 // pred_region
          %2385 = dma.done [#allocation54], 4096
        $region336: #{tpu_custom_call.1} parent=199 // pred_fallthru
          _
        %p2386 = pneg %p180
        %p2387 = pneg %p177
        %p2388 = pneg %p206
        %p2389 = pneg %p203
        %p2390 = pneg %p232
        %p2391 = pneg %p229
        %p2392 = pneg %p258
        %p2393 = pneg %p255
        %p2394 = pneg %p284
        %p2395 = pneg %p281
        %p2396 = pneg %p310
        %p2397 = pneg %p307
        %p2398 = pneg %p336
        %p2399 = pneg %p333
        %s2400 = sand.u32 %s147, 1
        %s2401 = scalar_lea.sflag [#allocation15], %s2400
        %s2402 = sand.u32 %s349, 1
        %s2403 = smul.addr %s2402, 256
        %s2404 = scalar_lea.vmem [#allocation14], %s2403
        %p2405 = pneg %p362
        %p2406 = pneg %p359
        %p2407 = scmp.lt.s32.totalorder %s152, 1
        %s2408 = scalar_select %p2407, %s152, 1
        %s2409 = smul.addr %s2408, 2
        %s2410 = scalar_lea.vmem %s17, %s2409
        %p2411 = pneg %p388
        %p2412 = pneg %p385
        %s2413 = sand.u32 %s147, 1
        %s2414 = scalar_lea.sflag [#allocation15], %s2413
        %s2415 = sand.u32 %s401, 1
        %s2416 = smul.addr %s2415, 256
        %s2417 = scalar_lea.vmem [#allocation16], %s2416
        %p2418 = pneg %p414
        %p2419 = pneg %p411
        %p2420 = scmp.lt.s32.totalorder %s152, 1
        %s2421 = scalar_select %p2420, %s152, 1
        %s2422 = smul.addr %s2421, 2
        %s2423 = scalar_lea.vmem %s21, %s2422
        %p2424 = pneg %p440
        %p2425 = pneg %p437
        %s2426 = sand.u32 %s147, 1
        %s2427 = scalar_lea.sflag [#allocation18], %s2426
        %s2428 = sand.u32 %s453, 1
        %s2429 = smul.addr %s2428, 256
        %s2430 = scalar_lea.vmem [#allocation17], %s2429
        %p2431 = pneg %p466
        %p2432 = pneg %p463
        %s2433 = sand.u32 %s147, 1
        %s2434 = scalar_lea.sflag [#allocation18], %s2433
        %s2435 = sand.u32 %s479, 1
        %s2436 = smul.addr %s2435, 2
        %s2437 = scalar_lea.vmem [#allocation19], %s2436
        %p2438 = pneg %p492
        %p2439 = pneg %p489
        %s2440 = sand.u32 %s147, 1
        %s2441 = scalar_lea.sflag [#allocation21], %s2440
        %s2442 = sand.u32 %s505, 1
        %s2443 = smul.addr %s2442, 256
        %s2444 = scalar_lea.vmem [#allocation20], %s2443
        %p2445 = pneg %p518
        %p2446 = pneg %p515
        %p2447 = scmp.lt.s32.totalorder %s152, 1
        %s2448 = scalar_select %p2447, %s152, 1
        %s2449 = smul.addr %s2448, 2
        %s2450 = scalar_lea.vmem %s29, %s2449
        %p2451 = pneg %p544
        %p2452 = pneg %p541
        %s2453 = sand.u32 %s147, 1
        %s2454 = scalar_lea.sflag [#allocation21], %s2453
        %s2455 = sand.u32 %s557, 1
        %s2456 = smul.addr %s2455, 256
        %s2457 = scalar_lea.vmem [#allocation22], %s2456
        %p2458 = pneg %p570
        %p2459 = pneg %p567
        %s2460 = sand.u32 %s147, 1
        %s2461 = scalar_lea.sflag [#allocation24], %s2460
        %s2462 = sand.u32 %s583, 1
        %s2463 = smul.addr %s2462, 2
        %s2464 = scalar_lea.vmem [#allocation23], %s2463
        %p2465 = pneg %p596
        %p2466 = pneg %p593
        %s2467 = sand.u32 %s147, 1
        %s2468 = scalar_lea.sflag [#allocation24], %s2467
        %s2469 = sand.u32 %s609, 1
        %s2470 = smul.addr %s2469, 256
        %s2471 = scalar_lea.vmem [#allocation25], %s2470
        %p2472 = pneg %p622
        %p2473 = pneg %p619
        %p2474 = scmp.lt.s32.totalorder %s152, 1
        %s2475 = scalar_select %p2474, %s152, 1
        %s2476 = smul.addr %s2475, 2
        %s2477 = scalar_lea.vmem %s37, %s2476
        %p2478 = pneg %p648
        %p2479 = pneg %p645
        %s2480 = sand.u32 %s147, 1
        %s2481 = scalar_lea.sflag [#allocation27], %s2480
        %s2482 = sand.u32 %s661, 1
        %s2483 = smul.addr %s2482, 2
        %s2484 = scalar_lea.vmem [#allocation26], %s2483
        %p2485 = pneg %p674
        %p2486 = pneg %p671
        %s2487 = sand.u32 %s147, 1
        %s2488 = scalar_lea.sflag [#allocation27], %s2487
        %s2489 = sand.u32 %s687, 1
        %s2490 = smul.addr %s2489, 2
        %s2491 = scalar_lea.vmem [#allocation28], %s2490
        %p2492 = pneg %p700
        %p2493 = pneg %p697
        %s2494 = sand.u32 %s147, 1
        %s2495 = scalar_lea.sflag [#allocation30], %s2494
        %s2496 = sand.u32 %s713, 1
        %s2497 = smul.addr %s2496, 256
        %s2498 = scalar_lea.vmem [#allocation29], %s2497
        %p2499 = pneg %p726
        %p2500 = pneg %p723
        %p2501 = scmp.lt.s32.totalorder %s152, 1
        %s2502 = scalar_select %p2501, %s152, 1
        %s2503 = smul.addr %s2502, 2
        %s2504 = scalar_lea.vmem %s45, %s2503
        %p2505 = pneg %p752
        %p2506 = pneg %p749
        %s2507 = sand.u32 %s147, 1
        %s2508 = scalar_lea.sflag [#allocation30], %s2507
        %s2509 = sand.u32 %s765, 1
        %s2510 = smul.addr %s2509, 256
        %s2511 = scalar_lea.vmem [#allocation31], %s2510
        %p2512 = pneg %p778
        %p2513 = pneg %p775
        %s2514 = sand.u32 %s147, 1
        %s2515 = scalar_lea.sflag [#allocation33], %s2514
        %s2516 = sand.u32 %s791, 1
        %s2517 = smul.addr %s2516, 2
        %s2518 = scalar_lea.vmem [#allocation32], %s2517
        %p2519 = pneg %p804
        %p2520 = pneg %p801
        %s2521 = sand.u32 %s147, 1
        %s2522 = scalar_lea.sflag [#allocation33], %s2521
        %s2523 = sand.u32 %s817, 1
        %s2524 = smul.addr %s2523, 256
        %s2525 = scalar_lea.vmem [#allocation34], %s2524
        %p2526 = pneg %p830
        %p2527 = pneg %p827
        %p2528 = scmp.lt.s32.totalorder %s152, 1
        %s2529 = scalar_select %p2528, %s152, 1
        %s2530 = smul.addr %s2529, 2
        %s2531 = scalar_lea.vmem %s53, %s2530
        %p2532 = pneg %p856
        %p2533 = pneg %p853
        %s2534 = sand.u32 %s147, 1
        %s2535 = scalar_lea.sflag [#allocation36], %s2534
        %s2536 = sand.u32 %s869, 1
        %s2537 = smul.addr %s2536, 256
        %s2538 = scalar_lea.vmem [#allocation35], %s2537
        %p2539 = pneg %p882
        %p2540 = pneg %p879
        %s2541 = sand.u32 %s147, 1
        %s2542 = scalar_lea.sflag [#allocation36], %s2541
        %s2543 = sand.u32 %s895, 1
        %s2544 = smul.addr %s2543, 2
        %s2545 = scalar_lea.vmem [#allocation37], %s2544
        %p2546 = pneg %p908
        %p2547 = pneg %p905
        %s2548 = sand.u32 %s147, 1
        %s2549 = scalar_lea.sflag [#allocation39], %s2548
        %s2550 = sand.u32 %s921, 1
        %s2551 = smul.addr %s2550, 256
        %s2552 = scalar_lea.vmem [#allocation38], %s2551
        %p2553 = pneg %p934
        %p2554 = pneg %p931
        %p2555 = scmp.lt.s32.totalorder %s152, 1
        %s2556 = scalar_select %p2555, %s152, 1
        %s2557 = smul.addr %s2556, 2
        %s2558 = scalar_lea.vmem %s61, %s2557
        %p2559 = pneg %p960
        %p2560 = pneg %p957
        %s2561 = sand.u32 %s147, 1
        %s2562 = scalar_lea.sflag [#allocation39], %s2561
        %s2563 = sand.u32 %s973, 1
        %s2564 = smul.addr %s2563, 256
        %s2565 = scalar_lea.vmem [#allocation40], %s2564
        %p2566 = pneg %p986
        %p2567 = pneg %p983
        %s2568 = sand.u32 %s147, 1
        %s2569 = scalar_lea.sflag [#allocation42], %s2568
        %s2570 = sand.u32 %s999, 1
        %s2571 = smul.addr %s2570, 2
        %s2572 = scalar_lea.vmem [#allocation41], %s2571
        %p2573 = pneg %p1012
        %p2574 = pneg %p1009
        %s2575 = sand.u32 %s147, 1
        %s2576 = scalar_lea.sflag [#allocation42], %s2575
        %s2577 = sand.u32 %s1025, 1
        %s2578 = smul.addr %s2577, 2
        %s2579 = scalar_lea.vmem [#allocation43], %s2578
        %p2580 = pneg %p1038
        %p2581 = pneg %p1035
        %p2582 = scmp.lt.s32.totalorder %s152, 1
        %s2583 = scalar_select %p2582, %s152, 1
        %s2584 = smul.addr %s2583, 2
        %s2585 = scalar_lea.vmem %s69, %s2584
        %p2586 = pneg %p1064
        %p2587 = pneg %p1061
        %s2588 = sand.u32 %s147, 1
        %s2589 = scalar_lea.sflag [#allocation45], %s2588
        %s2590 = sand.u32 %s1077, 1
        %s2591 = smul.addr %s2590, 128
        %s2592 = scalar_lea.vmem [#allocation44], %s2591
        %p2593 = pneg %p1090
        %p2594 = pneg %p1087
        %s2595 = sand.u32 %s147, 1
        %s2596 = scalar_lea.sflag [#allocation45], %s2595
        %s2597 = sand.u32 %s1103, 1
        %s2598 = scalar_lea.vmem [#allocation46], %s2597
        %p2599 = pneg %p1116
        %p2600 = pneg %p1113
        %s2601 = sand.u32 %s147, 1
        %s2602 = scalar_lea.sflag [#allocation48], %s2601
        %s2603 = sand.u32 %s1129, 1
        %s2604 = smul.addr %s2603, 128
        %s2605 = scalar_lea.vmem [#allocation47], %s2604
        %p2606 = pneg %p1142
        %p2607 = pneg %p1139
        %p2608 = scmp.lt.s32.totalorder %s152, 1
        %s2609 = scalar_select %p2608, %s152, 1
        %s2610 = smul.addr %s2609, 2
        %s2611 = scalar_lea.vmem %s77, %s2610
        %p2612 = pneg %p1168
        %p2613 = pneg %p1165
        %s2614 = sand.u32 %s147, 1
        %s2615 = scalar_lea.sflag [#allocation48], %s2614
        %s2616 = sand.u32 %s1181, 1
        %s2617 = smul.addr %s2616, 2
        %s2618 = scalar_lea.vmem [#allocation49], %s2617
        %p2619 = pneg %p1194
        %p2620 = pneg %p1191
        %s2621 = sand.u32 %s147, 1
        %s2622 = scalar_lea.sflag [#allocation51], %s2621
        %s2623 = sand.u32 %s1207, 1
        %s2624 = smul.addr %s2623, 2
        %s2625 = scalar_lea.vmem [#allocation50], %s2624
        %p2626 = pneg %p1220
        %p2627 = pneg %p1217
        %p2628 = pneg %p1241
        %p2629 = pneg %p1238
        %p2630 = pneg %p1262
        %p2631 = pneg %p1259
        %p2632 = pneg %p1283
        %p2633 = pneg %p1280
        %p2634 = pneg %p1304
        %p2635 = pneg %p1301
        %p2636 = pneg %p1330
        %p2637 = pneg %p1327
        %s2638 = smul.u32 2, %s151
        %s2639 = smul.u32 2, %s151
        %s2640 = smul.u32 2, %s151
        %s2641 = smul.u32 2, %s151
        %s2642 = smul.u32 2, %s151
        %s2643 = smul.u32 2, %s151
        %s2644 = smul.u32 2, %s151
        %p2645 = scmp.lt.s32.totalorder %s152, 1
        %s2646 = scalar_select %p2645, %s152, 1
        %s2647 = smul.addr %s2646, 2
        %s2648 = scalar_lea.vmem %s17, %s2647
        %p2649 = scmp.lt.s32.totalorder %s152, 1
        %s2650 = scalar_select %p2649, %s152, 1
        %s2651 = smul.addr %s2650, 2
        %s2652 = scalar_lea.vmem %s21, %s2651
        %p2653 = scmp.lt.s32.totalorder %s152, 1
        %s2654 = scalar_select %p2653, %s152, 1
        %s2655 = smul.addr %s2654, 2
        %s2656 = scalar_lea.vmem %s29, %s2655
        %p2657 = scmp.lt.s32.totalorder %s152, 1
        %s2658 = scalar_select %p2657, %s152, 1
        %s2659 = smul.addr %s2658, 2
        %s2660 = scalar_lea.vmem %s37, %s2659
        %p2661 = scmp.lt.s32.totalorder %s152, 1
        %s2662 = scalar_select %p2661, %s152, 1
        %s2663 = smul.addr %s2662, 2
        %s2664 = scalar_lea.vmem %s45, %s2663
        %p2665 = scmp.lt.s32.totalorder %s152, 1
        %s2666 = scalar_select %p2665, %s152, 1
        %s2667 = smul.addr %s2666, 2
        %s2668 = scalar_lea.vmem %s53, %s2667
        %p2669 = scmp.lt.s32.totalorder %s152, 1
        %s2670 = scalar_select %p2669, %s152, 1
        %s2671 = smul.addr %s2670, 2
        %s2672 = scalar_lea.vmem %s61, %s2671
        %p2673 = scmp.lt.s32.totalorder %s152, 1
        %s2674 = scalar_select %p2673, %s152, 1
        %s2675 = smul.addr %s2674, 2
        %s2676 = scalar_lea.vmem %s69, %s2675
        %p2677 = scmp.lt.s32.totalorder %s152, 1
        %s2678 = scalar_select %p2677, %s152, 1
        %s2679 = smul.addr %s2678, 2
        %s2680 = scalar_lea.vmem %s77, %s2679
        %s2681 = smul.u32 2, %s151
        %p2683 = scmp.eq.s32.totalorder %s152, 0
        // Predicated region
        $region337: #{tpu_custom_call.1} parent=199 // pred_check
          %p2684 = pneg %p2683
        $region338: #{tpu_custom_call.1} parent=199 // pred_check_branch
          %2686 = sbr.rel (%p2684) target = $region340
        $region339: #{tpu_custom_call.1} parent=199 // pred_region
          %v2687 = vld [vmem:[#allocation2] sm:$0xff]
          %v2688 = vld [vmem:[#allocation2 + $0x8] sm:$0xff]
          %v2689 = vld [vmem:[#allocation2 + $0x10] sm:$0xff]
          %v2690 = vld [vmem:[#allocation2 + $0x18] sm:$0xff]
          %2691 = vst [vmem:[#allocation55] sm:$0xff] %v2687
          %2692 = vst [vmem:[#allocation55 + $0x8] sm:$0xff] %v2688
          %2693 = vst [vmem:[#allocation55 + $0x10] sm:$0xff] %v2689
          %2694 = vst [vmem:[#allocation55 + $0x18] sm:$0xff] %v2690
        $region340: #{tpu_custom_call.1} parent=199 // pred_fallthru
          _
        %v2695 = vld [vmem:[#allocation55] sm:$0xff]
        %v2696 = vld [vmem:[#allocation55 + $0x8] sm:$0xff]
        %v2697 = vld [vmem:[#allocation55 + $0x10] sm:$0xff]
        %v2698 = vld [vmem:[#allocation55 + $0x18] sm:$0xff]
        %v2699 = vld [vmem:[#allocation5] sm:$0xff]
        %v2700 = vld [vmem:[#allocation5 + $0x8] sm:$0xff]
        %v2701 = vld [vmem:[#allocation5 + $0x10] sm:$0xff]
        %v2702 = vld [vmem:[#allocation5 + $0x18] sm:$0xff]
        %v2703 = vld [vmem:[#allocation5 + $0x20] sm:$0xff]
        %v2704 = vld [vmem:[#allocation5 + $0x28] sm:$0xff]
        %v2705 = vld [vmem:[#allocation5 + $0x30] sm:$0xff]
        %v2706 = vld [vmem:[#allocation5 + $0x38] sm:$0xff]
        %v2707 = vld [vmem:[#allocation7] sm:$0xff]
        %v2708 = vld [vmem:[#allocation7 + $0x8] sm:$0xff]
        %v2709 = vld [vmem:[#allocation7 + $0x10] sm:$0xff]
        %v2710 = vld [vmem:[#allocation7 + $0x18] sm:$0xff]
        %v2711 = vld [vmem:[#allocation8] sm:$0xff]
        %v2712 = vld [vmem:[#allocation8 + $0x8] sm:$0xff]
        %v2713 = vld [vmem:[#allocation8 + $0x10] sm:$0xff]
        %v2714 = vld [vmem:[#allocation8 + $0x18] sm:$0xff]
        %v2715 = vld [vmem:[#allocation8 + $0x20] sm:$0xff]
        %v2716 = vld [vmem:[#allocation8 + $0x28] sm:$0xff]
        %v2717 = vld [vmem:[#allocation8 + $0x30] sm:$0xff]
        %v2718 = vld [vmem:[#allocation8 + $0x38] sm:$0xff]
        %v2719 = vld [vmem:[#allocation10] sm:$0xff]
        %v2720 = vld [vmem:[#allocation10 + $0x8] sm:$0xff]
        %v2721 = vld [vmem:[#allocation10 + $0x10] sm:$0xff]
        %v2722 = vld [vmem:[#allocation10 + $0x18] sm:$0xff]
        %v2723 = vld [vmem:[#allocation11] sm:$0xff]
        %v2724 = vld [vmem:[#allocation11 + $0x8] sm:$0xff]
        %v2725 = vld [vmem:[#allocation11 + $0x10] sm:$0xff]
        %v2726 = vld [vmem:[#allocation11 + $0x18] sm:$0xff]
        %v2727 = vld [vmem:[#allocation13] sm:$0x1]
        %v2728 = vld [vmem:[#allocation13 + $0x1] sm:$0x1]
        %s2729 = scalar_select %p2683, 1, 0
        %s2730 = scvt.s32.f32 %s2729
        %v2731 = vpack.c.bf16 %v2697, %v2695
        %v2732 = vpack.c.bf16 %v2698, %v2696
        %v2733 = vld [vmem:[%s2131] sm:$0xff]
        %v2734 = vld [vmem:[%s2131 + $0x8] sm:$0xff]
        %v2735 = vld [vmem:[%s2131 + $0x10] sm:$0xff]
        %v2736 = vld [vmem:[%s2131 + $0x18] sm:$0xff]
        %v2737 = vld [vmem:[%s2131 + $0x20] sm:$0xff]
        %v2738 = vld [vmem:[%s2131 + $0x28] sm:$0xff]
        %v2739 = vld [vmem:[%s2131 + $0x30] sm:$0xff]
        %v2740 = vld [vmem:[%s2131 + $0x38] sm:$0xff]
        %v2741 = vld [vmem:[%s2131 + $0x40] sm:$0xff]
        %v2742 = vld [vmem:[%s2131 + $0x48] sm:$0xff]
        %v2743 = vld [vmem:[%s2131 + $0x50] sm:$0xff]
        %v2744 = vld [vmem:[%s2131 + $0x58] sm:$0xff]
        %v2745 = vld [vmem:[%s2131 + $0x60] sm:$0xff]
        %v2746 = vld [vmem:[%s2131 + $0x68] sm:$0xff]
        %v2747 = vld [vmem:[%s2131 + $0x70] sm:$0xff]
        %v2748 = vld [vmem:[%s2131 + $0x78] sm:$0xff]
        %v2749 = vld [vmem:[%s2131 + $0x80] sm:$0xff]
        %v2750 = vld [vmem:[%s2131 + $0x88] sm:$0xff]
        %v2751 = vld [vmem:[%s2131 + $0x90] sm:$0xff]
        %v2752 = vld [vmem:[%s2131 + $0x98] sm:$0xff]
        %v2753 = vld [vmem:[%s2131 + $0xa0] sm:$0xff]
        %v2754 = vld [vmem:[%s2131 + $0xa8] sm:$0xff]
        %v2755 = vld [vmem:[%s2131 + $0xb0] sm:$0xff]
        %v2756 = vld [vmem:[%s2131 + $0xb8] sm:$0xff]
        %v2757 = vld [vmem:[%s2131 + $0xc0] sm:$0xff]
        %v2758 = vld [vmem:[%s2131 + $0xc8] sm:$0xff]
        %v2759 = vld [vmem:[%s2131 + $0xd0] sm:$0xff]
        %v2760 = vld [vmem:[%s2131 + $0xd8] sm:$0xff]
        %v2761 = vld [vmem:[%s2131 + $0xe0] sm:$0xff]
        %v2762 = vld [vmem:[%s2131 + $0xe8] sm:$0xff]
        %v2763 = vld [vmem:[%s2131 + $0xf0] sm:$0xff]
        %v2764 = vld [vmem:[%s2131 + $0xf8] sm:$0xff]
        %v2765 = vld [vmem:[%s2648] sm:$0x3]
        %v2767 = vperm.slane %v2765, 0
        %v2768 = vperm.slane %v2765, 1
        %v2803 = vunpack.c.l.b16 %v2733
        %v2804 = vunpack.c.h.b16 %v2733
        %v2805 = vunpack.c.l.b16 %v2734
        %v2806 = vunpack.c.h.b16 %v2734
        %v2807 = vunpack.c.l.b16 %v2735
        %v2808 = vunpack.c.h.b16 %v2735
        %v2809 = vunpack.c.l.b16 %v2736
        %v2810 = vunpack.c.h.b16 %v2736
        %v2811 = vunpack.c.l.b16 %v2737
        %v2812 = vunpack.c.h.b16 %v2737
        %v2813 = vunpack.c.l.b16 %v2738
        %v2814 = vunpack.c.h.b16 %v2738
        %v2815 = vunpack.c.l.b16 %v2739
        %v2816 = vunpack.c.h.b16 %v2739
        %v2817 = vunpack.c.l.b16 %v2740
        %v2818 = vunpack.c.h.b16 %v2740
        %v2819 = vunpack.c.l.b16 %v2741
        %v2820 = vunpack.c.h.b16 %v2741
        %v2821 = vunpack.c.l.b16 %v2742
        %v2822 = vunpack.c.h.b16 %v2742
        %v2823 = vunpack.c.l.b16 %v2743
        %v2824 = vunpack.c.h.b16 %v2743
        %v2825 = vunpack.c.l.b16 %v2744
        %v2826 = vunpack.c.h.b16 %v2744
        %v2827 = vunpack.c.l.b16 %v2745
        %v2828 = vunpack.c.h.b16 %v2745
        %v2829 = vunpack.c.l.b16 %v2746
        %v2830 = vunpack.c.h.b16 %v2746
        %v2831 = vunpack.c.l.b16 %v2747
        %v2832 = vunpack.c.h.b16 %v2747
        %v2833 = vunpack.c.l.b16 %v2748
        %v2834 = vunpack.c.h.b16 %v2748
        %v2835 = vunpack.c.l.b16 %v2749
        %v2836 = vunpack.c.h.b16 %v2749
        %v2837 = vunpack.c.l.b16 %v2750
        %v2838 = vunpack.c.h.b16 %v2750
        %v2839 = vunpack.c.l.b16 %v2751
        %v2840 = vunpack.c.h.b16 %v2751
        %v2841 = vunpack.c.l.b16 %v2752
        %v2842 = vunpack.c.h.b16 %v2752
        %v2843 = vunpack.c.l.b16 %v2753
        %v2844 = vunpack.c.h.b16 %v2753
        %v2845 = vunpack.c.l.b16 %v2754
        %v2846 = vunpack.c.h.b16 %v2754
        %v2847 = vunpack.c.l.b16 %v2755
        %v2848 = vunpack.c.h.b16 %v2755
        %v2849 = vunpack.c.l.b16 %v2756
        %v2850 = vunpack.c.h.b16 %v2756
        %v2851 = vunpack.c.l.b16 %v2757
        %v2852 = vunpack.c.h.b16 %v2757
        %v2853 = vunpack.c.l.b16 %v2758
        %v2854 = vunpack.c.h.b16 %v2758
        %v2855 = vunpack.c.l.b16 %v2759
        %v2856 = vunpack.c.h.b16 %v2759
        %v2857 = vunpack.c.l.b16 %v2760
        %v2858 = vunpack.c.h.b16 %v2760
        %v2859 = vunpack.c.l.b16 %v2761
        %v2860 = vunpack.c.h.b16 %v2761
        %v2861 = vunpack.c.l.b16 %v2762
        %v2862 = vunpack.c.h.b16 %v2762
        %v2863 = vunpack.c.l.b16 %v2763
        %v2864 = vunpack.c.h.b16 %v2763
        %v2865 = vunpack.c.l.b16 %v2764
        %v2866 = vunpack.c.h.b16 %v2764
        %v2867 = vpack.c.b16 %v2805, %v2803
        %v2868 = vpack.c.b16 %v2806, %v2804
        %v2869 = vpack.c.b16 %v2809, %v2807
        %v2870 = vpack.c.b16 %v2810, %v2808
        %v2871 = vpack.c.b16 %v2813, %v2811
        %v2872 = vpack.c.b16 %v2814, %v2812
        %v2873 = vpack.c.b16 %v2817, %v2815
        %v2874 = vpack.c.b16 %v2818, %v2816
        %v2875 = vpack.c.b16 %v2821, %v2819
        %v2876 = vpack.c.b16 %v2822, %v2820
        %v2877 = vpack.c.b16 %v2825, %v2823
        %v2878 = vpack.c.b16 %v2826, %v2824
        %v2879 = vpack.c.b16 %v2829, %v2827
        %v2880 = vpack.c.b16 %v2830, %v2828
        %v2881 = vpack.c.b16 %v2833, %v2831
        %v2882 = vpack.c.b16 %v2834, %v2832
        %v2883 = vpack.c.b16 %v2837, %v2835
        %v2884 = vpack.c.b16 %v2838, %v2836
        %v2885 = vpack.c.b16 %v2841, %v2839
        %v2886 = vpack.c.b16 %v2842, %v2840
        %v2887 = vpack.c.b16 %v2845, %v2843
        %v2888 = vpack.c.b16 %v2846, %v2844
        %v2889 = vpack.c.b16 %v2849, %v2847
        %v2890 = vpack.c.b16 %v2850, %v2848
        %v2891 = vpack.c.b16 %v2853, %v2851
        %v2892 = vpack.c.b16 %v2854, %v2852
        %v2893 = vpack.c.b16 %v2857, %v2855
        %v2894 = vpack.c.b16 %v2858, %v2856
        %v2895 = vpack.c.b16 %v2861, %v2859
        %v2896 = vpack.c.b16 %v2862, %v2860
        %v2897 = vpack.c.b16 %v2865, %v2863
        %v2898 = vpack.c.b16 %v2866, %v2864
        %2931 = vmatpush.bf16.msra.mxu0 %v2881
        %2932 = vmatpush.bf16.msra.mxu0 %v2879
        %2933 = vmatpush.bf16.msra.mxu0 %v2877
        %2934 = vmatpush.bf16.msra.mxu0 %v2875
        %2935 = vmatpush.bf16.msra.mxu0 %v2873
        %2936 = vmatpush.bf16.msra.mxu0 %v2871
        %2937 = vmatpush.bf16.msra.mxu0 %v2869
        %2938 = vmatpush.bf16.msra.mxu0 %v2867
        %2939 = vmatmul.bf16.gmra.mxu0 %v2731
        %v2940 = vpop.f32.mrf.mxu0
        %v2941 = vadd.f32 %v2767, %v2940
        %v2942 = vpop.f32.mrf.mxu0
        %v2943 = vadd.f32 %v2767, %v2942
        %2944 = vdwg.mxu0
        %2945 = vmatpush.bf16.msra.mxu0 %v2897
        %2946 = vmatpush.bf16.msra.mxu0 %v2895
        %2947 = vmatpush.bf16.msra.mxu0 %v2893
        %2948 = vmatpush.bf16.msra.mxu0 %v2891
        %2949 = vmatpush.bf16.msra.mxu0 %v2889
        %2950 = vmatpush.bf16.msra.mxu0 %v2887
        %2951 = vmatpush.bf16.msra.mxu0 %v2885
        %2952 = vmatpush.bf16.msra.mxu0 %v2883
        %2953 = vmatmul.bf16.gmra.mxu0 %v2732
        %v2954 = vpop.f32.mrf.mxu0
        %v2955 = vadd.f32 %v2941, %v2954
        %v2956 = vpop.f32.mrf.mxu0
        %v2957 = vadd.f32 %v2943, %v2956
        %2958 = vdwg.mxu0
        %2959 = vmatpush.bf16.msra.mxu0 %v2882
        %2960 = vmatpush.bf16.msra.mxu0 %v2880
        %2961 = vmatpush.bf16.msra.mxu0 %v2878
        %2962 = vmatpush.bf16.msra.mxu0 %v2876
        %2963 = vmatpush.bf16.msra.mxu0 %v2874
        %2964 = vmatpush.bf16.msra.mxu0 %v2872
        %2965 = vmatpush.bf16.msra.mxu0 %v2870
        %2966 = vmatpush.bf16.msra.mxu0 %v2868
        %2967 = vmatmul.bf16.gmra.mxu0 %v2731
        %v2968 = vpop.f32.mrf.mxu0
        %v2969 = vadd.f32 %v2768, %v2968
        %v2970 = vpop.f32.mrf.mxu0
        %v2971 = vadd.f32 %v2768, %v2970
        %2972 = vdwg.mxu0
        %2973 = vmatpush.bf16.msra.mxu0 %v2898
        %2974 = vmatpush.bf16.msra.mxu0 %v2896
        %2975 = vmatpush.bf16.msra.mxu0 %v2894
        %2976 = vmatpush.bf16.msra.mxu0 %v2892
        %2977 = vmatpush.bf16.msra.mxu0 %v2890
        %2978 = vmatpush.bf16.msra.mxu0 %v2888
        %2979 = vmatpush.bf16.msra.mxu0 %v2886
        %2980 = vmatpush.bf16.msra.mxu0 %v2884
        %2981 = vmatmul.bf16.gmra.mxu0 %v2732
        %v2982 = vpop.f32.mrf.mxu0
        %v2983 = vadd.f32 %v2969, %v2982
        %v2984 = vpop.f32.mrf.mxu0
        %v2985 = vadd.f32 %v2971, %v2984
        %2986 = vdwg.mxu0
        %v2987 = vpack.c.bf16 %v2709, %v2707
        %v2988 = vpack.c.bf16 %v2710, %v2708
        %v2989 = vld [vmem:[%s2141] sm:$0xff]
        %v2990 = vld [vmem:[%s2141 + $0x8] sm:$0xff]
        %v2991 = vld [vmem:[%s2141 + $0x10] sm:$0xff]
        %v2992 = vld [vmem:[%s2141 + $0x18] sm:$0xff]
        %v2993 = vld [vmem:[%s2141 + $0x20] sm:$0xff]
        %v2994 = vld [vmem:[%s2141 + $0x28] sm:$0xff]
        %v2995 = vld [vmem:[%s2141 + $0x30] sm:$0xff]
        %v2996 = vld [vmem:[%s2141 + $0x38] sm:$0xff]
        %v2997 = vld [vmem:[%s2141 + $0x40] sm:$0xff]
        %v2998 = vld [vmem:[%s2141 + $0x48] sm:$0xff]
        %v2999 = vld [vmem:[%s2141 + $0x50] sm:$0xff]
        %v3000 = vld [vmem:[%s2141 + $0x58] sm:$0xff]
        %v3001 = vld [vmem:[%s2141 + $0x60] sm:$0xff]
        %v3002 = vld [vmem:[%s2141 + $0x68] sm:$0xff]
        %v3003 = vld [vmem:[%s2141 + $0x70] sm:$0xff]
        %v3004 = vld [vmem:[%s2141 + $0x78] sm:$0xff]
        %v3005 = vld [vmem:[%s2141 + $0x80] sm:$0xff]
        %v3006 = vld [vmem:[%s2141 + $0x88] sm:$0xff]
        %v3007 = vld [vmem:[%s2141 + $0x90] sm:$0xff]
        %v3008 = vld [vmem:[%s2141 + $0x98] sm:$0xff]
        %v3009 = vld [vmem:[%s2141 + $0xa0] sm:$0xff]
        %v3010 = vld [vmem:[%s2141 + $0xa8] sm:$0xff]
        %v3011 = vld [vmem:[%s2141 + $0xb0] sm:$0xff]
        %v3012 = vld [vmem:[%s2141 + $0xb8] sm:$0xff]
        %v3013 = vld [vmem:[%s2141 + $0xc0] sm:$0xff]
        %v3014 = vld [vmem:[%s2141 + $0xc8] sm:$0xff]
        %v3015 = vld [vmem:[%s2141 + $0xd0] sm:$0xff]
        %v3016 = vld [vmem:[%s2141 + $0xd8] sm:$0xff]
        %v3017 = vld [vmem:[%s2141 + $0xe0] sm:$0xff]
        %v3018 = vld [vmem:[%s2141 + $0xe8] sm:$0xff]
        %v3019 = vld [vmem:[%s2141 + $0xf0] sm:$0xff]
        %v3020 = vld [vmem:[%s2141 + $0xf8] sm:$0xff]
        %v3021 = vld [vmem:[%s2652] sm:$0x3]
        %v3023 = vperm.slane %v3021, 0
        %v3024 = vperm.slane %v3021, 1
        %v3059 = vunpack.c.l.b16 %v2989
        %v3060 = vunpack.c.h.b16 %v2989
        %v3061 = vunpack.c.l.b16 %v2990
        %v3062 = vunpack.c.h.b16 %v2990
        %v3063 = vunpack.c.l.b16 %v2991
        %v3064 = vunpack.c.h.b16 %v2991
        %v3065 = vunpack.c.l.b16 %v2992
        %v3066 = vunpack.c.h.b16 %v2992
        %v3067 = vunpack.c.l.b16 %v2993
        %v3068 = vunpack.c.h.b16 %v2993
        %v3069 = vunpack.c.l.b16 %v2994
        %v3070 = vunpack.c.h.b16 %v2994
        %v3071 = vunpack.c.l.b16 %v2995
        %v3072 = vunpack.c.h.b16 %v2995
        %v3073 = vunpack.c.l.b16 %v2996
        %v3074 = vunpack.c.h.b16 %v2996
        %v3075 = vunpack.c.l.b16 %v2997
        %v3076 = vunpack.c.h.b16 %v2997
        %v3077 = vunpack.c.l.b16 %v2998
        %v3078 = vunpack.c.h.b16 %v2998
        %v3079 = vunpack.c.l.b16 %v2999
        %v3080 = vunpack.c.h.b16 %v2999
        %v3081 = vunpack.c.l.b16 %v3000
        %v3082 = vunpack.c.h.b16 %v3000
        %v3083 = vunpack.c.l.b16 %v3001
        %v3084 = vunpack.c.h.b16 %v3001
        %v3085 = vunpack.c.l.b16 %v3002
        %v3086 = vunpack.c.h.b16 %v3002
        %v3087 = vunpack.c.l.b16 %v3003
        %v3088 = vunpack.c.h.b16 %v3003
        %v3089 = vunpack.c.l.b16 %v3004
        %v3090 = vunpack.c.h.b16 %v3004
        %v3091 = vunpack.c.l.b16 %v3005
        %v3092 = vunpack.c.h.b16 %v3005
        %v3093 = vunpack.c.l.b16 %v3006
        %v3094 = vunpack.c.h.b16 %v3006
        %v3095 = vunpack.c.l.b16 %v3007
        %v3096 = vunpack.c.h.b16 %v3007
        %v3097 = vunpack.c.l.b16 %v3008
        %v3098 = vunpack.c.h.b16 %v3008
        %v3099 = vunpack.c.l.b16 %v3009
        %v3100 = vunpack.c.h.b16 %v3009
        %v3101 = vunpack.c.l.b16 %v3010
        %v3102 = vunpack.c.h.b16 %v3010
        %v3103 = vunpack.c.l.b16 %v3011
        %v3104 = vunpack.c.h.b16 %v3011
        %v3105 = vunpack.c.l.b16 %v3012
        %v3106 = vunpack.c.h.b16 %v3012
        %v3107 = vunpack.c.l.b16 %v3013
        %v3108 = vunpack.c.h.b16 %v3013
        %v3109 = vunpack.c.l.b16 %v3014
        %v3110 = vunpack.c.h.b16 %v3014
        %v3111 = vunpack.c.l.b16 %v3015
        %v3112 = vunpack.c.h.b16 %v3015
        %v3113 = vunpack.c.l.b16 %v3016
        %v3114 = vunpack.c.h.b16 %v3016
        %v3115 = vunpack.c.l.b16 %v3017
        %v3116 = vunpack.c.h.b16 %v3017
        %v3117 = vunpack.c.l.b16 %v3018
        %v3118 = vunpack.c.h.b16 %v3018
        %v3119 = vunpack.c.l.b16 %v3019
        %v3120 = vunpack.c.h.b16 %v3019
        %v3121 = vunpack.c.l.b16 %v3020
        %v3122 = vunpack.c.h.b16 %v3020
        %v3123 = vpack.c.b16 %v3061, %v3059
        %v3124 = vpack.c.b16 %v3062, %v3060
        %v3125 = vpack.c.b16 %v3065, %v3063
        %v3126 = vpack.c.b16 %v3066, %v3064
        %v3127 = vpack.c.b16 %v3069, %v3067
        %v3128 = vpack.c.b16 %v3070, %v3068
        %v3129 = vpack.c.b16 %v3073, %v3071
        %v3130 = vpack.c.b16 %v3074, %v3072
        %v3131 = vpack.c.b16 %v3077, %v3075
        %v3132 = vpack.c.b16 %v3078, %v3076
        %v3133 = vpack.c.b16 %v3081, %v3079
        %v3134 = vpack.c.b16 %v3082, %v3080
        %v3135 = vpack.c.b16 %v3085, %v3083
        %v3136 = vpack.c.b16 %v3086, %v3084
        %v3137 = vpack.c.b16 %v3089, %v3087
        %v3138 = vpack.c.b16 %v3090, %v3088
        %v3139 = vpack.c.b16 %v3093, %v3091
        %v3140 = vpack.c.b16 %v3094, %v3092
        %v3141 = vpack.c.b16 %v3097, %v3095
        %v3142 = vpack.c.b16 %v3098, %v3096
        %v3143 = vpack.c.b16 %v3101, %v3099
        %v3144 = vpack.c.b16 %v3102, %v3100
        %v3145 = vpack.c.b16 %v3105, %v3103
        %v3146 = vpack.c.b16 %v3106, %v3104
        %v3147 = vpack.c.b16 %v3109, %v3107
        %v3148 = vpack.c.b16 %v3110, %v3108
        %v3149 = vpack.c.b16 %v3113, %v3111
        %v3150 = vpack.c.b16 %v3114, %v3112
        %v3151 = vpack.c.b16 %v3117, %v3115
        %v3152 = vpack.c.b16 %v3118, %v3116
        %v3153 = vpack.c.b16 %v3121, %v3119
        %v3154 = vpack.c.b16 %v3122, %v3120
        %3187 = vmatpush.bf16.msra.mxu0 %v3137
        %3188 = vmatpush.bf16.msra.mxu0 %v3135
        %3189 = vmatpush.bf16.msra.mxu0 %v3133
        %3190 = vmatpush.bf16.msra.mxu0 %v3131
        %3191 = vmatpush.bf16.msra.mxu0 %v3129
        %3192 = vmatpush.bf16.msra.mxu0 %v3127
        %3193 = vmatpush.bf16.msra.mxu0 %v3125
        %3194 = vmatpush.bf16.msra.mxu0 %v3123
        %3195 = vmatmul.bf16.gmra.mxu0 %v2987
        %v3196 = vpop.f32.mrf.mxu0
        %v3197 = vadd.f32 %v3023, %v3196
        %v3198 = vpop.f32.mrf.mxu0
        %v3199 = vadd.f32 %v3023, %v3198
        %3200 = vdwg.mxu0
        %3201 = vmatpush.bf16.msra.mxu0 %v3153
        %3202 = vmatpush.bf16.msra.mxu0 %v3151
        %3203 = vmatpush.bf16.msra.mxu0 %v3149
        %3204 = vmatpush.bf16.msra.mxu0 %v3147
        %3205 = vmatpush.bf16.msra.mxu0 %v3145
        %3206 = vmatpush.bf16.msra.mxu0 %v3143
        %3207 = vmatpush.bf16.msra.mxu0 %v3141
        %3208 = vmatpush.bf16.msra.mxu0 %v3139
        %3209 = vmatmul.bf16.gmra.mxu0 %v2988
        %v3210 = vpop.f32.mrf.mxu0
        %v3211 = vadd.f32 %v3197, %v3210
        %v3212 = vpop.f32.mrf.mxu0
        %v3213 = vadd.f32 %v3199, %v3212
        %3214 = vdwg.mxu0
        %3215 = vmatpush.bf16.msra.mxu0 %v3138
        %3216 = vmatpush.bf16.msra.mxu0 %v3136
        %3217 = vmatpush.bf16.msra.mxu0 %v3134
        %3218 = vmatpush.bf16.msra.mxu0 %v3132
        %3219 = vmatpush.bf16.msra.mxu0 %v3130
        %3220 = vmatpush.bf16.msra.mxu0 %v3128
        %3221 = vmatpush.bf16.msra.mxu0 %v3126
        %3222 = vmatpush.bf16.msra.mxu0 %v3124
        %3223 = vmatmul.bf16.gmra.mxu0 %v2987
        %v3224 = vpop.f32.mrf.mxu0
        %v3225 = vadd.f32 %v3024, %v3224
        %v3226 = vpop.f32.mrf.mxu0
        %v3227 = vadd.f32 %v3024, %v3226
        %3228 = vdwg.mxu0
        %3229 = vmatpush.bf16.msra.mxu0 %v3154
        %3230 = vmatpush.bf16.msra.mxu0 %v3152
        %3231 = vmatpush.bf16.msra.mxu0 %v3150
        %3232 = vmatpush.bf16.msra.mxu0 %v3148
        %3233 = vmatpush.bf16.msra.mxu0 %v3146
        %3234 = vmatpush.bf16.msra.mxu0 %v3144
        %3235 = vmatpush.bf16.msra.mxu0 %v3142
        %3236 = vmatpush.bf16.msra.mxu0 %v3140
        %3237 = vmatmul.bf16.gmra.mxu0 %v2988
        %v3238 = vpop.f32.mrf.mxu0
        %v3239 = vadd.f32 %v3225, %v3238
        %v3240 = vpop.f32.mrf.mxu0
        %v3241 = vadd.f32 %v3227, %v3240
        %3242 = vdwg.mxu0
        %v3243 = vadd.f32 %v2955, %v3211
        %v3244 = vadd.f32 %v2983, %v3239
        %v3245 = vadd.f32 %v2957, %v3213
        %v3246 = vadd.f32 %v2985, %v3241
        %v3247 = vld [vmem:[%s2151] sm:$0xff]
        %v3248 = vld [vmem:[%s2151 + $0x8] sm:$0xff]
        %v3249 = vld [vmem:[%s2151 + $0x10] sm:$0xff]
        %v3250 = vld [vmem:[%s2151 + $0x18] sm:$0xff]
        %v3251 = vld [vmem:[%s2151 + $0x20] sm:$0xff]
        %v3252 = vld [vmem:[%s2151 + $0x28] sm:$0xff]
        %v3253 = vld [vmem:[%s2151 + $0x30] sm:$0xff]
        %v3254 = vld [vmem:[%s2151 + $0x38] sm:$0xff]
        %v3255 = vld [vmem:[%s2151 + $0x40] sm:$0xff]
        %v3256 = vld [vmem:[%s2151 + $0x48] sm:$0xff]
        %v3257 = vld [vmem:[%s2151 + $0x50] sm:$0xff]
        %v3258 = vld [vmem:[%s2151 + $0x58] sm:$0xff]
        %v3259 = vld [vmem:[%s2151 + $0x60] sm:$0xff]
        %v3260 = vld [vmem:[%s2151 + $0x68] sm:$0xff]
        %v3261 = vld [vmem:[%s2151 + $0x70] sm:$0xff]
        %v3262 = vld [vmem:[%s2151 + $0x78] sm:$0xff]
        %v3263 = vld [vmem:[%s2151 + $0x80] sm:$0xff]
        %v3264 = vld [vmem:[%s2151 + $0x88] sm:$0xff]
        %v3265 = vld [vmem:[%s2151 + $0x90] sm:$0xff]
        %v3266 = vld [vmem:[%s2151 + $0x98] sm:$0xff]
        %v3267 = vld [vmem:[%s2151 + $0xa0] sm:$0xff]
        %v3268 = vld [vmem:[%s2151 + $0xa8] sm:$0xff]
        %v3269 = vld [vmem:[%s2151 + $0xb0] sm:$0xff]
        %v3270 = vld [vmem:[%s2151 + $0xb8] sm:$0xff]
        %v3271 = vld [vmem:[%s2151 + $0xc0] sm:$0xff]
        %v3272 = vld [vmem:[%s2151 + $0xc8] sm:$0xff]
        %v3273 = vld [vmem:[%s2151 + $0xd0] sm:$0xff]
        %v3274 = vld [vmem:[%s2151 + $0xd8] sm:$0xff]
        %v3275 = vld [vmem:[%s2151 + $0xe0] sm:$0xff]
        %v3276 = vld [vmem:[%s2151 + $0xe8] sm:$0xff]
        %v3277 = vld [vmem:[%s2151 + $0xf0] sm:$0xff]
        %v3278 = vld [vmem:[%s2151 + $0xf8] sm:$0xff]
        %v3279 = vld [vmem:[%s2161] sm:$0x3]
        %v3281 = vperm.slane %v3279, 0
        %v3282 = vperm.slane %v3279, 1
        %v3317 = vunpack.c.l.b16 %v3247
        %v3318 = vunpack.c.h.b16 %v3247
        %v3319 = vunpack.c.l.b16 %v3248
        %v3320 = vunpack.c.h.b16 %v3248
        %v3321 = vunpack.c.l.b16 %v3249
        %v3322 = vunpack.c.h.b16 %v3249
        %v3323 = vunpack.c.l.b16 %v3250
        %v3324 = vunpack.c.h.b16 %v3250
        %v3325 = vunpack.c.l.b16 %v3251
        %v3326 = vunpack.c.h.b16 %v3251
        %v3327 = vunpack.c.l.b16 %v3252
        %v3328 = vunpack.c.h.b16 %v3252
        %v3329 = vunpack.c.l.b16 %v3253
        %v3330 = vunpack.c.h.b16 %v3253
        %v3331 = vunpack.c.l.b16 %v3254
        %v3332 = vunpack.c.h.b16 %v3254
        %v3333 = vunpack.c.l.b16 %v3255
        %v3334 = vunpack.c.h.b16 %v3255
        %v3335 = vunpack.c.l.b16 %v3256
        %v3336 = vunpack.c.h.b16 %v3256
        %v3337 = vunpack.c.l.b16 %v3257
        %v3338 = vunpack.c.h.b16 %v3257
        %v3339 = vunpack.c.l.b16 %v3258
        %v3340 = vunpack.c.h.b16 %v3258
        %v3341 = vunpack.c.l.b16 %v3259
        %v3342 = vunpack.c.h.b16 %v3259
        %v3343 = vunpack.c.l.b16 %v3260
        %v3344 = vunpack.c.h.b16 %v3260
        %v3345 = vunpack.c.l.b16 %v3261
        %v3346 = vunpack.c.h.b16 %v3261
        %v3347 = vunpack.c.l.b16 %v3262
        %v3348 = vunpack.c.h.b16 %v3262
        %v3349 = vunpack.c.l.b16 %v3263
        %v3350 = vunpack.c.h.b16 %v3263
        %v3351 = vunpack.c.l.b16 %v3264
        %v3352 = vunpack.c.h.b16 %v3264
        %v3353 = vunpack.c.l.b16 %v3265
        %v3354 = vunpack.c.h.b16 %v3265
        %v3355 = vunpack.c.l.b16 %v3266
        %v3356 = vunpack.c.h.b16 %v3266
        %v3357 = vunpack.c.l.b16 %v3267
        %v3358 = vunpack.c.h.b16 %v3267
        %v3359 = vunpack.c.l.b16 %v3268
        %v3360 = vunpack.c.h.b16 %v3268
        %v3361 = vunpack.c.l.b16 %v3269
        %v3362 = vunpack.c.h.b16 %v3269
        %v3363 = vunpack.c.l.b16 %v3270
        %v3364 = vunpack.c.h.b16 %v3270
        %v3365 = vunpack.c.l.b16 %v3271
        %v3366 = vunpack.c.h.b16 %v3271
        %v3367 = vunpack.c.l.b16 %v3272
        %v3368 = vunpack.c.h.b16 %v3272
        %v3369 = vunpack.c.l.b16 %v3273
        %v3370 = vunpack.c.h.b16 %v3273
        %v3371 = vunpack.c.l.b16 %v3274
        %v3372 = vunpack.c.h.b16 %v3274
        %v3373 = vunpack.c.l.b16 %v3275
        %v3374 = vunpack.c.h.b16 %v3275
        %v3375 = vunpack.c.l.b16 %v3276
        %v3376 = vunpack.c.h.b16 %v3276
        %v3377 = vunpack.c.l.b16 %v3277
        %v3378 = vunpack.c.h.b16 %v3277
        %v3379 = vunpack.c.l.b16 %v3278
        %v3380 = vunpack.c.h.b16 %v3278
        %v3381 = vpack.c.b16 %v3319, %v3317
        %v3382 = vpack.c.b16 %v3320, %v3318
        %v3383 = vpack.c.b16 %v3323, %v3321
        %v3384 = vpack.c.b16 %v3324, %v3322
        %v3385 = vpack.c.b16 %v3327, %v3325
        %v3386 = vpack.c.b16 %v3328, %v3326
        %v3387 = vpack.c.b16 %v3331, %v3329
        %v3388 = vpack.c.b16 %v3332, %v3330
        %v3389 = vpack.c.b16 %v3335, %v3333
        %v3390 = vpack.c.b16 %v3336, %v3334
        %v3391 = vpack.c.b16 %v3339, %v3337
        %v3392 = vpack.c.b16 %v3340, %v3338
        %v3393 = vpack.c.b16 %v3343, %v3341
        %v3394 = vpack.c.b16 %v3344, %v3342
        %v3395 = vpack.c.b16 %v3347, %v3345
        %v3396 = vpack.c.b16 %v3348, %v3346
        %v3397 = vpack.c.b16 %v3351, %v3349
        %v3398 = vpack.c.b16 %v3352, %v3350
        %v3399 = vpack.c.b16 %v3355, %v3353
        %v3400 = vpack.c.b16 %v3356, %v3354
        %v3401 = vpack.c.b16 %v3359, %v3357
        %v3402 = vpack.c.b16 %v3360, %v3358
        %v3403 = vpack.c.b16 %v3363, %v3361
        %v3404 = vpack.c.b16 %v3364, %v3362
        %v3405 = vpack.c.b16 %v3367, %v3365
        %v3406 = vpack.c.b16 %v3368, %v3366
        %v3407 = vpack.c.b16 %v3371, %v3369
        %v3408 = vpack.c.b16 %v3372, %v3370
        %v3409 = vpack.c.b16 %v3375, %v3373
        %v3410 = vpack.c.b16 %v3376, %v3374
        %v3411 = vpack.c.b16 %v3379, %v3377
        %v3412 = vpack.c.b16 %v3380, %v3378
        %3445 = vmatpush.bf16.msra.mxu0 %v3395
        %3446 = vmatpush.bf16.msra.mxu0 %v3393
        %3447 = vmatpush.bf16.msra.mxu0 %v3391
        %3448 = vmatpush.bf16.msra.mxu0 %v3389
        %3449 = vmatpush.bf16.msra.mxu0 %v3387
        %3450 = vmatpush.bf16.msra.mxu0 %v3385
        %3451 = vmatpush.bf16.msra.mxu0 %v3383
        %3452 = vmatpush.bf16.msra.mxu0 %v3381
        %3453 = vmatmul.bf16.gmra.mxu0 %v2731
        %v3454 = vpop.f32.mrf.mxu0
        %v3455 = vadd.f32 %v3281, %v3454
        %v3456 = vpop.f32.mrf.mxu0
        %v3457 = vadd.f32 %v3281, %v3456
        %3458 = vdwg.mxu0
        %3459 = vmatpush.bf16.msra.mxu0 %v3411
        %3460 = vmatpush.bf16.msra.mxu0 %v3409
        %3461 = vmatpush.bf16.msra.mxu0 %v3407
        %3462 = vmatpush.bf16.msra.mxu0 %v3405
        %3463 = vmatpush.bf16.msra.mxu0 %v3403
        %3464 = vmatpush.bf16.msra.mxu0 %v3401
        %3465 = vmatpush.bf16.msra.mxu0 %v3399
        %3466 = vmatpush.bf16.msra.mxu0 %v3397
        %3467 = vmatmul.bf16.gmra.mxu0 %v2732
        %v3468 = vpop.f32.mrf.mxu0
        %v3469 = vadd.f32 %v3455, %v3468
        %v3470 = vpop.f32.mrf.mxu0
        %v3471 = vadd.f32 %v3457, %v3470
        %3472 = vdwg.mxu0
        %3473 = vmatpush.bf16.msra.mxu0 %v3396
        %3474 = vmatpush.bf16.msra.mxu0 %v3394
        %3475 = vmatpush.bf16.msra.mxu0 %v3392
        %3476 = vmatpush.bf16.msra.mxu0 %v3390
        %3477 = vmatpush.bf16.msra.mxu0 %v3388
        %3478 = vmatpush.bf16.msra.mxu0 %v3386
        %3479 = vmatpush.bf16.msra.mxu0 %v3384
        %3480 = vmatpush.bf16.msra.mxu0 %v3382
        %3481 = vmatmul.bf16.gmra.mxu0 %v2731
        %v3482 = vpop.f32.mrf.mxu0
        %v3483 = vadd.f32 %v3282, %v3482
        %v3484 = vpop.f32.mrf.mxu0
        %v3485 = vadd.f32 %v3282, %v3484
        %3486 = vdwg.mxu0
        %3487 = vmatpush.bf16.msra.mxu0 %v3412
        %3488 = vmatpush.bf16.msra.mxu0 %v3410
        %3489 = vmatpush.bf16.msra.mxu0 %v3408
        %3490 = vmatpush.bf16.msra.mxu0 %v3406
        %3491 = vmatpush.bf16.msra.mxu0 %v3404
        %3492 = vmatpush.bf16.msra.mxu0 %v3402
        %3493 = vmatpush.bf16.msra.mxu0 %v3400
        %3494 = vmatpush.bf16.msra.mxu0 %v3398
        %3495 = vmatmul.bf16.gmra.mxu0 %v2732
        %v3496 = vpop.f32.mrf.mxu0
        %v3497 = vadd.f32 %v3483, %v3496
        %v3498 = vpop.f32.mrf.mxu0
        %v3499 = vadd.f32 %v3485, %v3498
        %3500 = vdwg.mxu0
        %v3501 = vld [vmem:[%s2171] sm:$0xff]
        %v3502 = vld [vmem:[%s2171 + $0x8] sm:$0xff]
        %v3503 = vld [vmem:[%s2171 + $0x10] sm:$0xff]
        %v3504 = vld [vmem:[%s2171 + $0x18] sm:$0xff]
        %v3505 = vld [vmem:[%s2171 + $0x20] sm:$0xff]
        %v3506 = vld [vmem:[%s2171 + $0x28] sm:$0xff]
        %v3507 = vld [vmem:[%s2171 + $0x30] sm:$0xff]
        %v3508 = vld [vmem:[%s2171 + $0x38] sm:$0xff]
        %v3509 = vld [vmem:[%s2171 + $0x40] sm:$0xff]
        %v3510 = vld [vmem:[%s2171 + $0x48] sm:$0xff]
        %v3511 = vld [vmem:[%s2171 + $0x50] sm:$0xff]
        %v3512 = vld [vmem:[%s2171 + $0x58] sm:$0xff]
        %v3513 = vld [vmem:[%s2171 + $0x60] sm:$0xff]
        %v3514 = vld [vmem:[%s2171 + $0x68] sm:$0xff]
        %v3515 = vld [vmem:[%s2171 + $0x70] sm:$0xff]
        %v3516 = vld [vmem:[%s2171 + $0x78] sm:$0xff]
        %v3517 = vld [vmem:[%s2171 + $0x80] sm:$0xff]
        %v3518 = vld [vmem:[%s2171 + $0x88] sm:$0xff]
        %v3519 = vld [vmem:[%s2171 + $0x90] sm:$0xff]
        %v3520 = vld [vmem:[%s2171 + $0x98] sm:$0xff]
        %v3521 = vld [vmem:[%s2171 + $0xa0] sm:$0xff]
        %v3522 = vld [vmem:[%s2171 + $0xa8] sm:$0xff]
        %v3523 = vld [vmem:[%s2171 + $0xb0] sm:$0xff]
        %v3524 = vld [vmem:[%s2171 + $0xb8] sm:$0xff]
        %v3525 = vld [vmem:[%s2171 + $0xc0] sm:$0xff]
        %v3526 = vld [vmem:[%s2171 + $0xc8] sm:$0xff]
        %v3527 = vld [vmem:[%s2171 + $0xd0] sm:$0xff]
        %v3528 = vld [vmem:[%s2171 + $0xd8] sm:$0xff]
        %v3529 = vld [vmem:[%s2171 + $0xe0] sm:$0xff]
        %v3530 = vld [vmem:[%s2171 + $0xe8] sm:$0xff]
        %v3531 = vld [vmem:[%s2171 + $0xf0] sm:$0xff]
        %v3532 = vld [vmem:[%s2171 + $0xf8] sm:$0xff]
        %v3533 = vld [vmem:[%s2656] sm:$0x3]
        %v3535 = vperm.slane %v3533, 0
        %v3536 = vperm.slane %v3533, 1
        %v3571 = vunpack.c.l.b16 %v3501
        %v3572 = vunpack.c.h.b16 %v3501
        %v3573 = vunpack.c.l.b16 %v3502
        %v3574 = vunpack.c.h.b16 %v3502
        %v3575 = vunpack.c.l.b16 %v3503
        %v3576 = vunpack.c.h.b16 %v3503
        %v3577 = vunpack.c.l.b16 %v3504
        %v3578 = vunpack.c.h.b16 %v3504
        %v3579 = vunpack.c.l.b16 %v3505
        %v3580 = vunpack.c.h.b16 %v3505
        %v3581 = vunpack.c.l.b16 %v3506
        %v3582 = vunpack.c.h.b16 %v3506
        %v3583 = vunpack.c.l.b16 %v3507
        %v3584 = vunpack.c.h.b16 %v3507
        %v3585 = vunpack.c.l.b16 %v3508
        %v3586 = vunpack.c.h.b16 %v3508
        %v3587 = vunpack.c.l.b16 %v3509
        %v3588 = vunpack.c.h.b16 %v3509
        %v3589 = vunpack.c.l.b16 %v3510
        %v3590 = vunpack.c.h.b16 %v3510
        %v3591 = vunpack.c.l.b16 %v3511
        %v3592 = vunpack.c.h.b16 %v3511
        %v3593 = vunpack.c.l.b16 %v3512
        %v3594 = vunpack.c.h.b16 %v3512
        %v3595 = vunpack.c.l.b16 %v3513
        %v3596 = vunpack.c.h.b16 %v3513
        %v3597 = vunpack.c.l.b16 %v3514
        %v3598 = vunpack.c.h.b16 %v3514
        %v3599 = vunpack.c.l.b16 %v3515
        %v3600 = vunpack.c.h.b16 %v3515
        %v3601 = vunpack.c.l.b16 %v3516
        %v3602 = vunpack.c.h.b16 %v3516
        %v3603 = vunpack.c.l.b16 %v3517
        %v3604 = vunpack.c.h.b16 %v3517
        %v3605 = vunpack.c.l.b16 %v3518
        %v3606 = vunpack.c.h.b16 %v3518
        %v3607 = vunpack.c.l.b16 %v3519
        %v3608 = vunpack.c.h.b16 %v3519
        %v3609 = vunpack.c.l.b16 %v3520
        %v3610 = vunpack.c.h.b16 %v3520
        %v3611 = vunpack.c.l.b16 %v3521
        %v3612 = vunpack.c.h.b16 %v3521
        %v3613 = vunpack.c.l.b16 %v3522
        %v3614 = vunpack.c.h.b16 %v3522
        %v3615 = vunpack.c.l.b16 %v3523
        %v3616 = vunpack.c.h.b16 %v3523
        %v3617 = vunpack.c.l.b16 %v3524
        %v3618 = vunpack.c.h.b16 %v3524
        %v3619 = vunpack.c.l.b16 %v3525
        %v3620 = vunpack.c.h.b16 %v3525
        %v3621 = vunpack.c.l.b16 %v3526
        %v3622 = vunpack.c.h.b16 %v3526
        %v3623 = vunpack.c.l.b16 %v3527
        %v3624 = vunpack.c.h.b16 %v3527
        %v3625 = vunpack.c.l.b16 %v3528
        %v3626 = vunpack.c.h.b16 %v3528
        %v3627 = vunpack.c.l.b16 %v3529
        %v3628 = vunpack.c.h.b16 %v3529
        %v3629 = vunpack.c.l.b16 %v3530
        %v3630 = vunpack.c.h.b16 %v3530
        %v3631 = vunpack.c.l.b16 %v3531
        %v3632 = vunpack.c.h.b16 %v3531
        %v3633 = vunpack.c.l.b16 %v3532
        %v3634 = vunpack.c.h.b16 %v3532
        %v3635 = vpack.c.b16 %v3573, %v3571
        %v3636 = vpack.c.b16 %v3574, %v3572
        %v3637 = vpack.c.b16 %v3577, %v3575
        %v3638 = vpack.c.b16 %v3578, %v3576
        %v3639 = vpack.c.b16 %v3581, %v3579
        %v3640 = vpack.c.b16 %v3582, %v3580
        %v3641 = vpack.c.b16 %v3585, %v3583
        %v3642 = vpack.c.b16 %v3586, %v3584
        %v3643 = vpack.c.b16 %v3589, %v3587
        %v3644 = vpack.c.b16 %v3590, %v3588
        %v3645 = vpack.c.b16 %v3593, %v3591
        %v3646 = vpack.c.b16 %v3594, %v3592
        %v3647 = vpack.c.b16 %v3597, %v3595
        %v3648 = vpack.c.b16 %v3598, %v3596
        %v3649 = vpack.c.b16 %v3601, %v3599
        %v3650 = vpack.c.b16 %v3602, %v3600
        %v3651 = vpack.c.b16 %v3605, %v3603
        %v3652 = vpack.c.b16 %v3606, %v3604
        %v3653 = vpack.c.b16 %v3609, %v3607
        %v3654 = vpack.c.b16 %v3610, %v3608
        %v3655 = vpack.c.b16 %v3613, %v3611
        %v3656 = vpack.c.b16 %v3614, %v3612
        %v3657 = vpack.c.b16 %v3617, %v3615
        %v3658 = vpack.c.b16 %v3618, %v3616
        %v3659 = vpack.c.b16 %v3621, %v3619
        %v3660 = vpack.c.b16 %v3622, %v3620
        %v3661 = vpack.c.b16 %v3625, %v3623
        %v3662 = vpack.c.b16 %v3626, %v3624
        %v3663 = vpack.c.b16 %v3629, %v3627
        %v3664 = vpack.c.b16 %v3630, %v3628
        %v3665 = vpack.c.b16 %v3633, %v3631
        %v3666 = vpack.c.b16 %v3634, %v3632
        %3699 = vmatpush.bf16.msra.mxu0 %v3649
        %3700 = vmatpush.bf16.msra.mxu0 %v3647
        %3701 = vmatpush.bf16.msra.mxu0 %v3645
        %3702 = vmatpush.bf16.msra.mxu0 %v3643
        %3703 = vmatpush.bf16.msra.mxu0 %v3641
        %3704 = vmatpush.bf16.msra.mxu0 %v3639
        %3705 = vmatpush.bf16.msra.mxu0 %v3637
        %3706 = vmatpush.bf16.msra.mxu0 %v3635
        %3707 = vmatmul.bf16.gmra.mxu0 %v2987
        %v3708 = vpop.f32.mrf.mxu0
        %v3709 = vadd.f32 %v3535, %v3708
        %v3710 = vpop.f32.mrf.mxu0
        %v3711 = vadd.f32 %v3535, %v3710
        %3712 = vdwg.mxu0
        %3713 = vmatpush.bf16.msra.mxu0 %v3665
        %3714 = vmatpush.bf16.msra.mxu0 %v3663
        %3715 = vmatpush.bf16.msra.mxu0 %v3661
        %3716 = vmatpush.bf16.msra.mxu0 %v3659
        %3717 = vmatpush.bf16.msra.mxu0 %v3657
        %3718 = vmatpush.bf16.msra.mxu0 %v3655
        %3719 = vmatpush.bf16.msra.mxu0 %v3653
        %3720 = vmatpush.bf16.msra.mxu0 %v3651
        %3721 = vmatmul.bf16.gmra.mxu0 %v2988
        %v3722 = vpop.f32.mrf.mxu0
        %v3723 = vadd.f32 %v3709, %v3722
        %v3724 = vpop.f32.mrf.mxu0
        %v3725 = vadd.f32 %v3711, %v3724
        %3726 = vdwg.mxu0
        %3727 = vmatpush.bf16.msra.mxu0 %v3650
        %3728 = vmatpush.bf16.msra.mxu0 %v3648
        %3729 = vmatpush.bf16.msra.mxu0 %v3646
        %3730 = vmatpush.bf16.msra.mxu0 %v3644
        %3731 = vmatpush.bf16.msra.mxu0 %v3642
        %3732 = vmatpush.bf16.msra.mxu0 %v3640
        %3733 = vmatpush.bf16.msra.mxu0 %v3638
        %3734 = vmatpush.bf16.msra.mxu0 %v3636
        %3735 = vmatmul.bf16.gmra.mxu0 %v2987
        %v3736 = vpop.f32.mrf.mxu0
        %v3737 = vadd.f32 %v3536, %v3736
        %v3738 = vpop.f32.mrf.mxu0
        %v3739 = vadd.f32 %v3536, %v3738
        %3740 = vdwg.mxu0
        %3741 = vmatpush.bf16.msra.mxu0 %v3666
        %3742 = vmatpush.bf16.msra.mxu0 %v3664
        %3743 = vmatpush.bf16.msra.mxu0 %v3662
        %3744 = vmatpush.bf16.msra.mxu0 %v3660
        %3745 = vmatpush.bf16.msra.mxu0 %v3658
        %3746 = vmatpush.bf16.msra.mxu0 %v3656
        %3747 = vmatpush.bf16.msra.mxu0 %v3654
        %3748 = vmatpush.bf16.msra.mxu0 %v3652
        %3749 = vmatmul.bf16.gmra.mxu0 %v2988
        %v3750 = vpop.f32.mrf.mxu0
        %v3751 = vadd.f32 %v3737, %v3750
        %v3752 = vpop.f32.mrf.mxu0
        %v3753 = vadd.f32 %v3739, %v3752
        %3754 = vdwg.mxu0
        %v3755 = vadd.f32 %v3469, %v3723
        %v3756 = vadd.f32 %v3497, %v3751
        %v3757 = vadd.f32 %v3471, %v3725
        %v3758 = vadd.f32 %v3499, %v3753
        %v3759 = vld [vmem:[%s2181] sm:$0xff]
        %v3760 = vld [vmem:[%s2181 + $0x8] sm:$0xff]
        %v3761 = vld [vmem:[%s2181 + $0x10] sm:$0xff]
        %v3762 = vld [vmem:[%s2181 + $0x18] sm:$0xff]
        %v3763 = vld [vmem:[%s2181 + $0x20] sm:$0xff]
        %v3764 = vld [vmem:[%s2181 + $0x28] sm:$0xff]
        %v3765 = vld [vmem:[%s2181 + $0x30] sm:$0xff]
        %v3766 = vld [vmem:[%s2181 + $0x38] sm:$0xff]
        %v3767 = vld [vmem:[%s2181 + $0x40] sm:$0xff]
        %v3768 = vld [vmem:[%s2181 + $0x48] sm:$0xff]
        %v3769 = vld [vmem:[%s2181 + $0x50] sm:$0xff]
        %v3770 = vld [vmem:[%s2181 + $0x58] sm:$0xff]
        %v3771 = vld [vmem:[%s2181 + $0x60] sm:$0xff]
        %v3772 = vld [vmem:[%s2181 + $0x68] sm:$0xff]
        %v3773 = vld [vmem:[%s2181 + $0x70] sm:$0xff]
        %v3774 = vld [vmem:[%s2181 + $0x78] sm:$0xff]
        %v3775 = vld [vmem:[%s2181 + $0x80] sm:$0xff]
        %v3776 = vld [vmem:[%s2181 + $0x88] sm:$0xff]
        %v3777 = vld [vmem:[%s2181 + $0x90] sm:$0xff]
        %v3778 = vld [vmem:[%s2181 + $0x98] sm:$0xff]
        %v3779 = vld [vmem:[%s2181 + $0xa0] sm:$0xff]
        %v3780 = vld [vmem:[%s2181 + $0xa8] sm:$0xff]
        %v3781 = vld [vmem:[%s2181 + $0xb0] sm:$0xff]
        %v3782 = vld [vmem:[%s2181 + $0xb8] sm:$0xff]
        %v3783 = vld [vmem:[%s2181 + $0xc0] sm:$0xff]
        %v3784 = vld [vmem:[%s2181 + $0xc8] sm:$0xff]
        %v3785 = vld [vmem:[%s2181 + $0xd0] sm:$0xff]
        %v3786 = vld [vmem:[%s2181 + $0xd8] sm:$0xff]
        %v3787 = vld [vmem:[%s2181 + $0xe0] sm:$0xff]
        %v3788 = vld [vmem:[%s2181 + $0xe8] sm:$0xff]
        %v3789 = vld [vmem:[%s2181 + $0xf0] sm:$0xff]
        %v3790 = vld [vmem:[%s2181 + $0xf8] sm:$0xff]
        %v3791 = vld [vmem:[%s2191] sm:$0x3]
        %v3793 = vperm.slane %v3791, 0
        %v3794 = vperm.slane %v3791, 1
        %v3829 = vunpack.c.l.b16 %v3759
        %v3830 = vunpack.c.h.b16 %v3759
        %v3831 = vunpack.c.l.b16 %v3760
        %v3832 = vunpack.c.h.b16 %v3760
        %v3833 = vunpack.c.l.b16 %v3761
        %v3834 = vunpack.c.h.b16 %v3761
        %v3835 = vunpack.c.l.b16 %v3762
        %v3836 = vunpack.c.h.b16 %v3762
        %v3837 = vunpack.c.l.b16 %v3763
        %v3838 = vunpack.c.h.b16 %v3763
        %v3839 = vunpack.c.l.b16 %v3764
        %v3840 = vunpack.c.h.b16 %v3764
        %v3841 = vunpack.c.l.b16 %v3765
        %v3842 = vunpack.c.h.b16 %v3765
        %v3843 = vunpack.c.l.b16 %v3766
        %v3844 = vunpack.c.h.b16 %v3766
        %v3845 = vunpack.c.l.b16 %v3767
        %v3846 = vunpack.c.h.b16 %v3767
        %v3847 = vunpack.c.l.b16 %v3768
        %v3848 = vunpack.c.h.b16 %v3768
        %v3849 = vunpack.c.l.b16 %v3769
        %v3850 = vunpack.c.h.b16 %v3769
        %v3851 = vunpack.c.l.b16 %v3770
        %v3852 = vunpack.c.h.b16 %v3770
        %v3853 = vunpack.c.l.b16 %v3771
        %v3854 = vunpack.c.h.b16 %v3771
        %v3855 = vunpack.c.l.b16 %v3772
        %v3856 = vunpack.c.h.b16 %v3772
        %v3857 = vunpack.c.l.b16 %v3773
        %v3858 = vunpack.c.h.b16 %v3773
        %v3859 = vunpack.c.l.b16 %v3774
        %v3860 = vunpack.c.h.b16 %v3774
        %v3861 = vunpack.c.l.b16 %v3775
        %v3862 = vunpack.c.h.b16 %v3775
        %v3863 = vunpack.c.l.b16 %v3776
        %v3864 = vunpack.c.h.b16 %v3776
        %v3865 = vunpack.c.l.b16 %v3777
        %v3866 = vunpack.c.h.b16 %v3777
        %v3867 = vunpack.c.l.b16 %v3778
        %v3868 = vunpack.c.h.b16 %v3778
        %v3869 = vunpack.c.l.b16 %v3779
        %v3870 = vunpack.c.h.b16 %v3779
        %v3871 = vunpack.c.l.b16 %v3780
        %v3872 = vunpack.c.h.b16 %v3780
        %v3873 = vunpack.c.l.b16 %v3781
        %v3874 = vunpack.c.h.b16 %v3781
        %v3875 = vunpack.c.l.b16 %v3782
        %v3876 = vunpack.c.h.b16 %v3782
        %v3877 = vunpack.c.l.b16 %v3783
        %v3878 = vunpack.c.h.b16 %v3783
        %v3879 = vunpack.c.l.b16 %v3784
        %v3880 = vunpack.c.h.b16 %v3784
        %v3881 = vunpack.c.l.b16 %v3785
        %v3882 = vunpack.c.h.b16 %v3785
        %v3883 = vunpack.c.l.b16 %v3786
        %v3884 = vunpack.c.h.b16 %v3786
        %v3885 = vunpack.c.l.b16 %v3787
        %v3886 = vunpack.c.h.b16 %v3787
        %v3887 = vunpack.c.l.b16 %v3788
        %v3888 = vunpack.c.h.b16 %v3788
        %v3889 = vunpack.c.l.b16 %v3789
        %v3890 = vunpack.c.h.b16 %v3789
        %v3891 = vunpack.c.l.b16 %v3790
        %v3892 = vunpack.c.h.b16 %v3790
        %v3893 = vpack.c.b16 %v3831, %v3829
        %v3894 = vpack.c.b16 %v3832, %v3830
        %v3895 = vpack.c.b16 %v3835, %v3833
        %v3896 = vpack.c.b16 %v3836, %v3834
        %v3897 = vpack.c.b16 %v3839, %v3837
        %v3898 = vpack.c.b16 %v3840, %v3838
        %v3899 = vpack.c.b16 %v3843, %v3841
        %v3900 = vpack.c.b16 %v3844, %v3842
        %v3901 = vpack.c.b16 %v3847, %v3845
        %v3902 = vpack.c.b16 %v3848, %v3846
        %v3903 = vpack.c.b16 %v3851, %v3849
        %v3904 = vpack.c.b16 %v3852, %v3850
        %v3905 = vpack.c.b16 %v3855, %v3853
        %v3906 = vpack.c.b16 %v3856, %v3854
        %v3907 = vpack.c.b16 %v3859, %v3857
        %v3908 = vpack.c.b16 %v3860, %v3858
        %v3909 = vpack.c.b16 %v3863, %v3861
        %v3910 = vpack.c.b16 %v3864, %v3862
        %v3911 = vpack.c.b16 %v3867, %v3865
        %v3912 = vpack.c.b16 %v3868, %v3866
        %v3913 = vpack.c.b16 %v3871, %v3869
        %v3914 = vpack.c.b16 %v3872, %v3870
        %v3915 = vpack.c.b16 %v3875, %v3873
        %v3916 = vpack.c.b16 %v3876, %v3874
        %v3917 = vpack.c.b16 %v3879, %v3877
        %v3918 = vpack.c.b16 %v3880, %v3878
        %v3919 = vpack.c.b16 %v3883, %v3881
        %v3920 = vpack.c.b16 %v3884, %v3882
        %v3921 = vpack.c.b16 %v3887, %v3885
        %v3922 = vpack.c.b16 %v3888, %v3886
        %v3923 = vpack.c.b16 %v3891, %v3889
        %v3924 = vpack.c.b16 %v3892, %v3890
        %3957 = vmatpush.bf16.msra.mxu0 %v3907
        %3958 = vmatpush.bf16.msra.mxu0 %v3905
        %3959 = vmatpush.bf16.msra.mxu0 %v3903
        %3960 = vmatpush.bf16.msra.mxu0 %v3901
        %3961 = vmatpush.bf16.msra.mxu0 %v3899
        %3962 = vmatpush.bf16.msra.mxu0 %v3897
        %3963 = vmatpush.bf16.msra.mxu0 %v3895
        %3964 = vmatpush.bf16.msra.mxu0 %v3893
        %3965 = vmatmul.bf16.gmra.mxu0 %v2731
        %v3966 = vpop.f32.mrf.mxu0
        %v3967 = vadd.f32 %v3793, %v3966
        %v3968 = vpop.f32.mrf.mxu0
        %v3969 = vadd.f32 %v3793, %v3968
        %3970 = vdwg.mxu0
        %3971 = vmatpush.bf16.msra.mxu0 %v3923
        %3972 = vmatpush.bf16.msra.mxu0 %v3921
        %3973 = vmatpush.bf16.msra.mxu0 %v3919
        %3974 = vmatpush.bf16.msra.mxu0 %v3917
        %3975 = vmatpush.bf16.msra.mxu0 %v3915
        %3976 = vmatpush.bf16.msra.mxu0 %v3913
        %3977 = vmatpush.bf16.msra.mxu0 %v3911
        %3978 = vmatpush.bf16.msra.mxu0 %v3909
        %3979 = vmatmul.bf16.gmra.mxu0 %v2732
        %v3980 = vpop.f32.mrf.mxu0
        %v3981 = vadd.f32 %v3967, %v3980
        %v3982 = vpop.f32.mrf.mxu0
        %v3983 = vadd.f32 %v3969, %v3982
        %3984 = vdwg.mxu0
        %3985 = vmatpush.bf16.msra.mxu0 %v3908
        %3986 = vmatpush.bf16.msra.mxu0 %v3906
        %3987 = vmatpush.bf16.msra.mxu0 %v3904
        %3988 = vmatpush.bf16.msra.mxu0 %v3902
        %3989 = vmatpush.bf16.msra.mxu0 %v3900
        %3990 = vmatpush.bf16.msra.mxu0 %v3898
        %3991 = vmatpush.bf16.msra.mxu0 %v3896
        %3992 = vmatpush.bf16.msra.mxu0 %v3894
        %3993 = vmatmul.bf16.gmra.mxu0 %v2731
        %v3994 = vpop.f32.mrf.mxu0
        %v3995 = vadd.f32 %v3794, %v3994
        %v3996 = vpop.f32.mrf.mxu0
        %v3997 = vadd.f32 %v3794, %v3996
        %3998 = vdwg.mxu0
        %3999 = vmatpush.bf16.msra.mxu0 %v3924
        %4000 = vmatpush.bf16.msra.mxu0 %v3922
        %4001 = vmatpush.bf16.msra.mxu0 %v3920
        %4002 = vmatpush.bf16.msra.mxu0 %v3918
        %4003 = vmatpush.bf16.msra.mxu0 %v3916
        %4004 = vmatpush.bf16.msra.mxu0 %v3914
        %4005 = vmatpush.bf16.msra.mxu0 %v3912
        %4006 = vmatpush.bf16.msra.mxu0 %v3910
        %4007 = vmatmul.bf16.gmra.mxu0 %v2732
        %v4008 = vpop.f32.mrf.mxu0
        %v4009 = vadd.f32 %v3995, %v4008
        %v4010 = vpop.f32.mrf.mxu0
        %v4011 = vadd.f32 %v3997, %v4010
        %4012 = vdwg.mxu0
        %4015 = vrot.lane.b32.xlu0 %v3243, 96
        %v4016 = vpop.permute.xlu0 %4015
        %4017 = vrot.lane.b32.xlu0 %v3245, 96
        %v4018 = vpop.permute.xlu0 %4017
        %4021 = vrot.lane.b32.xlu0 %v3243, 64
        %v4022 = vpop.permute.xlu0 %4021
        %4023 = vrot.lane.b32.xlu0 %v3245, 64
        %v4024 = vpop.permute.xlu0 %4023
        %4027 = vrot.lane.b32.xlu0 %v3243, 32
        %v4028 = vpop.permute.xlu0 %4027
        %4029 = vrot.lane.b32.xlu0 %v3245, 32
        %v4030 = vpop.permute.xlu0 %4029
        %4035 = vrot.lane.b32.xlu0 %v3244, 96
        %v4036 = vpop.permute.xlu0 %4035
        %4037 = vrot.lane.b32.xlu0 %v3246, 96
        %v4038 = vpop.permute.xlu0 %4037
        %4041 = vrot.lane.b32.xlu0 %v3244, 64
        %v4042 = vpop.permute.xlu0 %4041
        %4043 = vrot.lane.b32.xlu0 %v3246, 64
        %v4044 = vpop.permute.xlu0 %4043
        %4047 = vrot.lane.b32.xlu0 %v3244, 32
        %v4048 = vpop.permute.xlu0 %4047
        %4049 = vrot.lane.b32.xlu0 %v3246, 32
        %v4050 = vpop.permute.xlu0 %4049
        %4055 = vrot.lane.b32.xlu0 %v3755, 96
        %v4056 = vpop.permute.xlu0 %4055
        %4057 = vrot.lane.b32.xlu0 %v3757, 96
        %v4058 = vpop.permute.xlu0 %4057
        %4061 = vrot.lane.b32.xlu0 %v3755, 64
        %v4062 = vpop.permute.xlu0 %4061
        %4063 = vrot.lane.b32.xlu0 %v3757, 64
        %v4064 = vpop.permute.xlu0 %4063
        %4067 = vrot.lane.b32.xlu0 %v3755, 32
        %v4068 = vpop.permute.xlu0 %4067
        %4069 = vrot.lane.b32.xlu0 %v3757, 32
        %v4070 = vpop.permute.xlu0 %4069
        %4075 = vrot.lane.b32.xlu0 %v3756, 96
        %v4076 = vpop.permute.xlu0 %4075
        %4077 = vrot.lane.b32.xlu0 %v3758, 96
        %v4078 = vpop.permute.xlu0 %4077
        %4081 = vrot.lane.b32.xlu0 %v3756, 64
        %v4082 = vpop.permute.xlu0 %4081
        %4083 = vrot.lane.b32.xlu0 %v3758, 64
        %v4084 = vpop.permute.xlu0 %4083
        %4087 = vrot.lane.b32.xlu0 %v3756, 32
        %v4088 = vpop.permute.xlu0 %4087
        %4089 = vrot.lane.b32.xlu0 %v3758, 32
        %v4090 = vpop.permute.xlu0 %4089
        %4095 = vrot.lane.b32.xlu0 %v3981, 96
        %v4096 = vpop.permute.xlu0 %4095
        %4097 = vrot.lane.b32.xlu0 %v3983, 96
        %v4098 = vpop.permute.xlu0 %4097
        %4101 = vrot.lane.b32.xlu0 %v3981, 64
        %v4102 = vpop.permute.xlu0 %4101
        %4103 = vrot.lane.b32.xlu0 %v3983, 64
        %v4104 = vpop.permute.xlu0 %4103
        %4107 = vrot.lane.b32.xlu0 %v3981, 32
        %v4108 = vpop.permute.xlu0 %4107
        %4109 = vrot.lane.b32.xlu0 %v3983, 32
        %v4110 = vpop.permute.xlu0 %4109
        %4115 = vrot.lane.b32.xlu0 %v4009, 96
        %v4116 = vpop.permute.xlu0 %4115
        %4117 = vrot.lane.b32.xlu0 %v4011, 96
        %v4118 = vpop.permute.xlu0 %4117
        %4121 = vrot.lane.b32.xlu0 %v4009, 64
        %v4122 = vpop.permute.xlu0 %4121
        %4123 = vrot.lane.b32.xlu0 %v4011, 64
        %v4124 = vpop.permute.xlu0 %4123
        %4127 = vrot.lane.b32.xlu0 %v4009, 32
        %v4128 = vpop.permute.xlu0 %4127
        %4129 = vrot.lane.b32.xlu0 %v4011, 32
        %v4130 = vpop.permute.xlu0 %4129
        %v4133 = vpack.c.bf16 %v3243, %v3243
        %v4134 = vpack.c.bf16 %v3245, %v3245
        %v4135 = vpack.c.bf16 %v4016, %v4016
        %v4136 = vpack.c.bf16 %v4018, %v4018
        %v4137 = vpack.c.bf16 %v4022, %v4022
        %v4138 = vpack.c.bf16 %v4024, %v4024
        %v4139 = vpack.c.bf16 %v4028, %v4028
        %v4140 = vpack.c.bf16 %v4030, %v4030
        %v4141 = vpack.c.bf16 %v3244, %v3244
        %v4142 = vpack.c.bf16 %v3246, %v3246
        %v4143 = vpack.c.bf16 %v4036, %v4036
        %v4144 = vpack.c.bf16 %v4038, %v4038
        %v4145 = vpack.c.bf16 %v4042, %v4042
        %v4146 = vpack.c.bf16 %v4044, %v4044
        %v4147 = vpack.c.bf16 %v4048, %v4048
        %v4148 = vpack.c.bf16 %v4050, %v4050
        %v4149 = vpack.c.bf16 %v3755, %v3755
        %v4150 = vpack.c.bf16 %v3757, %v3757
        %v4151 = vpack.c.bf16 %v4056, %v4056
        %v4152 = vpack.c.bf16 %v4058, %v4058
        %v4153 = vpack.c.bf16 %v4062, %v4062
        %v4154 = vpack.c.bf16 %v4064, %v4064
        %v4155 = vpack.c.bf16 %v4068, %v4068
        %v4156 = vpack.c.bf16 %v4070, %v4070
        %v4157 = vpack.c.bf16 %v3756, %v3756
        %v4158 = vpack.c.bf16 %v3758, %v3758
        %v4159 = vpack.c.bf16 %v4076, %v4076
        %v4160 = vpack.c.bf16 %v4078, %v4078
        %v4161 = vpack.c.bf16 %v4082, %v4082
        %v4162 = vpack.c.bf16 %v4084, %v4084
        %v4163 = vpack.c.bf16 %v4088, %v4088
        %v4164 = vpack.c.bf16 %v4090, %v4090
        %vm4165 = vcmask 261120
        %v4167 = vsel %vm4165, %v4133, 0
        %v4170 = vsel %vm4165, %v4149, 0
        %4172 = vmatpush.bf16.xpose.msra.mxu0 0
        %4173 = vmatpush.bf16.xpose.msra.mxu0 0
        %4174 = vmatpush.bf16.xpose.msra.mxu0 0
        %4175 = vmatpush.bf16.xpose.msra.mxu0 0
        %4176 = vmatpush.bf16.xpose.msra.mxu0 0
        %4177 = vmatpush.bf16.xpose.msra.mxu0 0
        %4178 = vmatpush.bf16.xpose.msra.mxu0 0
        %4179 = vmatpush.bf16.xpose.msra.mxu0 %v4170
        %4180 = vmatmul.bf16.gmra.mxu0 %v4167
        %v4181 = vpop.f32.mrf.mxu0
        %v4182 = vadd.f32 0.0, %v4181
        %v4183 = vpop.f32.mrf.mxu0
        %4184 = vdwg.mxu0
        %v4186 = vsel %vm4165, %v4134, 0
        %v4189 = vsel %vm4165, %v4150, 0
        %4191 = vmatpush.bf16.xpose.msra.mxu0 0
        %4192 = vmatpush.bf16.xpose.msra.mxu0 0
        %4193 = vmatpush.bf16.xpose.msra.mxu0 0
        %4194 = vmatpush.bf16.xpose.msra.mxu0 0
        %4195 = vmatpush.bf16.xpose.msra.mxu0 0
        %4196 = vmatpush.bf16.xpose.msra.mxu0 0
        %4197 = vmatpush.bf16.xpose.msra.mxu0 0
        %4198 = vmatpush.bf16.xpose.msra.mxu0 %v4189
        %4199 = vmatmul.bf16.gmra.mxu0 %v4186
        %v4200 = vpop.f32.mrf.mxu0
        %v4201 = vadd.f32 0.0, %v4200
        %v4202 = vpop.f32.mrf.mxu0
        %4203 = vdwg.mxu0
        %v4205 = vsel %vm4165, %v4135, 0
        %v4208 = vsel %vm4165, %v4151, 0
        %4210 = vmatpush.bf16.xpose.msra.mxu0 0
        %4211 = vmatpush.bf16.xpose.msra.mxu0 0
        %4212 = vmatpush.bf16.xpose.msra.mxu0 0
        %4213 = vmatpush.bf16.xpose.msra.mxu0 0
        %4214 = vmatpush.bf16.xpose.msra.mxu0 0
        %4215 = vmatpush.bf16.xpose.msra.mxu0 0
        %4216 = vmatpush.bf16.xpose.msra.mxu0 0
        %4217 = vmatpush.bf16.xpose.msra.mxu0 %v4208
        %4218 = vmatmul.bf16.gmra.mxu0 %v4205
        %v4219 = vpop.f32.mrf.mxu0
        %v4220 = vadd.f32 0.0, %v4219
        %v4221 = vpop.f32.mrf.mxu0
        %4222 = vdwg.mxu0
        %v4224 = vsel %vm4165, %v4136, 0
        %v4227 = vsel %vm4165, %v4152, 0
        %4229 = vmatpush.bf16.xpose.msra.mxu0 0
        %4230 = vmatpush.bf16.xpose.msra.mxu0 0
        %4231 = vmatpush.bf16.xpose.msra.mxu0 0
        %4232 = vmatpush.bf16.xpose.msra.mxu0 0
        %4233 = vmatpush.bf16.xpose.msra.mxu0 0
        %4234 = vmatpush.bf16.xpose.msra.mxu0 0
        %4235 = vmatpush.bf16.xpose.msra.mxu0 0
        %4236 = vmatpush.bf16.xpose.msra.mxu0 %v4227
        %4237 = vmatmul.bf16.gmra.mxu0 %v4224
        %v4238 = vpop.f32.mrf.mxu0
        %v4239 = vadd.f32 0.0, %v4238
        %v4240 = vpop.f32.mrf.mxu0
        %4241 = vdwg.mxu0
        %v4243 = vsel %vm4165, %v4137, 0
        %v4246 = vsel %vm4165, %v4153, 0
        %4248 = vmatpush.bf16.xpose.msra.mxu0 0
        %4249 = vmatpush.bf16.xpose.msra.mxu0 0
        %4250 = vmatpush.bf16.xpose.msra.mxu0 0
        %4251 = vmatpush.bf16.xpose.msra.mxu0 0
        %4252 = vmatpush.bf16.xpose.msra.mxu0 0
        %4253 = vmatpush.bf16.xpose.msra.mxu0 0
        %4254 = vmatpush.bf16.xpose.msra.mxu0 0
        %4255 = vmatpush.bf16.xpose.msra.mxu0 %v4246
        %4256 = vmatmul.bf16.gmra.mxu0 %v4243
        %v4257 = vpop.f32.mrf.mxu0
        %v4258 = vadd.f32 0.0, %v4257
        %v4259 = vpop.f32.mrf.mxu0
        %4260 = vdwg.mxu0
        %v4262 = vsel %vm4165, %v4138, 0
        %v4265 = vsel %vm4165, %v4154, 0
        %4267 = vmatpush.bf16.xpose.msra.mxu0 0
        %4268 = vmatpush.bf16.xpose.msra.mxu0 0
        %4269 = vmatpush.bf16.xpose.msra.mxu0 0
        %4270 = vmatpush.bf16.xpose.msra.mxu0 0
        %4271 = vmatpush.bf16.xpose.msra.mxu0 0
        %4272 = vmatpush.bf16.xpose.msra.mxu0 0
        %4273 = vmatpush.bf16.xpose.msra.mxu0 0
        %4274 = vmatpush.bf16.xpose.msra.mxu0 %v4265
        %4275 = vmatmul.bf16.gmra.mxu0 %v4262
        %v4276 = vpop.f32.mrf.mxu0
        %v4277 = vadd.f32 0.0, %v4276
        %v4278 = vpop.f32.mrf.mxu0
        %4279 = vdwg.mxu0
        %v4281 = vsel %vm4165, %v4139, 0
        %v4284 = vsel %vm4165, %v4155, 0
        %4286 = vmatpush.bf16.xpose.msra.mxu0 0
        %4287 = vmatpush.bf16.xpose.msra.mxu0 0
        %4288 = vmatpush.bf16.xpose.msra.mxu0 0
        %4289 = vmatpush.bf16.xpose.msra.mxu0 0
        %4290 = vmatpush.bf16.xpose.msra.mxu0 0
        %4291 = vmatpush.bf16.xpose.msra.mxu0 0
        %4292 = vmatpush.bf16.xpose.msra.mxu0 0
        %4293 = vmatpush.bf16.xpose.msra.mxu0 %v4284
        %4294 = vmatmul.bf16.gmra.mxu0 %v4281
        %v4295 = vpop.f32.mrf.mxu0
        %v4296 = vadd.f32 0.0, %v4295
        %v4297 = vpop.f32.mrf.mxu0
        %4298 = vdwg.mxu0
        %v4300 = vsel %vm4165, %v4140, 0
        %v4303 = vsel %vm4165, %v4156, 0
        %4305 = vmatpush.bf16.xpose.msra.mxu0 0
        %4306 = vmatpush.bf16.xpose.msra.mxu0 0
        %4307 = vmatpush.bf16.xpose.msra.mxu0 0
        %4308 = vmatpush.bf16.xpose.msra.mxu0 0
        %4309 = vmatpush.bf16.xpose.msra.mxu0 0
        %4310 = vmatpush.bf16.xpose.msra.mxu0 0
        %4311 = vmatpush.bf16.xpose.msra.mxu0 0
        %4312 = vmatpush.bf16.xpose.msra.mxu0 %v4303
        %4313 = vmatmul.bf16.gmra.mxu0 %v4300
        %v4314 = vpop.f32.mrf.mxu0
        %v4315 = vadd.f32 0.0, %v4314
        %v4316 = vpop.f32.mrf.mxu0
        %4317 = vdwg.mxu0
        %v4319 = vsel %vm4165, %v4141, 0
        %v4322 = vsel %vm4165, %v4157, 0
        %4324 = vmatpush.bf16.xpose.msra.mxu0 0
        %4325 = vmatpush.bf16.xpose.msra.mxu0 0
        %4326 = vmatpush.bf16.xpose.msra.mxu0 0
        %4327 = vmatpush.bf16.xpose.msra.mxu0 0
        %4328 = vmatpush.bf16.xpose.msra.mxu0 0
        %4329 = vmatpush.bf16.xpose.msra.mxu0 0
        %4330 = vmatpush.bf16.xpose.msra.mxu0 0
        %4331 = vmatpush.bf16.xpose.msra.mxu0 %v4322
        %4332 = vmatmul.bf16.gmra.mxu0 %v4319
        %v4333 = vpop.f32.mrf.mxu0
        %v4334 = vadd.f32 0.0, %v4333
        %v4335 = vpop.f32.mrf.mxu0
        %4336 = vdwg.mxu0
        %v4338 = vsel %vm4165, %v4142, 0
        %v4341 = vsel %vm4165, %v4158, 0
        %4343 = vmatpush.bf16.xpose.msra.mxu0 0
        %4344 = vmatpush.bf16.xpose.msra.mxu0 0
        %4345 = vmatpush.bf16.xpose.msra.mxu0 0
        %4346 = vmatpush.bf16.xpose.msra.mxu0 0
        %4347 = vmatpush.bf16.xpose.msra.mxu0 0
        %4348 = vmatpush.bf16.xpose.msra.mxu0 0
        %4349 = vmatpush.bf16.xpose.msra.mxu0 0
        %4350 = vmatpush.bf16.xpose.msra.mxu0 %v4341
        %4351 = vmatmul.bf16.gmra.mxu0 %v4338
        %v4352 = vpop.f32.mrf.mxu0
        %v4353 = vadd.f32 0.0, %v4352
        %v4354 = vpop.f32.mrf.mxu0
        %4355 = vdwg.mxu0
        %v4357 = vsel %vm4165, %v4143, 0
        %v4360 = vsel %vm4165, %v4159, 0
        %4362 = vmatpush.bf16.xpose.msra.mxu0 0
        %4363 = vmatpush.bf16.xpose.msra.mxu0 0
        %4364 = vmatpush.bf16.xpose.msra.mxu0 0
        %4365 = vmatpush.bf16.xpose.msra.mxu0 0
        %4366 = vmatpush.bf16.xpose.msra.mxu0 0
        %4367 = vmatpush.bf16.xpose.msra.mxu0 0
        %4368 = vmatpush.bf16.xpose.msra.mxu0 0
        %4369 = vmatpush.bf16.xpose.msra.mxu0 %v4360
        %4370 = vmatmul.bf16.gmra.mxu0 %v4357
        %v4371 = vpop.f32.mrf.mxu0
        %v4372 = vadd.f32 0.0, %v4371
        %v4373 = vpop.f32.mrf.mxu0
        %4374 = vdwg.mxu0
        %v4376 = vsel %vm4165, %v4144, 0
        %v4379 = vsel %vm4165, %v4160, 0
        %4381 = vmatpush.bf16.xpose.msra.mxu0 0
        %4382 = vmatpush.bf16.xpose.msra.mxu0 0
        %4383 = vmatpush.bf16.xpose.msra.mxu0 0
        %4384 = vmatpush.bf16.xpose.msra.mxu0 0
        %4385 = vmatpush.bf16.xpose.msra.mxu0 0
        %4386 = vmatpush.bf16.xpose.msra.mxu0 0
        %4387 = vmatpush.bf16.xpose.msra.mxu0 0
        %4388 = vmatpush.bf16.xpose.msra.mxu0 %v4379
        %4389 = vmatmul.bf16.gmra.mxu0 %v4376
        %v4390 = vpop.f32.mrf.mxu0
        %v4391 = vadd.f32 0.0, %v4390
        %v4392 = vpop.f32.mrf.mxu0
        %4393 = vdwg.mxu0
        %v4395 = vsel %vm4165, %v4145, 0
        %v4398 = vsel %vm4165, %v4161, 0
        %4400 = vmatpush.bf16.xpose.msra.mxu0 0
        %4401 = vmatpush.bf16.xpose.msra.mxu0 0
        %4402 = vmatpush.bf16.xpose.msra.mxu0 0
        %4403 = vmatpush.bf16.xpose.msra.mxu0 0
        %4404 = vmatpush.bf16.xpose.msra.mxu0 0
        %4405 = vmatpush.bf16.xpose.msra.mxu0 0
        %4406 = vmatpush.bf16.xpose.msra.mxu0 0
        %4407 = vmatpush.bf16.xpose.msra.mxu0 %v4398
        %4408 = vmatmul.bf16.gmra.mxu0 %v4395
        %v4409 = vpop.f32.mrf.mxu0
        %v4410 = vadd.f32 0.0, %v4409
        %v4411 = vpop.f32.mrf.mxu0
        %4412 = vdwg.mxu0
        %v4414 = vsel %vm4165, %v4146, 0
        %v4417 = vsel %vm4165, %v4162, 0
        %4419 = vmatpush.bf16.xpose.msra.mxu0 0
        %4420 = vmatpush.bf16.xpose.msra.mxu0 0
        %4421 = vmatpush.bf16.xpose.msra.mxu0 0
        %4422 = vmatpush.bf16.xpose.msra.mxu0 0
        %4423 = vmatpush.bf16.xpose.msra.mxu0 0
        %4424 = vmatpush.bf16.xpose.msra.mxu0 0
        %4425 = vmatpush.bf16.xpose.msra.mxu0 0
        %4426 = vmatpush.bf16.xpose.msra.mxu0 %v4417
        %4427 = vmatmul.bf16.gmra.mxu0 %v4414
        %v4428 = vpop.f32.mrf.mxu0
        %v4429 = vadd.f32 0.0, %v4428
        %v4430 = vpop.f32.mrf.mxu0
        %4431 = vdwg.mxu0
        %v4433 = vsel %vm4165, %v4147, 0
        %v4436 = vsel %vm4165, %v4163, 0
        %4438 = vmatpush.bf16.xpose.msra.mxu0 0
        %4439 = vmatpush.bf16.xpose.msra.mxu0 0
        %4440 = vmatpush.bf16.xpose.msra.mxu0 0
        %4441 = vmatpush.bf16.xpose.msra.mxu0 0
        %4442 = vmatpush.bf16.xpose.msra.mxu0 0
        %4443 = vmatpush.bf16.xpose.msra.mxu0 0
        %4444 = vmatpush.bf16.xpose.msra.mxu0 0
        %4445 = vmatpush.bf16.xpose.msra.mxu0 %v4436
        %4446 = vmatmul.bf16.gmra.mxu0 %v4433
        %v4447 = vpop.f32.mrf.mxu0
        %v4448 = vadd.f32 0.0, %v4447
        %v4449 = vpop.f32.mrf.mxu0
        %4450 = vdwg.mxu0
        %v4452 = vsel %vm4165, %v4148, 0
        %v4455 = vsel %vm4165, %v4164, 0
        %4457 = vmatpush.bf16.xpose.msra.mxu0 0
        %4458 = vmatpush.bf16.xpose.msra.mxu0 0
        %4459 = vmatpush.bf16.xpose.msra.mxu0 0
        %4460 = vmatpush.bf16.xpose.msra.mxu0 0
        %4461 = vmatpush.bf16.xpose.msra.mxu0 0
        %4462 = vmatpush.bf16.xpose.msra.mxu0 0
        %4463 = vmatpush.bf16.xpose.msra.mxu0 0
        %4464 = vmatpush.bf16.xpose.msra.mxu0 %v4455
        %4465 = vmatmul.bf16.gmra.mxu0 %v4452
        %v4466 = vpop.f32.mrf.mxu0
        %v4467 = vadd.f32 0.0, %v4466
        %v4468 = vpop.f32.mrf.mxu0
        %4469 = vdwg.mxu0
        %v4470 = vmul.f32 %v4182, 0.17677669
        %v4471 = vmul.f32 %v4201, 0.17677669
        %v4472 = vmul.f32 %v4220, 0.17677669
        %v4473 = vmul.f32 %v4239, 0.17677669
        %v4474 = vmul.f32 %v4258, 0.17677669
        %v4475 = vmul.f32 %v4277, 0.17677669
        %v4476 = vmul.f32 %v4296, 0.17677669
        %v4477 = vmul.f32 %v4315, 0.17677669
        %v4478 = vmul.f32 %v4334, 0.17677669
        %v4479 = vmul.f32 %v4353, 0.17677669
        %v4480 = vmul.f32 %v4372, 0.17677669
        %v4481 = vmul.f32 %v4391, 0.17677669
        %v4482 = vmul.f32 %v4410, 0.17677669
        %v4483 = vmul.f32 %v4429, 0.17677669
        %v4484 = vmul.f32 %v4448, 0.17677669
        %v4485 = vmul.f32 %v4467, 0.17677669
        %vm4486 = vcmask 64512
        %v4487 = vsel %vm4486, %v4470, -inf
        %4488 = vmax.xlane.f32.xlu0 %v4487
        %v4489 = vpop.xlane.xlu0 %4488
        %v4490 = vsel %vm4486, %v4471, -inf
        %4491 = vmax.xlane.f32.xlu0 %v4490
        %v4492 = vpop.xlane.xlu0 %4491
        %v4493 = vsel %vm4486, %v4472, -inf
        %4494 = vmax.xlane.f32.xlu0 %v4493
        %v4495 = vpop.xlane.xlu0 %4494
        %v4496 = vsel %vm4486, %v4473, -inf
        %4497 = vmax.xlane.f32.xlu0 %v4496
        %v4498 = vpop.xlane.xlu0 %4497
        %v4499 = vsel %vm4486, %v4474, -inf
        %4500 = vmax.xlane.f32.xlu0 %v4499
        %v4501 = vpop.xlane.xlu0 %4500
        %v4502 = vsel %vm4486, %v4475, -inf
        %4503 = vmax.xlane.f32.xlu0 %v4502
        %v4504 = vpop.xlane.xlu0 %4503
        %v4505 = vsel %vm4486, %v4476, -inf
        %4506 = vmax.xlane.f32.xlu0 %v4505
        %v4507 = vpop.xlane.xlu0 %4506
        %v4508 = vsel %vm4486, %v4477, -inf
        %4509 = vmax.xlane.f32.xlu0 %v4508
        %v4510 = vpop.xlane.xlu0 %4509
        %v4511 = vsel %vm4486, %v4478, -inf
        %4512 = vmax.xlane.f32.xlu0 %v4511
        %v4513 = vpop.xlane.xlu0 %4512
        %v4514 = vsel %vm4486, %v4479, -inf
        %4515 = vmax.xlane.f32.xlu0 %v4514
        %v4516 = vpop.xlane.xlu0 %4515
        %v4517 = vsel %vm4486, %v4480, -inf
        %4518 = vmax.xlane.f32.xlu0 %v4517
        %v4519 = vpop.xlane.xlu0 %4518
        %v4520 = vsel %vm4486, %v4481, -inf
        %4521 = vmax.xlane.f32.xlu0 %v4520
        %v4522 = vpop.xlane.xlu0 %4521
        %v4523 = vsel %vm4486, %v4482, -inf
        %4524 = vmax.xlane.f32.xlu0 %v4523
        %v4525 = vpop.xlane.xlu0 %4524
        %v4526 = vsel %vm4486, %v4483, -inf
        %4527 = vmax.xlane.f32.xlu0 %v4526
        %v4528 = vpop.xlane.xlu0 %4527
        %v4529 = vsel %vm4486, %v4484, -inf
        %4530 = vmax.xlane.f32.xlu0 %v4529
        %v4531 = vpop.xlane.xlu0 %4530
        %v4532 = vsel %vm4486, %v4485, -inf
        %4533 = vmax.xlane.f32.xlu0 %v4532
        %v4534 = vpop.xlane.xlu0 %4533
        %v4535 = vsub.f32 %v4470, %v4489
        %v4536 = vsub.f32 %v4471, %v4492
        %v4537 = vsub.f32 %v4472, %v4495
        %v4538 = vsub.f32 %v4473, %v4498
        %v4539 = vsub.f32 %v4474, %v4501
        %v4540 = vsub.f32 %v4475, %v4504
        %v4541 = vsub.f32 %v4476, %v4507
        %v4542 = vsub.f32 %v4477, %v4510
        %v4543 = vsub.f32 %v4478, %v4513
        %v4544 = vsub.f32 %v4479, %v4516
        %v4545 = vsub.f32 %v4480, %v4519
        %v4546 = vsub.f32 %v4481, %v4522
        %v4547 = vsub.f32 %v4482, %v4525
        %v4548 = vsub.f32 %v4483, %v4528
        %v4549 = vsub.f32 %v4484, %v4531
        %v4550 = vsub.f32 %v4485, %v4534
        %v4551 = vmul.f32 %v4535, 1.442695
        %v4552 = vpow.pop %v4551
        %v4553 = vmul.f32 %v4536, 1.442695
        %v4554 = vpow.pop %v4553
        %v4555 = vmul.f32 %v4537, 1.442695
        %v4556 = vpow.pop %v4555
        %v4557 = vmul.f32 %v4538, 1.442695
        %v4558 = vpow.pop %v4557
        %v4559 = vmul.f32 %v4539, 1.442695
        %v4560 = vpow.pop %v4559
        %v4561 = vmul.f32 %v4540, 1.442695
        %v4562 = vpow.pop %v4561
        %v4563 = vmul.f32 %v4541, 1.442695
        %v4564 = vpow.pop %v4563
        %v4565 = vmul.f32 %v4542, 1.442695
        %v4566 = vpow.pop %v4565
        %v4567 = vmul.f32 %v4543, 1.442695
        %v4568 = vpow.pop %v4567
        %v4569 = vmul.f32 %v4544, 1.442695
        %v4570 = vpow.pop %v4569
        %v4571 = vmul.f32 %v4545, 1.442695
        %v4572 = vpow.pop %v4571
        %v4573 = vmul.f32 %v4546, 1.442695
        %v4574 = vpow.pop %v4573
        %v4575 = vmul.f32 %v4547, 1.442695
        %v4576 = vpow.pop %v4575
        %v4577 = vmul.f32 %v4548, 1.442695
        %v4578 = vpow.pop %v4577
        %v4579 = vmul.f32 %v4549, 1.442695
        %v4580 = vpow.pop %v4579
        %v4581 = vmul.f32 %v4550, 1.442695
        %v4582 = vpow.pop %v4581
        %v4583 = vsel %vm4486, %v4552, 0.0
        %4584 = vadd.xlane.f32.xlu0 %v4583
        %v4585 = vpop.xlane.xlu0 %4584
        %v4586 = vsel %vm4486, %v4554, 0.0
        %4587 = vadd.xlane.f32.xlu0 %v4586
        %v4588 = vpop.xlane.xlu0 %4587
        %v4589 = vsel %vm4486, %v4556, 0.0
        %4590 = vadd.xlane.f32.xlu0 %v4589
        %v4591 = vpop.xlane.xlu0 %4590
        %v4592 = vsel %vm4486, %v4558, 0.0
        %4593 = vadd.xlane.f32.xlu0 %v4592
        %v4594 = vpop.xlane.xlu0 %4593
        %v4595 = vsel %vm4486, %v4560, 0.0
        %4596 = vadd.xlane.f32.xlu0 %v4595
        %v4597 = vpop.xlane.xlu0 %4596
        %v4598 = vsel %vm4486, %v4562, 0.0
        %4599 = vadd.xlane.f32.xlu0 %v4598
        %v4600 = vpop.xlane.xlu0 %4599
        %v4601 = vsel %vm4486, %v4564, 0.0
        %4602 = vadd.xlane.f32.xlu0 %v4601
        %v4603 = vpop.xlane.xlu0 %4602
        %v4604 = vsel %vm4486, %v4566, 0.0
        %4605 = vadd.xlane.f32.xlu0 %v4604
        %v4606 = vpop.xlane.xlu0 %4605
        %v4607 = vsel %vm4486, %v4568, 0.0
        %4608 = vadd.xlane.f32.xlu0 %v4607
        %v4609 = vpop.xlane.xlu0 %4608
        %v4610 = vsel %vm4486, %v4570, 0.0
        %4611 = vadd.xlane.f32.xlu0 %v4610
        %v4612 = vpop.xlane.xlu0 %4611
        %v4613 = vsel %vm4486, %v4572, 0.0
        %4614 = vadd.xlane.f32.xlu0 %v4613
        %v4615 = vpop.xlane.xlu0 %4614
        %v4616 = vsel %vm4486, %v4574, 0.0
        %4617 = vadd.xlane.f32.xlu0 %v4616
        %v4618 = vpop.xlane.xlu0 %4617
        %v4619 = vsel %vm4486, %v4576, 0.0
        %4620 = vadd.xlane.f32.xlu0 %v4619
        %v4621 = vpop.xlane.xlu0 %4620
        %v4622 = vsel %vm4486, %v4578, 0.0
        %4623 = vadd.xlane.f32.xlu0 %v4622
        %v4624 = vpop.xlane.xlu0 %4623
        %v4625 = vsel %vm4486, %v4580, 0.0
        %4626 = vadd.xlane.f32.xlu0 %v4625
        %v4627 = vpop.xlane.xlu0 %4626
        %v4628 = vsel %vm4486, %v4582, 0.0
        %4629 = vadd.xlane.f32.xlu0 %v4628
        %v4630 = vpop.xlane.xlu0 %4629
        %v4631 = vpack.c.bf16 %v4552, %v4552
        %v4632 = vpack.c.bf16 %v4554, %v4554
        %v4633 = vpack.c.bf16 %v4556, %v4556
        %v4634 = vpack.c.bf16 %v4558, %v4558
        %v4635 = vpack.c.bf16 %v4560, %v4560
        %v4636 = vpack.c.bf16 %v4562, %v4562
        %v4637 = vpack.c.bf16 %v4564, %v4564
        %v4638 = vpack.c.bf16 %v4566, %v4566
        %v4639 = vpack.c.bf16 %v4568, %v4568
        %v4640 = vpack.c.bf16 %v4570, %v4570
        %v4641 = vpack.c.bf16 %v4572, %v4572
        %v4642 = vpack.c.bf16 %v4574, %v4574
        %v4643 = vpack.c.bf16 %v4576, %v4576
        %v4644 = vpack.c.bf16 %v4578, %v4578
        %v4645 = vpack.c.bf16 %v4580, %v4580
        %v4646 = vpack.c.bf16 %v4582, %v4582
        %v4647 = vpack.c.bf16 %v3981, %v3981
        %v4648 = vpack.c.bf16 %v3983, %v3983
        %v4649 = vpack.c.bf16 %v4096, %v4096
        %v4650 = vpack.c.bf16 %v4098, %v4098
        %v4651 = vpack.c.bf16 %v4102, %v4102
        %v4652 = vpack.c.bf16 %v4104, %v4104
        %v4653 = vpack.c.bf16 %v4108, %v4108
        %v4654 = vpack.c.bf16 %v4110, %v4110
        %v4655 = vpack.c.bf16 %v4009, %v4009
        %v4656 = vpack.c.bf16 %v4011, %v4011
        %v4657 = vpack.c.bf16 %v4116, %v4116
        %v4658 = vpack.c.bf16 %v4118, %v4118
        %v4659 = vpack.c.bf16 %v4122, %v4122
        %v4660 = vpack.c.bf16 %v4124, %v4124
        %v4661 = vpack.c.bf16 %v4128, %v4128
        %v4662 = vpack.c.bf16 %v4130, %v4130
        %v4664 = vsel %vm4486, %v4631, 0
        %vm4666 = vcmask 1043456
        %v4668 = vsel %vm4666, %v4647, 0
        %4670 = vmatpush.bf16.msra.mxu0 0
        %4671 = vmatpush.bf16.msra.mxu0 0
        %4672 = vmatpush.bf16.msra.mxu0 0
        %4673 = vmatpush.bf16.msra.mxu0 0
        %4674 = vmatpush.bf16.msra.mxu0 0
        %4675 = vmatpush.bf16.msra.mxu0 0
        %4676 = vmatpush.bf16.msra.mxu0 0
        %4677 = vmatpush.bf16.msra.mxu0 %v4668
        %4678 = vmatmul.bf16.gmra.mxu0 %v4664
        %v4679 = vpop.f32.mrf.mxu0
        %v4680 = vadd.f32 0.0, %v4679
        %v4681 = vpop.f32.mrf.mxu0
        %4682 = vdwg.mxu0
        %v4684 = vsel %vm4486, %v4632, 0
        %v4687 = vsel %vm4666, %v4648, 0
        %4689 = vmatpush.bf16.msra.mxu0 0
        %4690 = vmatpush.bf16.msra.mxu0 0
        %4691 = vmatpush.bf16.msra.mxu0 0
        %4692 = vmatpush.bf16.msra.mxu0 0
        %4693 = vmatpush.bf16.msra.mxu0 0
        %4694 = vmatpush.bf16.msra.mxu0 0
        %4695 = vmatpush.bf16.msra.mxu0 0
        %4696 = vmatpush.bf16.msra.mxu0 %v4687
        %4697 = vmatmul.bf16.gmra.mxu0 %v4684
        %v4698 = vpop.f32.mrf.mxu0
        %v4699 = vadd.f32 0.0, %v4698
        %v4700 = vpop.f32.mrf.mxu0
        %4701 = vdwg.mxu0
        %v4703 = vsel %vm4486, %v4633, 0
        %v4706 = vsel %vm4666, %v4649, 0
        %4708 = vmatpush.bf16.msra.mxu0 0
        %4709 = vmatpush.bf16.msra.mxu0 0
        %4710 = vmatpush.bf16.msra.mxu0 0
        %4711 = vmatpush.bf16.msra.mxu0 0
        %4712 = vmatpush.bf16.msra.mxu0 0
        %4713 = vmatpush.bf16.msra.mxu0 0
        %4714 = vmatpush.bf16.msra.mxu0 0
        %4715 = vmatpush.bf16.msra.mxu0 %v4706
        %4716 = vmatmul.bf16.gmra.mxu0 %v4703
        %v4717 = vpop.f32.mrf.mxu0
        %v4718 = vadd.f32 0.0, %v4717
        %v4719 = vpop.f32.mrf.mxu0
        %4720 = vdwg.mxu0
        %v4722 = vsel %vm4486, %v4634, 0
        %v4725 = vsel %vm4666, %v4650, 0
        %4727 = vmatpush.bf16.msra.mxu0 0
        %4728 = vmatpush.bf16.msra.mxu0 0
        %4729 = vmatpush.bf16.msra.mxu0 0
        %4730 = vmatpush.bf16.msra.mxu0 0
        %4731 = vmatpush.bf16.msra.mxu0 0
        %4732 = vmatpush.bf16.msra.mxu0 0
        %4733 = vmatpush.bf16.msra.mxu0 0
        %4734 = vmatpush.bf16.msra.mxu0 %v4725
        %4735 = vmatmul.bf16.gmra.mxu0 %v4722
        %v4736 = vpop.f32.mrf.mxu0
        %v4737 = vadd.f32 0.0, %v4736
        %v4738 = vpop.f32.mrf.mxu0
        %4739 = vdwg.mxu0
        %v4741 = vsel %vm4486, %v4635, 0
        %v4744 = vsel %vm4666, %v4651, 0
        %4746 = vmatpush.bf16.msra.mxu0 0
        %4747 = vmatpush.bf16.msra.mxu0 0
        %4748 = vmatpush.bf16.msra.mxu0 0
        %4749 = vmatpush.bf16.msra.mxu0 0
        %4750 = vmatpush.bf16.msra.mxu0 0
        %4751 = vmatpush.bf16.msra.mxu0 0
        %4752 = vmatpush.bf16.msra.mxu0 0
        %4753 = vmatpush.bf16.msra.mxu0 %v4744
        %4754 = vmatmul.bf16.gmra.mxu0 %v4741
        %v4755 = vpop.f32.mrf.mxu0
        %v4756 = vadd.f32 0.0, %v4755
        %v4757 = vpop.f32.mrf.mxu0
        %4758 = vdwg.mxu0
        %v4760 = vsel %vm4486, %v4636, 0
        %v4763 = vsel %vm4666, %v4652, 0
        %4765 = vmatpush.bf16.msra.mxu0 0
        %4766 = vmatpush.bf16.msra.mxu0 0
        %4767 = vmatpush.bf16.msra.mxu0 0
        %4768 = vmatpush.bf16.msra.mxu0 0
        %4769 = vmatpush.bf16.msra.mxu0 0
        %4770 = vmatpush.bf16.msra.mxu0 0
        %4771 = vmatpush.bf16.msra.mxu0 0
        %4772 = vmatpush.bf16.msra.mxu0 %v4763
        %4773 = vmatmul.bf16.gmra.mxu0 %v4760
        %v4774 = vpop.f32.mrf.mxu0
        %v4775 = vadd.f32 0.0, %v4774
        %v4776 = vpop.f32.mrf.mxu0
        %4777 = vdwg.mxu0
        %v4779 = vsel %vm4486, %v4637, 0
        %v4782 = vsel %vm4666, %v4653, 0
        %4784 = vmatpush.bf16.msra.mxu0 0
        %4785 = vmatpush.bf16.msra.mxu0 0
        %4786 = vmatpush.bf16.msra.mxu0 0
        %4787 = vmatpush.bf16.msra.mxu0 0
        %4788 = vmatpush.bf16.msra.mxu0 0
        %4789 = vmatpush.bf16.msra.mxu0 0
        %4790 = vmatpush.bf16.msra.mxu0 0
        %4791 = vmatpush.bf16.msra.mxu0 %v4782
        %4792 = vmatmul.bf16.gmra.mxu0 %v4779
        %v4793 = vpop.f32.mrf.mxu0
        %v4794 = vadd.f32 0.0, %v4793
        %v4795 = vpop.f32.mrf.mxu0
        %4796 = vdwg.mxu0
        %v4798 = vsel %vm4486, %v4638, 0
        %v4801 = vsel %vm4666, %v4654, 0
        %4803 = vmatpush.bf16.msra.mxu0 0
        %4804 = vmatpush.bf16.msra.mxu0 0
        %4805 = vmatpush.bf16.msra.mxu0 0
        %4806 = vmatpush.bf16.msra.mxu0 0
        %4807 = vmatpush.bf16.msra.mxu0 0
        %4808 = vmatpush.bf16.msra.mxu0 0
        %4809 = vmatpush.bf16.msra.mxu0 0
        %4810 = vmatpush.bf16.msra.mxu0 %v4801
        %4811 = vmatmul.bf16.gmra.mxu0 %v4798
        %v4812 = vpop.f32.mrf.mxu0
        %v4813 = vadd.f32 0.0, %v4812
        %v4814 = vpop.f32.mrf.mxu0
        %4815 = vdwg.mxu0
        %v4817 = vsel %vm4486, %v4639, 0
        %v4820 = vsel %vm4666, %v4655, 0
        %4822 = vmatpush.bf16.msra.mxu0 0
        %4823 = vmatpush.bf16.msra.mxu0 0
        %4824 = vmatpush.bf16.msra.mxu0 0
        %4825 = vmatpush.bf16.msra.mxu0 0
        %4826 = vmatpush.bf16.msra.mxu0 0
        %4827 = vmatpush.bf16.msra.mxu0 0
        %4828 = vmatpush.bf16.msra.mxu0 0
        %4829 = vmatpush.bf16.msra.mxu0 %v4820
        %4830 = vmatmul.bf16.gmra.mxu0 %v4817
        %v4831 = vpop.f32.mrf.mxu0
        %v4832 = vadd.f32 0.0, %v4831
        %v4833 = vpop.f32.mrf.mxu0
        %4834 = vdwg.mxu0
        %v4836 = vsel %vm4486, %v4640, 0
        %v4839 = vsel %vm4666, %v4656, 0
        %4841 = vmatpush.bf16.msra.mxu0 0
        %4842 = vmatpush.bf16.msra.mxu0 0
        %4843 = vmatpush.bf16.msra.mxu0 0
        %4844 = vmatpush.bf16.msra.mxu0 0
        %4845 = vmatpush.bf16.msra.mxu0 0
        %4846 = vmatpush.bf16.msra.mxu0 0
        %4847 = vmatpush.bf16.msra.mxu0 0
        %4848 = vmatpush.bf16.msra.mxu0 %v4839
        %4849 = vmatmul.bf16.gmra.mxu0 %v4836
        %v4850 = vpop.f32.mrf.mxu0
        %v4851 = vadd.f32 0.0, %v4850
        %v4852 = vpop.f32.mrf.mxu0
        %4853 = vdwg.mxu0
        %v4855 = vsel %vm4486, %v4641, 0
        %v4858 = vsel %vm4666, %v4657, 0
        %4860 = vmatpush.bf16.msra.mxu0 0
        %4861 = vmatpush.bf16.msra.mxu0 0
        %4862 = vmatpush.bf16.msra.mxu0 0
        %4863 = vmatpush.bf16.msra.mxu0 0
        %4864 = vmatpush.bf16.msra.mxu0 0
        %4865 = vmatpush.bf16.msra.mxu0 0
        %4866 = vmatpush.bf16.msra.mxu0 0
        %4867 = vmatpush.bf16.msra.mxu0 %v4858
        %4868 = vmatmul.bf16.gmra.mxu0 %v4855
        %v4869 = vpop.f32.mrf.mxu0
        %v4870 = vadd.f32 0.0, %v4869
        %v4871 = vpop.f32.mrf.mxu0
        %4872 = vdwg.mxu0
        %v4874 = vsel %vm4486, %v4642, 0
        %v4877 = vsel %vm4666, %v4658, 0
        %4879 = vmatpush.bf16.msra.mxu0 0
        %4880 = vmatpush.bf16.msra.mxu0 0
        %4881 = vmatpush.bf16.msra.mxu0 0
        %4882 = vmatpush.bf16.msra.mxu0 0
        %4883 = vmatpush.bf16.msra.mxu0 0
        %4884 = vmatpush.bf16.msra.mxu0 0
        %4885 = vmatpush.bf16.msra.mxu0 0
        %4886 = vmatpush.bf16.msra.mxu0 %v4877
        %4887 = vmatmul.bf16.gmra.mxu0 %v4874
        %v4888 = vpop.f32.mrf.mxu0
        %v4889 = vadd.f32 0.0, %v4888
        %v4890 = vpop.f32.mrf.mxu0
        %4891 = vdwg.mxu0
        %v4893 = vsel %vm4486, %v4643, 0
        %v4896 = vsel %vm4666, %v4659, 0
        %4898 = vmatpush.bf16.msra.mxu0 0
        %4899 = vmatpush.bf16.msra.mxu0 0
        %4900 = vmatpush.bf16.msra.mxu0 0
        %4901 = vmatpush.bf16.msra.mxu0 0
        %4902 = vmatpush.bf16.msra.mxu0 0
        %4903 = vmatpush.bf16.msra.mxu0 0
        %4904 = vmatpush.bf16.msra.mxu0 0
        %4905 = vmatpush.bf16.msra.mxu0 %v4896
        %4906 = vmatmul.bf16.gmra.mxu0 %v4893
        %v4907 = vpop.f32.mrf.mxu0
        %v4908 = vadd.f32 0.0, %v4907
        %v4909 = vpop.f32.mrf.mxu0
        %4910 = vdwg.mxu0
        %v4912 = vsel %vm4486, %v4644, 0
        %v4915 = vsel %vm4666, %v4660, 0
        %4917 = vmatpush.bf16.msra.mxu0 0
        %4918 = vmatpush.bf16.msra.mxu0 0
        %4919 = vmatpush.bf16.msra.mxu0 0
        %4920 = vmatpush.bf16.msra.mxu0 0
        %4921 = vmatpush.bf16.msra.mxu0 0
        %4922 = vmatpush.bf16.msra.mxu0 0
        %4923 = vmatpush.bf16.msra.mxu0 0
        %4924 = vmatpush.bf16.msra.mxu0 %v4915
        %4925 = vmatmul.bf16.gmra.mxu0 %v4912
        %v4926 = vpop.f32.mrf.mxu0
        %v4927 = vadd.f32 0.0, %v4926
        %v4928 = vpop.f32.mrf.mxu0
        %4929 = vdwg.mxu0
        %v4931 = vsel %vm4486, %v4645, 0
        %v4934 = vsel %vm4666, %v4661, 0
        %4936 = vmatpush.bf16.msra.mxu0 0
        %4937 = vmatpush.bf16.msra.mxu0 0
        %4938 = vmatpush.bf16.msra.mxu0 0
        %4939 = vmatpush.bf16.msra.mxu0 0
        %4940 = vmatpush.bf16.msra.mxu0 0
        %4941 = vmatpush.bf16.msra.mxu0 0
        %4942 = vmatpush.bf16.msra.mxu0 0
        %4943 = vmatpush.bf16.msra.mxu0 %v4934
        %4944 = vmatmul.bf16.gmra.mxu0 %v4931
        %v4945 = vpop.f32.mrf.mxu0
        %v4946 = vadd.f32 0.0, %v4945
        %v4947 = vpop.f32.mrf.mxu0
        %4948 = vdwg.mxu0
        %v4950 = vsel %vm4486, %v4646, 0
        %v4953 = vsel %vm4666, %v4662, 0
        %4955 = vmatpush.bf16.msra.mxu0 0
        %4956 = vmatpush.bf16.msra.mxu0 0
        %4957 = vmatpush.bf16.msra.mxu0 0
        %4958 = vmatpush.bf16.msra.mxu0 0
        %4959 = vmatpush.bf16.msra.mxu0 0
        %4960 = vmatpush.bf16.msra.mxu0 0
        %4961 = vmatpush.bf16.msra.mxu0 0
        %4962 = vmatpush.bf16.msra.mxu0 %v4953
        %4963 = vmatmul.bf16.gmra.mxu0 %v4950
        %v4964 = vpop.f32.mrf.mxu0
        %v4965 = vadd.f32 0.0, %v4964
        %v4966 = vpop.f32.mrf.mxu0
        %4967 = vdwg.mxu0
        %v4968 = vrcp.pop %v4585
        %v4969 = vrcp.pop %v4588
        %v4970 = vrcp.pop %v4591
        %v4971 = vrcp.pop %v4594
        %v4972 = vrcp.pop %v4597
        %v4973 = vrcp.pop %v4600
        %v4974 = vrcp.pop %v4603
        %v4975 = vrcp.pop %v4606
        %v4976 = vrcp.pop %v4609
        %v4977 = vrcp.pop %v4612
        %v4978 = vrcp.pop %v4615
        %v4979 = vrcp.pop %v4618
        %v4980 = vrcp.pop %v4621
        %v4981 = vrcp.pop %v4624
        %v4982 = vrcp.pop %v4627
        %v4983 = vrcp.pop %v4630
        %v4984 = vmul.f32 %v4680, %v4968
        %v4985 = vmul.f32 %v4699, %v4969
        %v4986 = vmul.f32 %v4718, %v4970
        %v4987 = vmul.f32 %v4737, %v4971
        %v4988 = vmul.f32 %v4756, %v4972
        %v4989 = vmul.f32 %v4775, %v4973
        %v4990 = vmul.f32 %v4794, %v4974
        %v4991 = vmul.f32 %v4813, %v4975
        %v4992 = vmul.f32 %v4832, %v4976
        %v4993 = vmul.f32 %v4851, %v4977
        %v4994 = vmul.f32 %v4870, %v4978
        %v4995 = vmul.f32 %v4889, %v4979
        %v4996 = vmul.f32 %v4908, %v4980
        %v4997 = vmul.f32 %v4927, %v4981
        %v4998 = vmul.f32 %v4946, %v4982
        %v4999 = vmul.f32 %v4965, %v4983
        %5002 = vrot.lane.b32.xlu0 %v4986, 32
        %v5003 = vpop.permute.xlu0 %5002
        %5004 = vrot.lane.b32.xlu0 %v4987, 32
        %v5005 = vpop.permute.xlu0 %5004
        %5010 = vrot.lane.b32.xlu0 %v4988, 64
        %v5011 = vpop.permute.xlu0 %5010
        %5012 = vrot.lane.b32.xlu0 %v4989, 64
        %v5013 = vpop.permute.xlu0 %5012
        %5018 = vrot.lane.b32.xlu0 %v4990, 96
        %v5019 = vpop.permute.xlu0 %5018
        %5020 = vrot.lane.b32.xlu0 %v4991, 96
        %v5021 = vpop.permute.xlu0 %5020
        %5026 = vrot.lane.b32.xlu0 %v4994, 32
        %v5027 = vpop.permute.xlu0 %5026
        %5028 = vrot.lane.b32.xlu0 %v4995, 32
        %v5029 = vpop.permute.xlu0 %5028
        %5034 = vrot.lane.b32.xlu0 %v4996, 64
        %v5035 = vpop.permute.xlu0 %5034
        %5036 = vrot.lane.b32.xlu0 %v4997, 64
        %v5037 = vpop.permute.xlu0 %5036
        %5042 = vrot.lane.b32.xlu0 %v4998, 96
        %v5043 = vpop.permute.xlu0 %5042
        %5044 = vrot.lane.b32.xlu0 %v4999, 96
        %v5045 = vpop.permute.xlu0 %5044
        %v5048 = vsel %vm4165, %v4984, %v5003
        %v5049 = vsel %vm4165, %v4985, %v5005
        %vm5050 = vcmask 523264
        %v5051 = vsel %vm5050, %v5048, %v5011
        %v5052 = vsel %vm5050, %v5049, %v5013
        %vm5053 = vcmask 785408
        %v5054 = vsel %vm5053, %v5051, %v5019
        %v5055 = vsel %vm5053, %v5052, %v5021
        %v5056 = vsel %vm4165, %v4992, %v5027
        %v5057 = vsel %vm4165, %v4993, %v5029
        %v5058 = vsel %vm5050, %v5056, %v5035
        %v5059 = vsel %vm5050, %v5057, %v5037
        %v5060 = vsel %vm5053, %v5058, %v5043
        %v5061 = vsel %vm5053, %v5059, %v5045
        %v5062 = vpack.c.bf16 %v5055, %v5054
        %v5063 = vpack.c.bf16 %v5061, %v5060
        %v5064 = vld [vmem:[%s2201] sm:$0xff]
        %v5065 = vld [vmem:[%s2201 + $0x8] sm:$0xff]
        %v5066 = vld [vmem:[%s2201 + $0x10] sm:$0xff]
        %v5067 = vld [vmem:[%s2201 + $0x18] sm:$0xff]
        %v5068 = vld [vmem:[%s2201 + $0x20] sm:$0xff]
        %v5069 = vld [vmem:[%s2201 + $0x28] sm:$0xff]
        %v5070 = vld [vmem:[%s2201 + $0x30] sm:$0xff]
        %v5071 = vld [vmem:[%s2201 + $0x38] sm:$0xff]
        %v5072 = vld [vmem:[%s2201 + $0x40] sm:$0xff]
        %v5073 = vld [vmem:[%s2201 + $0x48] sm:$0xff]
        %v5074 = vld [vmem:[%s2201 + $0x50] sm:$0xff]
        %v5075 = vld [vmem:[%s2201 + $0x58] sm:$0xff]
        %v5076 = vld [vmem:[%s2201 + $0x60] sm:$0xff]
        %v5077 = vld [vmem:[%s2201 + $0x68] sm:$0xff]
        %v5078 = vld [vmem:[%s2201 + $0x70] sm:$0xff]
        %v5079 = vld [vmem:[%s2201 + $0x78] sm:$0xff]
        %v5080 = vld [vmem:[%s2201 + $0x80] sm:$0xff]
        %v5081 = vld [vmem:[%s2201 + $0x88] sm:$0xff]
        %v5082 = vld [vmem:[%s2201 + $0x90] sm:$0xff]
        %v5083 = vld [vmem:[%s2201 + $0x98] sm:$0xff]
        %v5084 = vld [vmem:[%s2201 + $0xa0] sm:$0xff]
        %v5085 = vld [vmem:[%s2201 + $0xa8] sm:$0xff]
        %v5086 = vld [vmem:[%s2201 + $0xb0] sm:$0xff]
        %v5087 = vld [vmem:[%s2201 + $0xb8] sm:$0xff]
        %v5088 = vld [vmem:[%s2201 + $0xc0] sm:$0xff]
        %v5089 = vld [vmem:[%s2201 + $0xc8] sm:$0xff]
        %v5090 = vld [vmem:[%s2201 + $0xd0] sm:$0xff]
        %v5091 = vld [vmem:[%s2201 + $0xd8] sm:$0xff]
        %v5092 = vld [vmem:[%s2201 + $0xe0] sm:$0xff]
        %v5093 = vld [vmem:[%s2201 + $0xe8] sm:$0xff]
        %v5094 = vld [vmem:[%s2201 + $0xf0] sm:$0xff]
        %v5095 = vld [vmem:[%s2201 + $0xf8] sm:$0xff]
        %v5096 = vld [vmem:[%s2660] sm:$0x3]
        %v5098 = vperm.slane %v5096, 0
        %v5099 = vperm.slane %v5096, 1
        %v5134 = vunpack.c.l.b16 %v5064
        %v5135 = vunpack.c.h.b16 %v5064
        %v5136 = vunpack.c.l.b16 %v5065
        %v5137 = vunpack.c.h.b16 %v5065
        %v5138 = vunpack.c.l.b16 %v5066
        %v5139 = vunpack.c.h.b16 %v5066
        %v5140 = vunpack.c.l.b16 %v5067
        %v5141 = vunpack.c.h.b16 %v5067
        %v5142 = vunpack.c.l.b16 %v5068
        %v5143 = vunpack.c.h.b16 %v5068
        %v5144 = vunpack.c.l.b16 %v5069
        %v5145 = vunpack.c.h.b16 %v5069
        %v5146 = vunpack.c.l.b16 %v5070
        %v5147 = vunpack.c.h.b16 %v5070
        %v5148 = vunpack.c.l.b16 %v5071
        %v5149 = vunpack.c.h.b16 %v5071
        %v5150 = vunpack.c.l.b16 %v5072
        %v5151 = vunpack.c.h.b16 %v5072
        %v5152 = vunpack.c.l.b16 %v5073
        %v5153 = vunpack.c.h.b16 %v5073
        %v5154 = vunpack.c.l.b16 %v5074
        %v5155 = vunpack.c.h.b16 %v5074
        %v5156 = vunpack.c.l.b16 %v5075
        %v5157 = vunpack.c.h.b16 %v5075
        %v5158 = vunpack.c.l.b16 %v5076
        %v5159 = vunpack.c.h.b16 %v5076
        %v5160 = vunpack.c.l.b16 %v5077
        %v5161 = vunpack.c.h.b16 %v5077
        %v5162 = vunpack.c.l.b16 %v5078
        %v5163 = vunpack.c.h.b16 %v5078
        %v5164 = vunpack.c.l.b16 %v5079
        %v5165 = vunpack.c.h.b16 %v5079
        %v5166 = vunpack.c.l.b16 %v5080
        %v5167 = vunpack.c.h.b16 %v5080
        %v5168 = vunpack.c.l.b16 %v5081
        %v5169 = vunpack.c.h.b16 %v5081
        %v5170 = vunpack.c.l.b16 %v5082
        %v5171 = vunpack.c.h.b16 %v5082
        %v5172 = vunpack.c.l.b16 %v5083
        %v5173 = vunpack.c.h.b16 %v5083
        %v5174 = vunpack.c.l.b16 %v5084
        %v5175 = vunpack.c.h.b16 %v5084
        %v5176 = vunpack.c.l.b16 %v5085
        %v5177 = vunpack.c.h.b16 %v5085
        %v5178 = vunpack.c.l.b16 %v5086
        %v5179 = vunpack.c.h.b16 %v5086
        %v5180 = vunpack.c.l.b16 %v5087
        %v5181 = vunpack.c.h.b16 %v5087
        %v5182 = vunpack.c.l.b16 %v5088
        %v5183 = vunpack.c.h.b16 %v5088
        %v5184 = vunpack.c.l.b16 %v5089
        %v5185 = vunpack.c.h.b16 %v5089
        %v5186 = vunpack.c.l.b16 %v5090
        %v5187 = vunpack.c.h.b16 %v5090
        %v5188 = vunpack.c.l.b16 %v5091
        %v5189 = vunpack.c.h.b16 %v5091
        %v5190 = vunpack.c.l.b16 %v5092
        %v5191 = vunpack.c.h.b16 %v5092
        %v5192 = vunpack.c.l.b16 %v5093
        %v5193 = vunpack.c.h.b16 %v5093
        %v5194 = vunpack.c.l.b16 %v5094
        %v5195 = vunpack.c.h.b16 %v5094
        %v5196 = vunpack.c.l.b16 %v5095
        %v5197 = vunpack.c.h.b16 %v5095
        %v5198 = vpack.c.b16 %v5136, %v5134
        %v5199 = vpack.c.b16 %v5137, %v5135
        %v5200 = vpack.c.b16 %v5140, %v5138
        %v5201 = vpack.c.b16 %v5141, %v5139
        %v5202 = vpack.c.b16 %v5144, %v5142
        %v5203 = vpack.c.b16 %v5145, %v5143
        %v5204 = vpack.c.b16 %v5148, %v5146
        %v5205 = vpack.c.b16 %v5149, %v5147
        %v5206 = vpack.c.b16 %v5152, %v5150
        %v5207 = vpack.c.b16 %v5153, %v5151
        %v5208 = vpack.c.b16 %v5156, %v5154
        %v5209 = vpack.c.b16 %v5157, %v5155
        %v5210 = vpack.c.b16 %v5160, %v5158
        %v5211 = vpack.c.b16 %v5161, %v5159
        %v5212 = vpack.c.b16 %v5164, %v5162
        %v5213 = vpack.c.b16 %v5165, %v5163
        %v5214 = vpack.c.b16 %v5168, %v5166
        %v5215 = vpack.c.b16 %v5169, %v5167
        %v5216 = vpack.c.b16 %v5172, %v5170
        %v5217 = vpack.c.b16 %v5173, %v5171
        %v5218 = vpack.c.b16 %v5176, %v5174
        %v5219 = vpack.c.b16 %v5177, %v5175
        %v5220 = vpack.c.b16 %v5180, %v5178
        %v5221 = vpack.c.b16 %v5181, %v5179
        %v5222 = vpack.c.b16 %v5184, %v5182
        %v5223 = vpack.c.b16 %v5185, %v5183
        %v5224 = vpack.c.b16 %v5188, %v5186
        %v5225 = vpack.c.b16 %v5189, %v5187
        %v5226 = vpack.c.b16 %v5192, %v5190
        %v5227 = vpack.c.b16 %v5193, %v5191
        %v5228 = vpack.c.b16 %v5196, %v5194
        %v5229 = vpack.c.b16 %v5197, %v5195
        %5262 = vmatpush.bf16.msra.mxu0 %v5212
        %5263 = vmatpush.bf16.msra.mxu0 %v5210
        %5264 = vmatpush.bf16.msra.mxu0 %v5208
        %5265 = vmatpush.bf16.msra.mxu0 %v5206
        %5266 = vmatpush.bf16.msra.mxu0 %v5204
        %5267 = vmatpush.bf16.msra.mxu0 %v5202
        %5268 = vmatpush.bf16.msra.mxu0 %v5200
        %5269 = vmatpush.bf16.msra.mxu0 %v5198
        %5270 = vmatmul.bf16.gmra.mxu0 %v5062
        %v5271 = vpop.f32.mrf.mxu0
        %v5272 = vadd.f32 %v5098, %v5271
        %v5273 = vpop.f32.mrf.mxu0
        %v5274 = vadd.f32 %v5098, %v5273
        %5275 = vdwg.mxu0
        %5276 = vmatpush.bf16.msra.mxu0 %v5228
        %5277 = vmatpush.bf16.msra.mxu0 %v5226
        %5278 = vmatpush.bf16.msra.mxu0 %v5224
        %5279 = vmatpush.bf16.msra.mxu0 %v5222
        %5280 = vmatpush.bf16.msra.mxu0 %v5220
        %5281 = vmatpush.bf16.msra.mxu0 %v5218
        %5282 = vmatpush.bf16.msra.mxu0 %v5216
        %5283 = vmatpush.bf16.msra.mxu0 %v5214
        %5284 = vmatmul.bf16.gmra.mxu0 %v5063
        %v5285 = vpop.f32.mrf.mxu0
        %v5286 = vadd.f32 %v5272, %v5285
        %v5287 = vpop.f32.mrf.mxu0
        %v5288 = vadd.f32 %v5274, %v5287
        %5289 = vdwg.mxu0
        %5290 = vmatpush.bf16.msra.mxu0 %v5213
        %5291 = vmatpush.bf16.msra.mxu0 %v5211
        %5292 = vmatpush.bf16.msra.mxu0 %v5209
        %5293 = vmatpush.bf16.msra.mxu0 %v5207
        %5294 = vmatpush.bf16.msra.mxu0 %v5205
        %5295 = vmatpush.bf16.msra.mxu0 %v5203
        %5296 = vmatpush.bf16.msra.mxu0 %v5201
        %5297 = vmatpush.bf16.msra.mxu0 %v5199
        %5298 = vmatmul.bf16.gmra.mxu0 %v5062
        %v5299 = vpop.f32.mrf.mxu0
        %v5300 = vadd.f32 %v5099, %v5299
        %v5301 = vpop.f32.mrf.mxu0
        %v5302 = vadd.f32 %v5099, %v5301
        %5303 = vdwg.mxu0
        %5304 = vmatpush.bf16.msra.mxu0 %v5229
        %5305 = vmatpush.bf16.msra.mxu0 %v5227
        %5306 = vmatpush.bf16.msra.mxu0 %v5225
        %5307 = vmatpush.bf16.msra.mxu0 %v5223
        %5308 = vmatpush.bf16.msra.mxu0 %v5221
        %5309 = vmatpush.bf16.msra.mxu0 %v5219
        %5310 = vmatpush.bf16.msra.mxu0 %v5217
        %5311 = vmatpush.bf16.msra.mxu0 %v5215
        %5312 = vmatmul.bf16.gmra.mxu0 %v5063
        %v5313 = vpop.f32.mrf.mxu0
        %v5314 = vadd.f32 %v5300, %v5313
        %v5315 = vpop.f32.mrf.mxu0
        %v5316 = vadd.f32 %v5302, %v5315
        %5317 = vdwg.mxu0
        %v5318 = vadd.f32 %v2695, %v5286
        %v5319 = vadd.f32 %v2696, %v5314
        %v5320 = vadd.f32 %v2697, %v5288
        %v5321 = vadd.f32 %v2698, %v5316
        %v5322 = vld [vmem:[%s2211] sm:$0x3]
        %v5323 = vld [vmem:[%s2221] sm:$0x3]
        %v5324 = vadd.f32 %v5318, %v5319
        %5325 = vadd.xlane.f32.xlu0 %v5324
        %v5326 = vpop.xlane.xlu0 %5325
        %v5327 = vadd.f32 %v5320, %v5321
        %5328 = vadd.xlane.f32.xlu0 %v5327
        %v5329 = vpop.xlane.xlu0 %5328
        %v5330 = vrcp.pop 256.0
        %v5331 = vmul.f32 256.0, %v5330
        %v5332 = vsub.f32 1.0, %v5331
        %v5333 = vmul.f32 %v5330, %v5332
        %v5334 = vadd.f32 %v5330, %v5333
        %vm5335 = vweird.f32 %v5330
        %v5336 = vsel %vm5335, %v5330, %v5334
        %v5337 = vmul.f32 %v5326, %v5336
        %v5338 = vmul.f32 %v5329, %v5336
        %v5339 = vsub.f32 %v5318, %v5337
        %v5340 = vsub.f32 %v5319, %v5337
        %v5341 = vsub.f32 %v5320, %v5338
        %v5342 = vsub.f32 %v5321, %v5338
        %v5343 = vmul.f32 %v5339, %v5339
        %v5344 = vmul.f32 %v5340, %v5340
        %v5345 = vmul.f32 %v5341, %v5341
        %v5346 = vmul.f32 %v5342, %v5342
        %v5347 = vadd.f32 %v5343, %v5344
        %5348 = vadd.xlane.f32.xlu0 %v5347
        %v5349 = vpop.xlane.xlu0 %5348
        %v5350 = vadd.f32 %v5345, %v5346
        %5351 = vadd.xlane.f32.xlu0 %v5350
        %v5352 = vpop.xlane.xlu0 %5351
        %v5353 = vmul.f32 %v5349, %v5336
        %v5354 = vmul.f32 %v5352, %v5336
        %v5355 = vadd.f32 %v5353, 1e-05
        %v5356 = vadd.f32 %v5354, 1e-05
        %v5357 = vrsqrt.pop %v5355
        %v5358 = vmul.f32 %v5357, %v5355
        %v5359 = vmul.f32 %v5358, %v5357
        %v5360 = vmul.f32 0.5, %v5359
        %v5361 = vsub.f32 1.5, %v5360
        %v5362 = vmul.f32 %v5357, %v5361
        %vm5363 = vweird.f32 %v5355
        %vm5364 = vweird.f32 %v5357
        %vm5365 = vmor %vm5363, %vm5364
        %v5366 = vsel %vm5365, %v5357, %v5362
        %v5367 = vrsqrt.pop %v5356
        %v5368 = vmul.f32 %v5367, %v5356
        %v5369 = vmul.f32 %v5368, %v5367
        %v5370 = vmul.f32 0.5, %v5369
        %v5371 = vsub.f32 1.5, %v5370
        %v5372 = vmul.f32 %v5367, %v5371
        %vm5373 = vweird.f32 %v5356
        %vm5374 = vweird.f32 %v5367
        %vm5375 = vmor %vm5373, %vm5374
        %v5376 = vsel %vm5375, %v5367, %v5372
        %v5377 = vmul.f32 %v5339, %v5366
        %v5378 = vmul.f32 %v5340, %v5366
        %v5379 = vmul.f32 %v5341, %v5376
        %v5380 = vmul.f32 %v5342, %v5376
        %v5382 = vperm.slane %v5322, 0
        %v5383 = vperm.slane %v5322, 1
        %v5386 = vmul.f32 %v5377, %v5382
        %v5387 = vmul.f32 %v5378, %v5383
        %v5388 = vmul.f32 %v5379, %v5382
        %v5389 = vmul.f32 %v5380, %v5383
        %v5391 = vperm.slane %v5323, 0
        %v5392 = vperm.slane %v5323, 1
        %v5395 = vadd.f32 %v5386, %v5391
        %v5396 = vadd.f32 %v5387, %v5392
        %v5397 = vadd.f32 %v5388, %v5391
        %v5398 = vadd.f32 %v5389, %v5392
        %v5399 = vld [vmem:[#allocation52] sm:$0xff]
        %v5400 = vld [vmem:[#allocation52 + $0x8] sm:$0xff]
        %v5401 = vld [vmem:[#allocation52 + $0x10] sm:$0xff]
        %v5402 = vld [vmem:[#allocation52 + $0x18] sm:$0xff]
        %v5403 = vld [vmem:[#allocation52 + $0x20] sm:$0xff]
        %v5404 = vld [vmem:[#allocation52 + $0x28] sm:$0xff]
        %v5405 = vld [vmem:[#allocation52 + $0x30] sm:$0xff]
        %v5406 = vld [vmem:[#allocation52 + $0x38] sm:$0xff]
        %v5407 = vld [vmem:[#allocation52 + $0x40] sm:$0xff]
        %v5408 = vld [vmem:[#allocation52 + $0x48] sm:$0xff]
        %v5409 = vld [vmem:[#allocation52 + $0x50] sm:$0xff]
        %v5410 = vld [vmem:[#allocation52 + $0x58] sm:$0xff]
        %v5411 = vld [vmem:[#allocation52 + $0x60] sm:$0xff]
        %v5412 = vld [vmem:[#allocation52 + $0x68] sm:$0xff]
        %v5413 = vld [vmem:[#allocation52 + $0x70] sm:$0xff]
        %v5414 = vld [vmem:[#allocation52 + $0x78] sm:$0xff]
        %v5415 = vld [vmem:[#allocation52 + $0x80] sm:$0xff]
        %v5416 = vld [vmem:[#allocation52 + $0x88] sm:$0xff]
        %v5417 = vld [vmem:[#allocation52 + $0x90] sm:$0xff]
        %v5418 = vld [vmem:[#allocation52 + $0x98] sm:$0xff]
        %v5419 = vld [vmem:[#allocation52 + $0xa0] sm:$0xff]
        %v5420 = vld [vmem:[#allocation52 + $0xa8] sm:$0xff]
        %v5421 = vld [vmem:[#allocation52 + $0xb0] sm:$0xff]
        %v5422 = vld [vmem:[#allocation52 + $0xb8] sm:$0xff]
        %v5423 = vld [vmem:[#allocation52 + $0xc0] sm:$0xff]
        %v5424 = vld [vmem:[#allocation52 + $0xc8] sm:$0xff]
        %v5425 = vld [vmem:[#allocation52 + $0xd0] sm:$0xff]
        %v5426 = vld [vmem:[#allocation52 + $0xd8] sm:$0xff]
        %v5427 = vld [vmem:[#allocation52 + $0xe0] sm:$0xff]
        %v5428 = vld [vmem:[#allocation52 + $0xe8] sm:$0xff]
        %v5429 = vld [vmem:[#allocation52 + $0xf0] sm:$0xff]
        %v5430 = vld [vmem:[#allocation52 + $0xf8] sm:$0xff]
        %v5431 = vld [vmem:[%s85] sm:$0x3]
        %v5433 = vperm.slane %v5431, 0
        %v5434 = vperm.slane %v5431, 1
        %v5469 = vunpack.c.l.b16 %v5399
        %v5470 = vunpack.c.h.b16 %v5399
        %v5471 = vunpack.c.l.b16 %v5400
        %v5472 = vunpack.c.h.b16 %v5400
        %v5473 = vunpack.c.l.b16 %v5401
        %v5474 = vunpack.c.h.b16 %v5401
        %v5475 = vunpack.c.l.b16 %v5402
        %v5476 = vunpack.c.h.b16 %v5402
        %v5477 = vunpack.c.l.b16 %v5403
        %v5478 = vunpack.c.h.b16 %v5403
        %v5479 = vunpack.c.l.b16 %v5404
        %v5480 = vunpack.c.h.b16 %v5404
        %v5481 = vunpack.c.l.b16 %v5405
        %v5482 = vunpack.c.h.b16 %v5405
        %v5483 = vunpack.c.l.b16 %v5406
        %v5484 = vunpack.c.h.b16 %v5406
        %v5485 = vunpack.c.l.b16 %v5407
        %v5486 = vunpack.c.h.b16 %v5407
        %v5487 = vunpack.c.l.b16 %v5408
        %v5488 = vunpack.c.h.b16 %v5408
        %v5489 = vunpack.c.l.b16 %v5409
        %v5490 = vunpack.c.h.b16 %v5409
        %v5491 = vunpack.c.l.b16 %v5410
        %v5492 = vunpack.c.h.b16 %v5410
        %v5493 = vunpack.c.l.b16 %v5411
        %v5494 = vunpack.c.h.b16 %v5411
        %v5495 = vunpack.c.l.b16 %v5412
        %v5496 = vunpack.c.h.b16 %v5412
        %v5497 = vunpack.c.l.b16 %v5413
        %v5498 = vunpack.c.h.b16 %v5413
        %v5499 = vunpack.c.l.b16 %v5414
        %v5500 = vunpack.c.h.b16 %v5414
        %v5501 = vunpack.c.l.b16 %v5415
        %v5502 = vunpack.c.h.b16 %v5415
        %v5503 = vunpack.c.l.b16 %v5416
        %v5504 = vunpack.c.h.b16 %v5416
        %v5505 = vunpack.c.l.b16 %v5417
        %v5506 = vunpack.c.h.b16 %v5417
        %v5507 = vunpack.c.l.b16 %v5418
        %v5508 = vunpack.c.h.b16 %v5418
        %v5509 = vunpack.c.l.b16 %v5419
        %v5510 = vunpack.c.h.b16 %v5419
        %v5511 = vunpack.c.l.b16 %v5420
        %v5512 = vunpack.c.h.b16 %v5420
        %v5513 = vunpack.c.l.b16 %v5421
        %v5514 = vunpack.c.h.b16 %v5421
        %v5515 = vunpack.c.l.b16 %v5422
        %v5516 = vunpack.c.h.b16 %v5422
        %v5517 = vunpack.c.l.b16 %v5423
        %v5518 = vunpack.c.h.b16 %v5423
        %v5519 = vunpack.c.l.b16 %v5424
        %v5520 = vunpack.c.h.b16 %v5424
        %v5521 = vunpack.c.l.b16 %v5425
        %v5522 = vunpack.c.h.b16 %v5425
        %v5523 = vunpack.c.l.b16 %v5426
        %v5524 = vunpack.c.h.b16 %v5426
        %v5525 = vunpack.c.l.b16 %v5427
        %v5526 = vunpack.c.h.b16 %v5427
        %v5527 = vunpack.c.l.b16 %v5428
        %v5528 = vunpack.c.h.b16 %v5428
        %v5529 = vunpack.c.l.b16 %v5429
        %v5530 = vunpack.c.h.b16 %v5429
        %v5531 = vunpack.c.l.b16 %v5430
        %v5532 = vunpack.c.h.b16 %v5430
        %v5533 = vpack.c.b16 %v5471, %v5469
        %v5534 = vpack.c.b16 %v5472, %v5470
        %v5535 = vpack.c.b16 %v5475, %v5473
        %v5536 = vpack.c.b16 %v5476, %v5474
        %v5537 = vpack.c.b16 %v5479, %v5477
        %v5538 = vpack.c.b16 %v5480, %v5478
        %v5539 = vpack.c.b16 %v5483, %v5481
        %v5540 = vpack.c.b16 %v5484, %v5482
        %v5541 = vpack.c.b16 %v5487, %v5485
        %v5542 = vpack.c.b16 %v5488, %v5486
        %v5543 = vpack.c.b16 %v5491, %v5489
        %v5544 = vpack.c.b16 %v5492, %v5490
        %v5545 = vpack.c.b16 %v5495, %v5493
        %v5546 = vpack.c.b16 %v5496, %v5494
        %v5547 = vpack.c.b16 %v5499, %v5497
        %v5548 = vpack.c.b16 %v5500, %v5498
        %v5549 = vpack.c.b16 %v5503, %v5501
        %v5550 = vpack.c.b16 %v5504, %v5502
        %v5551 = vpack.c.b16 %v5507, %v5505
        %v5552 = vpack.c.b16 %v5508, %v5506
        %v5553 = vpack.c.b16 %v5511, %v5509
        %v5554 = vpack.c.b16 %v5512, %v5510
        %v5555 = vpack.c.b16 %v5515, %v5513
        %v5556 = vpack.c.b16 %v5516, %v5514
        %v5557 = vpack.c.b16 %v5519, %v5517
        %v5558 = vpack.c.b16 %v5520, %v5518
        %v5559 = vpack.c.b16 %v5523, %v5521
        %v5560 = vpack.c.b16 %v5524, %v5522
        %v5561 = vpack.c.b16 %v5527, %v5525
        %v5562 = vpack.c.b16 %v5528, %v5526
        %v5563 = vpack.c.b16 %v5531, %v5529
        %v5564 = vpack.c.b16 %v5532, %v5530
        %5597 = vmatpush.bf16.msra.mxu0 %v5547
        %5598 = vmatpush.bf16.msra.mxu0 %v5545
        %5599 = vmatpush.bf16.msra.mxu0 %v5543
        %5600 = vmatpush.bf16.msra.mxu0 %v5541
        %5601 = vmatpush.bf16.msra.mxu0 %v5539
        %5602 = vmatpush.bf16.msra.mxu0 %v5537
        %5603 = vmatpush.bf16.msra.mxu0 %v5535
        %5604 = vmatpush.bf16.msra.mxu0 %v5533
        %5605 = vmatmul.bf16.gmra.mxu0 %v2731
        %v5606 = vpop.f32.mrf.mxu0
        %v5607 = vadd.f32 %v5433, %v5606
        %v5608 = vpop.f32.mrf.mxu0
        %v5609 = vadd.f32 %v5433, %v5608
        %5610 = vdwg.mxu0
        %5611 = vmatpush.bf16.msra.mxu0 %v5563
        %5612 = vmatpush.bf16.msra.mxu0 %v5561
        %5613 = vmatpush.bf16.msra.mxu0 %v5559
        %5614 = vmatpush.bf16.msra.mxu0 %v5557
        %5615 = vmatpush.bf16.msra.mxu0 %v5555
        %5616 = vmatpush.bf16.msra.mxu0 %v5553
        %5617 = vmatpush.bf16.msra.mxu0 %v5551
        %5618 = vmatpush.bf16.msra.mxu0 %v5549
        %5619 = vmatmul.bf16.gmra.mxu0 %v2732
        %v5620 = vpop.f32.mrf.mxu0
        %v5621 = vadd.f32 %v5607, %v5620
        %v5622 = vpop.f32.mrf.mxu0
        %v5623 = vadd.f32 %v5609, %v5622
        %5624 = vdwg.mxu0
        %5625 = vmatpush.bf16.msra.mxu0 %v5548
        %5626 = vmatpush.bf16.msra.mxu0 %v5546
        %5627 = vmatpush.bf16.msra.mxu0 %v5544
        %5628 = vmatpush.bf16.msra.mxu0 %v5542
        %5629 = vmatpush.bf16.msra.mxu0 %v5540
        %5630 = vmatpush.bf16.msra.mxu0 %v5538
        %5631 = vmatpush.bf16.msra.mxu0 %v5536
        %5632 = vmatpush.bf16.msra.mxu0 %v5534
        %5633 = vmatmul.bf16.gmra.mxu0 %v2731
        %v5634 = vpop.f32.mrf.mxu0
        %v5635 = vadd.f32 %v5434, %v5634
        %v5636 = vpop.f32.mrf.mxu0
        %v5637 = vadd.f32 %v5434, %v5636
        %5638 = vdwg.mxu0
        %5639 = vmatpush.bf16.msra.mxu0 %v5564
        %5640 = vmatpush.bf16.msra.mxu0 %v5562
        %5641 = vmatpush.bf16.msra.mxu0 %v5560
        %5642 = vmatpush.bf16.msra.mxu0 %v5558
        %5643 = vmatpush.bf16.msra.mxu0 %v5556
        %5644 = vmatpush.bf16.msra.mxu0 %v5554
        %5645 = vmatpush.bf16.msra.mxu0 %v5552
        %5646 = vmatpush.bf16.msra.mxu0 %v5550
        %5647 = vmatmul.bf16.gmra.mxu0 %v2732
        %v5648 = vpop.f32.mrf.mxu0
        %v5649 = vadd.f32 %v5635, %v5648
        %v5650 = vpop.f32.mrf.mxu0
        %v5651 = vadd.f32 %v5637, %v5650
        %5652 = vdwg.mxu0
        %v5653 = vmax.f32 %v5621, 0.0
        %v5654 = vmax.f32 %v5649, 0.0
        %v5655 = vmax.f32 %v5623, 0.0
        %v5656 = vmax.f32 %v5651, 0.0
        %v5657 = vpack.c.bf16 %v5655, %v5653
        %v5658 = vpack.c.bf16 %v5656, %v5654
        %v5659 = vld [vmem:[#allocation53] sm:$0xff]
        %v5660 = vld [vmem:[#allocation53 + $0x8] sm:$0xff]
        %v5661 = vld [vmem:[#allocation53 + $0x10] sm:$0xff]
        %v5662 = vld [vmem:[#allocation53 + $0x18] sm:$0xff]
        %v5663 = vld [vmem:[#allocation53 + $0x20] sm:$0xff]
        %v5664 = vld [vmem:[#allocation53 + $0x28] sm:$0xff]
        %v5665 = vld [vmem:[#allocation53 + $0x30] sm:$0xff]
        %v5666 = vld [vmem:[#allocation53 + $0x38] sm:$0xff]
        %v5667 = vld [vmem:[#allocation53 + $0x40] sm:$0xff]
        %v5668 = vld [vmem:[#allocation53 + $0x48] sm:$0xff]
        %v5669 = vld [vmem:[#allocation53 + $0x50] sm:$0xff]
        %v5670 = vld [vmem:[#allocation53 + $0x58] sm:$0xff]
        %v5671 = vld [vmem:[#allocation53 + $0x60] sm:$0xff]
        %v5672 = vld [vmem:[#allocation53 + $0x68] sm:$0xff]
        %v5673 = vld [vmem:[#allocation53 + $0x70] sm:$0xff]
        %v5674 = vld [vmem:[#allocation53 + $0x78] sm:$0xff]
        %v5675 = vld [vmem:[#allocation53 + $0x80] sm:$0xff]
        %v5676 = vld [vmem:[#allocation53 + $0x88] sm:$0xff]
        %v5677 = vld [vmem:[#allocation53 + $0x90] sm:$0xff]
        %v5678 = vld [vmem:[#allocation53 + $0x98] sm:$0xff]
        %v5679 = vld [vmem:[#allocation53 + $0xa0] sm:$0xff]
        %v5680 = vld [vmem:[#allocation53 + $0xa8] sm:$0xff]
        %v5681 = vld [vmem:[#allocation53 + $0xb0] sm:$0xff]
        %v5682 = vld [vmem:[#allocation53 + $0xb8] sm:$0xff]
        %v5683 = vld [vmem:[#allocation53 + $0xc0] sm:$0xff]
        %v5684 = vld [vmem:[#allocation53 + $0xc8] sm:$0xff]
        %v5685 = vld [vmem:[#allocation53 + $0xd0] sm:$0xff]
        %v5686 = vld [vmem:[#allocation53 + $0xd8] sm:$0xff]
        %v5687 = vld [vmem:[#allocation53 + $0xe0] sm:$0xff]
        %v5688 = vld [vmem:[#allocation53 + $0xe8] sm:$0xff]
        %v5689 = vld [vmem:[#allocation53 + $0xf0] sm:$0xff]
        %v5690 = vld [vmem:[#allocation53 + $0xf8] sm:$0xff]
        %v5691 = vld [vmem:[%s89] sm:$0x3]
        %v5693 = vperm.slane %v5691, 0
        %v5694 = vperm.slane %v5691, 1
        %v5729 = vunpack.c.l.b16 %v5659
        %v5730 = vunpack.c.h.b16 %v5659
        %v5731 = vunpack.c.l.b16 %v5660
        %v5732 = vunpack.c.h.b16 %v5660
        %v5733 = vunpack.c.l.b16 %v5661
        %v5734 = vunpack.c.h.b16 %v5661
        %v5735 = vunpack.c.l.b16 %v5662
        %v5736 = vunpack.c.h.b16 %v5662
        %v5737 = vunpack.c.l.b16 %v5663
        %v5738 = vunpack.c.h.b16 %v5663
        %v5739 = vunpack.c.l.b16 %v5664
        %v5740 = vunpack.c.h.b16 %v5664
        %v5741 = vunpack.c.l.b16 %v5665
        %v5742 = vunpack.c.h.b16 %v5665
        %v5743 = vunpack.c.l.b16 %v5666
        %v5744 = vunpack.c.h.b16 %v5666
        %v5745 = vunpack.c.l.b16 %v5667
        %v5746 = vunpack.c.h.b16 %v5667
        %v5747 = vunpack.c.l.b16 %v5668
        %v5748 = vunpack.c.h.b16 %v5668
        %v5749 = vunpack.c.l.b16 %v5669
        %v5750 = vunpack.c.h.b16 %v5669
        %v5751 = vunpack.c.l.b16 %v5670
        %v5752 = vunpack.c.h.b16 %v5670
        %v5753 = vunpack.c.l.b16 %v5671
        %v5754 = vunpack.c.h.b16 %v5671
        %v5755 = vunpack.c.l.b16 %v5672
        %v5756 = vunpack.c.h.b16 %v5672
        %v5757 = vunpack.c.l.b16 %v5673
        %v5758 = vunpack.c.h.b16 %v5673
        %v5759 = vunpack.c.l.b16 %v5674
        %v5760 = vunpack.c.h.b16 %v5674
        %v5761 = vunpack.c.l.b16 %v5675
        %v5762 = vunpack.c.h.b16 %v5675
        %v5763 = vunpack.c.l.b16 %v5676
        %v5764 = vunpack.c.h.b16 %v5676
        %v5765 = vunpack.c.l.b16 %v5677
        %v5766 = vunpack.c.h.b16 %v5677
        %v5767 = vunpack.c.l.b16 %v5678
        %v5768 = vunpack.c.h.b16 %v5678
        %v5769 = vunpack.c.l.b16 %v5679
        %v5770 = vunpack.c.h.b16 %v5679
        %v5771 = vunpack.c.l.b16 %v5680
        %v5772 = vunpack.c.h.b16 %v5680
        %v5773 = vunpack.c.l.b16 %v5681
        %v5774 = vunpack.c.h.b16 %v5681
        %v5775 = vunpack.c.l.b16 %v5682
        %v5776 = vunpack.c.h.b16 %v5682
        %v5777 = vunpack.c.l.b16 %v5683
        %v5778 = vunpack.c.h.b16 %v5683
        %v5779 = vunpack.c.l.b16 %v5684
        %v5780 = vunpack.c.h.b16 %v5684
        %v5781 = vunpack.c.l.b16 %v5685
        %v5782 = vunpack.c.h.b16 %v5685
        %v5783 = vunpack.c.l.b16 %v5686
        %v5784 = vunpack.c.h.b16 %v5686
        %v5785 = vunpack.c.l.b16 %v5687
        %v5786 = vunpack.c.h.b16 %v5687
        %v5787 = vunpack.c.l.b16 %v5688
        %v5788 = vunpack.c.h.b16 %v5688
        %v5789 = vunpack.c.l.b16 %v5689
        %v5790 = vunpack.c.h.b16 %v5689
        %v5791 = vunpack.c.l.b16 %v5690
        %v5792 = vunpack.c.h.b16 %v5690
        %v5793 = vpack.c.b16 %v5731, %v5729
        %v5794 = vpack.c.b16 %v5732, %v5730
        %v5795 = vpack.c.b16 %v5735, %v5733
        %v5796 = vpack.c.b16 %v5736, %v5734
        %v5797 = vpack.c.b16 %v5739, %v5737
        %v5798 = vpack.c.b16 %v5740, %v5738
        %v5799 = vpack.c.b16 %v5743, %v5741
        %v5800 = vpack.c.b16 %v5744, %v5742
        %v5801 = vpack.c.b16 %v5747, %v5745
        %v5802 = vpack.c.b16 %v5748, %v5746
        %v5803 = vpack.c.b16 %v5751, %v5749
        %v5804 = vpack.c.b16 %v5752, %v5750
        %v5805 = vpack.c.b16 %v5755, %v5753
        %v5806 = vpack.c.b16 %v5756, %v5754
        %v5807 = vpack.c.b16 %v5759, %v5757
        %v5808 = vpack.c.b16 %v5760, %v5758
        %v5809 = vpack.c.b16 %v5763, %v5761
        %v5810 = vpack.c.b16 %v5764, %v5762
        %v5811 = vpack.c.b16 %v5767, %v5765
        %v5812 = vpack.c.b16 %v5768, %v5766
        %v5813 = vpack.c.b16 %v5771, %v5769
        %v5814 = vpack.c.b16 %v5772, %v5770
        %v5815 = vpack.c.b16 %v5775, %v5773
        %v5816 = vpack.c.b16 %v5776, %v5774
        %v5817 = vpack.c.b16 %v5779, %v5777
        %v5818 = vpack.c.b16 %v5780, %v5778
        %v5819 = vpack.c.b16 %v5783, %v5781
        %v5820 = vpack.c.b16 %v5784, %v5782
        %v5821 = vpack.c.b16 %v5787, %v5785
        %v5822 = vpack.c.b16 %v5788, %v5786
        %v5823 = vpack.c.b16 %v5791, %v5789
        %v5824 = vpack.c.b16 %v5792, %v5790
        %5857 = vmatpush.bf16.msra.mxu0 %v5807
        %5858 = vmatpush.bf16.msra.mxu0 %v5805
        %5859 = vmatpush.bf16.msra.mxu0 %v5803
        %5860 = vmatpush.bf16.msra.mxu0 %v5801
        %5861 = vmatpush.bf16.msra.mxu0 %v5799
        %5862 = vmatpush.bf16.msra.mxu0 %v5797
        %5863 = vmatpush.bf16.msra.mxu0 %v5795
        %5864 = vmatpush.bf16.msra.mxu0 %v5793
        %5865 = vmatmul.bf16.gmra.mxu0 %v5657
        %v5866 = vpop.f32.mrf.mxu0
        %v5867 = vadd.f32 %v5693, %v5866
        %v5868 = vpop.f32.mrf.mxu0
        %v5869 = vadd.f32 %v5693, %v5868
        %5870 = vdwg.mxu0
        %5871 = vmatpush.bf16.msra.mxu0 %v5823
        %5872 = vmatpush.bf16.msra.mxu0 %v5821
        %5873 = vmatpush.bf16.msra.mxu0 %v5819
        %5874 = vmatpush.bf16.msra.mxu0 %v5817
        %5875 = vmatpush.bf16.msra.mxu0 %v5815
        %5876 = vmatpush.bf16.msra.mxu0 %v5813
        %5877 = vmatpush.bf16.msra.mxu0 %v5811
        %5878 = vmatpush.bf16.msra.mxu0 %v5809
        %5879 = vmatmul.bf16.gmra.mxu0 %v5658
        %v5880 = vpop.f32.mrf.mxu0
        %v5881 = vadd.f32 %v5867, %v5880
        %v5882 = vpop.f32.mrf.mxu0
        %v5883 = vadd.f32 %v5869, %v5882
        %5884 = vdwg.mxu0
        %5885 = vmatpush.bf16.msra.mxu0 %v5808
        %5886 = vmatpush.bf16.msra.mxu0 %v5806
        %5887 = vmatpush.bf16.msra.mxu0 %v5804
        %5888 = vmatpush.bf16.msra.mxu0 %v5802
        %5889 = vmatpush.bf16.msra.mxu0 %v5800
        %5890 = vmatpush.bf16.msra.mxu0 %v5798
        %5891 = vmatpush.bf16.msra.mxu0 %v5796
        %5892 = vmatpush.bf16.msra.mxu0 %v5794
        %5893 = vmatmul.bf16.gmra.mxu0 %v5657
        %v5894 = vpop.f32.mrf.mxu0
        %v5895 = vadd.f32 %v5694, %v5894
        %v5896 = vpop.f32.mrf.mxu0
        %v5897 = vadd.f32 %v5694, %v5896
        %5898 = vdwg.mxu0
        %5899 = vmatpush.bf16.msra.mxu0 %v5824
        %5900 = vmatpush.bf16.msra.mxu0 %v5822
        %5901 = vmatpush.bf16.msra.mxu0 %v5820
        %5902 = vmatpush.bf16.msra.mxu0 %v5818
        %5903 = vmatpush.bf16.msra.mxu0 %v5816
        %5904 = vmatpush.bf16.msra.mxu0 %v5814
        %5905 = vmatpush.bf16.msra.mxu0 %v5812
        %5906 = vmatpush.bf16.msra.mxu0 %v5810
        %5907 = vmatmul.bf16.gmra.mxu0 %v5658
        %v5908 = vpop.f32.mrf.mxu0
        %v5909 = vadd.f32 %v5895, %v5908
        %v5910 = vpop.f32.mrf.mxu0
        %v5911 = vadd.f32 %v5897, %v5910
        %5912 = vdwg.mxu0
        %s5913 = ssub.f32 1.0, %s2730
        %v5914 = vstv %s5913
        %v5915 = vmul.f32 %v5914, %v5881
        %v5916 = vmul.f32 %v5914, %v5909
        %v5917 = vmul.f32 %v5914, %v5883
        %v5918 = vmul.f32 %v5914, %v5911
        %v5919 = vstv %s2730
        %v5920 = vadd.f32 %v5919, %v5915
        %v5921 = vadd.f32 %v5919, %v5916
        %v5922 = vadd.f32 %v5919, %v5917
        %v5923 = vadd.f32 %v5919, %v5918
        %v5924 = vmul.f32 %v2719, %v5920
        %v5925 = vmul.f32 %v2720, %v5921
        %v5926 = vmul.f32 %v2721, %v5922
        %v5927 = vmul.f32 %v2722, %v5923
        %v5928 = vpack.c.bf16 %v5926, %v5924
        %v5929 = vpack.c.bf16 %v5927, %v5925
        %v5930 = vld [vmem:[%s2291] sm:$0xff]
        %v5931 = vld [vmem:[%s2291 + $0x8] sm:$0xff]
        %v5932 = vld [vmem:[%s2291 + $0x10] sm:$0xff]
        %v5933 = vld [vmem:[%s2291 + $0x18] sm:$0xff]
        %v5934 = vld [vmem:[%s2291 + $0x20] sm:$0xff]
        %v5935 = vld [vmem:[%s2291 + $0x28] sm:$0xff]
        %v5936 = vld [vmem:[%s2291 + $0x30] sm:$0xff]
        %v5937 = vld [vmem:[%s2291 + $0x38] sm:$0xff]
        %v5938 = vld [vmem:[%s2291 + $0x40] sm:$0xff]
        %v5939 = vld [vmem:[%s2291 + $0x48] sm:$0xff]
        %v5940 = vld [vmem:[%s2291 + $0x50] sm:$0xff]
        %v5941 = vld [vmem:[%s2291 + $0x58] sm:$0xff]
        %v5942 = vld [vmem:[%s2291 + $0x60] sm:$0xff]
        %v5943 = vld [vmem:[%s2291 + $0x68] sm:$0xff]
        %v5944 = vld [vmem:[%s2291 + $0x70] sm:$0xff]
        %v5945 = vld [vmem:[%s2291 + $0x78] sm:$0xff]
        %v5946 = vld [vmem:[%s2291 + $0x80] sm:$0xff]
        %v5947 = vld [vmem:[%s2291 + $0x88] sm:$0xff]
        %v5948 = vld [vmem:[%s2291 + $0x90] sm:$0xff]
        %v5949 = vld [vmem:[%s2291 + $0x98] sm:$0xff]
        %v5950 = vld [vmem:[%s2291 + $0xa0] sm:$0xff]
        %v5951 = vld [vmem:[%s2291 + $0xa8] sm:$0xff]
        %v5952 = vld [vmem:[%s2291 + $0xb0] sm:$0xff]
        %v5953 = vld [vmem:[%s2291 + $0xb8] sm:$0xff]
        %v5954 = vld [vmem:[%s2291 + $0xc0] sm:$0xff]
        %v5955 = vld [vmem:[%s2291 + $0xc8] sm:$0xff]
        %v5956 = vld [vmem:[%s2291 + $0xd0] sm:$0xff]
        %v5957 = vld [vmem:[%s2291 + $0xd8] sm:$0xff]
        %v5958 = vld [vmem:[%s2291 + $0xe0] sm:$0xff]
        %v5959 = vld [vmem:[%s2291 + $0xe8] sm:$0xff]
        %v5960 = vld [vmem:[%s2291 + $0xf0] sm:$0xff]
        %v5961 = vld [vmem:[%s2291 + $0xf8] sm:$0xff]
        %v5962 = vld [vmem:[%s2672] sm:$0x3]
        %v5964 = vperm.slane %v5962, 0
        %v5965 = vperm.slane %v5962, 1
        %v6000 = vunpack.c.l.b16 %v5930
        %v6001 = vunpack.c.h.b16 %v5930
        %v6002 = vunpack.c.l.b16 %v5931
        %v6003 = vunpack.c.h.b16 %v5931
        %v6004 = vunpack.c.l.b16 %v5932
        %v6005 = vunpack.c.h.b16 %v5932
        %v6006 = vunpack.c.l.b16 %v5933
        %v6007 = vunpack.c.h.b16 %v5933
        %v6008 = vunpack.c.l.b16 %v5934
        %v6009 = vunpack.c.h.b16 %v5934
        %v6010 = vunpack.c.l.b16 %v5935
        %v6011 = vunpack.c.h.b16 %v5935
        %v6012 = vunpack.c.l.b16 %v5936
        %v6013 = vunpack.c.h.b16 %v5936
        %v6014 = vunpack.c.l.b16 %v5937
        %v6015 = vunpack.c.h.b16 %v5937
        %v6016 = vunpack.c.l.b16 %v5938
        %v6017 = vunpack.c.h.b16 %v5938
        %v6018 = vunpack.c.l.b16 %v5939
        %v6019 = vunpack.c.h.b16 %v5939
        %v6020 = vunpack.c.l.b16 %v5940
        %v6021 = vunpack.c.h.b16 %v5940
        %v6022 = vunpack.c.l.b16 %v5941
        %v6023 = vunpack.c.h.b16 %v5941
        %v6024 = vunpack.c.l.b16 %v5942
        %v6025 = vunpack.c.h.b16 %v5942
        %v6026 = vunpack.c.l.b16 %v5943
        %v6027 = vunpack.c.h.b16 %v5943
        %v6028 = vunpack.c.l.b16 %v5944
        %v6029 = vunpack.c.h.b16 %v5944
        %v6030 = vunpack.c.l.b16 %v5945
        %v6031 = vunpack.c.h.b16 %v5945
        %v6032 = vunpack.c.l.b16 %v5946
        %v6033 = vunpack.c.h.b16 %v5946
        %v6034 = vunpack.c.l.b16 %v5947
        %v6035 = vunpack.c.h.b16 %v5947
        %v6036 = vunpack.c.l.b16 %v5948
        %v6037 = vunpack.c.h.b16 %v5948
        %v6038 = vunpack.c.l.b16 %v5949
        %v6039 = vunpack.c.h.b16 %v5949
        %v6040 = vunpack.c.l.b16 %v5950
        %v6041 = vunpack.c.h.b16 %v5950
        %v6042 = vunpack.c.l.b16 %v5951
        %v6043 = vunpack.c.h.b16 %v5951
        %v6044 = vunpack.c.l.b16 %v5952
        %v6045 = vunpack.c.h.b16 %v5952
        %v6046 = vunpack.c.l.b16 %v5953
        %v6047 = vunpack.c.h.b16 %v5953
        %v6048 = vunpack.c.l.b16 %v5954
        %v6049 = vunpack.c.h.b16 %v5954
        %v6050 = vunpack.c.l.b16 %v5955
        %v6051 = vunpack.c.h.b16 %v5955
        %v6052 = vunpack.c.l.b16 %v5956
        %v6053 = vunpack.c.h.b16 %v5956
        %v6054 = vunpack.c.l.b16 %v5957
        %v6055 = vunpack.c.h.b16 %v5957
        %v6056 = vunpack.c.l.b16 %v5958
        %v6057 = vunpack.c.h.b16 %v5958
        %v6058 = vunpack.c.l.b16 %v5959
        %v6059 = vunpack.c.h.b16 %v5959
        %v6060 = vunpack.c.l.b16 %v5960
        %v6061 = vunpack.c.h.b16 %v5960
        %v6062 = vunpack.c.l.b16 %v5961
        %v6063 = vunpack.c.h.b16 %v5961
        %v6064 = vpack.c.b16 %v6002, %v6000
        %v6065 = vpack.c.b16 %v6003, %v6001
        %v6066 = vpack.c.b16 %v6006, %v6004
        %v6067 = vpack.c.b16 %v6007, %v6005
        %v6068 = vpack.c.b16 %v6010, %v6008
        %v6069 = vpack.c.b16 %v6011, %v6009
        %v6070 = vpack.c.b16 %v6014, %v6012
        %v6071 = vpack.c.b16 %v6015, %v6013
        %v6072 = vpack.c.b16 %v6018, %v6016
        %v6073 = vpack.c.b16 %v6019, %v6017
        %v6074 = vpack.c.b16 %v6022, %v6020
        %v6075 = vpack.c.b16 %v6023, %v6021
        %v6076 = vpack.c.b16 %v6026, %v6024
        %v6077 = vpack.c.b16 %v6027, %v6025
        %v6078 = vpack.c.b16 %v6030, %v6028
        %v6079 = vpack.c.b16 %v6031, %v6029
        %v6080 = vpack.c.b16 %v6034, %v6032
        %v6081 = vpack.c.b16 %v6035, %v6033
        %v6082 = vpack.c.b16 %v6038, %v6036
        %v6083 = vpack.c.b16 %v6039, %v6037
        %v6084 = vpack.c.b16 %v6042, %v6040
        %v6085 = vpack.c.b16 %v6043, %v6041
        %v6086 = vpack.c.b16 %v6046, %v6044
        %v6087 = vpack.c.b16 %v6047, %v6045
        %v6088 = vpack.c.b16 %v6050, %v6048
        %v6089 = vpack.c.b16 %v6051, %v6049
        %v6090 = vpack.c.b16 %v6054, %v6052
        %v6091 = vpack.c.b16 %v6055, %v6053
        %v6092 = vpack.c.b16 %v6058, %v6056
        %v6093 = vpack.c.b16 %v6059, %v6057
        %v6094 = vpack.c.b16 %v6062, %v6060
        %v6095 = vpack.c.b16 %v6063, %v6061
        %6128 = vmatpush.bf16.msra.mxu0 %v6078
        %6129 = vmatpush.bf16.msra.mxu0 %v6076
        %6130 = vmatpush.bf16.msra.mxu0 %v6074
        %6131 = vmatpush.bf16.msra.mxu0 %v6072
        %6132 = vmatpush.bf16.msra.mxu0 %v6070
        %6133 = vmatpush.bf16.msra.mxu0 %v6068
        %6134 = vmatpush.bf16.msra.mxu0 %v6066
        %6135 = vmatpush.bf16.msra.mxu0 %v6064
        %6136 = vmatmul.bf16.gmra.mxu0 %v5928
        %v6137 = vpop.f32.mrf.mxu0
        %v6138 = vadd.f32 %v5964, %v6137
        %v6139 = vpop.f32.mrf.mxu0
        %v6140 = vadd.f32 %v5964, %v6139
        %6141 = vdwg.mxu0
        %6142 = vmatpush.bf16.msra.mxu0 %v6094
        %6143 = vmatpush.bf16.msra.mxu0 %v6092
        %6144 = vmatpush.bf16.msra.mxu0 %v6090
        %6145 = vmatpush.bf16.msra.mxu0 %v6088
        %6146 = vmatpush.bf16.msra.mxu0 %v6086
        %6147 = vmatpush.bf16.msra.mxu0 %v6084
        %6148 = vmatpush.bf16.msra.mxu0 %v6082
        %6149 = vmatpush.bf16.msra.mxu0 %v6080
        %6150 = vmatmul.bf16.gmra.mxu0 %v5929
        %v6151 = vpop.f32.mrf.mxu0
        %v6152 = vadd.f32 %v6138, %v6151
        %v6153 = vpop.f32.mrf.mxu0
        %v6154 = vadd.f32 %v6140, %v6153
        %6155 = vdwg.mxu0
        %6156 = vmatpush.bf16.msra.mxu0 %v6079
        %6157 = vmatpush.bf16.msra.mxu0 %v6077
        %6158 = vmatpush.bf16.msra.mxu0 %v6075
        %6159 = vmatpush.bf16.msra.mxu0 %v6073
        %6160 = vmatpush.bf16.msra.mxu0 %v6071
        %6161 = vmatpush.bf16.msra.mxu0 %v6069
        %6162 = vmatpush.bf16.msra.mxu0 %v6067
        %6163 = vmatpush.bf16.msra.mxu0 %v6065
        %6164 = vmatmul.bf16.gmra.mxu0 %v5928
        %v6165 = vpop.f32.mrf.mxu0
        %v6166 = vadd.f32 %v5965, %v6165
        %v6167 = vpop.f32.mrf.mxu0
        %v6168 = vadd.f32 %v5965, %v6167
        %6169 = vdwg.mxu0
        %6170 = vmatpush.bf16.msra.mxu0 %v6095
        %6171 = vmatpush.bf16.msra.mxu0 %v6093
        %6172 = vmatpush.bf16.msra.mxu0 %v6091
        %6173 = vmatpush.bf16.msra.mxu0 %v6089
        %6174 = vmatpush.bf16.msra.mxu0 %v6087
        %6175 = vmatpush.bf16.msra.mxu0 %v6085
        %6176 = vmatpush.bf16.msra.mxu0 %v6083
        %6177 = vmatpush.bf16.msra.mxu0 %v6081
        %6178 = vmatmul.bf16.gmra.mxu0 %v5929
        %v6179 = vpop.f32.mrf.mxu0
        %v6180 = vadd.f32 %v6166, %v6179
        %v6181 = vpop.f32.mrf.mxu0
        %v6182 = vadd.f32 %v6168, %v6181
        %6183 = vdwg.mxu0
        %v6184 = vpack.c.bf16 %v5397, %v5395
        %v6185 = vpack.c.bf16 %v5398, %v5396
        %v6186 = vld [vmem:[%s2231] sm:$0xff]
        %v6187 = vld [vmem:[%s2231 + $0x8] sm:$0xff]
        %v6188 = vld [vmem:[%s2231 + $0x10] sm:$0xff]
        %v6189 = vld [vmem:[%s2231 + $0x18] sm:$0xff]
        %v6190 = vld [vmem:[%s2231 + $0x20] sm:$0xff]
        %v6191 = vld [vmem:[%s2231 + $0x28] sm:$0xff]
        %v6192 = vld [vmem:[%s2231 + $0x30] sm:$0xff]
        %v6193 = vld [vmem:[%s2231 + $0x38] sm:$0xff]
        %v6194 = vld [vmem:[%s2231 + $0x40] sm:$0xff]
        %v6195 = vld [vmem:[%s2231 + $0x48] sm:$0xff]
        %v6196 = vld [vmem:[%s2231 + $0x50] sm:$0xff]
        %v6197 = vld [vmem:[%s2231 + $0x58] sm:$0xff]
        %v6198 = vld [vmem:[%s2231 + $0x60] sm:$0xff]
        %v6199 = vld [vmem:[%s2231 + $0x68] sm:$0xff]
        %v6200 = vld [vmem:[%s2231 + $0x70] sm:$0xff]
        %v6201 = vld [vmem:[%s2231 + $0x78] sm:$0xff]
        %v6202 = vld [vmem:[%s2231 + $0x80] sm:$0xff]
        %v6203 = vld [vmem:[%s2231 + $0x88] sm:$0xff]
        %v6204 = vld [vmem:[%s2231 + $0x90] sm:$0xff]
        %v6205 = vld [vmem:[%s2231 + $0x98] sm:$0xff]
        %v6206 = vld [vmem:[%s2231 + $0xa0] sm:$0xff]
        %v6207 = vld [vmem:[%s2231 + $0xa8] sm:$0xff]
        %v6208 = vld [vmem:[%s2231 + $0xb0] sm:$0xff]
        %v6209 = vld [vmem:[%s2231 + $0xb8] sm:$0xff]
        %v6210 = vld [vmem:[%s2231 + $0xc0] sm:$0xff]
        %v6211 = vld [vmem:[%s2231 + $0xc8] sm:$0xff]
        %v6212 = vld [vmem:[%s2231 + $0xd0] sm:$0xff]
        %v6213 = vld [vmem:[%s2231 + $0xd8] sm:$0xff]
        %v6214 = vld [vmem:[%s2231 + $0xe0] sm:$0xff]
        %v6215 = vld [vmem:[%s2231 + $0xe8] sm:$0xff]
        %v6216 = vld [vmem:[%s2231 + $0xf0] sm:$0xff]
        %v6217 = vld [vmem:[%s2231 + $0xf8] sm:$0xff]
        %v6218 = vld [vmem:[%s2664] sm:$0x3]
        %v6220 = vperm.slane %v6218, 0
        %v6221 = vperm.slane %v6218, 1
        %v6256 = vunpack.c.l.b16 %v6186
        %v6257 = vunpack.c.h.b16 %v6186
        %v6258 = vunpack.c.l.b16 %v6187
        %v6259 = vunpack.c.h.b16 %v6187
        %v6260 = vunpack.c.l.b16 %v6188
        %v6261 = vunpack.c.h.b16 %v6188
        %v6262 = vunpack.c.l.b16 %v6189
        %v6263 = vunpack.c.h.b16 %v6189
        %v6264 = vunpack.c.l.b16 %v6190
        %v6265 = vunpack.c.h.b16 %v6190
        %v6266 = vunpack.c.l.b16 %v6191
        %v6267 = vunpack.c.h.b16 %v6191
        %v6268 = vunpack.c.l.b16 %v6192
        %v6269 = vunpack.c.h.b16 %v6192
        %v6270 = vunpack.c.l.b16 %v6193
        %v6271 = vunpack.c.h.b16 %v6193
        %v6272 = vunpack.c.l.b16 %v6194
        %v6273 = vunpack.c.h.b16 %v6194
        %v6274 = vunpack.c.l.b16 %v6195
        %v6275 = vunpack.c.h.b16 %v6195
        %v6276 = vunpack.c.l.b16 %v6196
        %v6277 = vunpack.c.h.b16 %v6196
        %v6278 = vunpack.c.l.b16 %v6197
        %v6279 = vunpack.c.h.b16 %v6197
        %v6280 = vunpack.c.l.b16 %v6198
        %v6281 = vunpack.c.h.b16 %v6198
        %v6282 = vunpack.c.l.b16 %v6199
        %v6283 = vunpack.c.h.b16 %v6199
        %v6284 = vunpack.c.l.b16 %v6200
        %v6285 = vunpack.c.h.b16 %v6200
        %v6286 = vunpack.c.l.b16 %v6201
        %v6287 = vunpack.c.h.b16 %v6201
        %v6288 = vunpack.c.l.b16 %v6202
        %v6289 = vunpack.c.h.b16 %v6202
        %v6290 = vunpack.c.l.b16 %v6203
        %v6291 = vunpack.c.h.b16 %v6203
        %v6292 = vunpack.c.l.b16 %v6204
        %v6293 = vunpack.c.h.b16 %v6204
        %v6294 = vunpack.c.l.b16 %v6205
        %v6295 = vunpack.c.h.b16 %v6205
        %v6296 = vunpack.c.l.b16 %v6206
        %v6297 = vunpack.c.h.b16 %v6206
        %v6298 = vunpack.c.l.b16 %v6207
        %v6299 = vunpack.c.h.b16 %v6207
        %v6300 = vunpack.c.l.b16 %v6208
        %v6301 = vunpack.c.h.b16 %v6208
        %v6302 = vunpack.c.l.b16 %v6209
        %v6303 = vunpack.c.h.b16 %v6209
        %v6304 = vunpack.c.l.b16 %v6210
        %v6305 = vunpack.c.h.b16 %v6210
        %v6306 = vunpack.c.l.b16 %v6211
        %v6307 = vunpack.c.h.b16 %v6211
        %v6308 = vunpack.c.l.b16 %v6212
        %v6309 = vunpack.c.h.b16 %v6212
        %v6310 = vunpack.c.l.b16 %v6213
        %v6311 = vunpack.c.h.b16 %v6213
        %v6312 = vunpack.c.l.b16 %v6214
        %v6313 = vunpack.c.h.b16 %v6214
        %v6314 = vunpack.c.l.b16 %v6215
        %v6315 = vunpack.c.h.b16 %v6215
        %v6316 = vunpack.c.l.b16 %v6216
        %v6317 = vunpack.c.h.b16 %v6216
        %v6318 = vunpack.c.l.b16 %v6217
        %v6319 = vunpack.c.h.b16 %v6217
        %v6320 = vpack.c.b16 %v6258, %v6256
        %v6321 = vpack.c.b16 %v6259, %v6257
        %v6322 = vpack.c.b16 %v6262, %v6260
        %v6323 = vpack.c.b16 %v6263, %v6261
        %v6324 = vpack.c.b16 %v6266, %v6264
        %v6325 = vpack.c.b16 %v6267, %v6265
        %v6326 = vpack.c.b16 %v6270, %v6268
        %v6327 = vpack.c.b16 %v6271, %v6269
        %v6328 = vpack.c.b16 %v6274, %v6272
        %v6329 = vpack.c.b16 %v6275, %v6273
        %v6330 = vpack.c.b16 %v6278, %v6276
        %v6331 = vpack.c.b16 %v6279, %v6277
        %v6332 = vpack.c.b16 %v6282, %v6280
        %v6333 = vpack.c.b16 %v6283, %v6281
        %v6334 = vpack.c.b16 %v6286, %v6284
        %v6335 = vpack.c.b16 %v6287, %v6285
        %v6336 = vpack.c.b16 %v6290, %v6288
        %v6337 = vpack.c.b16 %v6291, %v6289
        %v6338 = vpack.c.b16 %v6294, %v6292
        %v6339 = vpack.c.b16 %v6295, %v6293
        %v6340 = vpack.c.b16 %v6298, %v6296
        %v6341 = vpack.c.b16 %v6299, %v6297
        %v6342 = vpack.c.b16 %v6302, %v6300
        %v6343 = vpack.c.b16 %v6303, %v6301
        %v6344 = vpack.c.b16 %v6306, %v6304
        %v6345 = vpack.c.b16 %v6307, %v6305
        %v6346 = vpack.c.b16 %v6310, %v6308
        %v6347 = vpack.c.b16 %v6311, %v6309
        %v6348 = vpack.c.b16 %v6314, %v6312
        %v6349 = vpack.c.b16 %v6315, %v6313
        %v6350 = vpack.c.b16 %v6318, %v6316
        %v6351 = vpack.c.b16 %v6319, %v6317
        %6384 = vmatpush.bf16.msra.mxu0 %v6334
        %6385 = vmatpush.bf16.msra.mxu0 %v6332
        %6386 = vmatpush.bf16.msra.mxu0 %v6330
        %6387 = vmatpush.bf16.msra.mxu0 %v6328
        %6388 = vmatpush.bf16.msra.mxu0 %v6326
        %6389 = vmatpush.bf16.msra.mxu0 %v6324
        %6390 = vmatpush.bf16.msra.mxu0 %v6322
        %6391 = vmatpush.bf16.msra.mxu0 %v6320
        %6392 = vmatmul.bf16.gmra.mxu0 %v6184
        %v6393 = vpop.f32.mrf.mxu0
        %v6394 = vadd.f32 %v6220, %v6393
        %v6395 = vpop.f32.mrf.mxu0
        %v6396 = vadd.f32 %v6220, %v6395
        %6397 = vdwg.mxu0
        %6398 = vmatpush.bf16.msra.mxu0 %v6350
        %6399 = vmatpush.bf16.msra.mxu0 %v6348
        %6400 = vmatpush.bf16.msra.mxu0 %v6346
        %6401 = vmatpush.bf16.msra.mxu0 %v6344
        %6402 = vmatpush.bf16.msra.mxu0 %v6342
        %6403 = vmatpush.bf16.msra.mxu0 %v6340
        %6404 = vmatpush.bf16.msra.mxu0 %v6338
        %6405 = vmatpush.bf16.msra.mxu0 %v6336
        %6406 = vmatmul.bf16.gmra.mxu0 %v6185
        %v6407 = vpop.f32.mrf.mxu0
        %v6408 = vadd.f32 %v6394, %v6407
        %v6409 = vpop.f32.mrf.mxu0
        %v6410 = vadd.f32 %v6396, %v6409
        %6411 = vdwg.mxu0
        %6412 = vmatpush.bf16.msra.mxu0 %v6335
        %6413 = vmatpush.bf16.msra.mxu0 %v6333
        %6414 = vmatpush.bf16.msra.mxu0 %v6331
        %6415 = vmatpush.bf16.msra.mxu0 %v6329
        %6416 = vmatpush.bf16.msra.mxu0 %v6327
        %6417 = vmatpush.bf16.msra.mxu0 %v6325
        %6418 = vmatpush.bf16.msra.mxu0 %v6323
        %6419 = vmatpush.bf16.msra.mxu0 %v6321
        %6420 = vmatmul.bf16.gmra.mxu0 %v6184
        %v6421 = vpop.f32.mrf.mxu0
        %v6422 = vadd.f32 %v6221, %v6421
        %v6423 = vpop.f32.mrf.mxu0
        %v6424 = vadd.f32 %v6221, %v6423
        %6425 = vdwg.mxu0
        %6426 = vmatpush.bf16.msra.mxu0 %v6351
        %6427 = vmatpush.bf16.msra.mxu0 %v6349
        %6428 = vmatpush.bf16.msra.mxu0 %v6347
        %6429 = vmatpush.bf16.msra.mxu0 %v6345
        %6430 = vmatpush.bf16.msra.mxu0 %v6343
        %6431 = vmatpush.bf16.msra.mxu0 %v6341
        %6432 = vmatpush.bf16.msra.mxu0 %v6339
        %6433 = vmatpush.bf16.msra.mxu0 %v6337
        %6434 = vmatmul.bf16.gmra.mxu0 %v6185
        %v6435 = vpop.f32.mrf.mxu0
        %v6436 = vadd.f32 %v6422, %v6435
        %v6437 = vpop.f32.mrf.mxu0
        %v6438 = vadd.f32 %v6424, %v6437
        %6439 = vdwg.mxu0
        %v6440 = vmul.f32 %v5919, %v2723
        %v6441 = vmul.f32 %v5919, %v2724
        %v6442 = vmul.f32 %v5919, %v2725
        %v6443 = vmul.f32 %v5919, %v2726
        %v6444 = vadd.f32 %v6408, %v6440
        %v6445 = vadd.f32 %v6436, %v6441
        %v6446 = vadd.f32 %v6410, %v6442
        %v6447 = vadd.f32 %v6438, %v6443
        %v6448 = vpack.c.bf16 %v2701, %v2699
        %v6449 = vpack.c.bf16 %v2702, %v2700
        %v6450 = vpack.c.bf16 %v2705, %v2703
        %v6451 = vpack.c.bf16 %v2706, %v2704
        %v6452 = vld [vmem:[%s2241] sm:$0xff]
        %v6453 = vld [vmem:[%s2241 + $0x8] sm:$0xff]
        %v6454 = vld [vmem:[%s2241 + $0x10] sm:$0xff]
        %v6455 = vld [vmem:[%s2241 + $0x18] sm:$0xff]
        %v6456 = vld [vmem:[%s2241 + $0x20] sm:$0xff]
        %v6457 = vld [vmem:[%s2241 + $0x28] sm:$0xff]
        %v6458 = vld [vmem:[%s2241 + $0x30] sm:$0xff]
        %v6459 = vld [vmem:[%s2241 + $0x38] sm:$0xff]
        %v6460 = vld [vmem:[%s2241 + $0x40] sm:$0xff]
        %v6461 = vld [vmem:[%s2241 + $0x48] sm:$0xff]
        %v6462 = vld [vmem:[%s2241 + $0x50] sm:$0xff]
        %v6463 = vld [vmem:[%s2241 + $0x58] sm:$0xff]
        %v6464 = vld [vmem:[%s2241 + $0x60] sm:$0xff]
        %v6465 = vld [vmem:[%s2241 + $0x68] sm:$0xff]
        %v6466 = vld [vmem:[%s2241 + $0x70] sm:$0xff]
        %v6467 = vld [vmem:[%s2241 + $0x78] sm:$0xff]
        %v6468 = vld [vmem:[%s2241 + $0x80] sm:$0xff]
        %v6469 = vld [vmem:[%s2241 + $0x88] sm:$0xff]
        %v6470 = vld [vmem:[%s2241 + $0x90] sm:$0xff]
        %v6471 = vld [vmem:[%s2241 + $0x98] sm:$0xff]
        %v6472 = vld [vmem:[%s2241 + $0xa0] sm:$0xff]
        %v6473 = vld [vmem:[%s2241 + $0xa8] sm:$0xff]
        %v6474 = vld [vmem:[%s2241 + $0xb0] sm:$0xff]
        %v6475 = vld [vmem:[%s2241 + $0xb8] sm:$0xff]
        %v6476 = vld [vmem:[%s2241 + $0xc0] sm:$0xff]
        %v6477 = vld [vmem:[%s2241 + $0xc8] sm:$0xff]
        %v6478 = vld [vmem:[%s2241 + $0xd0] sm:$0xff]
        %v6479 = vld [vmem:[%s2241 + $0xd8] sm:$0xff]
        %v6480 = vld [vmem:[%s2241 + $0xe0] sm:$0xff]
        %v6481 = vld [vmem:[%s2241 + $0xe8] sm:$0xff]
        %v6482 = vld [vmem:[%s2241 + $0xf0] sm:$0xff]
        %v6483 = vld [vmem:[%s2241 + $0xf8] sm:$0xff]
        %v6484 = vld [vmem:[%s2251] sm:$0x3]
        %v6486 = vperm.slane %v6484, 0
        %v6487 = vperm.slane %v6484, 1
        %v6522 = vunpack.c.l.b16 %v6452
        %v6523 = vunpack.c.h.b16 %v6452
        %v6524 = vunpack.c.l.b16 %v6453
        %v6525 = vunpack.c.h.b16 %v6453
        %v6526 = vunpack.c.l.b16 %v6454
        %v6527 = vunpack.c.h.b16 %v6454
        %v6528 = vunpack.c.l.b16 %v6455
        %v6529 = vunpack.c.h.b16 %v6455
        %v6530 = vunpack.c.l.b16 %v6456
        %v6531 = vunpack.c.h.b16 %v6456
        %v6532 = vunpack.c.l.b16 %v6457
        %v6533 = vunpack.c.h.b16 %v6457
        %v6534 = vunpack.c.l.b16 %v6458
        %v6535 = vunpack.c.h.b16 %v6458
        %v6536 = vunpack.c.l.b16 %v6459
        %v6537 = vunpack.c.h.b16 %v6459
        %v6538 = vunpack.c.l.b16 %v6460
        %v6539 = vunpack.c.h.b16 %v6460
        %v6540 = vunpack.c.l.b16 %v6461
        %v6541 = vunpack.c.h.b16 %v6461
        %v6542 = vunpack.c.l.b16 %v6462
        %v6543 = vunpack.c.h.b16 %v6462
        %v6544 = vunpack.c.l.b16 %v6463
        %v6545 = vunpack.c.h.b16 %v6463
        %v6546 = vunpack.c.l.b16 %v6464
        %v6547 = vunpack.c.h.b16 %v6464
        %v6548 = vunpack.c.l.b16 %v6465
        %v6549 = vunpack.c.h.b16 %v6465
        %v6550 = vunpack.c.l.b16 %v6466
        %v6551 = vunpack.c.h.b16 %v6466
        %v6552 = vunpack.c.l.b16 %v6467
        %v6553 = vunpack.c.h.b16 %v6467
        %v6554 = vunpack.c.l.b16 %v6468
        %v6555 = vunpack.c.h.b16 %v6468
        %v6556 = vunpack.c.l.b16 %v6469
        %v6557 = vunpack.c.h.b16 %v6469
        %v6558 = vunpack.c.l.b16 %v6470
        %v6559 = vunpack.c.h.b16 %v6470
        %v6560 = vunpack.c.l.b16 %v6471
        %v6561 = vunpack.c.h.b16 %v6471
        %v6562 = vunpack.c.l.b16 %v6472
        %v6563 = vunpack.c.h.b16 %v6472
        %v6564 = vunpack.c.l.b16 %v6473
        %v6565 = vunpack.c.h.b16 %v6473
        %v6566 = vunpack.c.l.b16 %v6474
        %v6567 = vunpack.c.h.b16 %v6474
        %v6568 = vunpack.c.l.b16 %v6475
        %v6569 = vunpack.c.h.b16 %v6475
        %v6570 = vunpack.c.l.b16 %v6476
        %v6571 = vunpack.c.h.b16 %v6476
        %v6572 = vunpack.c.l.b16 %v6477
        %v6573 = vunpack.c.h.b16 %v6477
        %v6574 = vunpack.c.l.b16 %v6478
        %v6575 = vunpack.c.h.b16 %v6478
        %v6576 = vunpack.c.l.b16 %v6479
        %v6577 = vunpack.c.h.b16 %v6479
        %v6578 = vunpack.c.l.b16 %v6480
        %v6579 = vunpack.c.h.b16 %v6480
        %v6580 = vunpack.c.l.b16 %v6481
        %v6581 = vunpack.c.h.b16 %v6481
        %v6582 = vunpack.c.l.b16 %v6482
        %v6583 = vunpack.c.h.b16 %v6482
        %v6584 = vunpack.c.l.b16 %v6483
        %v6585 = vunpack.c.h.b16 %v6483
        %v6586 = vpack.c.b16 %v6524, %v6522
        %v6587 = vpack.c.b16 %v6525, %v6523
        %v6588 = vpack.c.b16 %v6528, %v6526
        %v6589 = vpack.c.b16 %v6529, %v6527
        %v6590 = vpack.c.b16 %v6532, %v6530
        %v6591 = vpack.c.b16 %v6533, %v6531
        %v6592 = vpack.c.b16 %v6536, %v6534
        %v6593 = vpack.c.b16 %v6537, %v6535
        %v6594 = vpack.c.b16 %v6540, %v6538
        %v6595 = vpack.c.b16 %v6541, %v6539
        %v6596 = vpack.c.b16 %v6544, %v6542
        %v6597 = vpack.c.b16 %v6545, %v6543
        %v6598 = vpack.c.b16 %v6548, %v6546
        %v6599 = vpack.c.b16 %v6549, %v6547
        %v6600 = vpack.c.b16 %v6552, %v6550
        %v6601 = vpack.c.b16 %v6553, %v6551
        %v6602 = vpack.c.b16 %v6556, %v6554
        %v6603 = vpack.c.b16 %v6557, %v6555
        %v6604 = vpack.c.b16 %v6560, %v6558
        %v6605 = vpack.c.b16 %v6561, %v6559
        %v6606 = vpack.c.b16 %v6564, %v6562
        %v6607 = vpack.c.b16 %v6565, %v6563
        %v6608 = vpack.c.b16 %v6568, %v6566
        %v6609 = vpack.c.b16 %v6569, %v6567
        %v6610 = vpack.c.b16 %v6572, %v6570
        %v6611 = vpack.c.b16 %v6573, %v6571
        %v6612 = vpack.c.b16 %v6576, %v6574
        %v6613 = vpack.c.b16 %v6577, %v6575
        %v6614 = vpack.c.b16 %v6580, %v6578
        %v6615 = vpack.c.b16 %v6581, %v6579
        %v6616 = vpack.c.b16 %v6584, %v6582
        %v6617 = vpack.c.b16 %v6585, %v6583
        %6650 = vmatpush.bf16.msra.mxu0 %v6600
        %6651 = vmatpush.bf16.msra.mxu0 %v6598
        %6652 = vmatpush.bf16.msra.mxu0 %v6596
        %6653 = vmatpush.bf16.msra.mxu0 %v6594
        %6654 = vmatpush.bf16.msra.mxu0 %v6592
        %6655 = vmatpush.bf16.msra.mxu0 %v6590
        %6656 = vmatpush.bf16.msra.mxu0 %v6588
        %6657 = vmatpush.bf16.msra.mxu0 %v6586
        %6658 = vmatmul.bf16.gmra.mxu0 %v6448
        %v6659 = vpop.f32.mrf.mxu0
        %v6660 = vadd.f32 %v6486, %v6659
        %v6661 = vpop.f32.mrf.mxu0
        %v6662 = vadd.f32 %v6486, %v6661
        %6663 = vmatmul.bf16.gmra.mxu0 %v6450
        %v6664 = vpop.f32.mrf.mxu0
        %v6665 = vadd.f32 %v6486, %v6664
        %v6666 = vpop.f32.mrf.mxu0
        %v6667 = vadd.f32 %v6486, %v6666
        %6668 = vdwg.mxu0
        %6669 = vmatpush.bf16.msra.mxu0 %v6616
        %6670 = vmatpush.bf16.msra.mxu0 %v6614
        %6671 = vmatpush.bf16.msra.mxu0 %v6612
        %6672 = vmatpush.bf16.msra.mxu0 %v6610
        %6673 = vmatpush.bf16.msra.mxu0 %v6608
        %6674 = vmatpush.bf16.msra.mxu0 %v6606
        %6675 = vmatpush.bf16.msra.mxu0 %v6604
        %6676 = vmatpush.bf16.msra.mxu0 %v6602
        %6677 = vmatmul.bf16.gmra.mxu0 %v6449
        %v6678 = vpop.f32.mrf.mxu0
        %v6679 = vadd.f32 %v6660, %v6678
        %v6680 = vpop.f32.mrf.mxu0
        %v6681 = vadd.f32 %v6662, %v6680
        %6682 = vmatmul.bf16.gmra.mxu0 %v6451
        %v6683 = vpop.f32.mrf.mxu0
        %v6684 = vadd.f32 %v6665, %v6683
        %v6685 = vpop.f32.mrf.mxu0
        %v6686 = vadd.f32 %v6667, %v6685
        %6687 = vdwg.mxu0
        %6688 = vmatpush.bf16.msra.mxu0 %v6601
        %6689 = vmatpush.bf16.msra.mxu0 %v6599
        %6690 = vmatpush.bf16.msra.mxu0 %v6597
        %6691 = vmatpush.bf16.msra.mxu0 %v6595
        %6692 = vmatpush.bf16.msra.mxu0 %v6593
        %6693 = vmatpush.bf16.msra.mxu0 %v6591
        %6694 = vmatpush.bf16.msra.mxu0 %v6589
        %6695 = vmatpush.bf16.msra.mxu0 %v6587
        %6696 = vmatmul.bf16.gmra.mxu0 %v6448
        %v6697 = vpop.f32.mrf.mxu0
        %v6698 = vadd.f32 %v6487, %v6697
        %v6699 = vpop.f32.mrf.mxu0
        %v6700 = vadd.f32 %v6487, %v6699
        %6701 = vmatmul.bf16.gmra.mxu0 %v6450
        %v6702 = vpop.f32.mrf.mxu0
        %v6703 = vadd.f32 %v6487, %v6702
        %v6704 = vpop.f32.mrf.mxu0
        %v6705 = vadd.f32 %v6487, %v6704
        %6706 = vdwg.mxu0
        %6707 = vmatpush.bf16.msra.mxu0 %v6617
        %6708 = vmatpush.bf16.msra.mxu0 %v6615
        %6709 = vmatpush.bf16.msra.mxu0 %v6613
        %6710 = vmatpush.bf16.msra.mxu0 %v6611
        %6711 = vmatpush.bf16.msra.mxu0 %v6609
        %6712 = vmatpush.bf16.msra.mxu0 %v6607
        %6713 = vmatpush.bf16.msra.mxu0 %v6605
        %6714 = vmatpush.bf16.msra.mxu0 %v6603
        %6715 = vmatmul.bf16.gmra.mxu0 %v6449
        %v6716 = vpop.f32.mrf.mxu0
        %v6717 = vadd.f32 %v6698, %v6716
        %v6718 = vpop.f32.mrf.mxu0
        %v6719 = vadd.f32 %v6700, %v6718
        %6720 = vmatmul.bf16.gmra.mxu0 %v6451
        %v6721 = vpop.f32.mrf.mxu0
        %v6722 = vadd.f32 %v6703, %v6721
        %v6723 = vpop.f32.mrf.mxu0
        %v6724 = vadd.f32 %v6705, %v6723
        %6725 = vdwg.mxu0
        %v6726 = vld [vmem:[%s2271] sm:$0xff]
        %v6727 = vld [vmem:[%s2271 + $0x8] sm:$0xff]
        %v6728 = vld [vmem:[%s2271 + $0x10] sm:$0xff]
        %v6729 = vld [vmem:[%s2271 + $0x18] sm:$0xff]
        %v6730 = vld [vmem:[%s2271 + $0x20] sm:$0xff]
        %v6731 = vld [vmem:[%s2271 + $0x28] sm:$0xff]
        %v6732 = vld [vmem:[%s2271 + $0x30] sm:$0xff]
        %v6733 = vld [vmem:[%s2271 + $0x38] sm:$0xff]
        %v6734 = vld [vmem:[%s2271 + $0x40] sm:$0xff]
        %v6735 = vld [vmem:[%s2271 + $0x48] sm:$0xff]
        %v6736 = vld [vmem:[%s2271 + $0x50] sm:$0xff]
        %v6737 = vld [vmem:[%s2271 + $0x58] sm:$0xff]
        %v6738 = vld [vmem:[%s2271 + $0x60] sm:$0xff]
        %v6739 = vld [vmem:[%s2271 + $0x68] sm:$0xff]
        %v6740 = vld [vmem:[%s2271 + $0x70] sm:$0xff]
        %v6741 = vld [vmem:[%s2271 + $0x78] sm:$0xff]
        %v6742 = vld [vmem:[%s2271 + $0x80] sm:$0xff]
        %v6743 = vld [vmem:[%s2271 + $0x88] sm:$0xff]
        %v6744 = vld [vmem:[%s2271 + $0x90] sm:$0xff]
        %v6745 = vld [vmem:[%s2271 + $0x98] sm:$0xff]
        %v6746 = vld [vmem:[%s2271 + $0xa0] sm:$0xff]
        %v6747 = vld [vmem:[%s2271 + $0xa8] sm:$0xff]
        %v6748 = vld [vmem:[%s2271 + $0xb0] sm:$0xff]
        %v6749 = vld [vmem:[%s2271 + $0xb8] sm:$0xff]
        %v6750 = vld [vmem:[%s2271 + $0xc0] sm:$0xff]
        %v6751 = vld [vmem:[%s2271 + $0xc8] sm:$0xff]
        %v6752 = vld [vmem:[%s2271 + $0xd0] sm:$0xff]
        %v6753 = vld [vmem:[%s2271 + $0xd8] sm:$0xff]
        %v6754 = vld [vmem:[%s2271 + $0xe0] sm:$0xff]
        %v6755 = vld [vmem:[%s2271 + $0xe8] sm:$0xff]
        %v6756 = vld [vmem:[%s2271 + $0xf0] sm:$0xff]
        %v6757 = vld [vmem:[%s2271 + $0xf8] sm:$0xff]
        %v6758 = vld [vmem:[%s2281] sm:$0x3]
        %v6760 = vperm.slane %v6758, 0
        %v6761 = vperm.slane %v6758, 1
        %v6796 = vunpack.c.l.b16 %v6726
        %v6797 = vunpack.c.h.b16 %v6726
        %v6798 = vunpack.c.l.b16 %v6727
        %v6799 = vunpack.c.h.b16 %v6727
        %v6800 = vunpack.c.l.b16 %v6728
        %v6801 = vunpack.c.h.b16 %v6728
        %v6802 = vunpack.c.l.b16 %v6729
        %v6803 = vunpack.c.h.b16 %v6729
        %v6804 = vunpack.c.l.b16 %v6730
        %v6805 = vunpack.c.h.b16 %v6730
        %v6806 = vunpack.c.l.b16 %v6731
        %v6807 = vunpack.c.h.b16 %v6731
        %v6808 = vunpack.c.l.b16 %v6732
        %v6809 = vunpack.c.h.b16 %v6732
        %v6810 = vunpack.c.l.b16 %v6733
        %v6811 = vunpack.c.h.b16 %v6733
        %v6812 = vunpack.c.l.b16 %v6734
        %v6813 = vunpack.c.h.b16 %v6734
        %v6814 = vunpack.c.l.b16 %v6735
        %v6815 = vunpack.c.h.b16 %v6735
        %v6816 = vunpack.c.l.b16 %v6736
        %v6817 = vunpack.c.h.b16 %v6736
        %v6818 = vunpack.c.l.b16 %v6737
        %v6819 = vunpack.c.h.b16 %v6737
        %v6820 = vunpack.c.l.b16 %v6738
        %v6821 = vunpack.c.h.b16 %v6738
        %v6822 = vunpack.c.l.b16 %v6739
        %v6823 = vunpack.c.h.b16 %v6739
        %v6824 = vunpack.c.l.b16 %v6740
        %v6825 = vunpack.c.h.b16 %v6740
        %v6826 = vunpack.c.l.b16 %v6741
        %v6827 = vunpack.c.h.b16 %v6741
        %v6828 = vunpack.c.l.b16 %v6742
        %v6829 = vunpack.c.h.b16 %v6742
        %v6830 = vunpack.c.l.b16 %v6743
        %v6831 = vunpack.c.h.b16 %v6743
        %v6832 = vunpack.c.l.b16 %v6744
        %v6833 = vunpack.c.h.b16 %v6744
        %v6834 = vunpack.c.l.b16 %v6745
        %v6835 = vunpack.c.h.b16 %v6745
        %v6836 = vunpack.c.l.b16 %v6746
        %v6837 = vunpack.c.h.b16 %v6746
        %v6838 = vunpack.c.l.b16 %v6747
        %v6839 = vunpack.c.h.b16 %v6747
        %v6840 = vunpack.c.l.b16 %v6748
        %v6841 = vunpack.c.h.b16 %v6748
        %v6842 = vunpack.c.l.b16 %v6749
        %v6843 = vunpack.c.h.b16 %v6749
        %v6844 = vunpack.c.l.b16 %v6750
        %v6845 = vunpack.c.h.b16 %v6750
        %v6846 = vunpack.c.l.b16 %v6751
        %v6847 = vunpack.c.h.b16 %v6751
        %v6848 = vunpack.c.l.b16 %v6752
        %v6849 = vunpack.c.h.b16 %v6752
        %v6850 = vunpack.c.l.b16 %v6753
        %v6851 = vunpack.c.h.b16 %v6753
        %v6852 = vunpack.c.l.b16 %v6754
        %v6853 = vunpack.c.h.b16 %v6754
        %v6854 = vunpack.c.l.b16 %v6755
        %v6855 = vunpack.c.h.b16 %v6755
        %v6856 = vunpack.c.l.b16 %v6756
        %v6857 = vunpack.c.h.b16 %v6756
        %v6858 = vunpack.c.l.b16 %v6757
        %v6859 = vunpack.c.h.b16 %v6757
        %v6860 = vpack.c.b16 %v6798, %v6796
        %v6861 = vpack.c.b16 %v6799, %v6797
        %v6862 = vpack.c.b16 %v6802, %v6800
        %v6863 = vpack.c.b16 %v6803, %v6801
        %v6864 = vpack.c.b16 %v6806, %v6804
        %v6865 = vpack.c.b16 %v6807, %v6805
        %v6866 = vpack.c.b16 %v6810, %v6808
        %v6867 = vpack.c.b16 %v6811, %v6809
        %v6868 = vpack.c.b16 %v6814, %v6812
        %v6869 = vpack.c.b16 %v6815, %v6813
        %v6870 = vpack.c.b16 %v6818, %v6816
        %v6871 = vpack.c.b16 %v6819, %v6817
        %v6872 = vpack.c.b16 %v6822, %v6820
        %v6873 = vpack.c.b16 %v6823, %v6821
        %v6874 = vpack.c.b16 %v6826, %v6824
        %v6875 = vpack.c.b16 %v6827, %v6825
        %v6876 = vpack.c.b16 %v6830, %v6828
        %v6877 = vpack.c.b16 %v6831, %v6829
        %v6878 = vpack.c.b16 %v6834, %v6832
        %v6879 = vpack.c.b16 %v6835, %v6833
        %v6880 = vpack.c.b16 %v6838, %v6836
        %v6881 = vpack.c.b16 %v6839, %v6837
        %v6882 = vpack.c.b16 %v6842, %v6840
        %v6883 = vpack.c.b16 %v6843, %v6841
        %v6884 = vpack.c.b16 %v6846, %v6844
        %v6885 = vpack.c.b16 %v6847, %v6845
        %v6886 = vpack.c.b16 %v6850, %v6848
        %v6887 = vpack.c.b16 %v6851, %v6849
        %v6888 = vpack.c.b16 %v6854, %v6852
        %v6889 = vpack.c.b16 %v6855, %v6853
        %v6890 = vpack.c.b16 %v6858, %v6856
        %v6891 = vpack.c.b16 %v6859, %v6857
        %6924 = vmatpush.bf16.msra.mxu0 %v6874
        %6925 = vmatpush.bf16.msra.mxu0 %v6872
        %6926 = vmatpush.bf16.msra.mxu0 %v6870
        %6927 = vmatpush.bf16.msra.mxu0 %v6868
        %6928 = vmatpush.bf16.msra.mxu0 %v6866
        %6929 = vmatpush.bf16.msra.mxu0 %v6864
        %6930 = vmatpush.bf16.msra.mxu0 %v6862
        %6931 = vmatpush.bf16.msra.mxu0 %v6860
        %6932 = vmatmul.bf16.gmra.mxu0 %v6448
        %v6933 = vpop.f32.mrf.mxu0
        %v6934 = vadd.f32 %v6760, %v6933
        %v6935 = vpop.f32.mrf.mxu0
        %v6936 = vadd.f32 %v6760, %v6935
        %6937 = vmatmul.bf16.gmra.mxu0 %v6450
        %v6938 = vpop.f32.mrf.mxu0
        %v6939 = vadd.f32 %v6760, %v6938
        %v6940 = vpop.f32.mrf.mxu0
        %v6941 = vadd.f32 %v6760, %v6940
        %6942 = vdwg.mxu0
        %6943 = vmatpush.bf16.msra.mxu0 %v6890
        %6944 = vmatpush.bf16.msra.mxu0 %v6888
        %6945 = vmatpush.bf16.msra.mxu0 %v6886
        %6946 = vmatpush.bf16.msra.mxu0 %v6884
        %6947 = vmatpush.bf16.msra.mxu0 %v6882
        %6948 = vmatpush.bf16.msra.mxu0 %v6880
        %6949 = vmatpush.bf16.msra.mxu0 %v6878
        %6950 = vmatpush.bf16.msra.mxu0 %v6876
        %6951 = vmatmul.bf16.gmra.mxu0 %v6449
        %v6952 = vpop.f32.mrf.mxu0
        %v6953 = vadd.f32 %v6934, %v6952
        %v6954 = vpop.f32.mrf.mxu0
        %v6955 = vadd.f32 %v6936, %v6954
        %6956 = vmatmul.bf16.gmra.mxu0 %v6451
        %v6957 = vpop.f32.mrf.mxu0
        %v6958 = vadd.f32 %v6939, %v6957
        %v6959 = vpop.f32.mrf.mxu0
        %v6960 = vadd.f32 %v6941, %v6959
        %6961 = vdwg.mxu0
        %6962 = vmatpush.bf16.msra.mxu0 %v6875
        %6963 = vmatpush.bf16.msra.mxu0 %v6873
        %6964 = vmatpush.bf16.msra.mxu0 %v6871
        %6965 = vmatpush.bf16.msra.mxu0 %v6869
        %6966 = vmatpush.bf16.msra.mxu0 %v6867
        %6967 = vmatpush.bf16.msra.mxu0 %v6865
        %6968 = vmatpush.bf16.msra.mxu0 %v6863
        %6969 = vmatpush.bf16.msra.mxu0 %v6861
        %6970 = vmatmul.bf16.gmra.mxu0 %v6448
        %v6971 = vpop.f32.mrf.mxu0
        %v6972 = vadd.f32 %v6761, %v6971
        %v6973 = vpop.f32.mrf.mxu0
        %v6974 = vadd.f32 %v6761, %v6973
        %6975 = vmatmul.bf16.gmra.mxu0 %v6450
        %v6976 = vpop.f32.mrf.mxu0
        %v6977 = vadd.f32 %v6761, %v6976
        %v6978 = vpop.f32.mrf.mxu0
        %v6979 = vadd.f32 %v6761, %v6978
        %6980 = vdwg.mxu0
        %6981 = vmatpush.bf16.msra.mxu0 %v6891
        %6982 = vmatpush.bf16.msra.mxu0 %v6889
        %6983 = vmatpush.bf16.msra.mxu0 %v6887
        %6984 = vmatpush.bf16.msra.mxu0 %v6885
        %6985 = vmatpush.bf16.msra.mxu0 %v6883
        %6986 = vmatpush.bf16.msra.mxu0 %v6881
        %6987 = vmatpush.bf16.msra.mxu0 %v6879
        %6988 = vmatpush.bf16.msra.mxu0 %v6877
        %6989 = vmatmul.bf16.gmra.mxu0 %v6449
        %v6990 = vpop.f32.mrf.mxu0
        %v6991 = vadd.f32 %v6972, %v6990
        %v6992 = vpop.f32.mrf.mxu0
        %v6993 = vadd.f32 %v6974, %v6992
        %6994 = vmatmul.bf16.gmra.mxu0 %v6451
        %v6995 = vpop.f32.mrf.mxu0
        %v6996 = vadd.f32 %v6977, %v6995
        %v6997 = vpop.f32.mrf.mxu0
        %v6998 = vadd.f32 %v6979, %v6997
        %6999 = vdwg.mxu0
        %v7000 = vpack.c.bf16 %v2713, %v2711
        %v7001 = vpack.c.bf16 %v2714, %v2712
        %v7002 = vpack.c.bf16 %v2717, %v2715
        %v7003 = vpack.c.bf16 %v2718, %v2716
        %v7004 = vld [vmem:[%s2261] sm:$0xff]
        %v7005 = vld [vmem:[%s2261 + $0x8] sm:$0xff]
        %v7006 = vld [vmem:[%s2261 + $0x10] sm:$0xff]
        %v7007 = vld [vmem:[%s2261 + $0x18] sm:$0xff]
        %v7008 = vld [vmem:[%s2261 + $0x20] sm:$0xff]
        %v7009 = vld [vmem:[%s2261 + $0x28] sm:$0xff]
        %v7010 = vld [vmem:[%s2261 + $0x30] sm:$0xff]
        %v7011 = vld [vmem:[%s2261 + $0x38] sm:$0xff]
        %v7012 = vld [vmem:[%s2261 + $0x40] sm:$0xff]
        %v7013 = vld [vmem:[%s2261 + $0x48] sm:$0xff]
        %v7014 = vld [vmem:[%s2261 + $0x50] sm:$0xff]
        %v7015 = vld [vmem:[%s2261 + $0x58] sm:$0xff]
        %v7016 = vld [vmem:[%s2261 + $0x60] sm:$0xff]
        %v7017 = vld [vmem:[%s2261 + $0x68] sm:$0xff]
        %v7018 = vld [vmem:[%s2261 + $0x70] sm:$0xff]
        %v7019 = vld [vmem:[%s2261 + $0x78] sm:$0xff]
        %v7020 = vld [vmem:[%s2261 + $0x80] sm:$0xff]
        %v7021 = vld [vmem:[%s2261 + $0x88] sm:$0xff]
        %v7022 = vld [vmem:[%s2261 + $0x90] sm:$0xff]
        %v7023 = vld [vmem:[%s2261 + $0x98] sm:$0xff]
        %v7024 = vld [vmem:[%s2261 + $0xa0] sm:$0xff]
        %v7025 = vld [vmem:[%s2261 + $0xa8] sm:$0xff]
        %v7026 = vld [vmem:[%s2261 + $0xb0] sm:$0xff]
        %v7027 = vld [vmem:[%s2261 + $0xb8] sm:$0xff]
        %v7028 = vld [vmem:[%s2261 + $0xc0] sm:$0xff]
        %v7029 = vld [vmem:[%s2261 + $0xc8] sm:$0xff]
        %v7030 = vld [vmem:[%s2261 + $0xd0] sm:$0xff]
        %v7031 = vld [vmem:[%s2261 + $0xd8] sm:$0xff]
        %v7032 = vld [vmem:[%s2261 + $0xe0] sm:$0xff]
        %v7033 = vld [vmem:[%s2261 + $0xe8] sm:$0xff]
        %v7034 = vld [vmem:[%s2261 + $0xf0] sm:$0xff]
        %v7035 = vld [vmem:[%s2261 + $0xf8] sm:$0xff]
        %v7036 = vld [vmem:[%s2668] sm:$0x3]
        %v7038 = vperm.slane %v7036, 0
        %v7039 = vperm.slane %v7036, 1
        %v7074 = vunpack.c.l.b16 %v7004
        %v7075 = vunpack.c.h.b16 %v7004
        %v7076 = vunpack.c.l.b16 %v7005
        %v7077 = vunpack.c.h.b16 %v7005
        %v7078 = vunpack.c.l.b16 %v7006
        %v7079 = vunpack.c.h.b16 %v7006
        %v7080 = vunpack.c.l.b16 %v7007
        %v7081 = vunpack.c.h.b16 %v7007
        %v7082 = vunpack.c.l.b16 %v7008
        %v7083 = vunpack.c.h.b16 %v7008
        %v7084 = vunpack.c.l.b16 %v7009
        %v7085 = vunpack.c.h.b16 %v7009
        %v7086 = vunpack.c.l.b16 %v7010
        %v7087 = vunpack.c.h.b16 %v7010
        %v7088 = vunpack.c.l.b16 %v7011
        %v7089 = vunpack.c.h.b16 %v7011
        %v7090 = vunpack.c.l.b16 %v7012
        %v7091 = vunpack.c.h.b16 %v7012
        %v7092 = vunpack.c.l.b16 %v7013
        %v7093 = vunpack.c.h.b16 %v7013
        %v7094 = vunpack.c.l.b16 %v7014
        %v7095 = vunpack.c.h.b16 %v7014
        %v7096 = vunpack.c.l.b16 %v7015
        %v7097 = vunpack.c.h.b16 %v7015
        %v7098 = vunpack.c.l.b16 %v7016
        %v7099 = vunpack.c.h.b16 %v7016
        %v7100 = vunpack.c.l.b16 %v7017
        %v7101 = vunpack.c.h.b16 %v7017
        %v7102 = vunpack.c.l.b16 %v7018
        %v7103 = vunpack.c.h.b16 %v7018
        %v7104 = vunpack.c.l.b16 %v7019
        %v7105 = vunpack.c.h.b16 %v7019
        %v7106 = vunpack.c.l.b16 %v7020
        %v7107 = vunpack.c.h.b16 %v7020
        %v7108 = vunpack.c.l.b16 %v7021
        %v7109 = vunpack.c.h.b16 %v7021
        %v7110 = vunpack.c.l.b16 %v7022
        %v7111 = vunpack.c.h.b16 %v7022
        %v7112 = vunpack.c.l.b16 %v7023
        %v7113 = vunpack.c.h.b16 %v7023
        %v7114 = vunpack.c.l.b16 %v7024
        %v7115 = vunpack.c.h.b16 %v7024
        %v7116 = vunpack.c.l.b16 %v7025
        %v7117 = vunpack.c.h.b16 %v7025
        %v7118 = vunpack.c.l.b16 %v7026
        %v7119 = vunpack.c.h.b16 %v7026
        %v7120 = vunpack.c.l.b16 %v7027
        %v7121 = vunpack.c.h.b16 %v7027
        %v7122 = vunpack.c.l.b16 %v7028
        %v7123 = vunpack.c.h.b16 %v7028
        %v7124 = vunpack.c.l.b16 %v7029
        %v7125 = vunpack.c.h.b16 %v7029
        %v7126 = vunpack.c.l.b16 %v7030
        %v7127 = vunpack.c.h.b16 %v7030
        %v7128 = vunpack.c.l.b16 %v7031
        %v7129 = vunpack.c.h.b16 %v7031
        %v7130 = vunpack.c.l.b16 %v7032
        %v7131 = vunpack.c.h.b16 %v7032
        %v7132 = vunpack.c.l.b16 %v7033
        %v7133 = vunpack.c.h.b16 %v7033
        %v7134 = vunpack.c.l.b16 %v7034
        %v7135 = vunpack.c.h.b16 %v7034
        %v7136 = vunpack.c.l.b16 %v7035
        %v7137 = vunpack.c.h.b16 %v7035
        %v7138 = vpack.c.b16 %v7076, %v7074
        %v7139 = vpack.c.b16 %v7077, %v7075
        %v7140 = vpack.c.b16 %v7080, %v7078
        %v7141 = vpack.c.b16 %v7081, %v7079
        %v7142 = vpack.c.b16 %v7084, %v7082
        %v7143 = vpack.c.b16 %v7085, %v7083
        %v7144 = vpack.c.b16 %v7088, %v7086
        %v7145 = vpack.c.b16 %v7089, %v7087
        %v7146 = vpack.c.b16 %v7092, %v7090
        %v7147 = vpack.c.b16 %v7093, %v7091
        %v7148 = vpack.c.b16 %v7096, %v7094
        %v7149 = vpack.c.b16 %v7097, %v7095
        %v7150 = vpack.c.b16 %v7100, %v7098
        %v7151 = vpack.c.b16 %v7101, %v7099
        %v7152 = vpack.c.b16 %v7104, %v7102
        %v7153 = vpack.c.b16 %v7105, %v7103
        %v7154 = vpack.c.b16 %v7108, %v7106
        %v7155 = vpack.c.b16 %v7109, %v7107
        %v7156 = vpack.c.b16 %v7112, %v7110
        %v7157 = vpack.c.b16 %v7113, %v7111
        %v7158 = vpack.c.b16 %v7116, %v7114
        %v7159 = vpack.c.b16 %v7117, %v7115
        %v7160 = vpack.c.b16 %v7120, %v7118
        %v7161 = vpack.c.b16 %v7121, %v7119
        %v7162 = vpack.c.b16 %v7124, %v7122
        %v7163 = vpack.c.b16 %v7125, %v7123
        %v7164 = vpack.c.b16 %v7128, %v7126
        %v7165 = vpack.c.b16 %v7129, %v7127
        %v7166 = vpack.c.b16 %v7132, %v7130
        %v7167 = vpack.c.b16 %v7133, %v7131
        %v7168 = vpack.c.b16 %v7136, %v7134
        %v7169 = vpack.c.b16 %v7137, %v7135
        %7202 = vmatpush.bf16.msra.mxu0 %v7152
        %7203 = vmatpush.bf16.msra.mxu0 %v7150
        %7204 = vmatpush.bf16.msra.mxu0 %v7148
        %7205 = vmatpush.bf16.msra.mxu0 %v7146
        %7206 = vmatpush.bf16.msra.mxu0 %v7144
        %7207 = vmatpush.bf16.msra.mxu0 %v7142
        %7208 = vmatpush.bf16.msra.mxu0 %v7140
        %7209 = vmatpush.bf16.msra.mxu0 %v7138
        %7210 = vmatmul.bf16.gmra.mxu0 %v7000
        %v7211 = vpop.f32.mrf.mxu0
        %v7212 = vadd.f32 %v7038, %v7211
        %v7213 = vpop.f32.mrf.mxu0
        %v7214 = vadd.f32 %v7038, %v7213
        %7215 = vmatmul.bf16.gmra.mxu0 %v7002
        %v7216 = vpop.f32.mrf.mxu0
        %v7217 = vadd.f32 %v7038, %v7216
        %v7218 = vpop.f32.mrf.mxu0
        %v7219 = vadd.f32 %v7038, %v7218
        %7220 = vdwg.mxu0
        %7221 = vmatpush.bf16.msra.mxu0 %v7168
        %7222 = vmatpush.bf16.msra.mxu0 %v7166
        %7223 = vmatpush.bf16.msra.mxu0 %v7164
        %7224 = vmatpush.bf16.msra.mxu0 %v7162
        %7225 = vmatpush.bf16.msra.mxu0 %v7160
        %7226 = vmatpush.bf16.msra.mxu0 %v7158
        %7227 = vmatpush.bf16.msra.mxu0 %v7156
        %7228 = vmatpush.bf16.msra.mxu0 %v7154
        %7229 = vmatmul.bf16.gmra.mxu0 %v7001
        %v7230 = vpop.f32.mrf.mxu0
        %v7231 = vadd.f32 %v7212, %v7230
        %v7232 = vpop.f32.mrf.mxu0
        %v7233 = vadd.f32 %v7214, %v7232
        %7234 = vmatmul.bf16.gmra.mxu0 %v7003
        %v7235 = vpop.f32.mrf.mxu0
        %v7236 = vadd.f32 %v7217, %v7235
        %v7237 = vpop.f32.mrf.mxu0
        %v7238 = vadd.f32 %v7219, %v7237
        %7239 = vdwg.mxu0
        %7240 = vmatpush.bf16.msra.mxu0 %v7153
        %7241 = vmatpush.bf16.msra.mxu0 %v7151
        %7242 = vmatpush.bf16.msra.mxu0 %v7149
        %7243 = vmatpush.bf16.msra.mxu0 %v7147
        %7244 = vmatpush.bf16.msra.mxu0 %v7145
        %7245 = vmatpush.bf16.msra.mxu0 %v7143
        %7246 = vmatpush.bf16.msra.mxu0 %v7141
        %7247 = vmatpush.bf16.msra.mxu0 %v7139
        %7248 = vmatmul.bf16.gmra.mxu0 %v7000
        %v7249 = vpop.f32.mrf.mxu0
        %v7250 = vadd.f32 %v7039, %v7249
        %v7251 = vpop.f32.mrf.mxu0
        %v7252 = vadd.f32 %v7039, %v7251
        %7253 = vmatmul.bf16.gmra.mxu0 %v7002
        %v7254 = vpop.f32.mrf.mxu0
        %v7255 = vadd.f32 %v7039, %v7254
        %v7256 = vpop.f32.mrf.mxu0
        %v7257 = vadd.f32 %v7039, %v7256
        %7258 = vdwg.mxu0
        %7259 = vmatpush.bf16.msra.mxu0 %v7169
        %7260 = vmatpush.bf16.msra.mxu0 %v7167
        %7261 = vmatpush.bf16.msra.mxu0 %v7165
        %7262 = vmatpush.bf16.msra.mxu0 %v7163
        %7263 = vmatpush.bf16.msra.mxu0 %v7161
        %7264 = vmatpush.bf16.msra.mxu0 %v7159
        %7265 = vmatpush.bf16.msra.mxu0 %v7157
        %7266 = vmatpush.bf16.msra.mxu0 %v7155
        %7267 = vmatmul.bf16.gmra.mxu0 %v7001
        %v7268 = vpop.f32.mrf.mxu0
        %v7269 = vadd.f32 %v7250, %v7268
        %v7270 = vpop.f32.mrf.mxu0
        %v7271 = vadd.f32 %v7252, %v7270
        %7272 = vmatmul.bf16.gmra.mxu0 %v7003
        %v7273 = vpop.f32.mrf.mxu0
        %v7274 = vadd.f32 %v7255, %v7273
        %v7275 = vpop.f32.mrf.mxu0
        %v7276 = vadd.f32 %v7257, %v7275
        %7277 = vdwg.mxu0
        %v7278 = vmul.f32 %v5919, %v7231
        %v7279 = vmul.f32 %v5919, %v7269
        %v7280 = vmul.f32 %v5919, %v7233
        %v7281 = vmul.f32 %v5919, %v7271
        %v7282 = vmul.f32 %v5919, %v7236
        %v7283 = vmul.f32 %v5919, %v7274
        %v7284 = vmul.f32 %v5919, %v7238
        %v7285 = vmul.f32 %v5919, %v7276
        %v7286 = vadd.f32 %v6679, %v7278
        %v7287 = vadd.f32 %v6717, %v7279
        %v7288 = vadd.f32 %v6681, %v7280
        %v7289 = vadd.f32 %v6719, %v7281
        %v7290 = vadd.f32 %v6684, %v7282
        %v7291 = vadd.f32 %v6722, %v7283
        %v7292 = vadd.f32 %v6686, %v7284
        %v7293 = vadd.f32 %v6724, %v7285
        %7296 = vrot.lane.b32.xlu0 %v6444, 96
        %v7297 = vpop.permute.xlu0 %7296
        %7298 = vrot.lane.b32.xlu0 %v6446, 96
        %v7299 = vpop.permute.xlu0 %7298
        %7302 = vrot.lane.b32.xlu0 %v6444, 64
        %v7303 = vpop.permute.xlu0 %7302
        %7304 = vrot.lane.b32.xlu0 %v6446, 64
        %v7305 = vpop.permute.xlu0 %7304
        %7308 = vrot.lane.b32.xlu0 %v6444, 32
        %v7309 = vpop.permute.xlu0 %7308
        %7310 = vrot.lane.b32.xlu0 %v6446, 32
        %v7311 = vpop.permute.xlu0 %7310
        %7316 = vrot.lane.b32.xlu0 %v6445, 96
        %v7317 = vpop.permute.xlu0 %7316
        %7318 = vrot.lane.b32.xlu0 %v6447, 96
        %v7319 = vpop.permute.xlu0 %7318
        %7322 = vrot.lane.b32.xlu0 %v6445, 64
        %v7323 = vpop.permute.xlu0 %7322
        %7324 = vrot.lane.b32.xlu0 %v6447, 64
        %v7325 = vpop.permute.xlu0 %7324
        %7328 = vrot.lane.b32.xlu0 %v6445, 32
        %v7329 = vpop.permute.xlu0 %7328
        %7330 = vrot.lane.b32.xlu0 %v6447, 32
        %v7331 = vpop.permute.xlu0 %7330
        %7336 = vrot.lane.b32.xlu0 %v6152, 96
        %v7337 = vpop.permute.xlu0 %7336
        %7338 = vrot.lane.b32.xlu0 %v6154, 96
        %v7339 = vpop.permute.xlu0 %7338
        %7340 = vrot.lane.b32.xlu0 %v6152, 64
        %v7341 = vpop.permute.xlu0 %7340
        %7342 = vrot.lane.b32.xlu0 %v6154, 64
        %v7343 = vpop.permute.xlu0 %7342
        %7344 = vrot.lane.b32.xlu0 %v6152, 32
        %v7345 = vpop.permute.xlu0 %7344
        %7346 = vrot.lane.b32.xlu0 %v6154, 32
        %v7347 = vpop.permute.xlu0 %7346
        %7350 = vrot.lane.b32.xlu0 %v6180, 96
        %v7351 = vpop.permute.xlu0 %7350
        %7352 = vrot.lane.b32.xlu0 %v6182, 96
        %v7353 = vpop.permute.xlu0 %7352
        %7354 = vrot.lane.b32.xlu0 %v6180, 64
        %v7355 = vpop.permute.xlu0 %7354
        %7356 = vrot.lane.b32.xlu0 %v6182, 64
        %v7357 = vpop.permute.xlu0 %7356
        %7358 = vrot.lane.b32.xlu0 %v6180, 32
        %v7359 = vpop.permute.xlu0 %7358
        %7360 = vrot.lane.b32.xlu0 %v6182, 32
        %v7361 = vpop.permute.xlu0 %7360
        %7362 = vrot.lane.b32.xlu0 %v7337, 32
        %v7363 = vpop.permute.xlu0 %7362
        %7364 = vrot.lane.b32.xlu0 %v7339, 32
        %v7365 = vpop.permute.xlu0 %7364
        %7366 = vrot.lane.b32.xlu0 %v7341, 32
        %v7367 = vpop.permute.xlu0 %7366
        %7368 = vrot.lane.b32.xlu0 %v7343, 32
        %v7369 = vpop.permute.xlu0 %7368
        %7370 = vrot.lane.b32.xlu0 %v7345, 32
        %v7371 = vpop.permute.xlu0 %7370
        %7372 = vrot.lane.b32.xlu0 %v7347, 32
        %v7373 = vpop.permute.xlu0 %7372
        %7374 = vrot.lane.b32.xlu0 %v7351, 32
        %v7375 = vpop.permute.xlu0 %7374
        %7376 = vrot.lane.b32.xlu0 %v7353, 32
        %v7377 = vpop.permute.xlu0 %7376
        %7378 = vrot.lane.b32.xlu0 %v7355, 32
        %v7379 = vpop.permute.xlu0 %7378
        %7380 = vrot.lane.b32.xlu0 %v7357, 32
        %v7381 = vpop.permute.xlu0 %7380
        %7382 = vrot.lane.b32.xlu0 %v7359, 32
        %v7383 = vpop.permute.xlu0 %7382
        %7384 = vrot.lane.b32.xlu0 %v7361, 32
        %v7385 = vpop.permute.xlu0 %7384
        %v7402 = vsel %vm4165, %v6444, %v7345
        %v7403 = vsel %vm4165, %v6446, %v7347
        %v7404 = vsel %vm4165, %v7297, %v7363
        %v7405 = vsel %vm4165, %v7299, %v7365
        %v7406 = vsel %vm4165, %v7303, %v7367
        %v7407 = vsel %vm4165, %v7305, %v7369
        %v7408 = vsel %vm4165, %v7309, %v7371
        %v7409 = vsel %vm4165, %v7311, %v7373
        %v7410 = vsel %vm4165, %v6445, %v7359
        %v7411 = vsel %vm4165, %v6447, %v7361
        %v7412 = vsel %vm4165, %v7317, %v7375
        %v7413 = vsel %vm4165, %v7319, %v7377
        %v7414 = vsel %vm4165, %v7323, %v7379
        %v7415 = vsel %vm4165, %v7325, %v7381
        %v7416 = vsel %vm4165, %v7329, %v7383
        %v7417 = vsel %vm4165, %v7331, %v7385
        %7422 = vrot.lane.b32.xlu0 %v7286, 96
        %v7423 = vpop.permute.xlu0 %7422
        %7424 = vrot.lane.b32.xlu0 %v7288, 96
        %v7425 = vpop.permute.xlu0 %7424
        %7426 = vrot.lane.b32.xlu0 %v7290, 96
        %v7427 = vpop.permute.xlu0 %7426
        %7428 = vrot.lane.b32.xlu0 %v7292, 96
        %v7429 = vpop.permute.xlu0 %7428
        %7434 = vrot.lane.b32.xlu0 %v7286, 64
        %v7435 = vpop.permute.xlu0 %7434
        %7436 = vrot.lane.b32.xlu0 %v7288, 64
        %v7437 = vpop.permute.xlu0 %7436
        %7438 = vrot.lane.b32.xlu0 %v7290, 64
        %v7439 = vpop.permute.xlu0 %7438
        %7440 = vrot.lane.b32.xlu0 %v7292, 64
        %v7441 = vpop.permute.xlu0 %7440
        %7446 = vrot.lane.b32.xlu0 %v7286, 32
        %v7447 = vpop.permute.xlu0 %7446
        %7448 = vrot.lane.b32.xlu0 %v7288, 32
        %v7449 = vpop.permute.xlu0 %7448
        %7450 = vrot.lane.b32.xlu0 %v7290, 32
        %v7451 = vpop.permute.xlu0 %7450
        %7452 = vrot.lane.b32.xlu0 %v7292, 32
        %v7453 = vpop.permute.xlu0 %7452
        %7462 = vrot.lane.b32.xlu0 %v7287, 96
        %v7463 = vpop.permute.xlu0 %7462
        %7464 = vrot.lane.b32.xlu0 %v7289, 96
        %v7465 = vpop.permute.xlu0 %7464
        %7466 = vrot.lane.b32.xlu0 %v7291, 96
        %v7467 = vpop.permute.xlu0 %7466
        %7468 = vrot.lane.b32.xlu0 %v7293, 96
        %v7469 = vpop.permute.xlu0 %7468
        %7474 = vrot.lane.b32.xlu0 %v7287, 64
        %v7475 = vpop.permute.xlu0 %7474
        %7476 = vrot.lane.b32.xlu0 %v7289, 64
        %v7477 = vpop.permute.xlu0 %7476
        %7478 = vrot.lane.b32.xlu0 %v7291, 64
        %v7479 = vpop.permute.xlu0 %7478
        %7480 = vrot.lane.b32.xlu0 %v7293, 64
        %v7481 = vpop.permute.xlu0 %7480
        %7486 = vrot.lane.b32.xlu0 %v7287, 32
        %v7487 = vpop.permute.xlu0 %7486
        %7488 = vrot.lane.b32.xlu0 %v7289, 32
        %v7489 = vpop.permute.xlu0 %7488
        %7490 = vrot.lane.b32.xlu0 %v7291, 32
        %v7491 = vpop.permute.xlu0 %7490
        %7492 = vrot.lane.b32.xlu0 %v7293, 32
        %v7493 = vpop.permute.xlu0 %7492
        %7502 = vrot.lane.b32.xlu0 %v7231, 96
        %v7503 = vpop.permute.xlu0 %7502
        %7504 = vrot.lane.b32.xlu0 %v7233, 96
        %v7505 = vpop.permute.xlu0 %7504
        %7506 = vrot.lane.b32.xlu0 %v7236, 96
        %v7507 = vpop.permute.xlu0 %7506
        %7508 = vrot.lane.b32.xlu0 %v7238, 96
        %v7509 = vpop.permute.xlu0 %7508
        %7510 = vrot.lane.b32.xlu0 %v7231, 64
        %v7511 = vpop.permute.xlu0 %7510
        %7512 = vrot.lane.b32.xlu0 %v7233, 64
        %v7513 = vpop.permute.xlu0 %7512
        %7514 = vrot.lane.b32.xlu0 %v7236, 64
        %v7515 = vpop.permute.xlu0 %7514
        %7516 = vrot.lane.b32.xlu0 %v7238, 64
        %v7517 = vpop.permute.xlu0 %7516
        %7518 = vrot.lane.b32.xlu0 %v7231, 32
        %v7519 = vpop.permute.xlu0 %7518
        %7520 = vrot.lane.b32.xlu0 %v7233, 32
        %v7521 = vpop.permute.xlu0 %7520
        %7522 = vrot.lane.b32.xlu0 %v7236, 32
        %v7523 = vpop.permute.xlu0 %7522
        %7524 = vrot.lane.b32.xlu0 %v7238, 32
        %v7525 = vpop.permute.xlu0 %7524
        %7530 = vrot.lane.b32.xlu0 %v7269, 96
        %v7531 = vpop.permute.xlu0 %7530
        %7532 = vrot.lane.b32.xlu0 %v7271, 96
        %v7533 = vpop.permute.xlu0 %7532
        %7534 = vrot.lane.b32.xlu0 %v7274, 96
        %v7535 = vpop.permute.xlu0 %7534
        %7536 = vrot.lane.b32.xlu0 %v7276, 96
        %v7537 = vpop.permute.xlu0 %7536
        %7538 = vrot.lane.b32.xlu0 %v7269, 64
        %v7539 = vpop.permute.xlu0 %7538
        %7540 = vrot.lane.b32.xlu0 %v7271, 64
        %v7541 = vpop.permute.xlu0 %7540
        %7542 = vrot.lane.b32.xlu0 %v7274, 64
        %v7543 = vpop.permute.xlu0 %7542
        %7544 = vrot.lane.b32.xlu0 %v7276, 64
        %v7545 = vpop.permute.xlu0 %7544
        %7546 = vrot.lane.b32.xlu0 %v7269, 32
        %v7547 = vpop.permute.xlu0 %7546
        %7548 = vrot.lane.b32.xlu0 %v7271, 32
        %v7549 = vpop.permute.xlu0 %7548
        %7550 = vrot.lane.b32.xlu0 %v7274, 32
        %v7551 = vpop.permute.xlu0 %7550
        %7552 = vrot.lane.b32.xlu0 %v7276, 32
        %v7553 = vpop.permute.xlu0 %7552
        %7554 = vrot.lane.b32.xlu0 %v7503, 32
        %v7555 = vpop.permute.xlu0 %7554
        %7556 = vrot.lane.b32.xlu0 %v7505, 32
        %v7557 = vpop.permute.xlu0 %7556
        %7558 = vrot.lane.b32.xlu0 %v7507, 32
        %v7559 = vpop.permute.xlu0 %7558
        %7560 = vrot.lane.b32.xlu0 %v7509, 32
        %v7561 = vpop.permute.xlu0 %7560
        %7562 = vrot.lane.b32.xlu0 %v7511, 32
        %v7563 = vpop.permute.xlu0 %7562
        %7564 = vrot.lane.b32.xlu0 %v7513, 32
        %v7565 = vpop.permute.xlu0 %7564
        %7566 = vrot.lane.b32.xlu0 %v7515, 32
        %v7567 = vpop.permute.xlu0 %7566
        %7568 = vrot.lane.b32.xlu0 %v7517, 32
        %v7569 = vpop.permute.xlu0 %7568
        %7570 = vrot.lane.b32.xlu0 %v7519, 32
        %v7571 = vpop.permute.xlu0 %7570
        %7572 = vrot.lane.b32.xlu0 %v7521, 32
        %v7573 = vpop.permute.xlu0 %7572
        %7574 = vrot.lane.b32.xlu0 %v7523, 32
        %v7575 = vpop.permute.xlu0 %7574
        %7576 = vrot.lane.b32.xlu0 %v7525, 32
        %v7577 = vpop.permute.xlu0 %7576
        %7578 = vrot.lane.b32.xlu0 %v7531, 32
        %v7579 = vpop.permute.xlu0 %7578
        %7580 = vrot.lane.b32.xlu0 %v7533, 32
        %v7581 = vpop.permute.xlu0 %7580
        %7582 = vrot.lane.b32.xlu0 %v7535, 32
        %v7583 = vpop.permute.xlu0 %7582
        %7584 = vrot.lane.b32.xlu0 %v7537, 32
        %v7585 = vpop.permute.xlu0 %7584
        %7586 = vrot.lane.b32.xlu0 %v7539, 32
        %v7587 = vpop.permute.xlu0 %7586
        %7588 = vrot.lane.b32.xlu0 %v7541, 32
        %v7589 = vpop.permute.xlu0 %7588
        %7590 = vrot.lane.b32.xlu0 %v7543, 32
        %v7591 = vpop.permute.xlu0 %7590
        %7592 = vrot.lane.b32.xlu0 %v7545, 32
        %v7593 = vpop.permute.xlu0 %7592
        %7594 = vrot.lane.b32.xlu0 %v7547, 32
        %v7595 = vpop.permute.xlu0 %7594
        %7596 = vrot.lane.b32.xlu0 %v7549, 32
        %v7597 = vpop.permute.xlu0 %7596
        %7598 = vrot.lane.b32.xlu0 %v7551, 32
        %v7599 = vpop.permute.xlu0 %7598
        %7600 = vrot.lane.b32.xlu0 %v7553, 32
        %v7601 = vpop.permute.xlu0 %7600
        %v7634 = vsel %vm4165, %v7286, %v7519
        %v7635 = vsel %vm4165, %v7288, %v7521
        %v7636 = vsel %vm4165, %v7290, %v7523
        %v7637 = vsel %vm4165, %v7292, %v7525
        %v7638 = vsel %vm4165, %v7423, %v7555
        %v7639 = vsel %vm4165, %v7425, %v7557
        %v7640 = vsel %vm4165, %v7427, %v7559
        %v7641 = vsel %vm4165, %v7429, %v7561
        %v7642 = vsel %vm4165, %v7435, %v7563
        %v7643 = vsel %vm4165, %v7437, %v7565
        %v7644 = vsel %vm4165, %v7439, %v7567
        %v7645 = vsel %vm4165, %v7441, %v7569
        %v7646 = vsel %vm4165, %v7447, %v7571
        %v7647 = vsel %vm4165, %v7449, %v7573
        %v7648 = vsel %vm4165, %v7451, %v7575
        %v7649 = vsel %vm4165, %v7453, %v7577
        %v7650 = vsel %vm4165, %v7287, %v7547
        %v7651 = vsel %vm4165, %v7289, %v7549
        %v7652 = vsel %vm4165, %v7291, %v7551
        %v7653 = vsel %vm4165, %v7293, %v7553
        %v7654 = vsel %vm4165, %v7463, %v7579
        %v7655 = vsel %vm4165, %v7465, %v7581
        %v7656 = vsel %vm4165, %v7467, %v7583
        %v7657 = vsel %vm4165, %v7469, %v7585
        %v7658 = vsel %vm4165, %v7475, %v7587
        %v7659 = vsel %vm4165, %v7477, %v7589
        %v7660 = vsel %vm4165, %v7479, %v7591
        %v7661 = vsel %vm4165, %v7481, %v7593
        %v7662 = vsel %vm4165, %v7487, %v7595
        %v7663 = vsel %vm4165, %v7489, %v7597
        %v7664 = vsel %vm4165, %v7491, %v7599
        %v7665 = vsel %vm4165, %v7493, %v7601
        %7670 = vrot.lane.b32.xlu0 %v6953, 96
        %v7671 = vpop.permute.xlu0 %7670
        %7672 = vrot.lane.b32.xlu0 %v6955, 96
        %v7673 = vpop.permute.xlu0 %7672
        %7674 = vrot.lane.b32.xlu0 %v6958, 96
        %v7675 = vpop.permute.xlu0 %7674
        %7676 = vrot.lane.b32.xlu0 %v6960, 96
        %v7677 = vpop.permute.xlu0 %7676
        %7682 = vrot.lane.b32.xlu0 %v6953, 64
        %v7683 = vpop.permute.xlu0 %7682
        %7684 = vrot.lane.b32.xlu0 %v6955, 64
        %v7685 = vpop.permute.xlu0 %7684
        %7686 = vrot.lane.b32.xlu0 %v6958, 64
        %v7687 = vpop.permute.xlu0 %7686
        %7688 = vrot.lane.b32.xlu0 %v6960, 64
        %v7689 = vpop.permute.xlu0 %7688
        %7694 = vrot.lane.b32.xlu0 %v6953, 32
        %v7695 = vpop.permute.xlu0 %7694
        %7696 = vrot.lane.b32.xlu0 %v6955, 32
        %v7697 = vpop.permute.xlu0 %7696
        %7698 = vrot.lane.b32.xlu0 %v6958, 32
        %v7699 = vpop.permute.xlu0 %7698
        %7700 = vrot.lane.b32.xlu0 %v6960, 32
        %v7701 = vpop.permute.xlu0 %7700
        %7710 = vrot.lane.b32.xlu0 %v6991, 96
        %v7711 = vpop.permute.xlu0 %7710
        %7712 = vrot.lane.b32.xlu0 %v6993, 96
        %v7713 = vpop.permute.xlu0 %7712
        %7714 = vrot.lane.b32.xlu0 %v6996, 96
        %v7715 = vpop.permute.xlu0 %7714
        %7716 = vrot.lane.b32.xlu0 %v6998, 96
        %v7717 = vpop.permute.xlu0 %7716
        %7722 = vrot.lane.b32.xlu0 %v6991, 64
        %v7723 = vpop.permute.xlu0 %7722
        %7724 = vrot.lane.b32.xlu0 %v6993, 64
        %v7725 = vpop.permute.xlu0 %7724
        %7726 = vrot.lane.b32.xlu0 %v6996, 64
        %v7727 = vpop.permute.xlu0 %7726
        %7728 = vrot.lane.b32.xlu0 %v6998, 64
        %v7729 = vpop.permute.xlu0 %7728
        %7734 = vrot.lane.b32.xlu0 %v6991, 32
        %v7735 = vpop.permute.xlu0 %7734
        %7736 = vrot.lane.b32.xlu0 %v6993, 32
        %v7737 = vpop.permute.xlu0 %7736
        %7738 = vrot.lane.b32.xlu0 %v6996, 32
        %v7739 = vpop.permute.xlu0 %7738
        %7740 = vrot.lane.b32.xlu0 %v6998, 32
        %v7741 = vpop.permute.xlu0 %7740
        %v7746 = vpack.c.bf16 %v7402, %v7402
        %v7747 = vpack.c.bf16 %v7403, %v7403
        %v7748 = vpack.c.bf16 %v7404, %v7404
        %v7749 = vpack.c.bf16 %v7405, %v7405
        %v7750 = vpack.c.bf16 %v7406, %v7406
        %v7751 = vpack.c.bf16 %v7407, %v7407
        %v7752 = vpack.c.bf16 %v7408, %v7408
        %v7753 = vpack.c.bf16 %v7409, %v7409
        %v7754 = vpack.c.bf16 %v7410, %v7410
        %v7755 = vpack.c.bf16 %v7411, %v7411
        %v7756 = vpack.c.bf16 %v7412, %v7412
        %v7757 = vpack.c.bf16 %v7413, %v7413
        %v7758 = vpack.c.bf16 %v7414, %v7414
        %v7759 = vpack.c.bf16 %v7415, %v7415
        %v7760 = vpack.c.bf16 %v7416, %v7416
        %v7761 = vpack.c.bf16 %v7417, %v7417
        %v7762 = vpack.c.bf16 %v7634, %v7634
        %v7763 = vpack.c.bf16 %v7635, %v7635
        %v7764 = vpack.c.bf16 %v7636, %v7636
        %v7765 = vpack.c.bf16 %v7637, %v7637
        %v7766 = vpack.c.bf16 %v7638, %v7638
        %v7767 = vpack.c.bf16 %v7639, %v7639
        %v7768 = vpack.c.bf16 %v7640, %v7640
        %v7769 = vpack.c.bf16 %v7641, %v7641
        %v7770 = vpack.c.bf16 %v7642, %v7642
        %v7771 = vpack.c.bf16 %v7643, %v7643
        %v7772 = vpack.c.bf16 %v7644, %v7644
        %v7773 = vpack.c.bf16 %v7645, %v7645
        %v7774 = vpack.c.bf16 %v7646, %v7646
        %v7775 = vpack.c.bf16 %v7647, %v7647
        %v7776 = vpack.c.bf16 %v7648, %v7648
        %v7777 = vpack.c.bf16 %v7649, %v7649
        %v7778 = vpack.c.bf16 %v7650, %v7650
        %v7779 = vpack.c.bf16 %v7651, %v7651
        %v7780 = vpack.c.bf16 %v7652, %v7652
        %v7781 = vpack.c.bf16 %v7653, %v7653
        %v7782 = vpack.c.bf16 %v7654, %v7654
        %v7783 = vpack.c.bf16 %v7655, %v7655
        %v7784 = vpack.c.bf16 %v7656, %v7656
        %v7785 = vpack.c.bf16 %v7657, %v7657
        %v7786 = vpack.c.bf16 %v7658, %v7658
        %v7787 = vpack.c.bf16 %v7659, %v7659
        %v7788 = vpack.c.bf16 %v7660, %v7660
        %v7789 = vpack.c.bf16 %v7661, %v7661
        %v7790 = vpack.c.bf16 %v7662, %v7662
        %v7791 = vpack.c.bf16 %v7663, %v7663
        %v7792 = vpack.c.bf16 %v7664, %v7664
        %v7793 = vpack.c.bf16 %v7665, %v7665
        %v7796 = vunpack.c.l.b16 %v7762
        %v7797 = vunpack.c.l.b16 %v7763
        %v7798 = vpack.c.b16 %v7797, %v7796
        %v7800 = vsel %vm5050, %v7746, 0
        %v7803 = vsel %vm5050, %v7798, 0
        %7805 = vmatpush.bf16.xpose.msra.mxu0 0
        %7806 = vmatpush.bf16.xpose.msra.mxu0 0
        %7807 = vmatpush.bf16.xpose.msra.mxu0 0
        %7808 = vmatpush.bf16.xpose.msra.mxu0 0
        %7809 = vmatpush.bf16.xpose.msra.mxu0 0
        %7810 = vmatpush.bf16.xpose.msra.mxu0 0
        %7811 = vmatpush.bf16.xpose.msra.mxu0 0
        %7812 = vmatpush.bf16.xpose.msra.mxu0 %v7803
        %7813 = vmatmul.bf16.gmra.mxu0 %v7800
        %v7814 = vpop.f32.mrf.mxu0
        %v7815 = vadd.f32 0.0, %v7814
        %v7816 = vpop.f32.mrf.mxu0
        %7817 = vdwg.mxu0
        %v7820 = vunpack.c.l.b16 %v7764
        %v7821 = vunpack.c.l.b16 %v7765
        %v7822 = vpack.c.b16 %v7821, %v7820
        %v7824 = vsel %vm5050, %v7747, 0
        %v7827 = vsel %vm5050, %v7822, 0
        %7829 = vmatpush.bf16.xpose.msra.mxu0 0
        %7830 = vmatpush.bf16.xpose.msra.mxu0 0
        %7831 = vmatpush.bf16.xpose.msra.mxu0 0
        %7832 = vmatpush.bf16.xpose.msra.mxu0 0
        %7833 = vmatpush.bf16.xpose.msra.mxu0 0
        %7834 = vmatpush.bf16.xpose.msra.mxu0 0
        %7835 = vmatpush.bf16.xpose.msra.mxu0 0
        %7836 = vmatpush.bf16.xpose.msra.mxu0 %v7827
        %7837 = vmatmul.bf16.gmra.mxu0 %v7824
        %v7838 = vpop.f32.mrf.mxu0
        %v7839 = vadd.f32 0.0, %v7838
        %v7840 = vpop.f32.mrf.mxu0
        %7841 = vdwg.mxu0
        %v7844 = vunpack.c.l.b16 %v7766
        %v7845 = vunpack.c.l.b16 %v7767
        %v7846 = vpack.c.b16 %v7845, %v7844
        %v7848 = vsel %vm5050, %v7748, 0
        %v7851 = vsel %vm5050, %v7846, 0
        %7853 = vmatpush.bf16.xpose.msra.mxu0 0
        %7854 = vmatpush.bf16.xpose.msra.mxu0 0
        %7855 = vmatpush.bf16.xpose.msra.mxu0 0
        %7856 = vmatpush.bf16.xpose.msra.mxu0 0
        %7857 = vmatpush.bf16.xpose.msra.mxu0 0
        %7858 = vmatpush.bf16.xpose.msra.mxu0 0
        %7859 = vmatpush.bf16.xpose.msra.mxu0 0
        %7860 = vmatpush.bf16.xpose.msra.mxu0 %v7851
        %7861 = vmatmul.bf16.gmra.mxu0 %v7848
        %v7862 = vpop.f32.mrf.mxu0
        %v7863 = vadd.f32 0.0, %v7862
        %v7864 = vpop.f32.mrf.mxu0
        %7865 = vdwg.mxu0
        %v7868 = vunpack.c.l.b16 %v7768
        %v7869 = vunpack.c.l.b16 %v7769
        %v7870 = vpack.c.b16 %v7869, %v7868
        %v7872 = vsel %vm5050, %v7749, 0
        %v7875 = vsel %vm5050, %v7870, 0
        %7877 = vmatpush.bf16.xpose.msra.mxu0 0
        %7878 = vmatpush.bf16.xpose.msra.mxu0 0
        %7879 = vmatpush.bf16.xpose.msra.mxu0 0
        %7880 = vmatpush.bf16.xpose.msra.mxu0 0
        %7881 = vmatpush.bf16.xpose.msra.mxu0 0
        %7882 = vmatpush.bf16.xpose.msra.mxu0 0
        %7883 = vmatpush.bf16.xpose.msra.mxu0 0
        %7884 = vmatpush.bf16.xpose.msra.mxu0 %v7875
        %7885 = vmatmul.bf16.gmra.mxu0 %v7872
        %v7886 = vpop.f32.mrf.mxu0
        %v7887 = vadd.f32 0.0, %v7886
        %v7888 = vpop.f32.mrf.mxu0
        %7889 = vdwg.mxu0
        %v7892 = vunpack.c.l.b16 %v7770
        %v7893 = vunpack.c.l.b16 %v7771
        %v7894 = vpack.c.b16 %v7893, %v7892
        %v7896 = vsel %vm5050, %v7750, 0
        %v7899 = vsel %vm5050, %v7894, 0
        %7901 = vmatpush.bf16.xpose.msra.mxu0 0
        %7902 = vmatpush.bf16.xpose.msra.mxu0 0
        %7903 = vmatpush.bf16.xpose.msra.mxu0 0
        %7904 = vmatpush.bf16.xpose.msra.mxu0 0
        %7905 = vmatpush.bf16.xpose.msra.mxu0 0
        %7906 = vmatpush.bf16.xpose.msra.mxu0 0
        %7907 = vmatpush.bf16.xpose.msra.mxu0 0
        %7908 = vmatpush.bf16.xpose.msra.mxu0 %v7899
        %7909 = vmatmul.bf16.gmra.mxu0 %v7896
        %v7910 = vpop.f32.mrf.mxu0
        %v7911 = vadd.f32 0.0, %v7910
        %v7912 = vpop.f32.mrf.mxu0
        %7913 = vdwg.mxu0
        %v7916 = vunpack.c.l.b16 %v7772
        %v7917 = vunpack.c.l.b16 %v7773
        %v7918 = vpack.c.b16 %v7917, %v7916
        %v7920 = vsel %vm5050, %v7751, 0
        %v7923 = vsel %vm5050, %v7918, 0
        %7925 = vmatpush.bf16.xpose.msra.mxu0 0
        %7926 = vmatpush.bf16.xpose.msra.mxu0 0
        %7927 = vmatpush.bf16.xpose.msra.mxu0 0
        %7928 = vmatpush.bf16.xpose.msra.mxu0 0
        %7929 = vmatpush.bf16.xpose.msra.mxu0 0
        %7930 = vmatpush.bf16.xpose.msra.mxu0 0
        %7931 = vmatpush.bf16.xpose.msra.mxu0 0
        %7932 = vmatpush.bf16.xpose.msra.mxu0 %v7923
        %7933 = vmatmul.bf16.gmra.mxu0 %v7920
        %v7934 = vpop.f32.mrf.mxu0
        %v7935 = vadd.f32 0.0, %v7934
        %v7936 = vpop.f32.mrf.mxu0
        %7937 = vdwg.mxu0
        %v7940 = vunpack.c.l.b16 %v7774
        %v7941 = vunpack.c.l.b16 %v7775
        %v7942 = vpack.c.b16 %v7941, %v7940
        %v7944 = vsel %vm5050, %v7752, 0
        %v7947 = vsel %vm5050, %v7942, 0
        %7949 = vmatpush.bf16.xpose.msra.mxu0 0
        %7950 = vmatpush.bf16.xpose.msra.mxu0 0
        %7951 = vmatpush.bf16.xpose.msra.mxu0 0
        %7952 = vmatpush.bf16.xpose.msra.mxu0 0
        %7953 = vmatpush.bf16.xpose.msra.mxu0 0
        %7954 = vmatpush.bf16.xpose.msra.mxu0 0
        %7955 = vmatpush.bf16.xpose.msra.mxu0 0
        %7956 = vmatpush.bf16.xpose.msra.mxu0 %v7947
        %7957 = vmatmul.bf16.gmra.mxu0 %v7944
        %v7958 = vpop.f32.mrf.mxu0
        %v7959 = vadd.f32 0.0, %v7958
        %v7960 = vpop.f32.mrf.mxu0
        %7961 = vdwg.mxu0
        %v7964 = vunpack.c.l.b16 %v7776
        %v7965 = vunpack.c.l.b16 %v7777
        %v7966 = vpack.c.b16 %v7965, %v7964
        %v7968 = vsel %vm5050, %v7753, 0
        %v7971 = vsel %vm5050, %v7966, 0
        %7973 = vmatpush.bf16.xpose.msra.mxu0 0
        %7974 = vmatpush.bf16.xpose.msra.mxu0 0
        %7975 = vmatpush.bf16.xpose.msra.mxu0 0
        %7976 = vmatpush.bf16.xpose.msra.mxu0 0
        %7977 = vmatpush.bf16.xpose.msra.mxu0 0
        %7978 = vmatpush.bf16.xpose.msra.mxu0 0
        %7979 = vmatpush.bf16.xpose.msra.mxu0 0
        %7980 = vmatpush.bf16.xpose.msra.mxu0 %v7971
        %7981 = vmatmul.bf16.gmra.mxu0 %v7968
        %v7982 = vpop.f32.mrf.mxu0
        %v7983 = vadd.f32 0.0, %v7982
        %v7984 = vpop.f32.mrf.mxu0
        %7985 = vdwg.mxu0
        %v7988 = vunpack.c.l.b16 %v7778
        %v7989 = vunpack.c.l.b16 %v7779
        %v7990 = vpack.c.b16 %v7989, %v7988
        %v7992 = vsel %vm5050, %v7754, 0
        %v7995 = vsel %vm5050, %v7990, 0
        %7997 = vmatpush.bf16.xpose.msra.mxu0 0
        %7998 = vmatpush.bf16.xpose.msra.mxu0 0
        %7999 = vmatpush.bf16.xpose.msra.mxu0 0
        %8000 = vmatpush.bf16.xpose.msra.mxu0 0
        %8001 = vmatpush.bf16.xpose.msra.mxu0 0
        %8002 = vmatpush.bf16.xpose.msra.mxu0 0
        %8003 = vmatpush.bf16.xpose.msra.mxu0 0
        %8004 = vmatpush.bf16.xpose.msra.mxu0 %v7995
        %8005 = vmatmul.bf16.gmra.mxu0 %v7992
        %v8006 = vpop.f32.mrf.mxu0
        %v8007 = vadd.f32 0.0, %v8006
        %v8008 = vpop.f32.mrf.mxu0
        %8009 = vdwg.mxu0
        %v8012 = vunpack.c.l.b16 %v7780
        %v8013 = vunpack.c.l.b16 %v7781
        %v8014 = vpack.c.b16 %v8013, %v8012
        %v8016 = vsel %vm5050, %v7755, 0
        %v8019 = vsel %vm5050, %v8014, 0
        %8021 = vmatpush.bf16.xpose.msra.mxu0 0
        %8022 = vmatpush.bf16.xpose.msra.mxu0 0
        %8023 = vmatpush.bf16.xpose.msra.mxu0 0
        %8024 = vmatpush.bf16.xpose.msra.mxu0 0
        %8025 = vmatpush.bf16.xpose.msra.mxu0 0
        %8026 = vmatpush.bf16.xpose.msra.mxu0 0
        %8027 = vmatpush.bf16.xpose.msra.mxu0 0
        %8028 = vmatpush.bf16.xpose.msra.mxu0 %v8019
        %8029 = vmatmul.bf16.gmra.mxu0 %v8016
        %v8030 = vpop.f32.mrf.mxu0
        %v8031 = vadd.f32 0.0, %v8030
        %v8032 = vpop.f32.mrf.mxu0
        %8033 = vdwg.mxu0
        %v8036 = vunpack.c.l.b16 %v7782
        %v8037 = vunpack.c.l.b16 %v7783
        %v8038 = vpack.c.b16 %v8037, %v8036
        %v8040 = vsel %vm5050, %v7756, 0
        %v8043 = vsel %vm5050, %v8038, 0
        %8045 = vmatpush.bf16.xpose.msra.mxu0 0
        %8046 = vmatpush.bf16.xpose.msra.mxu0 0
        %8047 = vmatpush.bf16.xpose.msra.mxu0 0
        %8048 = vmatpush.bf16.xpose.msra.mxu0 0
        %8049 = vmatpush.bf16.xpose.msra.mxu0 0
        %8050 = vmatpush.bf16.xpose.msra.mxu0 0
        %8051 = vmatpush.bf16.xpose.msra.mxu0 0
        %8052 = vmatpush.bf16.xpose.msra.mxu0 %v8043
        %8053 = vmatmul.bf16.gmra.mxu0 %v8040
        %v8054 = vpop.f32.mrf.mxu0
        %v8055 = vadd.f32 0.0, %v8054
        %v8056 = vpop.f32.mrf.mxu0
        %8057 = vdwg.mxu0
        %v8060 = vunpack.c.l.b16 %v7784
        %v8061 = vunpack.c.l.b16 %v7785
        %v8062 = vpack.c.b16 %v8061, %v8060
        %v8064 = vsel %vm5050, %v7757, 0
        %v8067 = vsel %vm5050, %v8062, 0
        %8069 = vmatpush.bf16.xpose.msra.mxu0 0
        %8070 = vmatpush.bf16.xpose.msra.mxu0 0
        %8071 = vmatpush.bf16.xpose.msra.mxu0 0
        %8072 = vmatpush.bf16.xpose.msra.mxu0 0
        %8073 = vmatpush.bf16.xpose.msra.mxu0 0
        %8074 = vmatpush.bf16.xpose.msra.mxu0 0
        %8075 = vmatpush.bf16.xpose.msra.mxu0 0
        %8076 = vmatpush.bf16.xpose.msra.mxu0 %v8067
        %8077 = vmatmul.bf16.gmra.mxu0 %v8064
        %v8078 = vpop.f32.mrf.mxu0
        %v8079 = vadd.f32 0.0, %v8078
        %v8080 = vpop.f32.mrf.mxu0
        %8081 = vdwg.mxu0
        %v8084 = vunpack.c.l.b16 %v7786
        %v8085 = vunpack.c.l.b16 %v7787
        %v8086 = vpack.c.b16 %v8085, %v8084
        %v8088 = vsel %vm5050, %v7758, 0
        %v8091 = vsel %vm5050, %v8086, 0
        %8093 = vmatpush.bf16.xpose.msra.mxu0 0
        %8094 = vmatpush.bf16.xpose.msra.mxu0 0
        %8095 = vmatpush.bf16.xpose.msra.mxu0 0
        %8096 = vmatpush.bf16.xpose.msra.mxu0 0
        %8097 = vmatpush.bf16.xpose.msra.mxu0 0
        %8098 = vmatpush.bf16.xpose.msra.mxu0 0
        %8099 = vmatpush.bf16.xpose.msra.mxu0 0
        %8100 = vmatpush.bf16.xpose.msra.mxu0 %v8091
        %8101 = vmatmul.bf16.gmra.mxu0 %v8088
        %v8102 = vpop.f32.mrf.mxu0
        %v8103 = vadd.f32 0.0, %v8102
        %v8104 = vpop.f32.mrf.mxu0
        %8105 = vdwg.mxu0
        %v8108 = vunpack.c.l.b16 %v7788
        %v8109 = vunpack.c.l.b16 %v7789
        %v8110 = vpack.c.b16 %v8109, %v8108
        %v8112 = vsel %vm5050, %v7759, 0
        %v8115 = vsel %vm5050, %v8110, 0
        %8117 = vmatpush.bf16.xpose.msra.mxu0 0
        %8118 = vmatpush.bf16.xpose.msra.mxu0 0
        %8119 = vmatpush.bf16.xpose.msra.mxu0 0
        %8120 = vmatpush.bf16.xpose.msra.mxu0 0
        %8121 = vmatpush.bf16.xpose.msra.mxu0 0
        %8122 = vmatpush.bf16.xpose.msra.mxu0 0
        %8123 = vmatpush.bf16.xpose.msra.mxu0 0
        %8124 = vmatpush.bf16.xpose.msra.mxu0 %v8115
        %8125 = vmatmul.bf16.gmra.mxu0 %v8112
        %v8126 = vpop.f32.mrf.mxu0
        %v8127 = vadd.f32 0.0, %v8126
        %v8128 = vpop.f32.mrf.mxu0
        %8129 = vdwg.mxu0
        %v8132 = vunpack.c.l.b16 %v7790
        %v8133 = vunpack.c.l.b16 %v7791
        %v8134 = vpack.c.b16 %v8133, %v8132
        %v8136 = vsel %vm5050, %v7760, 0
        %v8139 = vsel %vm5050, %v8134, 0
        %8141 = vmatpush.bf16.xpose.msra.mxu0 0
        %8142 = vmatpush.bf16.xpose.msra.mxu0 0
        %8143 = vmatpush.bf16.xpose.msra.mxu0 0
        %8144 = vmatpush.bf16.xpose.msra.mxu0 0
        %8145 = vmatpush.bf16.xpose.msra.mxu0 0
        %8146 = vmatpush.bf16.xpose.msra.mxu0 0
        %8147 = vmatpush.bf16.xpose.msra.mxu0 0
        %8148 = vmatpush.bf16.xpose.msra.mxu0 %v8139
        %8149 = vmatmul.bf16.gmra.mxu0 %v8136
        %v8150 = vpop.f32.mrf.mxu0
        %v8151 = vadd.f32 0.0, %v8150
        %v8152 = vpop.f32.mrf.mxu0
        %8153 = vdwg.mxu0
        %v8156 = vunpack.c.l.b16 %v7792
        %v8157 = vunpack.c.l.b16 %v7793
        %v8158 = vpack.c.b16 %v8157, %v8156
        %v8160 = vsel %vm5050, %v7761, 0
        %v8163 = vsel %vm5050, %v8158, 0
        %8165 = vmatpush.bf16.xpose.msra.mxu0 0
        %8166 = vmatpush.bf16.xpose.msra.mxu0 0
        %8167 = vmatpush.bf16.xpose.msra.mxu0 0
        %8168 = vmatpush.bf16.xpose.msra.mxu0 0
        %8169 = vmatpush.bf16.xpose.msra.mxu0 0
        %8170 = vmatpush.bf16.xpose.msra.mxu0 0
        %8171 = vmatpush.bf16.xpose.msra.mxu0 0
        %8172 = vmatpush.bf16.xpose.msra.mxu0 %v8163
        %8173 = vmatmul.bf16.gmra.mxu0 %v8160
        %v8174 = vpop.f32.mrf.mxu0
        %v8175 = vadd.f32 0.0, %v8174
        %v8176 = vpop.f32.mrf.mxu0
        %8177 = vdwg.mxu0
        %v8178 = vmul.f32 %v7815, 0.125
        %v8179 = vmul.f32 %v7839, 0.125
        %v8180 = vmul.f32 %v7863, 0.125
        %v8181 = vmul.f32 %v7887, 0.125
        %v8182 = vmul.f32 %v7911, 0.125
        %v8183 = vmul.f32 %v7935, 0.125
        %v8184 = vmul.f32 %v7959, 0.125
        %v8185 = vmul.f32 %v7983, 0.125
        %v8186 = vmul.f32 %v8007, 0.125
        %v8187 = vmul.f32 %v8031, 0.125
        %v8188 = vmul.f32 %v8055, 0.125
        %v8189 = vmul.f32 %v8079, 0.125
        %v8190 = vmul.f32 %v8103, 0.125
        %v8191 = vmul.f32 %v8127, 0.125
        %v8192 = vmul.f32 %v8151, 0.125
        %v8193 = vmul.f32 %v8175, 0.125
        %v8196 = vperm.slane %v2727, 0
        %v8197 = vperm.slane %v2728, 0
        %v8200 = vadd.f32 %v8178, %v8196
        %v8201 = vadd.f32 %v8179, %v8197
        %v8202 = vadd.f32 %v8180, %v8196
        %v8203 = vadd.f32 %v8181, %v8197
        %v8204 = vadd.f32 %v8182, %v8196
        %v8205 = vadd.f32 %v8183, %v8197
        %v8206 = vadd.f32 %v8184, %v8196
        %v8207 = vadd.f32 %v8185, %v8197
        %v8208 = vadd.f32 %v8186, %v8196
        %v8209 = vadd.f32 %v8187, %v8197
        %v8210 = vadd.f32 %v8188, %v8196
        %v8211 = vadd.f32 %v8189, %v8197
        %v8212 = vadd.f32 %v8190, %v8196
        %v8213 = vadd.f32 %v8191, %v8197
        %v8214 = vadd.f32 %v8192, %v8196
        %v8215 = vadd.f32 %v8193, %v8197
        %vm8216 = vcmask 130048
        %v8217 = vsel %vm8216, %v8200, -inf
        %8218 = vmax.xlane.f32.xlu0 %v8217
        %v8219 = vpop.xlane.xlu0 %8218
        %v8220 = vsel %vm8216, %v8201, -inf
        %8221 = vmax.xlane.f32.xlu0 %v8220
        %v8222 = vpop.xlane.xlu0 %8221
        %v8223 = vsel %vm8216, %v8202, -inf
        %8224 = vmax.xlane.f32.xlu0 %v8223
        %v8225 = vpop.xlane.xlu0 %8224
        %v8226 = vsel %vm8216, %v8203, -inf
        %8227 = vmax.xlane.f32.xlu0 %v8226
        %v8228 = vpop.xlane.xlu0 %8227
        %v8229 = vsel %vm8216, %v8204, -inf
        %8230 = vmax.xlane.f32.xlu0 %v8229
        %v8231 = vpop.xlane.xlu0 %8230
        %v8232 = vsel %vm8216, %v8205, -inf
        %8233 = vmax.xlane.f32.xlu0 %v8232
        %v8234 = vpop.xlane.xlu0 %8233
        %v8235 = vsel %vm8216, %v8206, -inf
        %8236 = vmax.xlane.f32.xlu0 %v8235
        %v8237 = vpop.xlane.xlu0 %8236
        %v8238 = vsel %vm8216, %v8207, -inf
        %8239 = vmax.xlane.f32.xlu0 %v8238
        %v8240 = vpop.xlane.xlu0 %8239
        %v8241 = vsel %vm8216, %v8208, -inf
        %8242 = vmax.xlane.f32.xlu0 %v8241
        %v8243 = vpop.xlane.xlu0 %8242
        %v8244 = vsel %vm8216, %v8209, -inf
        %8245 = vmax.xlane.f32.xlu0 %v8244
        %v8246 = vpop.xlane.xlu0 %8245
        %v8247 = vsel %vm8216, %v8210, -inf
        %8248 = vmax.xlane.f32.xlu0 %v8247
        %v8249 = vpop.xlane.xlu0 %8248
        %v8250 = vsel %vm8216, %v8211, -inf
        %8251 = vmax.xlane.f32.xlu0 %v8250
        %v8252 = vpop.xlane.xlu0 %8251
        %v8253 = vsel %vm8216, %v8212, -inf
        %8254 = vmax.xlane.f32.xlu0 %v8253
        %v8255 = vpop.xlane.xlu0 %8254
        %v8256 = vsel %vm8216, %v8213, -inf
        %8257 = vmax.xlane.f32.xlu0 %v8256
        %v8258 = vpop.xlane.xlu0 %8257
        %v8259 = vsel %vm8216, %v8214, -inf
        %8260 = vmax.xlane.f32.xlu0 %v8259
        %v8261 = vpop.xlane.xlu0 %8260
        %v8262 = vsel %vm8216, %v8215, -inf
        %8263 = vmax.xlane.f32.xlu0 %v8262
        %v8264 = vpop.xlane.xlu0 %8263
        %v8265 = vsub.f32 %v8200, %v8219
        %v8266 = vsub.f32 %v8201, %v8222
        %v8267 = vsub.f32 %v8202, %v8225
        %v8268 = vsub.f32 %v8203, %v8228
        %v8269 = vsub.f32 %v8204, %v8231
        %v8270 = vsub.f32 %v8205, %v8234
        %v8271 = vsub.f32 %v8206, %v8237
        %v8272 = vsub.f32 %v8207, %v8240
        %v8273 = vsub.f32 %v8208, %v8243
        %v8274 = vsub.f32 %v8209, %v8246
        %v8275 = vsub.f32 %v8210, %v8249
        %v8276 = vsub.f32 %v8211, %v8252
        %v8277 = vsub.f32 %v8212, %v8255
        %v8278 = vsub.f32 %v8213, %v8258
        %v8279 = vsub.f32 %v8214, %v8261
        %v8280 = vsub.f32 %v8215, %v8264
        %v8281 = vmul.f32 %v8265, 1.442695
        %v8282 = vpow.pop %v8281
        %v8283 = vmul.f32 %v8266, 1.442695
        %v8284 = vpow.pop %v8283
        %v8285 = vmul.f32 %v8267, 1.442695
        %v8286 = vpow.pop %v8285
        %v8287 = vmul.f32 %v8268, 1.442695
        %v8288 = vpow.pop %v8287
        %v8289 = vmul.f32 %v8269, 1.442695
        %v8290 = vpow.pop %v8289
        %v8291 = vmul.f32 %v8270, 1.442695
        %v8292 = vpow.pop %v8291
        %v8293 = vmul.f32 %v8271, 1.442695
        %v8294 = vpow.pop %v8293
        %v8295 = vmul.f32 %v8272, 1.442695
        %v8296 = vpow.pop %v8295
        %v8297 = vmul.f32 %v8273, 1.442695
        %v8298 = vpow.pop %v8297
        %v8299 = vmul.f32 %v8274, 1.442695
        %v8300 = vpow.pop %v8299
        %v8301 = vmul.f32 %v8275, 1.442695
        %v8302 = vpow.pop %v8301
        %v8303 = vmul.f32 %v8276, 1.442695
        %v8304 = vpow.pop %v8303
        %v8305 = vmul.f32 %v8277, 1.442695
        %v8306 = vpow.pop %v8305
        %v8307 = vmul.f32 %v8278, 1.442695
        %v8308 = vpow.pop %v8307
        %v8309 = vmul.f32 %v8279, 1.442695
        %v8310 = vpow.pop %v8309
        %v8311 = vmul.f32 %v8280, 1.442695
        %v8312 = vpow.pop %v8311
        %v8313 = vsel %vm8216, %v8282, 0.0
        %8314 = vadd.xlane.f32.xlu0 %v8313
        %v8315 = vpop.xlane.xlu0 %8314
        %v8316 = vsel %vm8216, %v8284, 0.0
        %8317 = vadd.xlane.f32.xlu0 %v8316
        %v8318 = vpop.xlane.xlu0 %8317
        %v8319 = vsel %vm8216, %v8286, 0.0
        %8320 = vadd.xlane.f32.xlu0 %v8319
        %v8321 = vpop.xlane.xlu0 %8320
        %v8322 = vsel %vm8216, %v8288, 0.0
        %8323 = vadd.xlane.f32.xlu0 %v8322
        %v8324 = vpop.xlane.xlu0 %8323
        %v8325 = vsel %vm8216, %v8290, 0.0
        %8326 = vadd.xlane.f32.xlu0 %v8325
        %v8327 = vpop.xlane.xlu0 %8326
        %v8328 = vsel %vm8216, %v8292, 0.0
        %8329 = vadd.xlane.f32.xlu0 %v8328
        %v8330 = vpop.xlane.xlu0 %8329
        %v8331 = vsel %vm8216, %v8294, 0.0
        %8332 = vadd.xlane.f32.xlu0 %v8331
        %v8333 = vpop.xlane.xlu0 %8332
        %v8334 = vsel %vm8216, %v8296, 0.0
        %8335 = vadd.xlane.f32.xlu0 %v8334
        %v8336 = vpop.xlane.xlu0 %8335
        %v8337 = vsel %vm8216, %v8298, 0.0
        %8338 = vadd.xlane.f32.xlu0 %v8337
        %v8339 = vpop.xlane.xlu0 %8338
        %v8340 = vsel %vm8216, %v8300, 0.0
        %8341 = vadd.xlane.f32.xlu0 %v8340
        %v8342 = vpop.xlane.xlu0 %8341
        %v8343 = vsel %vm8216, %v8302, 0.0
        %8344 = vadd.xlane.f32.xlu0 %v8343
        %v8345 = vpop.xlane.xlu0 %8344
        %v8346 = vsel %vm8216, %v8304, 0.0
        %8347 = vadd.xlane.f32.xlu0 %v8346
        %v8348 = vpop.xlane.xlu0 %8347
        %v8349 = vsel %vm8216, %v8306, 0.0
        %8350 = vadd.xlane.f32.xlu0 %v8349
        %v8351 = vpop.xlane.xlu0 %8350
        %v8352 = vsel %vm8216, %v8308, 0.0
        %8353 = vadd.xlane.f32.xlu0 %v8352
        %v8354 = vpop.xlane.xlu0 %8353
        %v8355 = vsel %vm8216, %v8310, 0.0
        %8356 = vadd.xlane.f32.xlu0 %v8355
        %v8357 = vpop.xlane.xlu0 %8356
        %v8358 = vsel %vm8216, %v8312, 0.0
        %8359 = vadd.xlane.f32.xlu0 %v8358
        %v8360 = vpop.xlane.xlu0 %8359
        %v8361 = vpack.c.bf16 %v8282, %v8282
        %v8362 = vpack.c.bf16 %v8284, %v8284
        %v8363 = vpack.c.bf16 %v8286, %v8286
        %v8364 = vpack.c.bf16 %v8288, %v8288
        %v8365 = vpack.c.bf16 %v8290, %v8290
        %v8366 = vpack.c.bf16 %v8292, %v8292
        %v8367 = vpack.c.bf16 %v8294, %v8294
        %v8368 = vpack.c.bf16 %v8296, %v8296
        %v8369 = vpack.c.bf16 %v8298, %v8298
        %v8370 = vpack.c.bf16 %v8300, %v8300
        %v8371 = vpack.c.bf16 %v8302, %v8302
        %v8372 = vpack.c.bf16 %v8304, %v8304
        %v8373 = vpack.c.bf16 %v8306, %v8306
        %v8374 = vpack.c.bf16 %v8308, %v8308
        %v8375 = vpack.c.bf16 %v8310, %v8310
        %v8376 = vpack.c.bf16 %v8312, %v8312
        %v8377 = vpack.c.bf16 %v6953, %v6953
        %v8378 = vpack.c.bf16 %v6955, %v6955
        %v8379 = vpack.c.bf16 %v6958, %v6958
        %v8380 = vpack.c.bf16 %v6960, %v6960
        %v8381 = vpack.c.bf16 %v7671, %v7671
        %v8382 = vpack.c.bf16 %v7673, %v7673
        %v8383 = vpack.c.bf16 %v7675, %v7675
        %v8384 = vpack.c.bf16 %v7677, %v7677
        %v8385 = vpack.c.bf16 %v7683, %v7683
        %v8386 = vpack.c.bf16 %v7685, %v7685
        %v8387 = vpack.c.bf16 %v7687, %v7687
        %v8388 = vpack.c.bf16 %v7689, %v7689
        %v8389 = vpack.c.bf16 %v7695, %v7695
        %v8390 = vpack.c.bf16 %v7697, %v7697
        %v8391 = vpack.c.bf16 %v7699, %v7699
        %v8392 = vpack.c.bf16 %v7701, %v7701
        %v8393 = vpack.c.bf16 %v6991, %v6991
        %v8394 = vpack.c.bf16 %v6993, %v6993
        %v8395 = vpack.c.bf16 %v6996, %v6996
        %v8396 = vpack.c.bf16 %v6998, %v6998
        %v8397 = vpack.c.bf16 %v7711, %v7711
        %v8398 = vpack.c.bf16 %v7713, %v7713
        %v8399 = vpack.c.bf16 %v7715, %v7715
        %v8400 = vpack.c.bf16 %v7717, %v7717
        %v8401 = vpack.c.bf16 %v7723, %v7723
        %v8402 = vpack.c.bf16 %v7725, %v7725
        %v8403 = vpack.c.bf16 %v7727, %v7727
        %v8404 = vpack.c.bf16 %v7729, %v7729
        %v8405 = vpack.c.bf16 %v7735, %v7735
        %v8406 = vpack.c.bf16 %v7737, %v7737
        %v8407 = vpack.c.bf16 %v7739, %v7739
        %v8408 = vpack.c.bf16 %v7741, %v7741
        %v8411 = vunpack.c.l.b16 %v8377
        %v8412 = vunpack.c.l.b16 %v8378
        %v8413 = vpack.c.b16 %v8412, %v8411
        %v8416 = vsel %vm8216, %v8361, 0
        %8418 = vmatpush.bf16.msra.mxu0 0
        %8419 = vmatpush.bf16.msra.mxu0 0
        %8420 = vmatpush.bf16.msra.mxu0 0
        %8421 = vmatpush.bf16.msra.mxu0 0
        %8422 = vmatpush.bf16.msra.mxu0 0
        %8423 = vmatpush.bf16.msra.mxu0 0
        %8424 = vmatpush.bf16.msra.mxu0 0
        %8425 = vmatpush.bf16.msra.mxu0 %v8413
        %8426 = vmatmul.bf16.gmra.mxu0 %v8416
        %v8427 = vpop.f32.mrf.mxu0
        %v8428 = vadd.f32 0.0, %v8427
        %v8429 = vpop.f32.mrf.mxu0
        %8430 = vdwg.mxu0
        %v8433 = vunpack.c.l.b16 %v8379
        %v8434 = vunpack.c.l.b16 %v8380
        %v8435 = vpack.c.b16 %v8434, %v8433
        %v8438 = vsel %vm8216, %v8362, 0
        %8440 = vmatpush.bf16.msra.mxu0 0
        %8441 = vmatpush.bf16.msra.mxu0 0
        %8442 = vmatpush.bf16.msra.mxu0 0
        %8443 = vmatpush.bf16.msra.mxu0 0
        %8444 = vmatpush.bf16.msra.mxu0 0
        %8445 = vmatpush.bf16.msra.mxu0 0
        %8446 = vmatpush.bf16.msra.mxu0 0
        %8447 = vmatpush.bf16.msra.mxu0 %v8435
        %8448 = vmatmul.bf16.gmra.mxu0 %v8438
        %v8449 = vpop.f32.mrf.mxu0
        %v8450 = vadd.f32 0.0, %v8449
        %v8451 = vpop.f32.mrf.mxu0
        %8452 = vdwg.mxu0
        %v8455 = vunpack.c.l.b16 %v8381
        %v8456 = vunpack.c.l.b16 %v8382
        %v8457 = vpack.c.b16 %v8456, %v8455
        %v8460 = vsel %vm8216, %v8363, 0
        %8462 = vmatpush.bf16.msra.mxu0 0
        %8463 = vmatpush.bf16.msra.mxu0 0
        %8464 = vmatpush.bf16.msra.mxu0 0
        %8465 = vmatpush.bf16.msra.mxu0 0
        %8466 = vmatpush.bf16.msra.mxu0 0
        %8467 = vmatpush.bf16.msra.mxu0 0
        %8468 = vmatpush.bf16.msra.mxu0 0
        %8469 = vmatpush.bf16.msra.mxu0 %v8457
        %8470 = vmatmul.bf16.gmra.mxu0 %v8460
        %v8471 = vpop.f32.mrf.mxu0
        %v8472 = vadd.f32 0.0, %v8471
        %v8473 = vpop.f32.mrf.mxu0
        %8474 = vdwg.mxu0
        %v8477 = vunpack.c.l.b16 %v8383
        %v8478 = vunpack.c.l.b16 %v8384
        %v8479 = vpack.c.b16 %v8478, %v8477
        %v8482 = vsel %vm8216, %v8364, 0
        %8484 = vmatpush.bf16.msra.mxu0 0
        %8485 = vmatpush.bf16.msra.mxu0 0
        %8486 = vmatpush.bf16.msra.mxu0 0
        %8487 = vmatpush.bf16.msra.mxu0 0
        %8488 = vmatpush.bf16.msra.mxu0 0
        %8489 = vmatpush.bf16.msra.mxu0 0
        %8490 = vmatpush.bf16.msra.mxu0 0
        %8491 = vmatpush.bf16.msra.mxu0 %v8479
        %8492 = vmatmul.bf16.gmra.mxu0 %v8482
        %v8493 = vpop.f32.mrf.mxu0
        %v8494 = vadd.f32 0.0, %v8493
        %v8495 = vpop.f32.mrf.mxu0
        %8496 = vdwg.mxu0
        %v8499 = vunpack.c.l.b16 %v8385
        %v8500 = vunpack.c.l.b16 %v8386
        %v8501 = vpack.c.b16 %v8500, %v8499
        %v8504 = vsel %vm8216, %v8365, 0
        %8506 = vmatpush.bf16.msra.mxu0 0
        %8507 = vmatpush.bf16.msra.mxu0 0
        %8508 = vmatpush.bf16.msra.mxu0 0
        %8509 = vmatpush.bf16.msra.mxu0 0
        %8510 = vmatpush.bf16.msra.mxu0 0
        %8511 = vmatpush.bf16.msra.mxu0 0
        %8512 = vmatpush.bf16.msra.mxu0 0
        %8513 = vmatpush.bf16.msra.mxu0 %v8501
        %8514 = vmatmul.bf16.gmra.mxu0 %v8504
        %v8515 = vpop.f32.mrf.mxu0
        %v8516 = vadd.f32 0.0, %v8515
        %v8517 = vpop.f32.mrf.mxu0
        %8518 = vdwg.mxu0
        %v8521 = vunpack.c.l.b16 %v8387
        %v8522 = vunpack.c.l.b16 %v8388
        %v8523 = vpack.c.b16 %v8522, %v8521
        %v8526 = vsel %vm8216, %v8366, 0
        %8528 = vmatpush.bf16.msra.mxu0 0
        %8529 = vmatpush.bf16.msra.mxu0 0
        %8530 = vmatpush.bf16.msra.mxu0 0
        %8531 = vmatpush.bf16.msra.mxu0 0
        %8532 = vmatpush.bf16.msra.mxu0 0
        %8533 = vmatpush.bf16.msra.mxu0 0
        %8534 = vmatpush.bf16.msra.mxu0 0
        %8535 = vmatpush.bf16.msra.mxu0 %v8523
        %8536 = vmatmul.bf16.gmra.mxu0 %v8526
        %v8537 = vpop.f32.mrf.mxu0
        %v8538 = vadd.f32 0.0, %v8537
        %v8539 = vpop.f32.mrf.mxu0
        %8540 = vdwg.mxu0
        %v8543 = vunpack.c.l.b16 %v8389
        %v8544 = vunpack.c.l.b16 %v8390
        %v8545 = vpack.c.b16 %v8544, %v8543
        %v8548 = vsel %vm8216, %v8367, 0
        %8550 = vmatpush.bf16.msra.mxu0 0
        %8551 = vmatpush.bf16.msra.mxu0 0
        %8552 = vmatpush.bf16.msra.mxu0 0
        %8553 = vmatpush.bf16.msra.mxu0 0
        %8554 = vmatpush.bf16.msra.mxu0 0
        %8555 = vmatpush.bf16.msra.mxu0 0
        %8556 = vmatpush.bf16.msra.mxu0 0
        %8557 = vmatpush.bf16.msra.mxu0 %v8545
        %8558 = vmatmul.bf16.gmra.mxu0 %v8548
        %v8559 = vpop.f32.mrf.mxu0
        %v8560 = vadd.f32 0.0, %v8559
        %v8561 = vpop.f32.mrf.mxu0
        %8562 = vdwg.mxu0
        %v8565 = vunpack.c.l.b16 %v8391
        %v8566 = vunpack.c.l.b16 %v8392
        %v8567 = vpack.c.b16 %v8566, %v8565
        %v8570 = vsel %vm8216, %v8368, 0
        %8572 = vmatpush.bf16.msra.mxu0 0
        %8573 = vmatpush.bf16.msra.mxu0 0
        %8574 = vmatpush.bf16.msra.mxu0 0
        %8575 = vmatpush.bf16.msra.mxu0 0
        %8576 = vmatpush.bf16.msra.mxu0 0
        %8577 = vmatpush.bf16.msra.mxu0 0
        %8578 = vmatpush.bf16.msra.mxu0 0
        %8579 = vmatpush.bf16.msra.mxu0 %v8567
        %8580 = vmatmul.bf16.gmra.mxu0 %v8570
        %v8581 = vpop.f32.mrf.mxu0
        %v8582 = vadd.f32 0.0, %v8581
        %v8583 = vpop.f32.mrf.mxu0
        %8584 = vdwg.mxu0
        %v8587 = vunpack.c.l.b16 %v8393
        %v8588 = vunpack.c.l.b16 %v8394
        %v8589 = vpack.c.b16 %v8588, %v8587
        %v8592 = vsel %vm8216, %v8369, 0
        %8594 = vmatpush.bf16.msra.mxu0 0
        %8595 = vmatpush.bf16.msra.mxu0 0
        %8596 = vmatpush.bf16.msra.mxu0 0
        %8597 = vmatpush.bf16.msra.mxu0 0
        %8598 = vmatpush.bf16.msra.mxu0 0
        %8599 = vmatpush.bf16.msra.mxu0 0
        %8600 = vmatpush.bf16.msra.mxu0 0
        %8601 = vmatpush.bf16.msra.mxu0 %v8589
        %8602 = vmatmul.bf16.gmra.mxu0 %v8592
        %v8603 = vpop.f32.mrf.mxu0
        %v8604 = vadd.f32 0.0, %v8603
        %v8605 = vpop.f32.mrf.mxu0
        %8606 = vdwg.mxu0
        %v8609 = vunpack.c.l.b16 %v8395
        %v8610 = vunpack.c.l.b16 %v8396
        %v8611 = vpack.c.b16 %v8610, %v8609
        %v8614 = vsel %vm8216, %v8370, 0
        %8616 = vmatpush.bf16.msra.mxu0 0
        %8617 = vmatpush.bf16.msra.mxu0 0
        %8618 = vmatpush.bf16.msra.mxu0 0
        %8619 = vmatpush.bf16.msra.mxu0 0
        %8620 = vmatpush.bf16.msra.mxu0 0
        %8621 = vmatpush.bf16.msra.mxu0 0
        %8622 = vmatpush.bf16.msra.mxu0 0
        %8623 = vmatpush.bf16.msra.mxu0 %v8611
        %8624 = vmatmul.bf16.gmra.mxu0 %v8614
        %v8625 = vpop.f32.mrf.mxu0
        %v8626 = vadd.f32 0.0, %v8625
        %v8627 = vpop.f32.mrf.mxu0
        %8628 = vdwg.mxu0
        %v8631 = vunpack.c.l.b16 %v8397
        %v8632 = vunpack.c.l.b16 %v8398
        %v8633 = vpack.c.b16 %v8632, %v8631
        %v8636 = vsel %vm8216, %v8371, 0
        %8638 = vmatpush.bf16.msra.mxu0 0
        %8639 = vmatpush.bf16.msra.mxu0 0
        %8640 = vmatpush.bf16.msra.mxu0 0
        %8641 = vmatpush.bf16.msra.mxu0 0
        %8642 = vmatpush.bf16.msra.mxu0 0
        %8643 = vmatpush.bf16.msra.mxu0 0
        %8644 = vmatpush.bf16.msra.mxu0 0
        %8645 = vmatpush.bf16.msra.mxu0 %v8633
        %8646 = vmatmul.bf16.gmra.mxu0 %v8636
        %v8647 = vpop.f32.mrf.mxu0
        %v8648 = vadd.f32 0.0, %v8647
        %v8649 = vpop.f32.mrf.mxu0
        %8650 = vdwg.mxu0
        %v8653 = vunpack.c.l.b16 %v8399
        %v8654 = vunpack.c.l.b16 %v8400
        %v8655 = vpack.c.b16 %v8654, %v8653
        %v8658 = vsel %vm8216, %v8372, 0
        %8660 = vmatpush.bf16.msra.mxu0 0
        %8661 = vmatpush.bf16.msra.mxu0 0
        %8662 = vmatpush.bf16.msra.mxu0 0
        %8663 = vmatpush.bf16.msra.mxu0 0
        %8664 = vmatpush.bf16.msra.mxu0 0
        %8665 = vmatpush.bf16.msra.mxu0 0
        %8666 = vmatpush.bf16.msra.mxu0 0
        %8667 = vmatpush.bf16.msra.mxu0 %v8655
        %8668 = vmatmul.bf16.gmra.mxu0 %v8658
        %v8669 = vpop.f32.mrf.mxu0
        %v8670 = vadd.f32 0.0, %v8669
        %v8671 = vpop.f32.mrf.mxu0
        %8672 = vdwg.mxu0
        %v8675 = vunpack.c.l.b16 %v8401
        %v8676 = vunpack.c.l.b16 %v8402
        %v8677 = vpack.c.b16 %v8676, %v8675
        %v8680 = vsel %vm8216, %v8373, 0
        %8682 = vmatpush.bf16.msra.mxu0 0
        %8683 = vmatpush.bf16.msra.mxu0 0
        %8684 = vmatpush.bf16.msra.mxu0 0
        %8685 = vmatpush.bf16.msra.mxu0 0
        %8686 = vmatpush.bf16.msra.mxu0 0
        %8687 = vmatpush.bf16.msra.mxu0 0
        %8688 = vmatpush.bf16.msra.mxu0 0
        %8689 = vmatpush.bf16.msra.mxu0 %v8677
        %8690 = vmatmul.bf16.gmra.mxu0 %v8680
        %v8691 = vpop.f32.mrf.mxu0
        %v8692 = vadd.f32 0.0, %v8691
        %v8693 = vpop.f32.mrf.mxu0
        %8694 = vdwg.mxu0
        %v8697 = vunpack.c.l.b16 %v8403
        %v8698 = vunpack.c.l.b16 %v8404
        %v8699 = vpack.c.b16 %v8698, %v8697
        %v8702 = vsel %vm8216, %v8374, 0
        %8704 = vmatpush.bf16.msra.mxu0 0
        %8705 = vmatpush.bf16.msra.mxu0 0
        %8706 = vmatpush.bf16.msra.mxu0 0
        %8707 = vmatpush.bf16.msra.mxu0 0
        %8708 = vmatpush.bf16.msra.mxu0 0
        %8709 = vmatpush.bf16.msra.mxu0 0
        %8710 = vmatpush.bf16.msra.mxu0 0
        %8711 = vmatpush.bf16.msra.mxu0 %v8699
        %8712 = vmatmul.bf16.gmra.mxu0 %v8702
        %v8713 = vpop.f32.mrf.mxu0
        %v8714 = vadd.f32 0.0, %v8713
        %v8715 = vpop.f32.mrf.mxu0
        %8716 = vdwg.mxu0
        %v8719 = vunpack.c.l.b16 %v8405
        %v8720 = vunpack.c.l.b16 %v8406
        %v8721 = vpack.c.b16 %v8720, %v8719
        %v8724 = vsel %vm8216, %v8375, 0
        %8726 = vmatpush.bf16.msra.mxu0 0
        %8727 = vmatpush.bf16.msra.mxu0 0
        %8728 = vmatpush.bf16.msra.mxu0 0
        %8729 = vmatpush.bf16.msra.mxu0 0
        %8730 = vmatpush.bf16.msra.mxu0 0
        %8731 = vmatpush.bf16.msra.mxu0 0
        %8732 = vmatpush.bf16.msra.mxu0 0
        %8733 = vmatpush.bf16.msra.mxu0 %v8721
        %8734 = vmatmul.bf16.gmra.mxu0 %v8724
        %v8735 = vpop.f32.mrf.mxu0
        %v8736 = vadd.f32 0.0, %v8735
        %v8737 = vpop.f32.mrf.mxu0
        %8738 = vdwg.mxu0
        %v8741 = vunpack.c.l.b16 %v8407
        %v8742 = vunpack.c.l.b16 %v8408
        %v8743 = vpack.c.b16 %v8742, %v8741
        %v8746 = vsel %vm8216, %v8376, 0
        %8748 = vmatpush.bf16.msra.mxu0 0
        %8749 = vmatpush.bf16.msra.mxu0 0
        %8750 = vmatpush.bf16.msra.mxu0 0
        %8751 = vmatpush.bf16.msra.mxu0 0
        %8752 = vmatpush.bf16.msra.mxu0 0
        %8753 = vmatpush.bf16.msra.mxu0 0
        %8754 = vmatpush.bf16.msra.mxu0 0
        %8755 = vmatpush.bf16.msra.mxu0 %v8743
        %8756 = vmatmul.bf16.gmra.mxu0 %v8746
        %v8757 = vpop.f32.mrf.mxu0
        %v8758 = vadd.f32 0.0, %v8757
        %v8759 = vpop.f32.mrf.mxu0
        %8760 = vdwg.mxu0
        %v8761 = vrcp.pop %v8315
        %v8762 = vrcp.pop %v8318
        %v8763 = vrcp.pop %v8321
        %v8764 = vrcp.pop %v8324
        %v8765 = vrcp.pop %v8327
        %v8766 = vrcp.pop %v8330
        %v8767 = vrcp.pop %v8333
        %v8768 = vrcp.pop %v8336
        %v8769 = vrcp.pop %v8339
        %v8770 = vrcp.pop %v8342
        %v8771 = vrcp.pop %v8345
        %v8772 = vrcp.pop %v8348
        %v8773 = vrcp.pop %v8351
        %v8774 = vrcp.pop %v8354
        %v8775 = vrcp.pop %v8357
        %v8776 = vrcp.pop %v8360
        %v8777 = vmul.f32 %v8428, %v8761
        %v8778 = vmul.f32 %v8450, %v8762
        %v8779 = vmul.f32 %v8472, %v8763
        %v8780 = vmul.f32 %v8494, %v8764
        %v8781 = vmul.f32 %v8516, %v8765
        %v8782 = vmul.f32 %v8538, %v8766
        %v8783 = vmul.f32 %v8560, %v8767
        %v8784 = vmul.f32 %v8582, %v8768
        %v8785 = vmul.f32 %v8604, %v8769
        %v8786 = vmul.f32 %v8626, %v8770
        %v8787 = vmul.f32 %v8648, %v8771
        %v8788 = vmul.f32 %v8670, %v8772
        %v8789 = vmul.f32 %v8692, %v8773
        %v8790 = vmul.f32 %v8714, %v8774
        %v8791 = vmul.f32 %v8736, %v8775
        %v8792 = vmul.f32 %v8758, %v8776
        %8795 = vrot.lane.b32.xlu0 %v8779, 32
        %v8796 = vpop.permute.xlu0 %8795
        %8797 = vrot.lane.b32.xlu0 %v8780, 32
        %v8798 = vpop.permute.xlu0 %8797
        %8803 = vrot.lane.b32.xlu0 %v8781, 64
        %v8804 = vpop.permute.xlu0 %8803
        %8805 = vrot.lane.b32.xlu0 %v8782, 64
        %v8806 = vpop.permute.xlu0 %8805
        %8811 = vrot.lane.b32.xlu0 %v8783, 96
        %v8812 = vpop.permute.xlu0 %8811
        %8813 = vrot.lane.b32.xlu0 %v8784, 96
        %v8814 = vpop.permute.xlu0 %8813
        %8819 = vrot.lane.b32.xlu0 %v8787, 32
        %v8820 = vpop.permute.xlu0 %8819
        %8821 = vrot.lane.b32.xlu0 %v8788, 32
        %v8822 = vpop.permute.xlu0 %8821
        %8827 = vrot.lane.b32.xlu0 %v8789, 64
        %v8828 = vpop.permute.xlu0 %8827
        %8829 = vrot.lane.b32.xlu0 %v8790, 64
        %v8830 = vpop.permute.xlu0 %8829
        %8835 = vrot.lane.b32.xlu0 %v8791, 96
        %v8836 = vpop.permute.xlu0 %8835
        %8837 = vrot.lane.b32.xlu0 %v8792, 96
        %v8838 = vpop.permute.xlu0 %8837
        %v8841 = vsel %vm4165, %v8777, %v8796
        %v8842 = vsel %vm4165, %v8778, %v8798
        %v8843 = vsel %vm5050, %v8841, %v8804
        %v8844 = vsel %vm5050, %v8842, %v8806
        %v8845 = vsel %vm5053, %v8843, %v8812
        %v8846 = vsel %vm5053, %v8844, %v8814
        %v8847 = vsel %vm4165, %v8785, %v8820
        %v8848 = vsel %vm4165, %v8786, %v8822
        %v8849 = vsel %vm5050, %v8847, %v8828
        %v8850 = vsel %vm5050, %v8848, %v8830
        %v8851 = vsel %vm5053, %v8849, %v8836
        %v8852 = vsel %vm5053, %v8850, %v8838
        %v8853 = vpack.c.bf16 %v8846, %v8845
        %v8854 = vpack.c.bf16 %v8852, %v8851
        %v8855 = vld [vmem:[%s2301] sm:$0xff]
        %v8856 = vld [vmem:[%s2301 + $0x8] sm:$0xff]
        %v8857 = vld [vmem:[%s2301 + $0x10] sm:$0xff]
        %v8858 = vld [vmem:[%s2301 + $0x18] sm:$0xff]
        %v8859 = vld [vmem:[%s2301 + $0x20] sm:$0xff]
        %v8860 = vld [vmem:[%s2301 + $0x28] sm:$0xff]
        %v8861 = vld [vmem:[%s2301 + $0x30] sm:$0xff]
        %v8862 = vld [vmem:[%s2301 + $0x38] sm:$0xff]
        %v8863 = vld [vmem:[%s2301 + $0x40] sm:$0xff]
        %v8864 = vld [vmem:[%s2301 + $0x48] sm:$0xff]
        %v8865 = vld [vmem:[%s2301 + $0x50] sm:$0xff]
        %v8866 = vld [vmem:[%s2301 + $0x58] sm:$0xff]
        %v8867 = vld [vmem:[%s2301 + $0x60] sm:$0xff]
        %v8868 = vld [vmem:[%s2301 + $0x68] sm:$0xff]
        %v8869 = vld [vmem:[%s2301 + $0x70] sm:$0xff]
        %v8870 = vld [vmem:[%s2301 + $0x78] sm:$0xff]
        %v8871 = vld [vmem:[%s2301 + $0x80] sm:$0xff]
        %v8872 = vld [vmem:[%s2301 + $0x88] sm:$0xff]
        %v8873 = vld [vmem:[%s2301 + $0x90] sm:$0xff]
        %v8874 = vld [vmem:[%s2301 + $0x98] sm:$0xff]
        %v8875 = vld [vmem:[%s2301 + $0xa0] sm:$0xff]
        %v8876 = vld [vmem:[%s2301 + $0xa8] sm:$0xff]
        %v8877 = vld [vmem:[%s2301 + $0xb0] sm:$0xff]
        %v8878 = vld [vmem:[%s2301 + $0xb8] sm:$0xff]
        %v8879 = vld [vmem:[%s2301 + $0xc0] sm:$0xff]
        %v8880 = vld [vmem:[%s2301 + $0xc8] sm:$0xff]
        %v8881 = vld [vmem:[%s2301 + $0xd0] sm:$0xff]
        %v8882 = vld [vmem:[%s2301 + $0xd8] sm:$0xff]
        %v8883 = vld [vmem:[%s2301 + $0xe0] sm:$0xff]
        %v8884 = vld [vmem:[%s2301 + $0xe8] sm:$0xff]
        %v8885 = vld [vmem:[%s2301 + $0xf0] sm:$0xff]
        %v8886 = vld [vmem:[%s2301 + $0xf8] sm:$0xff]
        %v8887 = vld [vmem:[%s2311] sm:$0x3]
        %v8889 = vperm.slane %v8887, 0
        %v8890 = vperm.slane %v8887, 1
        %v8925 = vunpack.c.l.b16 %v8855
        %v8926 = vunpack.c.h.b16 %v8855
        %v8927 = vunpack.c.l.b16 %v8856
        %v8928 = vunpack.c.h.b16 %v8856
        %v8929 = vunpack.c.l.b16 %v8857
        %v8930 = vunpack.c.h.b16 %v8857
        %v8931 = vunpack.c.l.b16 %v8858
        %v8932 = vunpack.c.h.b16 %v8858
        %v8933 = vunpack.c.l.b16 %v8859
        %v8934 = vunpack.c.h.b16 %v8859
        %v8935 = vunpack.c.l.b16 %v8860
        %v8936 = vunpack.c.h.b16 %v8860
        %v8937 = vunpack.c.l.b16 %v8861
        %v8938 = vunpack.c.h.b16 %v8861
        %v8939 = vunpack.c.l.b16 %v8862
        %v8940 = vunpack.c.h.b16 %v8862
        %v8941 = vunpack.c.l.b16 %v8863
        %v8942 = vunpack.c.h.b16 %v8863
        %v8943 = vunpack.c.l.b16 %v8864
        %v8944 = vunpack.c.h.b16 %v8864
        %v8945 = vunpack.c.l.b16 %v8865
        %v8946 = vunpack.c.h.b16 %v8865
        %v8947 = vunpack.c.l.b16 %v8866
        %v8948 = vunpack.c.h.b16 %v8866
        %v8949 = vunpack.c.l.b16 %v8867
        %v8950 = vunpack.c.h.b16 %v8867
        %v8951 = vunpack.c.l.b16 %v8868
        %v8952 = vunpack.c.h.b16 %v8868
        %v8953 = vunpack.c.l.b16 %v8869
        %v8954 = vunpack.c.h.b16 %v8869
        %v8955 = vunpack.c.l.b16 %v8870
        %v8956 = vunpack.c.h.b16 %v8870
        %v8957 = vunpack.c.l.b16 %v8871
        %v8958 = vunpack.c.h.b16 %v8871
        %v8959 = vunpack.c.l.b16 %v8872
        %v8960 = vunpack.c.h.b16 %v8872
        %v8961 = vunpack.c.l.b16 %v8873
        %v8962 = vunpack.c.h.b16 %v8873
        %v8963 = vunpack.c.l.b16 %v8874
        %v8964 = vunpack.c.h.b16 %v8874
        %v8965 = vunpack.c.l.b16 %v8875
        %v8966 = vunpack.c.h.b16 %v8875
        %v8967 = vunpack.c.l.b16 %v8876
        %v8968 = vunpack.c.h.b16 %v8876
        %v8969 = vunpack.c.l.b16 %v8877
        %v8970 = vunpack.c.h.b16 %v8877
        %v8971 = vunpack.c.l.b16 %v8878
        %v8972 = vunpack.c.h.b16 %v8878
        %v8973 = vunpack.c.l.b16 %v8879
        %v8974 = vunpack.c.h.b16 %v8879
        %v8975 = vunpack.c.l.b16 %v8880
        %v8976 = vunpack.c.h.b16 %v8880
        %v8977 = vunpack.c.l.b16 %v8881
        %v8978 = vunpack.c.h.b16 %v8881
        %v8979 = vunpack.c.l.b16 %v8882
        %v8980 = vunpack.c.h.b16 %v8882
        %v8981 = vunpack.c.l.b16 %v8883
        %v8982 = vunpack.c.h.b16 %v8883
        %v8983 = vunpack.c.l.b16 %v8884
        %v8984 = vunpack.c.h.b16 %v8884
        %v8985 = vunpack.c.l.b16 %v8885
        %v8986 = vunpack.c.h.b16 %v8885
        %v8987 = vunpack.c.l.b16 %v8886
        %v8988 = vunpack.c.h.b16 %v8886
        %v8989 = vpack.c.b16 %v8927, %v8925
        %v8990 = vpack.c.b16 %v8928, %v8926
        %v8991 = vpack.c.b16 %v8931, %v8929
        %v8992 = vpack.c.b16 %v8932, %v8930
        %v8993 = vpack.c.b16 %v8935, %v8933
        %v8994 = vpack.c.b16 %v8936, %v8934
        %v8995 = vpack.c.b16 %v8939, %v8937
        %v8996 = vpack.c.b16 %v8940, %v8938
        %v8997 = vpack.c.b16 %v8943, %v8941
        %v8998 = vpack.c.b16 %v8944, %v8942
        %v8999 = vpack.c.b16 %v8947, %v8945
        %v9000 = vpack.c.b16 %v8948, %v8946
        %v9001 = vpack.c.b16 %v8951, %v8949
        %v9002 = vpack.c.b16 %v8952, %v8950
        %v9003 = vpack.c.b16 %v8955, %v8953
        %v9004 = vpack.c.b16 %v8956, %v8954
        %v9005 = vpack.c.b16 %v8959, %v8957
        %v9006 = vpack.c.b16 %v8960, %v8958
        %v9007 = vpack.c.b16 %v8963, %v8961
        %v9008 = vpack.c.b16 %v8964, %v8962
        %v9009 = vpack.c.b16 %v8967, %v8965
        %v9010 = vpack.c.b16 %v8968, %v8966
        %v9011 = vpack.c.b16 %v8971, %v8969
        %v9012 = vpack.c.b16 %v8972, %v8970
        %v9013 = vpack.c.b16 %v8975, %v8973
        %v9014 = vpack.c.b16 %v8976, %v8974
        %v9015 = vpack.c.b16 %v8979, %v8977
        %v9016 = vpack.c.b16 %v8980, %v8978
        %v9017 = vpack.c.b16 %v8983, %v8981
        %v9018 = vpack.c.b16 %v8984, %v8982
        %v9019 = vpack.c.b16 %v8987, %v8985
        %v9020 = vpack.c.b16 %v8988, %v8986
        %9053 = vmatpush.bf16.msra.mxu0 %v9003
        %9054 = vmatpush.bf16.msra.mxu0 %v9001
        %9055 = vmatpush.bf16.msra.mxu0 %v8999
        %9056 = vmatpush.bf16.msra.mxu0 %v8997
        %9057 = vmatpush.bf16.msra.mxu0 %v8995
        %9058 = vmatpush.bf16.msra.mxu0 %v8993
        %9059 = vmatpush.bf16.msra.mxu0 %v8991
        %9060 = vmatpush.bf16.msra.mxu0 %v8989
        %9061 = vmatmul.bf16.gmra.mxu0 %v8853
        %v9062 = vpop.f32.mrf.mxu0
        %v9063 = vadd.f32 %v8889, %v9062
        %v9064 = vpop.f32.mrf.mxu0
        %v9065 = vadd.f32 %v8889, %v9064
        %9066 = vdwg.mxu0
        %9067 = vmatpush.bf16.msra.mxu0 %v9019
        %9068 = vmatpush.bf16.msra.mxu0 %v9017
        %9069 = vmatpush.bf16.msra.mxu0 %v9015
        %9070 = vmatpush.bf16.msra.mxu0 %v9013
        %9071 = vmatpush.bf16.msra.mxu0 %v9011
        %9072 = vmatpush.bf16.msra.mxu0 %v9009
        %9073 = vmatpush.bf16.msra.mxu0 %v9007
        %9074 = vmatpush.bf16.msra.mxu0 %v9005
        %9075 = vmatmul.bf16.gmra.mxu0 %v8854
        %v9076 = vpop.f32.mrf.mxu0
        %v9077 = vadd.f32 %v9063, %v9076
        %v9078 = vpop.f32.mrf.mxu0
        %v9079 = vadd.f32 %v9065, %v9078
        %9080 = vdwg.mxu0
        %9081 = vmatpush.bf16.msra.mxu0 %v9004
        %9082 = vmatpush.bf16.msra.mxu0 %v9002
        %9083 = vmatpush.bf16.msra.mxu0 %v9000
        %9084 = vmatpush.bf16.msra.mxu0 %v8998
        %9085 = vmatpush.bf16.msra.mxu0 %v8996
        %9086 = vmatpush.bf16.msra.mxu0 %v8994
        %9087 = vmatpush.bf16.msra.mxu0 %v8992
        %9088 = vmatpush.bf16.msra.mxu0 %v8990
        %9089 = vmatmul.bf16.gmra.mxu0 %v8853
        %v9090 = vpop.f32.mrf.mxu0
        %v9091 = vadd.f32 %v8890, %v9090
        %v9092 = vpop.f32.mrf.mxu0
        %v9093 = vadd.f32 %v8890, %v9092
        %9094 = vdwg.mxu0
        %9095 = vmatpush.bf16.msra.mxu0 %v9020
        %9096 = vmatpush.bf16.msra.mxu0 %v9018
        %9097 = vmatpush.bf16.msra.mxu0 %v9016
        %9098 = vmatpush.bf16.msra.mxu0 %v9014
        %9099 = vmatpush.bf16.msra.mxu0 %v9012
        %9100 = vmatpush.bf16.msra.mxu0 %v9010
        %9101 = vmatpush.bf16.msra.mxu0 %v9008
        %9102 = vmatpush.bf16.msra.mxu0 %v9006
        %9103 = vmatmul.bf16.gmra.mxu0 %v8854
        %v9104 = vpop.f32.mrf.mxu0
        %v9105 = vadd.f32 %v9091, %v9104
        %v9106 = vpop.f32.mrf.mxu0
        %v9107 = vadd.f32 %v9093, %v9106
        %9108 = vdwg.mxu0
        %v9109 = vadd.f32 %v5395, %v9077
        %v9110 = vadd.f32 %v5396, %v9105
        %v9111 = vadd.f32 %v5397, %v9079
        %v9112 = vadd.f32 %v5398, %v9107
        %v9113 = vld [vmem:[%s2321] sm:$0x3]
        %v9114 = vld [vmem:[%s2676] sm:$0x3]
        %v9115 = vadd.f32 %v9109, %v9110
        %9116 = vadd.xlane.f32.xlu0 %v9115
        %v9117 = vpop.xlane.xlu0 %9116
        %v9118 = vadd.f32 %v9111, %v9112
        %9119 = vadd.xlane.f32.xlu0 %v9118
        %v9120 = vpop.xlane.xlu0 %9119
        %v9121 = vmul.f32 %v9117, %v5336
        %v9122 = vmul.f32 %v9120, %v5336
        %v9123 = vsub.f32 %v9109, %v9121
        %v9124 = vsub.f32 %v9110, %v9121
        %v9125 = vsub.f32 %v9111, %v9122
        %v9126 = vsub.f32 %v9112, %v9122
        %v9127 = vmul.f32 %v9123, %v9123
        %v9128 = vmul.f32 %v9124, %v9124
        %v9129 = vmul.f32 %v9125, %v9125
        %v9130 = vmul.f32 %v9126, %v9126
        %v9131 = vadd.f32 %v9127, %v9128
        %9132 = vadd.xlane.f32.xlu0 %v9131
        %v9133 = vpop.xlane.xlu0 %9132
        %v9134 = vadd.f32 %v9129, %v9130
        %9135 = vadd.xlane.f32.xlu0 %v9134
        %v9136 = vpop.xlane.xlu0 %9135
        %v9137 = vmul.f32 %v9133, %v5336
        %v9138 = vmul.f32 %v9136, %v5336
        %v9139 = vadd.f32 %v9137, 1e-05
        %v9140 = vadd.f32 %v9138, 1e-05
        %v9141 = vrsqrt.pop %v9139
        %v9142 = vmul.f32 %v9141, %v9139
        %v9143 = vmul.f32 %v9142, %v9141
        %v9144 = vmul.f32 0.5, %v9143
        %v9145 = vsub.f32 1.5, %v9144
        %v9146 = vmul.f32 %v9141, %v9145
        %vm9147 = vweird.f32 %v9139
        %vm9148 = vweird.f32 %v9141
        %vm9149 = vmor %vm9147, %vm9148
        %v9150 = vsel %vm9149, %v9141, %v9146
        %v9151 = vrsqrt.pop %v9140
        %v9152 = vmul.f32 %v9151, %v9140
        %v9153 = vmul.f32 %v9152, %v9151
        %v9154 = vmul.f32 0.5, %v9153
        %v9155 = vsub.f32 1.5, %v9154
        %v9156 = vmul.f32 %v9151, %v9155
        %vm9157 = vweird.f32 %v9140
        %vm9158 = vweird.f32 %v9151
        %vm9159 = vmor %vm9157, %vm9158
        %v9160 = vsel %vm9159, %v9151, %v9156
        %v9161 = vmul.f32 %v9123, %v9150
        %v9162 = vmul.f32 %v9124, %v9150
        %v9163 = vmul.f32 %v9125, %v9160
        %v9164 = vmul.f32 %v9126, %v9160
        %v9166 = vperm.slane %v9113, 0
        %v9167 = vperm.slane %v9113, 1
        %v9170 = vmul.f32 %v9161, %v9166
        %v9171 = vmul.f32 %v9162, %v9167
        %v9172 = vmul.f32 %v9163, %v9166
        %v9173 = vmul.f32 %v9164, %v9167
        %v9175 = vperm.slane %v9114, 0
        %v9176 = vperm.slane %v9114, 1
        %v9179 = vadd.f32 %v9170, %v9175
        %v9180 = vadd.f32 %v9171, %v9176
        %v9181 = vadd.f32 %v9172, %v9175
        %v9182 = vadd.f32 %v9173, %v9176
        %v9183 = vpack.c.bf16 %v9181, %v9179
        %v9184 = vpack.c.bf16 %v9182, %v9180
        %v9185 = vld [vmem:[%s2331] sm:$0xf]
        %v9186 = vld [vmem:[%s2331 + $0x4] sm:$0xf]
        %v9187 = vld [vmem:[%s2331 + $0x8] sm:$0xf]
        %v9188 = vld [vmem:[%s2331 + $0xc] sm:$0xf]
        %v9189 = vld [vmem:[%s2331 + $0x10] sm:$0xf]
        %v9190 = vld [vmem:[%s2331 + $0x14] sm:$0xf]
        %v9191 = vld [vmem:[%s2331 + $0x18] sm:$0xf]
        %v9192 = vld [vmem:[%s2331 + $0x1c] sm:$0xf]
        %v9193 = vld [vmem:[%s2331 + $0x20] sm:$0xf]
        %v9194 = vld [vmem:[%s2331 + $0x24] sm:$0xf]
        %v9195 = vld [vmem:[%s2331 + $0x28] sm:$0xf]
        %v9196 = vld [vmem:[%s2331 + $0x2c] sm:$0xf]
        %v9197 = vld [vmem:[%s2331 + $0x30] sm:$0xf]
        %v9198 = vld [vmem:[%s2331 + $0x34] sm:$0xf]
        %v9199 = vld [vmem:[%s2331 + $0x38] sm:$0xf]
        %v9200 = vld [vmem:[%s2331 + $0x3c] sm:$0xf]
        %v9201 = vld [vmem:[%s2331 + $0x40] sm:$0xf]
        %v9202 = vld [vmem:[%s2331 + $0x44] sm:$0xf]
        %v9203 = vld [vmem:[%s2331 + $0x48] sm:$0xf]
        %v9204 = vld [vmem:[%s2331 + $0x4c] sm:$0xf]
        %v9205 = vld [vmem:[%s2331 + $0x50] sm:$0xf]
        %v9206 = vld [vmem:[%s2331 + $0x54] sm:$0xf]
        %v9207 = vld [vmem:[%s2331 + $0x58] sm:$0xf]
        %v9208 = vld [vmem:[%s2331 + $0x5c] sm:$0xf]
        %v9209 = vld [vmem:[%s2331 + $0x60] sm:$0xf]
        %v9210 = vld [vmem:[%s2331 + $0x64] sm:$0xf]
        %v9211 = vld [vmem:[%s2331 + $0x68] sm:$0xf]
        %v9212 = vld [vmem:[%s2331 + $0x6c] sm:$0xf]
        %v9213 = vld [vmem:[%s2331 + $0x70] sm:$0xf]
        %v9214 = vld [vmem:[%s2331 + $0x74] sm:$0xf]
        %v9215 = vld [vmem:[%s2331 + $0x78] sm:$0xf]
        %v9216 = vld [vmem:[%s2331 + $0x7c] sm:$0xf]
        %v9217 = vld [vmem:[%s2340] sm:$0x1]
        %v9219 = vperm.slane %v9217, 0
        %v9253 = vunpack.c.l.b16 %v9185
        %v9254 = vunpack.c.l.b16 %v9186
        %v9255 = vunpack.c.l.b16 %v9187
        %v9256 = vunpack.c.l.b16 %v9188
        %v9257 = vunpack.c.l.b16 %v9189
        %v9258 = vunpack.c.l.b16 %v9190
        %v9259 = vunpack.c.l.b16 %v9191
        %v9260 = vunpack.c.l.b16 %v9192
        %v9261 = vunpack.c.l.b16 %v9193
        %v9262 = vunpack.c.l.b16 %v9194
        %v9263 = vunpack.c.l.b16 %v9195
        %v9264 = vunpack.c.l.b16 %v9196
        %v9265 = vunpack.c.l.b16 %v9197
        %v9266 = vunpack.c.l.b16 %v9198
        %v9267 = vunpack.c.l.b16 %v9199
        %v9268 = vunpack.c.l.b16 %v9200
        %v9269 = vunpack.c.l.b16 %v9201
        %v9270 = vunpack.c.l.b16 %v9202
        %v9271 = vunpack.c.l.b16 %v9203
        %v9272 = vunpack.c.l.b16 %v9204
        %v9273 = vunpack.c.l.b16 %v9205
        %v9274 = vunpack.c.l.b16 %v9206
        %v9275 = vunpack.c.l.b16 %v9207
        %v9276 = vunpack.c.l.b16 %v9208
        %v9277 = vunpack.c.l.b16 %v9209
        %v9278 = vunpack.c.l.b16 %v9210
        %v9279 = vunpack.c.l.b16 %v9211
        %v9280 = vunpack.c.l.b16 %v9212
        %v9281 = vunpack.c.l.b16 %v9213
        %v9282 = vunpack.c.l.b16 %v9214
        %v9283 = vunpack.c.l.b16 %v9215
        %v9284 = vunpack.c.l.b16 %v9216
        %v9285 = vpack.c.b16 %v9254, %v9253
        %v9286 = vpack.c.b16 %v9256, %v9255
        %v9287 = vpack.c.b16 %v9258, %v9257
        %v9288 = vpack.c.b16 %v9260, %v9259
        %v9289 = vpack.c.b16 %v9262, %v9261
        %v9290 = vpack.c.b16 %v9264, %v9263
        %v9291 = vpack.c.b16 %v9266, %v9265
        %v9292 = vpack.c.b16 %v9268, %v9267
        %v9293 = vpack.c.b16 %v9270, %v9269
        %v9294 = vpack.c.b16 %v9272, %v9271
        %v9295 = vpack.c.b16 %v9274, %v9273
        %v9296 = vpack.c.b16 %v9276, %v9275
        %v9297 = vpack.c.b16 %v9278, %v9277
        %v9298 = vpack.c.b16 %v9280, %v9279
        %v9299 = vpack.c.b16 %v9282, %v9281
        %v9300 = vpack.c.b16 %v9284, %v9283
        %9317 = vmatpush.bf16.msra.mxu0 %v9292
        %9318 = vmatpush.bf16.msra.mxu0 %v9291
        %9319 = vmatpush.bf16.msra.mxu0 %v9290
        %9320 = vmatpush.bf16.msra.mxu0 %v9289
        %9321 = vmatpush.bf16.msra.mxu0 %v9288
        %9322 = vmatpush.bf16.msra.mxu0 %v9287
        %9323 = vmatpush.bf16.msra.mxu0 %v9286
        %9324 = vmatpush.bf16.msra.mxu0 %v9285
        %9325 = vmatmul.bf16.gmra.mxu0 %v9183
        %v9326 = vpop.f32.mrf.mxu0
        %v9327 = vadd.f32 %v9219, %v9326
        %v9328 = vpop.f32.mrf.mxu0
        %v9329 = vadd.f32 %v9219, %v9328
        %9330 = vdwg.mxu0
        %9331 = vmatpush.bf16.msra.mxu0 %v9300
        %9332 = vmatpush.bf16.msra.mxu0 %v9299
        %9333 = vmatpush.bf16.msra.mxu0 %v9298
        %9334 = vmatpush.bf16.msra.mxu0 %v9297
        %9335 = vmatpush.bf16.msra.mxu0 %v9296
        %9336 = vmatpush.bf16.msra.mxu0 %v9295
        %9337 = vmatpush.bf16.msra.mxu0 %v9294
        %9338 = vmatpush.bf16.msra.mxu0 %v9293
        %9339 = vmatmul.bf16.gmra.mxu0 %v9184
        %v9340 = vpop.f32.mrf.mxu0
        %v9341 = vadd.f32 %v9327, %v9340
        %v9342 = vpop.f32.mrf.mxu0
        %v9343 = vadd.f32 %v9329, %v9342
        %9344 = vdwg.mxu0
        %v9345 = vmax.f32 %v9341, 0.0
        %v9346 = vmax.f32 %v9343, 0.0
        %v9347 = vpack.c.bf16 %v9346, %v9345
        %v9348 = vld [vmem:[%s2350] sm:$0xff]
        %v9349 = vld [vmem:[%s2350 + $0x8] sm:$0xff]
        %v9350 = vld [vmem:[%s2350 + $0x10] sm:$0xff]
        %v9351 = vld [vmem:[%s2350 + $0x18] sm:$0xff]
        %v9352 = vld [vmem:[%s2350 + $0x20] sm:$0xff]
        %v9353 = vld [vmem:[%s2350 + $0x28] sm:$0xff]
        %v9354 = vld [vmem:[%s2350 + $0x30] sm:$0xff]
        %v9355 = vld [vmem:[%s2350 + $0x38] sm:$0xff]
        %v9356 = vld [vmem:[%s2350 + $0x40] sm:$0xff]
        %v9357 = vld [vmem:[%s2350 + $0x48] sm:$0xff]
        %v9358 = vld [vmem:[%s2350 + $0x50] sm:$0xff]
        %v9359 = vld [vmem:[%s2350 + $0x58] sm:$0xff]
        %v9360 = vld [vmem:[%s2350 + $0x60] sm:$0xff]
        %v9361 = vld [vmem:[%s2350 + $0x68] sm:$0xff]
        %v9362 = vld [vmem:[%s2350 + $0x70] sm:$0xff]
        %v9363 = vld [vmem:[%s2350 + $0x78] sm:$0xff]
        %v9364 = vld [vmem:[%s2680] sm:$0x3]
        %v9366 = vperm.slane %v9364, 0
        %v9367 = vperm.slane %v9364, 1
        %v9386 = vunpack.c.l.b16 %v9348
        %v9387 = vunpack.c.h.b16 %v9348
        %v9388 = vunpack.c.l.b16 %v9349
        %v9389 = vunpack.c.h.b16 %v9349
        %v9390 = vunpack.c.l.b16 %v9350
        %v9391 = vunpack.c.h.b16 %v9350
        %v9392 = vunpack.c.l.b16 %v9351
        %v9393 = vunpack.c.h.b16 %v9351
        %v9394 = vunpack.c.l.b16 %v9352
        %v9395 = vunpack.c.h.b16 %v9352
        %v9396 = vunpack.c.l.b16 %v9353
        %v9397 = vunpack.c.h.b16 %v9353
        %v9398 = vunpack.c.l.b16 %v9354
        %v9399 = vunpack.c.h.b16 %v9354
        %v9400 = vunpack.c.l.b16 %v9355
        %v9401 = vunpack.c.h.b16 %v9355
        %v9402 = vunpack.c.l.b16 %v9356
        %v9403 = vunpack.c.h.b16 %v9356
        %v9404 = vunpack.c.l.b16 %v9357
        %v9405 = vunpack.c.h.b16 %v9357
        %v9406 = vunpack.c.l.b16 %v9358
        %v9407 = vunpack.c.h.b16 %v9358
        %v9408 = vunpack.c.l.b16 %v9359
        %v9409 = vunpack.c.h.b16 %v9359
        %v9410 = vunpack.c.l.b16 %v9360
        %v9411 = vunpack.c.h.b16 %v9360
        %v9412 = vunpack.c.l.b16 %v9361
        %v9413 = vunpack.c.h.b16 %v9361
        %v9414 = vunpack.c.l.b16 %v9362
        %v9415 = vunpack.c.h.b16 %v9362
        %v9416 = vunpack.c.l.b16 %v9363
        %v9417 = vunpack.c.h.b16 %v9363
        %v9418 = vpack.c.b16 %v9388, %v9386
        %v9419 = vpack.c.b16 %v9389, %v9387
        %v9420 = vpack.c.b16 %v9392, %v9390
        %v9421 = vpack.c.b16 %v9393, %v9391
        %v9422 = vpack.c.b16 %v9396, %v9394
        %v9423 = vpack.c.b16 %v9397, %v9395
        %v9424 = vpack.c.b16 %v9400, %v9398
        %v9425 = vpack.c.b16 %v9401, %v9399
        %v9426 = vpack.c.b16 %v9404, %v9402
        %v9427 = vpack.c.b16 %v9405, %v9403
        %v9428 = vpack.c.b16 %v9408, %v9406
        %v9429 = vpack.c.b16 %v9409, %v9407
        %v9430 = vpack.c.b16 %v9412, %v9410
        %v9431 = vpack.c.b16 %v9413, %v9411
        %v9432 = vpack.c.b16 %v9416, %v9414
        %v9433 = vpack.c.b16 %v9417, %v9415
        %9450 = vmatpush.bf16.msra.mxu0 %v9432
        %9451 = vmatpush.bf16.msra.mxu0 %v9430
        %9452 = vmatpush.bf16.msra.mxu0 %v9428
        %9453 = vmatpush.bf16.msra.mxu0 %v9426
        %9454 = vmatpush.bf16.msra.mxu0 %v9424
        %9455 = vmatpush.bf16.msra.mxu0 %v9422
        %9456 = vmatpush.bf16.msra.mxu0 %v9420
        %9457 = vmatpush.bf16.msra.mxu0 %v9418
        %9458 = vmatmul.bf16.gmra.mxu0 %v9347
        %v9459 = vpop.f32.mrf.mxu0
        %v9460 = vadd.f32 %v9366, %v9459
        %v9461 = vpop.f32.mrf.mxu0
        %v9462 = vadd.f32 %v9366, %v9461
        %9463 = vdwg.mxu0
        %9464 = vmatpush.bf16.msra.mxu0 %v9433
        %9465 = vmatpush.bf16.msra.mxu0 %v9431
        %9466 = vmatpush.bf16.msra.mxu0 %v9429
        %9467 = vmatpush.bf16.msra.mxu0 %v9427
        %9468 = vmatpush.bf16.msra.mxu0 %v9425
        %9469 = vmatpush.bf16.msra.mxu0 %v9423
        %9470 = vmatpush.bf16.msra.mxu0 %v9421
        %9471 = vmatpush.bf16.msra.mxu0 %v9419
        %9472 = vmatmul.bf16.gmra.mxu0 %v9347
        %v9473 = vpop.f32.mrf.mxu0
        %v9474 = vadd.f32 %v9367, %v9473
        %v9475 = vpop.f32.mrf.mxu0
        %v9476 = vadd.f32 %v9367, %v9475
        %9477 = vdwg.mxu0
        %v9478 = vadd.f32 %v9179, %v9460
        %v9479 = vadd.f32 %v9180, %v9474
        %v9480 = vadd.f32 %v9181, %v9462
        %v9481 = vadd.f32 %v9182, %v9476
        %v9482 = vld [vmem:[%s2360] sm:$0x3]
        %v9483 = vld [vmem:[%s2370] sm:$0x3]
        %v9484 = vadd.f32 %v9478, %v9479
        %9485 = vadd.xlane.f32.xlu0 %v9484
        %v9486 = vpop.xlane.xlu0 %9485
        %v9487 = vadd.f32 %v9480, %v9481
        %9488 = vadd.xlane.f32.xlu0 %v9487
        %v9489 = vpop.xlane.xlu0 %9488
        %v9490 = vmul.f32 %v9486, %v5336
        %v9491 = vmul.f32 %v9489, %v5336
        %v9492 = vsub.f32 %v9478, %v9490
        %v9493 = vsub.f32 %v9479, %v9490
        %v9494 = vsub.f32 %v9480, %v9491
        %v9495 = vsub.f32 %v9481, %v9491
        %v9496 = vmul.f32 %v9492, %v9492
        %v9497 = vmul.f32 %v9493, %v9493
        %v9498 = vmul.f32 %v9494, %v9494
        %v9499 = vmul.f32 %v9495, %v9495
        %v9500 = vadd.f32 %v9496, %v9497
        %9501 = vadd.xlane.f32.xlu0 %v9500
        %v9502 = vpop.xlane.xlu0 %9501
        %v9503 = vadd.f32 %v9498, %v9499
        %9504 = vadd.xlane.f32.xlu0 %v9503
        %v9505 = vpop.xlane.xlu0 %9504
        %v9506 = vmul.f32 %v9502, %v5336
        %v9507 = vmul.f32 %v9505, %v5336
        %v9508 = vadd.f32 %v9506, 1e-05
        %v9509 = vadd.f32 %v9507, 1e-05
        %v9510 = vrsqrt.pop %v9508
        %v9511 = vmul.f32 %v9510, %v9508
        %v9512 = vmul.f32 %v9511, %v9510
        %v9513 = vmul.f32 0.5, %v9512
        %v9514 = vsub.f32 1.5, %v9513
        %v9515 = vmul.f32 %v9510, %v9514
        %vm9516 = vweird.f32 %v9508
        %vm9517 = vweird.f32 %v9510
        %vm9518 = vmor %vm9516, %vm9517
        %v9519 = vsel %vm9518, %v9510, %v9515
        %v9520 = vrsqrt.pop %v9509
        %v9521 = vmul.f32 %v9520, %v9509
        %v9522 = vmul.f32 %v9521, %v9520
        %v9523 = vmul.f32 0.5, %v9522
        %v9524 = vsub.f32 1.5, %v9523
        %v9525 = vmul.f32 %v9520, %v9524
        %vm9526 = vweird.f32 %v9509
        %vm9527 = vweird.f32 %v9520
        %vm9528 = vmor %vm9526, %vm9527
        %v9529 = vsel %vm9528, %v9520, %v9525
        %v9530 = vmul.f32 %v9492, %v9519
        %v9531 = vmul.f32 %v9493, %v9519
        %v9532 = vmul.f32 %v9494, %v9529
        %v9533 = vmul.f32 %v9495, %v9529
        %v9535 = vperm.slane %v9482, 0
        %v9536 = vperm.slane %v9482, 1
        %v9539 = vmul.f32 %v9530, %v9535
        %v9540 = vmul.f32 %v9531, %v9536
        %v9541 = vmul.f32 %v9532, %v9535
        %v9542 = vmul.f32 %v9533, %v9536
        %v9544 = vperm.slane %v9483, 0
        %v9545 = vperm.slane %v9483, 1
        %v9548 = vadd.f32 %v9539, %v9544
        %v9549 = vadd.f32 %v9540, %v9545
        %v9550 = vadd.f32 %v9541, %v9544
        %v9551 = vadd.f32 %v9542, %v9545
        %9552 = vst [vmem:[#allocation55] sm:$0xff] %v9548
        %9553 = vst [vmem:[#allocation55 + $0x8] sm:$0xff] %v9549
        %9554 = vst [vmem:[#allocation55 + $0x10] sm:$0xff] %v9550
        %9555 = vst [vmem:[#allocation55 + $0x18] sm:$0xff] %v9551
        // Predicated region
        $region341: #{tpu_custom_call.1} parent=199 // pred_check
          %p9556 = pneg %p1327
        $region342: #{tpu_custom_call.1} parent=199 // pred_check_branch
          %9558 = sbr.rel (%p9556) target = $region344
        $region343: #{tpu_custom_call.1} parent=199 // pred_region
          %s9559 = smul.u32 2, %s151
          %9561 = vsyncadd [#allocation4], 0
          %s9562 = smul.addr %s9559, 2
          %s9563 = smul.addr %s9562, 8
          %s9564 = scalar_lea.hbm %s91, %s9563
          %s9565 = sshll.u32 [#allocation55], 4
          %s9566 = int_to_ptr.vmem [resolvable:$true] %s9565
          %s9567 = sshll.u32 %s9564, 4
          %s9568 = int_to_ptr.hbm [resolvable:$true] %s9567
          %9573 = dma.vmem_to_hbm [thread:$0]  %s9566, 512, %s9568, [#allocation4], 256, 256, 16
        $region344: #{tpu_custom_call.1} parent=199 // pred_fallthru
          _
        // Predicated region
        $region345: #{tpu_custom_call.1} parent=199 // pred_check
          %p9574 = pneg %p1327
        $region346: #{tpu_custom_call.1} parent=199 // pred_check_branch
          %9576 = sbr.rel (%p9574) target = $region348
        $region347: #{tpu_custom_call.1} parent=199 // pred_region
          %9578 = dma.done [#allocation4], 512
        $region348: #{tpu_custom_call.1} parent=199 // pred_fallthru
          _
      $region200: #{tpu_custom_call.1} parent=5 // pred_fallthru
        _
      %p9579 = scmp.le.s32.totalorder 2, %s142
      // Predicated region
      $region349: #{tpu_custom_call.1} parent=5 // pred_check
        %p9580 = pneg %p9579
      $region350: #{tpu_custom_call.1} parent=5 // pred_check_branch
        %9582 = sbr.rel (%p9580) target = $region352
      $region351: #{tpu_custom_call.1} parent=5 // pred_region
        %s9583 = ssub.s32 %s142, 2
      $region352: #{tpu_custom_call.1} parent=5 // pred_fallthru
        _
    $region6: #{tpu_custom_call.1} parent=1 // loop_footer
      %s146 = sadd.s32 1, %s142
    $region7: #{tpu_custom_call.1} parent=1 // loop_footer_branch
      %141 = sbr.rel target = $region3
    $region8: #{tpu_custom_call.1} parent=1 // loop_exit
      _
    %9584 = vsyncpa [#allocation3], 1
    %s9585 = scalar_lea.sflag [#allocation3], 1
    %9586 = vsyncpa %s9585, 1
    %9587 = vsyncpa [#allocation6], 1
    %9588 = vsyncpa [#allocation9], 1
    %9589 = vsyncpa [#allocation12], 1
    %9590 = vsyncpa [#allocation15], 1
    %s9591 = scalar_lea.sflag [#allocation15], 1
    %9592 = vsyncpa %s9591, 1
    %9593 = vsyncpa [#allocation18], 1
    %s9594 = scalar_lea.sflag [#allocation18], 1
    %9595 = vsyncpa %s9594, 1
    %9596 = vsyncpa [#allocation21], 1
    %s9597 = scalar_lea.sflag [#allocation21], 1
    %9598 = vsyncpa %s9597, 1
    %9599 = vsyncpa [#allocation24], 1
    %s9600 = scalar_lea.sflag [#allocation24], 1
    %9601 = vsyncpa %s9600, 1
    %9602 = vsyncpa [#allocation27], 1
    %s9603 = scalar_lea.sflag [#allocation27], 1
    %9604 = vsyncpa %s9603, 1
    %9605 = vsyncpa [#allocation30], 1
    %s9606 = scalar_lea.sflag [#allocation30], 1
    %9607 = vsyncpa %s9606, 1
    %9608 = vsyncpa [#allocation33], 1
    %s9609 = scalar_lea.sflag [#allocation33], 1
    %9610 = vsyncpa %s9609, 1
    %9611 = vsyncpa [#allocation36], 1
    %s9612 = scalar_lea.sflag [#allocation36], 1
    %9613 = vsyncpa %s9612, 1
    %9614 = vsyncpa [#allocation39], 1
    %s9615 = scalar_lea.sflag [#allocation39], 1
    %9616 = vsyncpa %s9615, 1
    %9617 = vsyncpa [#allocation42], 1
    %s9618 = scalar_lea.sflag [#allocation42], 1
    %9619 = vsyncpa %s9618, 1
    %9620 = vsyncpa [#allocation45], 1
    %s9621 = scalar_lea.sflag [#allocation45], 1
    %9622 = vsyncpa %s9621, 1
    %9623 = vsyncpa [#allocation48], 1
    %s9624 = scalar_lea.sflag [#allocation48], 1
    %9625 = vsyncpa %s9624, 1
    %9626 = vsyncpa [#allocation51], 1
    %s9627 = scalar_lea.sflag [#allocation51], 1
    %9628 = vsyncpa %s9627, 1
    %9629 = vsyncpa [#allocation54], 1
    %9630 = vsyncpa [#allocation4], 1
    %s9631 = scalar_lea.sflag [#allocation4], 1
    %9632 = vsyncpa %s9631, 1

</llo_original>
